<compile_context>
chip_gen: v5e
topology: v5e:2x2
jax: 0.10.0
libtpu: 0.0.40
codegen_flags: <defaults>
</compile_context>

<pallas_src>
import functools

import jax
import jax.numpy as jnp
from jax.experimental import pallas as pl
from jax.experimental.pallas import tpu as pltpu


def _choose_tm(M):
    """Pixel-tile (lane-axis) size.

    Small layers (M <= 1024) run as a single full block.  Larger layers use a
    multiple of 128 that divides M exactly (never any padding) and yields
    >= 4 grid blocks, so on v7x both TensorCores get work and each still
    double-buffers; on single-TC v5e/v6e the extra grid steps are ~0.35us
    each, which is negligible at these sizes."""
    if M <= 1024 or M % 128 != 0:
        return M
    target = min(1024, max(128, M // 4))
    best = 128
    t = 128
    while t <= target:
        if M % t == 0:
            best = t
        t += 128
    return best


# ----------------------------------------------------------------------------
# Pallas kernel: outT = relu((W_bf16 @ patchesT_bf16)_f32 * scale + shift)
# ----------------------------------------------------------------------------
def _fused_gemm_kernel(w_ref, x_ref, scale_ref, shift_ref, o_ref, *, relu):
    acc = jnp.dot(w_ref[...], x_ref[...], preferred_element_type=jnp.float32)
    y = acc * scale_ref[...] + shift_ref[...]
    if relu:
        y = jnp.maximum(y, 0.0)
    o_ref[...] = y.astype(o_ref.dtype)


def fused_gemm(w, x_t, scale, shift, relu=True, out_dtype=jnp.bfloat16):
    """Transposed, lane-dense fused conv GEMM.

    w:     (Cout, K) bf16 -- tiny, resident across all grid steps
    x_t:   (K, M)    bf16 -- patchesT; pixel dim M on the 128-lane axis
    scale: (Cout, 1) f32  -- BatchNorm scale, applied in the f32 epilogue
    shift: (Cout, 1) f32  -- BatchNorm shift
    out:   (Cout, M) out_dtype with lane-dense stores.
    """
    Co, K = w.shape
    K2, M = x_t.shape
    assert K == K2 and scale.shape == (Co, 1) and shift.shape == (Co, 1)
    tm = _choose_tm(M)

    cost = pl.CostEstimate(
        flops=2 * M * K * Co,
        transcendentals=0,
        bytes_accessed=(2 * (x_t.size + w.size)
                        + 4 * (scale.size + shift.size)
                        + M * Co * jnp.dtype(out_dtype).itemsize),
    )
    return pl.pallas_call(
        functools.partial(_fused_gemm_kernel, relu=relu),
        out_shape=jax.ShapeDtypeStruct((Co, M), out_dtype),
        grid_spec=pltpu.PrefetchScalarGridSpec(
            num_scalar_prefetch=0,
            grid=(M // tm,),
            in_specs=[
                pl.BlockSpec((Co, K), lambda i: (0, 0)),   # resident weight
                pl.BlockSpec((K, tm), lambda i: (0, i)),   # streamed patchesT
                pl.BlockSpec((Co, 1), lambda i: (0, 0)),
                pl.BlockSpec((Co, 1), lambda i: (0, 0)),
            ],
            out_specs=pl.BlockSpec((Co, tm), lambda i: (0, i)),
        ),
        compiler_params=pltpu.CompilerParams(
            dimension_semantics=("parallel",),
            vmem_limit_bytes=32 * 1024 * 1024,
        ),
        cost_estimate=cost,
    )(w, x_t, scale, shift)


# ----------------------------------------------------------------------------
# Conv glue (channel-first im2col = pad + strided slices + concat; no
# transposes needed because activations, patchesT and outputs all keep the
# pixel dim last).  The matmul itself always runs in the Pallas kernel.
# ----------------------------------------------------------------------------
def _im2col_t(x, kh, kw, stride, pad):
    """x (C, N, H, W) -> patchesT (kh*kw*C, N*Ho*Wo), tap-major / channel-minor."""
    C, N, H, W = x.shape
    xp = jnp.pad(x, ((0, 0), (0, 0), (pad, pad), (pad, pad)))
    Ho = (H + 2 * pad - kh) // stride + 1
    Wo = (W + 2 * pad - kw) // stride + 1
    taps = [xp[:, :, i:i + stride * Ho:stride, j:j + stride * Wo:stride]
            for i in range(kh) for j in range(kw)]
    xt = jnp.concatenate(taps, axis=0).reshape(kh * kw * C, N * Ho * Wo)
    return xt, (N, Ho, Wo)


def conv2d_cf(x, p, kh, kw, stride, pad, relu=True, out_dtype=jnp.bfloat16):
    xt, (N, Ho, Wo) = _im2col_t(x, kh, kw, stride, pad)
    y = fused_gemm(p['w'], xt, p['scale'], p['shift'], relu=relu, out_dtype=out_dtype)
    return y.reshape(-1, N, Ho, Wo)


def conv2d_skip_cf(x, skip, p, relu=True, out_dtype=jnp.bfloat16):
    """3x3 / stride-1 / pad-1 conv over concat([x, skip], channel) without
    materializing the concat: the skip's im2col taps are appended along the K
    axis and the weight was built in the matching [x-taps | skip-taps] order."""
    xt, (N, Ho, Wo) = _im2col_t(x, 3, 3, 1, 1)
    if skip is not None:
        st, _ = _im2col_t(skip, 3, 3, 1, 1)
        xt = jnp.concatenate([xt, st], axis=0)
    y = fused_gemm(p['w'], xt, p['scale'], p['shift'], relu=relu, out_dtype=out_dtype)
    return y.reshape(-1, N, Ho, Wo)


def conv_transpose2d_cf(x, p, relu=True):
    """ConvTranspose2d(kernel=4, stride=2, pad=1, bias=False) + BN + ReLU.

    Decomposed into its 4 output-parity 2x2 convolutions over the un-dilated
    input; all 4 phases come out of ONE GEMM whose (4*Cout, 9*Cin) weight was
    built at parameter time (zeros at the 5 unused taps of each phase).  The
    phase outputs are then interleaved to the (2H, 2W) grid (layout-only)."""
    C, N, H, W = x.shape
    xt, _ = _im2col_t(x, 3, 3, 1, 1)
    y = fused_gemm(p['w'], xt, p['scale'], p['shift'], relu=relu,
                   out_dtype=jnp.bfloat16)
    cout = p['w'].shape[0] // 4
    y = y.reshape(2, 2, cout, N, H, W)                 # (ry, rx, C, N, H, W)
    y = y.transpose(2, 3, 4, 0, 5, 1).reshape(cout, N, 2 * H, 2 * W)
    return y


# ----------------------------------------------------------------------------
# Deterministic parameter construction (bf16 weights, f32 BN scale/shift)
# ----------------------------------------------------------------------------
def _conv_weight(key, cout, cin, kh, kw):
    fan_in = cin * kh * kw
    return jax.random.normal(key, (cout, cin, kh, kw), jnp.float32) * jnp.sqrt(2.0 / fan_in)


def _conv_wt(w):
    """Torch (Cout, Cin, KH, KW) -> transposed-GEMM weight (Cout, KH*KW*Cin),
    K laid out tap-major / channel-minor to match _im2col_t."""
    return w.transpose(0, 2, 3, 1).reshape(w.shape[0], -1)


def _bn_params(key, c, eps=1e-5):
    k1, k2, k3, k4 = jax.random.split(key, 4)
    gamma = 1.0 + 0.1 * jax.random.normal(k1, (c,), jnp.float32)
    beta = 0.1 * jax.random.normal(k2, (c,), jnp.float32)
    mean = 0.1 * jax.random.normal(k3, (c,), jnp.float32)
    var = 1.0 + 0.1 * jnp.abs(jax.random.normal(k4, (c,), jnp.float32))
    s = gamma / jnp.sqrt(var + eps)
    b = beta - mean * s
    return s, b


def _convtranspose_phase_w(wt):
    """Torch ConvTranspose weight (Cin, Cout, 4, 4) -> (4*Cout, 9*Cin) phase-
    decomposed transposed-GEMM weight for k=4, s=2, p=1.  Output phase
    p = 2*ry + rx at coarse pixel (a, b) lands at (2a+ry, 2b+rx) and uses the
    pad-1 3x3 window taps (i, j) with i in {ry, ry+1}, j in {rx, rx+1} and
    kernel indices ky = 3 + ry - 2*i, kx = 3 + rx - 2*j; other taps are 0."""
    cin, cout = wt.shape[0], wt.shape[1]
    w = jnp.zeros((2, 2, cout, 3, 3, cin), jnp.float32)
    for ry in range(2):
        for rx in range(2):
            for i in range(ry, ry + 2):
                for j in range(rx, rx + 2):
                    ky = 3 + ry - 2 * i
                    kx = 3 + rx - 2 * j
                    w = w.at[ry, rx, :, i, j, :].set(wt[:, :, ky, kx].T)
    return w.reshape(4 * cout, 9 * cin)


def build_unet_params(key, n_channels=3,
                      backbone_chs=(8, 16, 16, 32, 32),
                      decoder_filters=(32, 32, 16, 16, 8)):
    keys = iter(jax.random.split(key, 64))
    params = {}

    # Encoder ("backbone"): conv1(s2)+bn+relu -> layer1..layer4, each 3x3(s2)+bn+relu
    chs = [n_channels] + list(backbone_chs)
    bb = []
    for li in range(5):
        w = _conv_weight(next(keys), chs[li + 1], chs[li], 3, 3)
        s, b = _bn_params(next(keys), chs[li + 1])
        bb.append(dict(w=_conv_wt(w).astype(jnp.bfloat16),
                       scale=s.reshape(-1, 1), shift=b.reshape(-1, 1)))
    params['backbone'] = bb

    # Unet._infer_skip_channels: [0, ch('relu'), ch('layer1'), ch('layer2'), ch('layer3')]
    shortcut_chs = [0, backbone_chs[0], backbone_chs[1], backbone_chs[2], backbone_chs[3]]
    bb_out = backbone_chs[4]

    dec_in = [bb_out] + list(decoder_filters[:-1])
    blocks = []
    num_blocks = 5
    for i, (cin, cout) in enumerate(zip(dec_in, decoder_filters)):
        skip_in = shortcut_chs[num_blocks - i - 1]
        # up: ConvTranspose2d(cin, cout, 4, stride=2, pad=1, bias=False) + BN + ReLU
        wt = jax.random.normal(next(keys), (cin, cout, 4, 4), jnp.float32) * jnp.sqrt(2.0 / (cin * 16))
        s1, b1 = _bn_params(next(keys), cout)
        up = dict(w=_convtranspose_phase_w(wt).astype(jnp.bfloat16),
                  scale=jnp.tile(s1, 4).reshape(-1, 1),
                  shift=jnp.tile(b1, 4).reshape(-1, 1))
        # conv2: Conv2d(cout + skip_in, cout, 3, pad=1, bias=False) + BN + ReLU
        w2 = _conv_weight(next(keys), cout, cout + skip_in, 3, 3)
        s2, b2 = _bn_params(next(keys), cout)
        w2x = _conv_wt(w2[:, :cout])
        if skip_in > 0:
            w2m = jnp.concatenate([w2x, _conv_wt(w2[:, cout:])], axis=1)  # [x | skip]
        else:
            w2m = w2x
        conv2 = dict(w=w2m.astype(jnp.bfloat16),
                     scale=s2.reshape(-1, 1), shift=b2.reshape(-1, 1))
        blocks.append(dict(up=up, conv2=conv2))
    params['decoder'] = blocks
    return params


# ----------------------------------------------------------------------------
# Unet forward (classes=-1, parametric_upsampling=True, decoder_use_batchnorm=True)
# ----------------------------------------------------------------------------
def unet_forward(params, x_nchw):
    # channel-first activations (C, N, H, W); bf16 between layers
    x = jnp.transpose(x_nchw, (1, 0, 2, 3)).astype(jnp.bfloat16)
    bb = params['backbone']
    feats = {}

    # conv1 + bn1 + relu  -> 'relu' skip feature
    x = conv2d_cf(x, bb[0], 3, 3, 2, 1, relu=True)
    feats['relu'] = x
    for li, name in enumerate(['layer1', 'layer2', 'layer3', 'layer4'], start=1):
        x = conv2d_cf(x, bb[li], 3, 3, 2, 1, relu=True)
        if name != 'layer4':
            feats[name] = x

    # decoder: shortcut_features reversed = ['layer3','layer2','layer1','relu', None]
    skip_names = ['layer3', 'layer2', 'layer1', 'relu', None]
    for idx, (name, blk) in enumerate(zip(skip_names, params['decoder'])):
        skip = feats[name] if name is not None else None
        # parametric UpsampleBlock: x = relu(bn1(up(x))); cat skip; x = relu(bn2(conv2(x)))
        x = conv_transpose2d_cf(x, blk['up'], relu=True)
        last = idx == len(skip_names) - 1
        x = conv2d_skip_cf(x, skip, blk['conv2'], relu=True,
                           out_dtype=jnp.float32 if last else jnp.bfloat16)

    # classes = -1 -> no final 1x1 conv; return decoder feature map as NCHW
    return jnp.transpose(x, (1, 0, 2, 3))


if __name__ == "__main__":
    key = jax.random.PRNGKey(0)
    kp, kx = jax.random.split(key)

    params = build_unet_params(kp, n_channels=3)
    # NCHW input, matching the PyTorch module
    x = jax.random.normal(kx, (2, 3, 64, 64), jnp.float32)

    fwd = jax.jit(unet_forward)
    out = jax.block_until_ready(fwd(params, x))

    assert out.shape == (2, 8, 64, 64), out.shape   # decoder_filters[-1] channels, full res
    assert out.dtype == jnp.float32
    assert bool(jnp.all(jnp.isfinite(out)))
    print("KERNEL_OK")
</pallas_src>

<mosaic_0001>
module attributes {stable_mosaic.version = 11 : i64} {
  func.func @_fused_gemm_kernel(%arg0: i32, %arg1: memref<8x27xbf16, #tpu.memory_space<vmem>>, %arg2: memref<27x512xbf16, #tpu.memory_space<vmem>>, %arg3: memref<8x1xf32, #tpu.memory_space<vmem>>, %arg4: memref<8x1xf32, #tpu.memory_space<vmem>>, %arg5: memref<8x512xbf16, #tpu.memory_space<vmem>>) attributes {dimension_semantics = [#tpu.dimension_semantics<parallel>], iteration_bounds = array<i64: 4>, scalar_prefetch = 0 : i64, scratch_operands = 0 : i64, tpu.core_type = #tpu.core_type<tc>, window_params = [{pipeline_mode = #tpu.pipeline_mode<synchronous>, transform_indices = @transform_0, window_bounds = array<i64: 8, 27>}, {transform_indices = @transform_1, window_bounds = array<i64: 27, 512>}, {pipeline_mode = #tpu.pipeline_mode<synchronous>, transform_indices = @transform_2, window_bounds = array<i64: 8, 1>}, {pipeline_mode = #tpu.pipeline_mode<synchronous>, transform_indices = @transform_3, window_bounds = array<i64: 8, 1>}, {transform_indices = @transform_4, window_bounds = array<i64: 8, 512>}]} {
    %c0 = arith.constant 0 : index
    %c0_0 = arith.constant 0 : index
    %0 = vector.load %arg1[%c0, %c0_0] : memref<8x27xbf16, #tpu.memory_space<vmem>>, vector<8x27xbf16>
    %c0_1 = arith.constant 0 : index
    %c0_2 = arith.constant 0 : index
    %1 = vector.load %arg2[%c0_1, %c0_2] : memref<27x512xbf16, #tpu.memory_space<vmem>>, vector<27x512xbf16>
    %cst = arith.constant dense<0.000000e+00> : vector<8x512xf32>
    %2 = tpu.matmul %0, %1, %cst {dimension_numbers = #tpu.dot_dimension_numbers<[1], [0], [0], [1], [0, 0, 1, 1], [], []>} : vector<8x27xbf16>, vector<27x512xbf16>, vector<8x512xf32> -> vector<8x512xf32>
    %c0_3 = arith.constant 0 : index
    %c0_4 = arith.constant 0 : index
    %3 = vector.load %arg3[%c0_3, %c0_4] : memref<8x1xf32, #tpu.memory_space<vmem>>, vector<8x1xf32>
    %4 = vector.broadcast %3 : vector<8x1xf32> to vector<8x512xf32>
    %5 = arith.mulf %2, %4 : vector<8x512xf32>
    %c0_5 = arith.constant 0 : index
    %c0_6 = arith.constant 0 : index
    %6 = vector.load %arg4[%c0_5, %c0_6] : memref<8x1xf32, #tpu.memory_space<vmem>>, vector<8x1xf32>
    %7 = vector.broadcast %6 : vector<8x1xf32> to vector<8x512xf32>
    %8 = arith.addf %5, %7 : vector<8x512xf32>
    %cst_7 = arith.constant 0.000000e+00 : f32
    %9 = vector.broadcast %cst_7 : f32 to vector<8x512xf32>
    %10 = arith.maximumf %8, %9 : vector<8x512xf32>
    %11 = arith.truncf %10 : vector<8x512xf32> to vector<8x512xbf16>
    %c0_8 = arith.constant 0 : index
    %c0_9 = arith.constant 0 : index
    %12 = vector.load %arg5[%c0_8, %c0_9] : memref<8x512xbf16, #tpu.memory_space<vmem>>, vector<8x512xbf16>
    tpu.vector_store %arg5[%c0_8, %c0_9], %11 {strides = array<i32>} : memref<8x512xbf16, #tpu.memory_space<vmem>>, vector<8x512xbf16>,
    return
  }
  func.func @transform_0(%arg0: i32) -> (i32, i32) {
    %c0_i32 = arith.constant 0 : i32
    %c0_i32_0 = arith.constant 0 : i32
    %c0_i32_1 = arith.constant 0 : i32
    return %c0_i32, %c0_i32_0 : i32, i32
  }
  func.func @transform_1(%arg0: i32) -> (i32, i32) {
    %c0_i32 = arith.constant 0 : i32
    %c0_i32_0 = arith.constant 0 : i32
    return %c0_i32, %arg0 : i32, i32
  }
  func.func @transform_2(%arg0: i32) -> (i32, i32) {
    %c0_i32 = arith.constant 0 : i32
    %c0_i32_0 = arith.constant 0 : i32
    %c0_i32_1 = arith.constant 0 : i32
    return %c0_i32, %c0_i32_0 : i32, i32
  }
  func.func @transform_3(%arg0: i32) -> (i32, i32) {
    %c0_i32 = arith.constant 0 : i32
    %c0_i32_0 = arith.constant 0 : i32
    %c0_i32_1 = arith.constant 0 : i32
    return %c0_i32, %c0_i32_0 : i32, i32
  }
  func.func @transform_4(%arg0: i32) -> (i32, i32) {
    %c0_i32 = arith.constant 0 : i32
    %c0_i32_0 = arith.constant 0 : i32
    return %c0_i32, %arg0 : i32, i32
  }
}

module attributes {stable_mosaic.version = 11 : i64} {
  func.func @_fused_gemm_kernel(%arg0: i32, %arg1: memref<16x72xbf16, #tpu.memory_space<vmem>>, %arg2: memref<72x512xbf16, #tpu.memory_space<vmem>>, %arg3: memref<16x1xf32, #tpu.memory_space<vmem>>, %arg4: memref<16x1xf32, #tpu.memory_space<vmem>>, %arg5: memref<16x512xbf16, #tpu.memory_space<vmem>>) attributes {dimension_semantics = [#tpu.dimension_semantics<parallel>], iteration_bounds = array<i64: 1>, scalar_prefetch = 0 : i64, scratch_operands = 0 : i64, tpu.core_type = #tpu.core_type<tc>, window_params = [{pipeline_mode = #tpu.pipeline_mode<synchronous>, transform_indices = @transform_0, window_bounds = array<i64: 16, 72>}, {transform_indices = @transform_1, window_bounds = array<i64: 72, 512>}, {pipeline_mode = #tpu.pipeline_mode<synchronous>, transform_indices = @transform_2, window_bounds = array<i64: 16, 1>}, {pipeline_mode = #tpu.pipeline_mode<synchronous>, transform_indices = @transform_3, window_bounds = array<i64: 16, 1>}, {transform_indices = @transform_4, window_bounds = array<i64: 16, 512>}]} {
    %c0 = arith.constant 0 : index
    %c0_0 = arith.constant 0 : index
    %0 = vector.load %arg1[%c0, %c0_0] : memref<16x72xbf16, #tpu.memory_space<vmem>>, vector<16x72xbf16>
    %c0_1 = arith.constant 0 : index
    %c0_2 = arith.constant 0 : index
    %1 = vector.load %arg2[%c0_1, %c0_2] : memref<72x512xbf16, #tpu.memory_space<vmem>>, vector<72x512xbf16>
    %cst = arith.constant dense<0.000000e+00> : vector<16x512xf32>
    %2 = tpu.matmul %0, %1, %cst {dimension_numbers = #tpu.dot_dimension_numbers<[1], [0], [0], [1], [0, 0, 1, 1], [], []>} : vector<16x72xbf16>, vector<72x512xbf16>, vector<16x512xf32> -> vector<16x512xf32>
    %c0_3 = arith.constant 0 : index
    %c0_4 = arith.constant 0 : index
    %3 = vector.load %arg3[%c0_3, %c0_4] : memref<16x1xf32, #tpu.memory_space<vmem>>, vector<16x1xf32>
    %4 = vector.broadcast %3 : vector<16x1xf32> to vector<16x512xf32>
    %5 = arith.mulf %2, %4 : vector<16x512xf32>
    %c0_5 = arith.constant 0 : index
    %c0_6 = arith.constant 0 : index
    %6 = vector.load %arg4[%c0_5, %c0_6] : memref<16x1xf32, #tpu.memory_space<vmem>>, vector<16x1xf32>
    %7 = vector.broadcast %6 : vector<16x1xf32> to vector<16x512xf32>
    %8 = arith.addf %5, %7 : vector<16x512xf32>
    %cst_7 = arith.constant 0.000000e+00 : f32
    %9 = vector.broadcast %cst_7 : f32 to vector<16x512xf32>
    %10 = arith.maximumf %8, %9 : vector<16x512xf32>
    %11 = arith.truncf %10 : vector<16x512xf32> to vector<16x512xbf16>
    %c0_8 = arith.constant 0 : index
    %c0_9 = arith.constant 0 : index
    %12 = vector.load %arg5[%c0_8, %c0_9] : memref<16x512xbf16, #tpu.memory_space<vmem>>, vector<16x512xbf16>
    tpu.vector_store %arg5[%c0_8, %c0_9], %11 {strides = array<i32>} : memref<16x512xbf16, #tpu.memory_space<vmem>>, vector<16x512xbf16>,
    return
  }
  func.func @transform_0(%arg0: i32) -> (i32, i32) {
    %c0_i32 = arith.constant 0 : i32
    %c0_i32_0 = arith.constant 0 : i32
    %c0_i32_1 = arith.constant 0 : i32
    return %c0_i32, %c0_i32_0 : i32, i32
  }
  func.func @transform_1(%arg0: i32) -> (i32, i32) {
    %c0_i32 = arith.constant 0 : i32
    %c0_i32_0 = arith.constant 0 : i32
    return %c0_i32, %arg0 : i32, i32
  }
  func.func @transform_2(%arg0: i32) -> (i32, i32) {
    %c0_i32 = arith.constant 0 : i32
    %c0_i32_0 = arith.constant 0 : i32
    %c0_i32_1 = arith.constant 0 : i32
    return %c0_i32, %c0_i32_0 : i32, i32
  }
  func.func @transform_3(%arg0: i32) -> (i32, i32) {
    %c0_i32 = arith.constant 0 : i32
    %c0_i32_0 = arith.constant 0 : i32
    %c0_i32_1 = arith.constant 0 : i32
    return %c0_i32, %c0_i32_0 : i32, i32
  }
  func.func @transform_4(%arg0: i32) -> (i32, i32) {
    %c0_i32 = arith.constant 0 : i32
    %c0_i32_0 = arith.constant 0 : i32
    return %c0_i32, %arg0 : i32, i32
  }
}

module attributes {stable_mosaic.version = 11 : i64} {
  func.func @_fused_gemm_kernel(%arg0: i32, %arg1: memref<16x144xbf16, #tpu.memory_space<vmem>>, %arg2: memref<144x128xbf16, #tpu.memory_space<vmem>>, %arg3: memref<16x1xf32, #tpu.memory_space<vmem>>, %arg4: memref<16x1xf32, #tpu.memory_space<vmem>>, %arg5: memref<16x128xbf16, #tpu.memory_space<vmem>>) attributes {dimension_semantics = [#tpu.dimension_semantics<parallel>], iteration_bounds = array<i64: 1>, scalar_prefetch = 0 : i64, scratch_operands = 0 : i64, tpu.core_type = #tpu.core_type<tc>, window_params = [{pipeline_mode = #tpu.pipeline_mode<synchronous>, transform_indices = @transform_0, window_bounds = array<i64: 16, 144>}, {transform_indices = @transform_1, window_bounds = array<i64: 144, 128>}, {pipeline_mode = #tpu.pipeline_mode<synchronous>, transform_indices = @transform_2, window_bounds = array<i64: 16, 1>}, {pipeline_mode = #tpu.pipeline_mode<synchronous>, transform_indices = @transform_3, window_bounds = array<i64: 16, 1>}, {transform_indices = @transform_4, window_bounds = array<i64: 16, 128>}]} {
    %c0 = arith.constant 0 : index
    %c0_0 = arith.constant 0 : index
    %0 = vector.load %arg1[%c0, %c0_0] : memref<16x144xbf16, #tpu.memory_space<vmem>>, vector<16x144xbf16>
    %c0_1 = arith.constant 0 : index
    %c0_2 = arith.constant 0 : index
    %1 = vector.load %arg2[%c0_1, %c0_2] : memref<144x128xbf16, #tpu.memory_space<vmem>>, vector<144x128xbf16>
    %cst = arith.constant dense<0.000000e+00> : vector<16x128xf32>
    %2 = tpu.matmul %0, %1, %cst {dimension_numbers = #tpu.dot_dimension_numbers<[1], [0], [0], [1], [0, 0, 1, 1], [], []>} : vector<16x144xbf16>, vector<144x128xbf16>, vector<16x128xf32> -> vector<16x128xf32>
    %c0_3 = arith.constant 0 : index
    %c0_4 = arith.constant 0 : index
    %3 = vector.load %arg3[%c0_3, %c0_4] : memref<16x1xf32, #tpu.memory_space<vmem>>, vector<16x1xf32>
    %4 = vector.broadcast %3 : vector<16x1xf32> to vector<16x128xf32>
    %5 = arith.mulf %2, %4 : vector<16x128xf32>
    %c0_5 = arith.constant 0 : index
    %c0_6 = arith.constant 0 : index
    %6 = vector.load %arg4[%c0_5, %c0_6] : memref<16x1xf32, #tpu.memory_space<vmem>>, vector<16x1xf32>
    %7 = vector.broadcast %6 : vector<16x1xf32> to vector<16x128xf32>
    %8 = arith.addf %5, %7 : vector<16x128xf32>
    %cst_7 = arith.constant 0.000000e+00 : f32
    %9 = vector.broadcast %cst_7 : f32 to vector<16x128xf32>
    %10 = arith.maximumf %8, %9 : vector<16x128xf32>
    %11 = arith.truncf %10 : vector<16x128xf32> to vector<16x128xbf16>
    %c0_8 = arith.constant 0 : index
    %c0_9 = arith.constant 0 : index
    %12 = vector.load %arg5[%c0_8, %c0_9] : memref<16x128xbf16, #tpu.memory_space<vmem>>, vector<16x128xbf16>
    tpu.vector_store %arg5[%c0_8, %c0_9], %11 {strides = array<i32>} : memref<16x128xbf16, #tpu.memory_space<vmem>>, vector<16x128xbf16>,
    return
  }
  func.func @transform_0(%arg0: i32) -> (i32, i32) {
    %c0_i32 = arith.constant 0 : i32
    %c0_i32_0 = arith.constant 0 : i32
    %c0_i32_1 = arith.constant 0 : i32
    return %c0_i32, %c0_i32_0 : i32, i32
  }
  func.func @transform_1(%arg0: i32) -> (i32, i32) {
    %c0_i32 = arith.constant 0 : i32
    %c0_i32_0 = arith.constant 0 : i32
    return %c0_i32, %arg0 : i32, i32
  }
  func.func @transform_2(%arg0: i32) -> (i32, i32) {
    %c0_i32 = arith.constant 0 : i32
    %c0_i32_0 = arith.constant 0 : i32
    %c0_i32_1 = arith.constant 0 : i32
    return %c0_i32, %c0_i32_0 : i32, i32
  }
  func.func @transform_3(%arg0: i32) -> (i32, i32) {
    %c0_i32 = arith.constant 0 : i32
    %c0_i32_0 = arith.constant 0 : i32
    %c0_i32_1 = arith.constant 0 : i32
    return %c0_i32, %c0_i32_0 : i32, i32
  }
  func.func @transform_4(%arg0: i32) -> (i32, i32) {
    %c0_i32 = arith.constant 0 : i32
    %c0_i32_0 = arith.constant 0 : i32
    return %c0_i32, %arg0 : i32, i32
  }
}

module attributes {stable_mosaic.version = 11 : i64} {
  func.func @_fused_gemm_kernel(%arg0: i32, %arg1: memref<32x144xbf16, #tpu.memory_space<vmem>>, %arg2: memref<144x32xbf16, #tpu.memory_space<vmem>>, %arg3: memref<32x1xf32, #tpu.memory_space<vmem>>, %arg4: memref<32x1xf32, #tpu.memory_space<vmem>>, %arg5: memref<32x32xbf16, #tpu.memory_space<vmem>>) attributes {dimension_semantics = [#tpu.dimension_semantics<parallel>], iteration_bounds = array<i64: 1>, scalar_prefetch = 0 : i64, scratch_operands = 0 : i64, tpu.core_type = #tpu.core_type<tc>, window_params = [{pipeline_mode = #tpu.pipeline_mode<synchronous>, transform_indices = @transform_0, window_bounds = array<i64: 32, 144>}, {transform_indices = @transform_1, window_bounds = array<i64: 144, 32>}, {pipeline_mode = #tpu.pipeline_mode<synchronous>, transform_indices = @transform_2, window_bounds = array<i64: 32, 1>}, {pipeline_mode = #tpu.pipeline_mode<synchronous>, transform_indices = @transform_3, window_bounds = array<i64: 32, 1>}, {transform_indices = @transform_4, window_bounds = array<i64: 32, 32>}]} {
    %c0 = arith.constant 0 : index
    %c0_0 = arith.constant 0 : index
    %0 = vector.load %arg1[%c0, %c0_0] : memref<32x144xbf16, #tpu.memory_space<vmem>>, vector<32x144xbf16>
    %c0_1 = arith.constant 0 : index
    %c0_2 = arith.constant 0 : index
    %1 = vector.load %arg2[%c0_1, %c0_2] : memref<144x32xbf16, #tpu.memory_space<vmem>>, vector<144x32xbf16>
    %cst = arith.constant dense<0.000000e+00> : vector<32x32xf32>
    %2 = tpu.matmul %0, %1, %cst {dimension_numbers = #tpu.dot_dimension_numbers<[1], [0], [0], [1], [0, 0, 1, 1], [], []>} : vector<32x144xbf16>, vector<144x32xbf16>, vector<32x32xf32> -> vector<32x32xf32>
    %c0_3 = arith.constant 0 : index
    %c0_4 = arith.constant 0 : index
    %3 = vector.load %arg3[%c0_3, %c0_4] : memref<32x1xf32, #tpu.memory_space<vmem>>, vector<32x1xf32>
    %4 = vector.broadcast %3 : vector<32x1xf32> to vector<32x32xf32>
    %5 = arith.mulf %2, %4 : vector<32x32xf32>
    %c0_5 = arith.constant 0 : index
    %c0_6 = arith.constant 0 : index
    %6 = vector.load %arg4[%c0_5, %c0_6] : memref<32x1xf32, #tpu.memory_space<vmem>>, vector<32x1xf32>
    %7 = vector.broadcast %6 : vector<32x1xf32> to vector<32x32xf32>
    %8 = arith.addf %5, %7 : vector<32x32xf32>
    %cst_7 = arith.constant 0.000000e+00 : f32
    %9 = vector.broadcast %cst_7 : f32 to vector<32x32xf32>
    %10 = arith.maximumf %8, %9 : vector<32x32xf32>
    %11 = arith.truncf %10 : vector<32x32xf32> to vector<32x32xbf16>
    %c0_8 = arith.constant 0 : index
    %c0_9 = arith.constant 0 : index
    %12 = vector.load %arg5[%c0_8, %c0_9] : memref<32x32xbf16, #tpu.memory_space<vmem>>, vector<32x32xbf16>
    tpu.vector_store %arg5[%c0_8, %c0_9], %11 {strides = array<i32>} : memref<32x32xbf16, #tpu.memory_space<vmem>>, vector<32x32xbf16>,
    return
  }
  func.func @transform_0(%arg0: i32) -> (i32, i32) {
    %c0_i32 = arith.constant 0 : i32
    %c0_i32_0 = arith.constant 0 : i32
    %c0_i32_1 = arith.constant 0 : i32
    return %c0_i32, %c0_i32_0 : i32, i32
  }
  func.func @transform_1(%arg0: i32) -> (i32, i32) {
    %c0_i32 = arith.constant 0 : i32
    %c0_i32_0 = arith.constant 0 : i32
    return %c0_i32, %arg0 : i32, i32
  }
  func.func @transform_2(%arg0: i32) -> (i32, i32) {
    %c0_i32 = arith.constant 0 : i32
    %c0_i32_0 = arith.constant 0 : i32
    %c0_i32_1 = arith.constant 0 : i32
    return %c0_i32, %c0_i32_0 : i32, i32
  }
  func.func @transform_3(%arg0: i32) -> (i32, i32) {
    %c0_i32 = arith.constant 0 : i32
    %c0_i32_0 = arith.constant 0 : i32
    %c0_i32_1 = arith.constant 0 : i32
    return %c0_i32, %c0_i32_0 : i32, i32
  }
  func.func @transform_4(%arg0: i32) -> (i32, i32) {
    %c0_i32 = arith.constant 0 : i32
    %c0_i32_0 = arith.constant 0 : i32
    return %c0_i32, %arg0 : i32, i32
  }
}

module attributes {stable_mosaic.version = 11 : i64} {
  func.func @_fused_gemm_kernel(%arg0: i32, %arg1: memref<32x288xbf16, #tpu.memory_space<vmem>>, %arg2: memref<288x8xbf16, #tpu.memory_space<vmem>>, %arg3: memref<32x1xf32, #tpu.memory_space<vmem>>, %arg4: memref<32x1xf32, #tpu.memory_space<vmem>>, %arg5: memref<32x8xbf16, #tpu.memory_space<vmem>>) attributes {dimension_semantics = [#tpu.dimension_semantics<parallel>], iteration_bounds = array<i64: 1>, scalar_prefetch = 0 : i64, scratch_operands = 0 : i64, tpu.core_type = #tpu.core_type<tc>, window_params = [{pipeline_mode = #tpu.pipeline_mode<synchronous>, transform_indices = @transform_0, window_bounds = array<i64: 32, 288>}, {transform_indices = @transform_1, window_bounds = array<i64: 288, 8>}, {pipeline_mode = #tpu.pipeline_mode<synchronous>, transform_indices = @transform_2, window_bounds = array<i64: 32, 1>}, {pipeline_mode = #tpu.pipeline_mode<synchronous>, transform_indices = @transform_3, window_bounds = array<i64: 32, 1>}, {transform_indices = @transform_4, window_bounds = array<i64: 32, 8>}]} {
    %c0 = arith.constant 0 : index
    %c0_0 = arith.constant 0 : index
    %0 = vector.load %arg1[%c0, %c0_0] : memref<32x288xbf16, #tpu.memory_space<vmem>>, vector<32x288xbf16>
    %c0_1 = arith.constant 0 : index
    %c0_2 = arith.constant 0 : index
    %1 = vector.load %arg2[%c0_1, %c0_2] : memref<288x8xbf16, #tpu.memory_space<vmem>>, vector<288x8xbf16>
    %cst = arith.constant dense<0.000000e+00> : vector<32x8xf32>
    %2 = tpu.matmul %0, %1, %cst {dimension_numbers = #tpu.dot_dimension_numbers<[1], [0], [0], [1], [0, 0, 1, 1], [], []>} : vector<32x288xbf16>, vector<288x8xbf16>, vector<32x8xf32> -> vector<32x8xf32>
    %c0_3 = arith.constant 0 : index
    %c0_4 = arith.constant 0 : index
    %3 = vector.load %arg3[%c0_3, %c0_4] : memref<32x1xf32, #tpu.memory_space<vmem>>, vector<32x1xf32>
    %4 = vector.broadcast %3 : vector<32x1xf32> to vector<32x8xf32>
    %5 = arith.mulf %2, %4 : vector<32x8xf32>
    %c0_5 = arith.constant 0 : index
    %c0_6 = arith.constant 0 : index
    %6 = vector.load %arg4[%c0_5, %c0_6] : memref<32x1xf32, #tpu.memory_space<vmem>>, vector<32x1xf32>
    %7 = vector.broadcast %6 : vector<32x1xf32> to vector<32x8xf32>
    %8 = arith.addf %5, %7 : vector<32x8xf32>
    %cst_7 = arith.constant 0.000000e+00 : f32
    %9 = vector.broadcast %cst_7 : f32 to vector<32x8xf32>
    %10 = arith.maximumf %8, %9 : vector<32x8xf32>
    %11 = arith.truncf %10 : vector<32x8xf32> to vector<32x8xbf16>
    %c0_8 = arith.constant 0 : index
    %c0_9 = arith.constant 0 : index
    %12 = vector.load %arg5[%c0_8, %c0_9] : memref<32x8xbf16, #tpu.memory_space<vmem>>, vector<32x8xbf16>
    tpu.vector_store %arg5[%c0_8, %c0_9], %11 {strides = array<i32>} : memref<32x8xbf16, #tpu.memory_space<vmem>>, vector<32x8xbf16>,
    return
  }
  func.func @transform_0(%arg0: i32) -> (i32, i32) {
    %c0_i32 = arith.constant 0 : i32
    %c0_i32_0 = arith.constant 0 : i32
    %c0_i32_1 = arith.constant 0 : i32
    return %c0_i32, %c0_i32_0 : i32, i32
  }
  func.func @transform_1(%arg0: i32) -> (i32, i32) {
    %c0_i32 = arith.constant 0 : i32
    %c0_i32_0 = arith.constant 0 : i32
    return %c0_i32, %arg0 : i32, i32
  }
  func.func @transform_2(%arg0: i32) -> (i32, i32) {
    %c0_i32 = arith.constant 0 : i32
    %c0_i32_0 = arith.constant 0 : i32
    %c0_i32_1 = arith.constant 0 : i32
    return %c0_i32, %c0_i32_0 : i32, i32
  }
  func.func @transform_3(%arg0: i32) -> (i32, i32) {
    %c0_i32 = arith.constant 0 : i32
    %c0_i32_0 = arith.constant 0 : i32
    %c0_i32_1 = arith.constant 0 : i32
    return %c0_i32, %c0_i32_0 : i32, i32
  }
  func.func @transform_4(%arg0: i32) -> (i32, i32) {
    %c0_i32 = arith.constant 0 : i32
    %c0_i32_0 = arith.constant 0 : i32
    return %c0_i32, %arg0 : i32, i32
  }
}

module attributes {stable_mosaic.version = 11 : i64} {
  func.func @_fused_gemm_kernel(%arg0: i32, %arg1: memref<128x288xbf16, #tpu.memory_space<vmem>>, %arg2: memref<288x8xbf16, #tpu.memory_space<vmem>>, %arg3: memref<128x1xf32, #tpu.memory_space<vmem>>, %arg4: memref<128x1xf32, #tpu.memory_space<vmem>>, %arg5: memref<128x8xbf16, #tpu.memory_space<vmem>>) attributes {dimension_semantics = [#tpu.dimension_semantics<parallel>], iteration_bounds = array<i64: 1>, scalar_prefetch = 0 : i64, scratch_operands = 0 : i64, tpu.core_type = #tpu.core_type<tc>, window_params = [{pipeline_mode = #tpu.pipeline_mode<synchronous>, transform_indices = @transform_0, window_bounds = array<i64: 128, 288>}, {transform_indices = @transform_1, window_bounds = array<i64: 288, 8>}, {pipeline_mode = #tpu.pipeline_mode<synchronous>, transform_indices = @transform_2, window_bounds = array<i64: 128, 1>}, {pipeline_mode = #tpu.pipeline_mode<synchronous>, transform_indices = @transform_3, window_bounds = array<i64: 128, 1>}, {transform_indices = @transform_4, window_bounds = array<i64: 128, 8>}]} {
    %c0 = arith.constant 0 : index
    %c0_0 = arith.constant 0 : index
    %0 = vector.load %arg1[%c0, %c0_0] : memref<128x288xbf16, #tpu.memory_space<vmem>>, vector<128x288xbf16>
    %c0_1 = arith.constant 0 : index
    %c0_2 = arith.constant 0 : index
    %1 = vector.load %arg2[%c0_1, %c0_2] : memref<288x8xbf16, #tpu.memory_space<vmem>>, vector<288x8xbf16>
    %cst = arith.constant dense<0.000000e+00> : vector<128x8xf32>
    %2 = tpu.matmul %0, %1, %cst {dimension_numbers = #tpu.dot_dimension_numbers<[1], [0], [0], [1], [0, 0, 1, 1], [], []>} : vector<128x288xbf16>, vector<288x8xbf16>, vector<128x8xf32> -> vector<128x8xf32>
    %c0_3 = arith.constant 0 : index
    %c0_4 = arith.constant 0 : index
    %3 = vector.load %arg3[%c0_3, %c0_4] : memref<128x1xf32, #tpu.memory_space<vmem>>, vector<128x1xf32>
    %4 = vector.broadcast %3 : vector<128x1xf32> to vector<128x8xf32>
    %5 = arith.mulf %2, %4 : vector<128x8xf32>
    %c0_5 = arith.constant 0 : index
    %c0_6 = arith.constant 0 : index
    %6 = vector.load %arg4[%c0_5, %c0_6] : memref<128x1xf32, #tpu.memory_space<vmem>>, vector<128x1xf32>
    %7 = vector.broadcast %6 : vector<128x1xf32> to vector<128x8xf32>
    %8 = arith.addf %5, %7 : vector<128x8xf32>
    %cst_7 = arith.constant 0.000000e+00 : f32
    %9 = vector.broadcast %cst_7 : f32 to vector<128x8xf32>
    %10 = arith.maximumf %8, %9 : vector<128x8xf32>
    %11 = arith.truncf %10 : vector<128x8xf32> to vector<128x8xbf16>
    %c0_8 = arith.constant 0 : index
    %c0_9 = arith.constant 0 : index
    %12 = vector.load %arg5[%c0_8, %c0_9] : memref<128x8xbf16, #tpu.memory_space<vmem>>, vector<128x8xbf16>
    tpu.vector_store %arg5[%c0_8, %c0_9], %11 {strides = array<i32>} : memref<128x8xbf16, #tpu.memory_space<vmem>>, vector<128x8xbf16>,
    return
  }
  func.func @transform_0(%arg0: i32) -> (i32, i32) {
    %c0_i32 = arith.constant 0 : i32
    %c0_i32_0 = arith.constant 0 : i32
    %c0_i32_1 = arith.constant 0 : i32
    return %c0_i32, %c0_i32_0 : i32, i32
  }
  func.func @transform_1(%arg0: i32) -> (i32, i32) {
    %c0_i32 = arith.constant 0 : i32
    %c0_i32_0 = arith.constant 0 : i32
    return %c0_i32, %arg0 : i32, i32
  }
  func.func @transform_2(%arg0: i32) -> (i32, i32) {
    %c0_i32 = arith.constant 0 : i32
    %c0_i32_0 = arith.constant 0 : i32
    %c0_i32_1 = arith.constant 0 : i32
    return %c0_i32, %c0_i32_0 : i32, i32
  }
  func.func @transform_3(%arg0: i32) -> (i32, i32) {
    %c0_i32 = arith.constant 0 : i32
    %c0_i32_0 = arith.constant 0 : i32
    %c0_i32_1 = arith.constant 0 : i32
    return %c0_i32, %c0_i32_0 : i32, i32
  }
  func.func @transform_4(%arg0: i32) -> (i32, i32) {
    %c0_i32 = arith.constant 0 : i32
    %c0_i32_0 = arith.constant 0 : i32
    return %c0_i32, %arg0 : i32, i32
  }
}

module attributes {stable_mosaic.version = 11 : i64} {
  func.func @_fused_gemm_kernel(%arg0: i32, %arg1: memref<32x576xbf16, #tpu.memory_space<vmem>>, %arg2: memref<576x32xbf16, #tpu.memory_space<vmem>>, %arg3: memref<32x1xf32, #tpu.memory_space<vmem>>, %arg4: memref<32x1xf32, #tpu.memory_space<vmem>>, %arg5: memref<32x32xbf16, #tpu.memory_space<vmem>>) attributes {dimension_semantics = [#tpu.dimension_semantics<parallel>], iteration_bounds = array<i64: 1>, scalar_prefetch = 0 : i64, scratch_operands = 0 : i64, tpu.core_type = #tpu.core_type<tc>, window_params = [{pipeline_mode = #tpu.pipeline_mode<synchronous>, transform_indices = @transform_0, window_bounds = array<i64: 32, 576>}, {transform_indices = @transform_1, window_bounds = array<i64: 576, 32>}, {pipeline_mode = #tpu.pipeline_mode<synchronous>, transform_indices = @transform_2, window_bounds = array<i64: 32, 1>}, {pipeline_mode = #tpu.pipeline_mode<synchronous>, transform_indices = @transform_3, window_bounds = array<i64: 32, 1>}, {transform_indices = @transform_4, window_bounds = array<i64: 32, 32>}]} {
    %c0 = arith.constant 0 : index
    %c0_0 = arith.constant 0 : index
    %0 = vector.load %arg1[%c0, %c0_0] : memref<32x576xbf16, #tpu.memory_space<vmem>>, vector<32x576xbf16>
    %c0_1 = arith.constant 0 : index
    %c0_2 = arith.constant 0 : index
    %1 = vector.load %arg2[%c0_1, %c0_2] : memref<576x32xbf16, #tpu.memory_space<vmem>>, vector<576x32xbf16>
    %cst = arith.constant dense<0.000000e+00> : vector<32x32xf32>
    %2 = tpu.matmul %0, %1, %cst {dimension_numbers = #tpu.dot_dimension_numbers<[1], [0], [0], [1], [0, 0, 1, 1], [], []>} : vector<32x576xbf16>, vector<576x32xbf16>, vector<32x32xf32> -> vector<32x32xf32>
    %c0_3 = arith.constant 0 : index
    %c0_4 = arith.constant 0 : index
    %3 = vector.load %arg3[%c0_3, %c0_4] : memref<32x1xf32, #tpu.memory_space<vmem>>, vector<32x1xf32>
    %4 = vector.broadcast %3 : vector<32x1xf32> to vector<32x32xf32>
    %5 = arith.mulf %2, %4 : vector<32x32xf32>
    %c0_5 = arith.constant 0 : index
    %c0_6 = arith.constant 0 : index
    %6 = vector.load %arg4[%c0_5, %c0_6] : memref<32x1xf32, #tpu.memory_space<vmem>>, vector<32x1xf32>
    %7 = vector.broadcast %6 : vector<32x1xf32> to vector<32x32xf32>
    %8 = arith.addf %5, %7 : vector<32x32xf32>
    %cst_7 = arith.constant 0.000000e+00 : f32
    %9 = vector.broadcast %cst_7 : f32 to vector<32x32xf32>
    %10 = arith.maximumf %8, %9 : vector<32x32xf32>
    %11 = arith.truncf %10 : vector<32x32xf32> to vector<32x32xbf16>
    %c0_8 = arith.constant 0 : index
    %c0_9 = arith.constant 0 : index
    %12 = vector.load %arg5[%c0_8, %c0_9] : memref<32x32xbf16, #tpu.memory_space<vmem>>, vector<32x32xbf16>
    tpu.vector_store %arg5[%c0_8, %c0_9], %11 {strides = array<i32>} : memref<32x32xbf16, #tpu.memory_space<vmem>>, vector<32x32xbf16>,
    return
  }
  func.func @transform_0(%arg0: i32) -> (i32, i32) {
    %c0_i32 = arith.constant 0 : i32
    %c0_i32_0 = arith.constant 0 : i32
    %c0_i32_1 = arith.constant 0 : i32
    return %c0_i32, %c0_i32_0 : i32, i32
  }
  func.func @transform_1(%arg0: i32) -> (i32, i32) {
    %c0_i32 = arith.constant 0 : i32
    %c0_i32_0 = arith.constant 0 : i32
    return %c0_i32, %arg0 : i32, i32
  }
  func.func @transform_2(%arg0: i32) -> (i32, i32) {
    %c0_i32 = arith.constant 0 : i32
    %c0_i32_0 = arith.constant 0 : i32
    %c0_i32_1 = arith.constant 0 : i32
    return %c0_i32, %c0_i32_0 : i32, i32
  }
  func.func @transform_3(%arg0: i32) -> (i32, i32) {
    %c0_i32 = arith.constant 0 : i32
    %c0_i32_0 = arith.constant 0 : i32
    %c0_i32_1 = arith.constant 0 : i32
    return %c0_i32, %c0_i32_0 : i32, i32
  }
  func.func @transform_4(%arg0: i32) -> (i32, i32) {
    %c0_i32 = arith.constant 0 : i32
    %c0_i32_0 = arith.constant 0 : i32
    return %c0_i32, %arg0 : i32, i32
  }
}

module attributes {stable_mosaic.version = 11 : i64} {
  func.func @_fused_gemm_kernel(%arg0: i32, %arg1: memref<128x288xbf16, #tpu.memory_space<vmem>>, %arg2: memref<288x32xbf16, #tpu.memory_space<vmem>>, %arg3: memref<128x1xf32, #tpu.memory_space<vmem>>, %arg4: memref<128x1xf32, #tpu.memory_space<vmem>>, %arg5: memref<128x32xbf16, #tpu.memory_space<vmem>>) attributes {dimension_semantics = [#tpu.dimension_semantics<parallel>], iteration_bounds = array<i64: 1>, scalar_prefetch = 0 : i64, scratch_operands = 0 : i64, tpu.core_type = #tpu.core_type<tc>, window_params = [{pipeline_mode = #tpu.pipeline_mode<synchronous>, transform_indices = @transform_0, window_bounds = array<i64: 128, 288>}, {transform_indices = @transform_1, window_bounds = array<i64: 288, 32>}, {pipeline_mode = #tpu.pipeline_mode<synchronous>, transform_indices = @transform_2, window_bounds = array<i64: 128, 1>}, {pipeline_mode = #tpu.pipeline_mode<synchronous>, transform_indices = @transform_3, window_bounds = array<i64: 128, 1>}, {transform_indices = @transform_4, window_bounds = array<i64: 128, 32>}]} {
    %c0 = arith.constant 0 : index
    %c0_0 = arith.constant 0 : index
    %0 = vector.load %arg1[%c0, %c0_0] : memref<128x288xbf16, #tpu.memory_space<vmem>>, vector<128x288xbf16>
    %c0_1 = arith.constant 0 : index
    %c0_2 = arith.constant 0 : index
    %1 = vector.load %arg2[%c0_1, %c0_2] : memref<288x32xbf16, #tpu.memory_space<vmem>>, vector<288x32xbf16>
    %cst = arith.constant dense<0.000000e+00> : vector<128x32xf32>
    %2 = tpu.matmul %0, %1, %cst {dimension_numbers = #tpu.dot_dimension_numbers<[1], [0], [0], [1], [0, 0, 1, 1], [], []>} : vector<128x288xbf16>, vector<288x32xbf16>, vector<128x32xf32> -> vector<128x32xf32>
    %c0_3 = arith.constant 0 : index
    %c0_4 = arith.constant 0 : index
    %3 = vector.load %arg3[%c0_3, %c0_4] : memref<128x1xf32, #tpu.memory_space<vmem>>, vector<128x1xf32>
    %4 = vector.broadcast %3 : vector<128x1xf32> to vector<128x32xf32>
    %5 = arith.mulf %2, %4 : vector<128x32xf32>
    %c0_5 = arith.constant 0 : index
    %c0_6 = arith.constant 0 : index
    %6 = vector.load %arg4[%c0_5, %c0_6] : memref<128x1xf32, #tpu.memory_space<vmem>>, vector<128x1xf32>
    %7 = vector.broadcast %6 : vector<128x1xf32> to vector<128x32xf32>
    %8 = arith.addf %5, %7 : vector<128x32xf32>
    %cst_7 = arith.constant 0.000000e+00 : f32
    %9 = vector.broadcast %cst_7 : f32 to vector<128x32xf32>
    %10 = arith.maximumf %8, %9 : vector<128x32xf32>
    %11 = arith.truncf %10 : vector<128x32xf32> to vector<128x32xbf16>
    %c0_8 = arith.constant 0 : index
    %c0_9 = arith.constant 0 : index
    %12 = vector.load %arg5[%c0_8, %c0_9] : memref<128x32xbf16, #tpu.memory_space<vmem>>, vector<128x32xbf16>
    tpu.vector_store %arg5[%c0_8, %c0_9], %11 {strides = array<i32>} : memref<128x32xbf16, #tpu.memory_space<vmem>>, vector<128x32xbf16>,
    return
  }
  func.func @transform_0(%arg0: i32) -> (i32, i32) {
    %c0_i32 = arith.constant 0 : i32
    %c0_i32_0 = arith.constant 0 : i32
    %c0_i32_1 = arith.constant 0 : i32
    return %c0_i32, %c0_i32_0 : i32, i32
  }
  func.func @transform_1(%arg0: i32) -> (i32, i32) {
    %c0_i32 = arith.constant 0 : i32
    %c0_i32_0 = arith.constant 0 : i32
    return %c0_i32, %arg0 : i32, i32
  }
  func.func @transform_2(%arg0: i32) -> (i32, i32) {
    %c0_i32 = arith.constant 0 : i32
    %c0_i32_0 = arith.constant 0 : i32
    %c0_i32_1 = arith.constant 0 : i32
    return %c0_i32, %c0_i32_0 : i32, i32
  }
  func.func @transform_3(%arg0: i32) -> (i32, i32) {
    %c0_i32 = arith.constant 0 : i32
    %c0_i32_0 = arith.constant 0 : i32
    %c0_i32_1 = arith.constant 0 : i32
    return %c0_i32, %c0_i32_0 : i32, i32
  }
  func.func @transform_4(%arg0: i32) -> (i32, i32) {
    %c0_i32 = arith.constant 0 : i32
    %c0_i32_0 = arith.constant 0 : i32
    return %c0_i32, %arg0 : i32, i32
  }
}

module attributes {stable_mosaic.version = 11 : i64} {
  func.func @_fused_gemm_kernel(%arg0: i32, %arg1: memref<32x432xbf16, #tpu.memory_space<vmem>>, %arg2: memref<432x128xbf16, #tpu.memory_space<vmem>>, %arg3: memref<32x1xf32, #tpu.memory_space<vmem>>, %arg4: memref<32x1xf32, #tpu.memory_space<vmem>>, %arg5: memref<32x128xbf16, #tpu.memory_space<vmem>>) attributes {dimension_semantics = [#tpu.dimension_semantics<parallel>], iteration_bounds = array<i64: 1>, scalar_prefetch = 0 : i64, scratch_operands = 0 : i64, tpu.core_type = #tpu.core_type<tc>, window_params = [{pipeline_mode = #tpu.pipeline_mode<synchronous>, transform_indices = @transform_0, window_bounds = array<i64: 32, 432>}, {transform_indices = @transform_1, window_bounds = array<i64: 432, 128>}, {pipeline_mode = #tpu.pipeline_mode<synchronous>, transform_indices = @transform_2, window_bounds = array<i64: 32, 1>}, {pipeline_mode = #tpu.pipeline_mode<synchronous>, transform_indices = @transform_3, window_bounds = array<i64: 32, 1>}, {transform_indices = @transform_4, window_bounds = array<i64: 32, 128>}]} {
    %c0 = arith.constant 0 : index
    %c0_0 = arith.constant 0 : index
    %0 = vector.load %arg1[%c0, %c0_0] : memref<32x432xbf16, #tpu.memory_space<vmem>>, vector<32x432xbf16>
    %c0_1 = arith.constant 0 : index
    %c0_2 = arith.constant 0 : index
    %1 = vector.load %arg2[%c0_1, %c0_2] : memref<432x128xbf16, #tpu.memory_space<vmem>>, vector<432x128xbf16>
    %cst = arith.constant dense<0.000000e+00> : vector<32x128xf32>
    %2 = tpu.matmul %0, %1, %cst {dimension_numbers = #tpu.dot_dimension_numbers<[1], [0], [0], [1], [0, 0, 1, 1], [], []>} : vector<32x432xbf16>, vector<432x128xbf16>, vector<32x128xf32> -> vector<32x128xf32>
    %c0_3 = arith.constant 0 : index
    %c0_4 = arith.constant 0 : index
    %3 = vector.load %arg3[%c0_3, %c0_4] : memref<32x1xf32, #tpu.memory_space<vmem>>, vector<32x1xf32>
    %4 = vector.broadcast %3 : vector<32x1xf32> to vector<32x128xf32>
    %5 = arith.mulf %2, %4 : vector<32x128xf32>
    %c0_5 = arith.constant 0 : index
    %c0_6 = arith.constant 0 : index
    %6 = vector.load %arg4[%c0_5, %c0_6] : memref<32x1xf32, #tpu.memory_space<vmem>>, vector<32x1xf32>
    %7 = vector.broadcast %6 : vector<32x1xf32> to vector<32x128xf32>
    %8 = arith.addf %5, %7 : vector<32x128xf32>
    %cst_7 = arith.constant 0.000000e+00 : f32
    %9 = vector.broadcast %cst_7 : f32 to vector<32x128xf32>
    %10 = arith.maximumf %8, %9 : vector<32x128xf32>
    %11 = arith.truncf %10 : vector<32x128xf32> to vector<32x128xbf16>
    %c0_8 = arith.constant 0 : index
    %c0_9 = arith.constant 0 : index
    %12 = vector.load %arg5[%c0_8, %c0_9] : memref<32x128xbf16, #tpu.memory_space<vmem>>, vector<32x128xbf16>
    tpu.vector_store %arg5[%c0_8, %c0_9], %11 {strides = array<i32>} : memref<32x128xbf16, #tpu.memory_space<vmem>>, vector<32x128xbf16>,
    return
  }
  func.func @transform_0(%arg0: i32) -> (i32, i32) {
    %c0_i32 = arith.constant 0 : i32
    %c0_i32_0 = arith.constant 0 : i32
    %c0_i32_1 = arith.constant 0 : i32
    return %c0_i32, %c0_i32_0 : i32, i32
  }
  func.func @transform_1(%arg0: i32) -> (i32, i32) {
    %c0_i32 = arith.constant 0 : i32
    %c0_i32_0 = arith.constant 0 : i32
    return %c0_i32, %arg0 : i32, i32
  }
  func.func @transform_2(%arg0: i32) -> (i32, i32) {
    %c0_i32 = arith.constant 0 : i32
    %c0_i32_0 = arith.constant 0 : i32
    %c0_i32_1 = arith.constant 0 : i32
    return %c0_i32, %c0_i32_0 : i32, i32
  }
  func.func @transform_3(%arg0: i32) -> (i32, i32) {
    %c0_i32 = arith.constant 0 : i32
    %c0_i32_0 = arith.constant 0 : i32
    %c0_i32_1 = arith.constant 0 : i32
    return %c0_i32, %c0_i32_0 : i32, i32
  }
  func.func @transform_4(%arg0: i32) -> (i32, i32) {
    %c0_i32 = arith.constant 0 : i32
    %c0_i32_0 = arith.constant 0 : i32
    return %c0_i32, %arg0 : i32, i32
  }
}

module attributes {stable_mosaic.version = 11 : i64} {
  func.func @_fused_gemm_kernel(%arg0: i32, %arg1: memref<64x288xbf16, #tpu.memory_space<vmem>>, %arg2: memref<288x128xbf16, #tpu.memory_space<vmem>>, %arg3: memref<64x1xf32, #tpu.memory_space<vmem>>, %arg4: memref<64x1xf32, #tpu.memory_space<vmem>>, %arg5: memref<64x128xbf16, #tpu.memory_space<vmem>>) attributes {dimension_semantics = [#tpu.dimension_semantics<parallel>], iteration_bounds = array<i64: 1>, scalar_prefetch = 0 : i64, scratch_operands = 0 : i64, tpu.core_type = #tpu.core_type<tc>, window_params = [{pipeline_mode = #tpu.pipeline_mode<synchronous>, transform_indices = @transform_0, window_bounds = array<i64: 64, 288>}, {transform_indices = @transform_1, window_bounds = array<i64: 288, 128>}, {pipeline_mode = #tpu.pipeline_mode<synchronous>, transform_indices = @transform_2, window_bounds = array<i64: 64, 1>}, {pipeline_mode = #tpu.pipeline_mode<synchronous>, transform_indices = @transform_3, window_bounds = array<i64: 64, 1>}, {transform_indices = @transform_4, window_bounds = array<i64: 64, 128>}]} {
    %c0 = arith.constant 0 : index
    %c0_0 = arith.constant 0 : index
    %0 = vector.load %arg1[%c0, %c0_0] : memref<64x288xbf16, #tpu.memory_space<vmem>>, vector<64x288xbf16>
    %c0_1 = arith.constant 0 : index
    %c0_2 = arith.constant 0 : index
    %1 = vector.load %arg2[%c0_1, %c0_2] : memref<288x128xbf16, #tpu.memory_space<vmem>>, vector<288x128xbf16>
    %cst = arith.constant dense<0.000000e+00> : vector<64x128xf32>
    %2 = tpu.matmul %0, %1, %cst {dimension_numbers = #tpu.dot_dimension_numbers<[1], [0], [0], [1], [0, 0, 1, 1], [], []>} : vector<64x288xbf16>, vector<288x128xbf16>, vector<64x128xf32> -> vector<64x128xf32>
    %c0_3 = arith.constant 0 : index
    %c0_4 = arith.constant 0 : index
    %3 = vector.load %arg3[%c0_3, %c0_4] : memref<64x1xf32, #tpu.memory_space<vmem>>, vector<64x1xf32>
    %4 = vector.broadcast %3 : vector<64x1xf32> to vector<64x128xf32>
    %5 = arith.mulf %2, %4 : vector<64x128xf32>
    %c0_5 = arith.constant 0 : index
    %c0_6 = arith.constant 0 : index
    %6 = vector.load %arg4[%c0_5, %c0_6] : memref<64x1xf32, #tpu.memory_space<vmem>>, vector<64x1xf32>
    %7 = vector.broadcast %6 : vector<64x1xf32> to vector<64x128xf32>
    %8 = arith.addf %5, %7 : vector<64x128xf32>
    %cst_7 = arith.constant 0.000000e+00 : f32
    %9 = vector.broadcast %cst_7 : f32 to vector<64x128xf32>
    %10 = arith.maximumf %8, %9 : vector<64x128xf32>
    %11 = arith.truncf %10 : vector<64x128xf32> to vector<64x128xbf16>
    %c0_8 = arith.constant 0 : index
    %c0_9 = arith.constant 0 : index
    %12 = vector.load %arg5[%c0_8, %c0_9] : memref<64x128xbf16, #tpu.memory_space<vmem>>, vector<64x128xbf16>
    tpu.vector_store %arg5[%c0_8, %c0_9], %11 {strides = array<i32>} : memref<64x128xbf16, #tpu.memory_space<vmem>>, vector<64x128xbf16>,
    return
  }
  func.func @transform_0(%arg0: i32) -> (i32, i32) {
    %c0_i32 = arith.constant 0 : i32
    %c0_i32_0 = arith.constant 0 : i32
    %c0_i32_1 = arith.constant 0 : i32
    return %c0_i32, %c0_i32_0 : i32, i32
  }
  func.func @transform_1(%arg0: i32) -> (i32, i32) {
    %c0_i32 = arith.constant 0 : i32
    %c0_i32_0 = arith.constant 0 : i32
    return %c0_i32, %arg0 : i32, i32
  }
  func.func @transform_2(%arg0: i32) -> (i32, i32) {
    %c0_i32 = arith.constant 0 : i32
    %c0_i32_0 = arith.constant 0 : i32
    %c0_i32_1 = arith.constant 0 : i32
    return %c0_i32, %c0_i32_0 : i32, i32
  }
  func.func @transform_3(%arg0: i32) -> (i32, i32) {
    %c0_i32 = arith.constant 0 : i32
    %c0_i32_0 = arith.constant 0 : i32
    %c0_i32_1 = arith.constant 0 : i32
    return %c0_i32, %c0_i32_0 : i32, i32
  }
  func.func @transform_4(%arg0: i32) -> (i32, i32) {
    %c0_i32 = arith.constant 0 : i32
    %c0_i32_0 = arith.constant 0 : i32
    return %c0_i32, %arg0 : i32, i32
  }
}

module attributes {stable_mosaic.version = 11 : i64} {
  func.func @_fused_gemm_kernel(%arg0: i32, %arg1: memref<16x288xbf16, #tpu.memory_space<vmem>>, %arg2: memref<288x512xbf16, #tpu.memory_space<vmem>>, %arg3: memref<16x1xf32, #tpu.memory_space<vmem>>, %arg4: memref<16x1xf32, #tpu.memory_space<vmem>>, %arg5: memref<16x512xbf16, #tpu.memory_space<vmem>>) attributes {dimension_semantics = [#tpu.dimension_semantics<parallel>], iteration_bounds = array<i64: 1>, scalar_prefetch = 0 : i64, scratch_operands = 0 : i64, tpu.core_type = #tpu.core_type<tc>, window_params = [{pipeline_mode = #tpu.pipeline_mode<synchronous>, transform_indices = @transform_0, window_bounds = array<i64: 16, 288>}, {transform_indices = @transform_1, window_bounds = array<i64: 288, 512>}, {pipeline_mode = #tpu.pipeline_mode<synchronous>, transform_indices = @transform_2, window_bounds = array<i64: 16, 1>}, {pipeline_mode = #tpu.pipeline_mode<synchronous>, transform_indices = @transform_3, window_bounds = array<i64: 16, 1>}, {transform_indices = @transform_4, window_bounds = array<i64: 16, 512>}]} {
    %c0 = arith.constant 0 : index
    %c0_0 = arith.constant 0 : index
    %0 = vector.load %arg1[%c0, %c0_0] : memref<16x288xbf16, #tpu.memory_space<vmem>>, vector<16x288xbf16>
    %c0_1 = arith.constant 0 : index
    %c0_2 = arith.constant 0 : index
    %1 = vector.load %arg2[%c0_1, %c0_2] : memref<288x512xbf16, #tpu.memory_space<vmem>>, vector<288x512xbf16>
    %cst = arith.constant dense<0.000000e+00> : vector<16x512xf32>
    %2 = tpu.matmul %0, %1, %cst {dimension_numbers = #tpu.dot_dimension_numbers<[1], [0], [0], [1], [0, 0, 1, 1], [], []>} : vector<16x288xbf16>, vector<288x512xbf16>, vector<16x512xf32> -> vector<16x512xf32>
    %c0_3 = arith.constant 0 : index
    %c0_4 = arith.constant 0 : index
    %3 = vector.load %arg3[%c0_3, %c0_4] : memref<16x1xf32, #tpu.memory_space<vmem>>, vector<16x1xf32>
    %4 = vector.broadcast %3 : vector<16x1xf32> to vector<16x512xf32>
    %5 = arith.mulf %2, %4 : vector<16x512xf32>
    %c0_5 = arith.constant 0 : index
    %c0_6 = arith.constant 0 : index
    %6 = vector.load %arg4[%c0_5, %c0_6] : memref<16x1xf32, #tpu.memory_space<vmem>>, vector<16x1xf32>
    %7 = vector.broadcast %6 : vector<16x1xf32> to vector<16x512xf32>
    %8 = arith.addf %5, %7 : vector<16x512xf32>
    %cst_7 = arith.constant 0.000000e+00 : f32
    %9 = vector.broadcast %cst_7 : f32 to vector<16x512xf32>
    %10 = arith.maximumf %8, %9 : vector<16x512xf32>
    %11 = arith.truncf %10 : vector<16x512xf32> to vector<16x512xbf16>
    %c0_8 = arith.constant 0 : index
    %c0_9 = arith.constant 0 : index
    %12 = vector.load %arg5[%c0_8, %c0_9] : memref<16x512xbf16, #tpu.memory_space<vmem>>, vector<16x512xbf16>
    tpu.vector_store %arg5[%c0_8, %c0_9], %11 {strides = array<i32>} : memref<16x512xbf16, #tpu.memory_space<vmem>>, vector<16x512xbf16>,
    return
  }
  func.func @transform_0(%arg0: i32) -> (i32, i32) {
    %c0_i32 = arith.constant 0 : i32
    %c0_i32_0 = arith.constant 0 : i32
    %c0_i32_1 = arith.constant 0 : i32
    return %c0_i32, %c0_i32_0 : i32, i32
  }
  func.func @transform_1(%arg0: i32) -> (i32, i32) {
    %c0_i32 = arith.constant 0 : i32
    %c0_i32_0 = arith.constant 0 : i32
    return %c0_i32, %arg0 : i32, i32
  }
  func.func @transform_2(%arg0: i32) -> (i32, i32) {
    %c0_i32 = arith.constant 0 : i32
    %c0_i32_0 = arith.constant 0 : i32
    %c0_i32_1 = arith.constant 0 : i32
    return %c0_i32, %c0_i32_0 : i32, i32
  }
  func.func @transform_3(%arg0: i32) -> (i32, i32) {
    %c0_i32 = arith.constant 0 : i32
    %c0_i32_0 = arith.constant 0 : i32
    %c0_i32_1 = arith.constant 0 : i32
    return %c0_i32, %c0_i32_0 : i32, i32
  }
  func.func @transform_4(%arg0: i32) -> (i32, i32) {
    %c0_i32 = arith.constant 0 : i32
    %c0_i32_0 = arith.constant 0 : i32
    return %c0_i32, %arg0 : i32, i32
  }
}

module attributes {stable_mosaic.version = 11 : i64} {
  func.func @_fused_gemm_kernel(%arg0: i32, %arg1: memref<64x144xbf16, #tpu.memory_space<vmem>>, %arg2: memref<144x512xbf16, #tpu.memory_space<vmem>>, %arg3: memref<64x1xf32, #tpu.memory_space<vmem>>, %arg4: memref<64x1xf32, #tpu.memory_space<vmem>>, %arg5: memref<64x512xbf16, #tpu.memory_space<vmem>>) attributes {dimension_semantics = [#tpu.dimension_semantics<parallel>], iteration_bounds = array<i64: 1>, scalar_prefetch = 0 : i64, scratch_operands = 0 : i64, tpu.core_type = #tpu.core_type<tc>, window_params = [{pipeline_mode = #tpu.pipeline_mode<synchronous>, transform_indices = @transform_0, window_bounds = array<i64: 64, 144>}, {transform_indices = @transform_1, window_bounds = array<i64: 144, 512>}, {pipeline_mode = #tpu.pipeline_mode<synchronous>, transform_indices = @transform_2, window_bounds = array<i64: 64, 1>}, {pipeline_mode = #tpu.pipeline_mode<synchronous>, transform_indices = @transform_3, window_bounds = array<i64: 64, 1>}, {transform_indices = @transform_4, window_bounds = array<i64: 64, 512>}]} {
    %c0 = arith.constant 0 : index
    %c0_0 = arith.constant 0 : index
    %0 = vector.load %arg1[%c0, %c0_0] : memref<64x144xbf16, #tpu.memory_space<vmem>>, vector<64x144xbf16>
    %c0_1 = arith.constant 0 : index
    %c0_2 = arith.constant 0 : index
    %1 = vector.load %arg2[%c0_1, %c0_2] : memref<144x512xbf16, #tpu.memory_space<vmem>>, vector<144x512xbf16>
    %cst = arith.constant dense<0.000000e+00> : vector<64x512xf32>
    %2 = tpu.matmul %0, %1, %cst {dimension_numbers = #tpu.dot_dimension_numbers<[1], [0], [0], [1], [0, 0, 1, 1], [], []>} : vector<64x144xbf16>, vector<144x512xbf16>, vector<64x512xf32> -> vector<64x512xf32>
    %c0_3 = arith.constant 0 : index
    %c0_4 = arith.constant 0 : index
    %3 = vector.load %arg3[%c0_3, %c0_4] : memref<64x1xf32, #tpu.memory_space<vmem>>, vector<64x1xf32>
    %4 = vector.broadcast %3 : vector<64x1xf32> to vector<64x512xf32>
    %5 = arith.mulf %2, %4 : vector<64x512xf32>
    %c0_5 = arith.constant 0 : index
    %c0_6 = arith.constant 0 : index
    %6 = vector.load %arg4[%c0_5, %c0_6] : memref<64x1xf32, #tpu.memory_space<vmem>>, vector<64x1xf32>
    %7 = vector.broadcast %6 : vector<64x1xf32> to vector<64x512xf32>
    %8 = arith.addf %5, %7 : vector<64x512xf32>
    %cst_7 = arith.constant 0.000000e+00 : f32
    %9 = vector.broadcast %cst_7 : f32 to vector<64x512xf32>
    %10 = arith.maximumf %8, %9 : vector<64x512xf32>
    %11 = arith.truncf %10 : vector<64x512xf32> to vector<64x512xbf16>
    %c0_8 = arith.constant 0 : index
    %c0_9 = arith.constant 0 : index
    %12 = vector.load %arg5[%c0_8, %c0_9] : memref<64x512xbf16, #tpu.memory_space<vmem>>, vector<64x512xbf16>
    tpu.vector_store %arg5[%c0_8, %c0_9], %11 {strides = array<i32>} : memref<64x512xbf16, #tpu.memory_space<vmem>>, vector<64x512xbf16>,
    return
  }
  func.func @transform_0(%arg0: i32) -> (i32, i32) {
    %c0_i32 = arith.constant 0 : i32
    %c0_i32_0 = arith.constant 0 : i32
    %c0_i32_1 = arith.constant 0 : i32
    return %c0_i32, %c0_i32_0 : i32, i32
  }
  func.func @transform_1(%arg0: i32) -> (i32, i32) {
    %c0_i32 = arith.constant 0 : i32
    %c0_i32_0 = arith.constant 0 : i32
    return %c0_i32, %arg0 : i32, i32
  }
  func.func @transform_2(%arg0: i32) -> (i32, i32) {
    %c0_i32 = arith.constant 0 : i32
    %c0_i32_0 = arith.constant 0 : i32
    %c0_i32_1 = arith.constant 0 : i32
    return %c0_i32, %c0_i32_0 : i32, i32
  }
  func.func @transform_3(%arg0: i32) -> (i32, i32) {
    %c0_i32 = arith.constant 0 : i32
    %c0_i32_0 = arith.constant 0 : i32
    %c0_i32_1 = arith.constant 0 : i32
    return %c0_i32, %c0_i32_0 : i32, i32
  }
  func.func @transform_4(%arg0: i32) -> (i32, i32) {
    %c0_i32 = arith.constant 0 : i32
    %c0_i32_0 = arith.constant 0 : i32
    return %c0_i32, %arg0 : i32, i32
  }
}

module attributes {stable_mosaic.version = 11 : i64} {
  func.func @_fused_gemm_kernel(%arg0: i32, %arg1: memref<16x216xbf16, #tpu.memory_space<vmem>>, %arg2: memref<216x512xbf16, #tpu.memory_space<vmem>>, %arg3: memref<16x1xf32, #tpu.memory_space<vmem>>, %arg4: memref<16x1xf32, #tpu.memory_space<vmem>>, %arg5: memref<16x512xbf16, #tpu.memory_space<vmem>>) attributes {dimension_semantics = [#tpu.dimension_semantics<parallel>], iteration_bounds = array<i64: 4>, scalar_prefetch = 0 : i64, scratch_operands = 0 : i64, tpu.core_type = #tpu.core_type<tc>, window_params = [{pipeline_mode = #tpu.pipeline_mode<synchronous>, transform_indices = @transform_0, window_bounds = array<i64: 16, 216>}, {transform_indices = @transform_1, window_bounds = array<i64: 216, 512>}, {pipeline_mode = #tpu.pipeline_mode<synchronous>, transform_indices = @transform_2, window_bounds = array<i64: 16, 1>}, {pipeline_mode = #tpu.pipeline_mode<synchronous>, transform_indices = @transform_3, window_bounds = array<i64: 16, 1>}, {transform_indices = @transform_4, window_bounds = array<i64: 16, 512>}]} {
    %c0 = arith.constant 0 : index
    %c0_0 = arith.constant 0 : index
    %0 = vector.load %arg1[%c0, %c0_0] : memref<16x216xbf16, #tpu.memory_space<vmem>>, vector<16x216xbf16>
    %c0_1 = arith.constant 0 : index
    %c0_2 = arith.constant 0 : index
    %1 = vector.load %arg2[%c0_1, %c0_2] : memref<216x512xbf16, #tpu.memory_space<vmem>>, vector<216x512xbf16>
    %cst = arith.constant dense<0.000000e+00> : vector<16x512xf32>
    %2 = tpu.matmul %0, %1, %cst {dimension_numbers = #tpu.dot_dimension_numbers<[1], [0], [0], [1], [0, 0, 1, 1], [], []>} : vector<16x216xbf16>, vector<216x512xbf16>, vector<16x512xf32> -> vector<16x512xf32>
    %c0_3 = arith.constant 0 : index
    %c0_4 = arith.constant 0 : index
    %3 = vector.load %arg3[%c0_3, %c0_4] : memref<16x1xf32, #tpu.memory_space<vmem>>, vector<16x1xf32>
    %4 = vector.broadcast %3 : vector<16x1xf32> to vector<16x512xf32>
    %5 = arith.mulf %2, %4 : vector<16x512xf32>
    %c0_5 = arith.constant 0 : index
    %c0_6 = arith.constant 0 : index
    %6 = vector.load %arg4[%c0_5, %c0_6] : memref<16x1xf32, #tpu.memory_space<vmem>>, vector<16x1xf32>
    %7 = vector.broadcast %6 : vector<16x1xf32> to vector<16x512xf32>
    %8 = arith.addf %5, %7 : vector<16x512xf32>
    %cst_7 = arith.constant 0.000000e+00 : f32
    %9 = vector.broadcast %cst_7 : f32 to vector<16x512xf32>
    %10 = arith.maximumf %8, %9 : vector<16x512xf32>
    %11 = arith.truncf %10 : vector<16x512xf32> to vector<16x512xbf16>
    %c0_8 = arith.constant 0 : index
    %c0_9 = arith.constant 0 : index
    %12 = vector.load %arg5[%c0_8, %c0_9] : memref<16x512xbf16, #tpu.memory_space<vmem>>, vector<16x512xbf16>
    tpu.vector_store %arg5[%c0_8, %c0_9], %11 {strides = array<i32>} : memref<16x512xbf16, #tpu.memory_space<vmem>>, vector<16x512xbf16>,
    return
  }
  func.func @transform_0(%arg0: i32) -> (i32, i32) {
    %c0_i32 = arith.constant 0 : i32
    %c0_i32_0 = arith.constant 0 : i32
    %c0_i32_1 = arith.constant 0 : i32
    return %c0_i32, %c0_i32_0 : i32, i32
  }
  func.func @transform_1(%arg0: i32) -> (i32, i32) {
    %c0_i32 = arith.constant 0 : i32
    %c0_i32_0 = arith.constant 0 : i32
    return %c0_i32, %arg0 : i32, i32
  }
  func.func @transform_2(%arg0: i32) -> (i32, i32) {
    %c0_i32 = arith.constant 0 : i32
    %c0_i32_0 = arith.constant 0 : i32
    %c0_i32_1 = arith.constant 0 : i32
    return %c0_i32, %c0_i32_0 : i32, i32
  }
  func.func @transform_3(%arg0: i32) -> (i32, i32) {
    %c0_i32 = arith.constant 0 : i32
    %c0_i32_0 = arith.constant 0 : i32
    %c0_i32_1 = arith.constant 0 : i32
    return %c0_i32, %c0_i32_0 : i32, i32
  }
  func.func @transform_4(%arg0: i32) -> (i32, i32) {
    %c0_i32 = arith.constant 0 : i32
    %c0_i32_0 = arith.constant 0 : i32
    return %c0_i32, %arg0 : i32, i32
  }
}

module attributes {stable_mosaic.version = 11 : i64} {
  func.func @_fused_gemm_kernel(%arg0: i32, %arg1: memref<32x144xbf16, #tpu.memory_space<vmem>>, %arg2: memref<144x512xbf16, #tpu.memory_space<vmem>>, %arg3: memref<32x1xf32, #tpu.memory_space<vmem>>, %arg4: memref<32x1xf32, #tpu.memory_space<vmem>>, %arg5: memref<32x512xbf16, #tpu.memory_space<vmem>>) attributes {dimension_semantics = [#tpu.dimension_semantics<parallel>], iteration_bounds = array<i64: 4>, scalar_prefetch = 0 : i64, scratch_operands = 0 : i64, tpu.core_type = #tpu.core_type<tc>, window_params = [{pipeline_mode = #tpu.pipeline_mode<synchronous>, transform_indices = @transform_0, window_bounds = array<i64: 32, 144>}, {transform_indices = @transform_1, window_bounds = array<i64: 144, 512>}, {pipeline_mode = #tpu.pipeline_mode<synchronous>, transform_indices = @transform_2, window_bounds = array<i64: 32, 1>}, {pipeline_mode = #tpu.pipeline_mode<synchronous>, transform_indices = @transform_3, window_bounds = array<i64: 32, 1>}, {transform_indices = @transform_4, window_bounds = array<i64: 32, 512>}]} {
    %c0 = arith.constant 0 : index
    %c0_0 = arith.constant 0 : index
    %0 = vector.load %arg1[%c0, %c0_0] : memref<32x144xbf16, #tpu.memory_space<vmem>>, vector<32x144xbf16>
    %c0_1 = arith.constant 0 : index
    %c0_2 = arith.constant 0 : index
    %1 = vector.load %arg2[%c0_1, %c0_2] : memref<144x512xbf16, #tpu.memory_space<vmem>>, vector<144x512xbf16>
    %cst = arith.constant dense<0.000000e+00> : vector<32x512xf32>
    %2 = tpu.matmul %0, %1, %cst {dimension_numbers = #tpu.dot_dimension_numbers<[1], [0], [0], [1], [0, 0, 1, 1], [], []>} : vector<32x144xbf16>, vector<144x512xbf16>, vector<32x512xf32> -> vector<32x512xf32>
    %c0_3 = arith.constant 0 : index
    %c0_4 = arith.constant 0 : index
    %3 = vector.load %arg3[%c0_3, %c0_4] : memref<32x1xf32, #tpu.memory_space<vmem>>, vector<32x1xf32>
    %4 = vector.broadcast %3 : vector<32x1xf32> to vector<32x512xf32>
    %5 = arith.mulf %2, %4 : vector<32x512xf32>
    %c0_5 = arith.constant 0 : index
    %c0_6 = arith.constant 0 : index
    %6 = vector.load %arg4[%c0_5, %c0_6] : memref<32x1xf32, #tpu.memory_space<vmem>>, vector<32x1xf32>
    %7 = vector.broadcast %6 : vector<32x1xf32> to vector<32x512xf32>
    %8 = arith.addf %5, %7 : vector<32x512xf32>
    %cst_7 = arith.constant 0.000000e+00 : f32
    %9 = vector.broadcast %cst_7 : f32 to vector<32x512xf32>
    %10 = arith.maximumf %8, %9 : vector<32x512xf32>
    %11 = arith.truncf %10 : vector<32x512xf32> to vector<32x512xbf16>
    %c0_8 = arith.constant 0 : index
    %c0_9 = arith.constant 0 : index
    %12 = vector.load %arg5[%c0_8, %c0_9] : memref<32x512xbf16, #tpu.memory_space<vmem>>, vector<32x512xbf16>
    tpu.vector_store %arg5[%c0_8, %c0_9], %11 {strides = array<i32>} : memref<32x512xbf16, #tpu.memory_space<vmem>>, vector<32x512xbf16>,
    return
  }
  func.func @transform_0(%arg0: i32) -> (i32, i32) {
    %c0_i32 = arith.constant 0 : i32
    %c0_i32_0 = arith.constant 0 : i32
    %c0_i32_1 = arith.constant 0 : i32
    return %c0_i32, %c0_i32_0 : i32, i32
  }
  func.func @transform_1(%arg0: i32) -> (i32, i32) {
    %c0_i32 = arith.constant 0 : i32
    %c0_i32_0 = arith.constant 0 : i32
    return %c0_i32, %arg0 : i32, i32
  }
  func.func @transform_2(%arg0: i32) -> (i32, i32) {
    %c0_i32 = arith.constant 0 : i32
    %c0_i32_0 = arith.constant 0 : i32
    %c0_i32_1 = arith.constant 0 : i32
    return %c0_i32, %c0_i32_0 : i32, i32
  }
  func.func @transform_3(%arg0: i32) -> (i32, i32) {
    %c0_i32 = arith.constant 0 : i32
    %c0_i32_0 = arith.constant 0 : i32
    %c0_i32_1 = arith.constant 0 : i32
    return %c0_i32, %c0_i32_0 : i32, i32
  }
  func.func @transform_4(%arg0: i32) -> (i32, i32) {
    %c0_i32 = arith.constant 0 : i32
    %c0_i32_0 = arith.constant 0 : i32
    return %c0_i32, %arg0 : i32, i32
  }
}

module attributes {stable_mosaic.version = 11 : i64} {
  func.func @_fused_gemm_kernel(%arg0: i32, %arg1: memref<8x72xbf16, #tpu.memory_space<vmem>>, %arg2: memref<72x1024xbf16, #tpu.memory_space<vmem>>, %arg3: memref<8x1xf32, #tpu.memory_space<vmem>>, %arg4: memref<8x1xf32, #tpu.memory_space<vmem>>, %arg5: memref<8x1024xf32, #tpu.memory_space<vmem>>) attributes {dimension_semantics = [#tpu.dimension_semantics<parallel>], iteration_bounds = array<i64: 8>, scalar_prefetch = 0 : i64, scratch_operands = 0 : i64, tpu.core_type = #tpu.core_type<tc>, window_params = [{pipeline_mode = #tpu.pipeline_mode<synchronous>, transform_indices = @transform_0, window_bounds = array<i64: 8, 72>}, {transform_indices = @transform_1, window_bounds = array<i64: 72, 1024>}, {pipeline_mode = #tpu.pipeline_mode<synchronous>, transform_indices = @transform_2, window_bounds = array<i64: 8, 1>}, {pipeline_mode = #tpu.pipeline_mode<synchronous>, transform_indices = @transform_3, window_bounds = array<i64: 8, 1>}, {transform_indices = @transform_4, window_bounds = array<i64: 8, 1024>}]} {
    %c0 = arith.constant 0 : index
    %c0_0 = arith.constant 0 : index
    %0 = vector.load %arg1[%c0, %c0_0] : memref<8x72xbf16, #tpu.memory_space<vmem>>, vector<8x72xbf16>
    %c0_1 = arith.constant 0 : index
    %c0_2 = arith.constant 0 : index
    %1 = vector.load %arg2[%c0_1, %c0_2] : memref<72x1024xbf16, #tpu.memory_space<vmem>>, vector<72x1024xbf16>
    %cst = arith.constant dense<0.000000e+00> : vector<8x1024xf32>
    %2 = tpu.matmul %0, %1, %cst {dimension_numbers = #tpu.dot_dimension_numbers<[1], [0], [0], [1], [0, 0, 1, 1], [], []>} : vector<8x72xbf16>, vector<72x1024xbf16>, vector<8x1024xf32> -> vector<8x1024xf32>
    %c0_3 = arith.constant 0 : index
    %c0_4 = arith.constant 0 : index
    %3 = vector.load %arg3[%c0_3, %c0_4] : memref<8x1xf32, #tpu.memory_space<vmem>>, vector<8x1xf32>
    %4 = vector.broadcast %3 : vector<8x1xf32> to vector<8x1024xf32>
    %5 = arith.mulf %2, %4 : vector<8x1024xf32>
    %c0_5 = arith.constant 0 : index
    %c0_6 = arith.constant 0 : index
    %6 = vector.load %arg4[%c0_5, %c0_6] : memref<8x1xf32, #tpu.memory_space<vmem>>, vector<8x1xf32>
    %7 = vector.broadcast %6 : vector<8x1xf32> to vector<8x1024xf32>
    %8 = arith.addf %5, %7 : vector<8x1024xf32>
    %cst_7 = arith.constant 0.000000e+00 : f32
    %9 = vector.broadcast %cst_7 : f32 to vector<8x1024xf32>
    %10 = arith.maximumf %8, %9 : vector<8x1024xf32>
    %c0_8 = arith.constant 0 : index
    %c0_9 = arith.constant 0 : index
    %11 = vector.load %arg5[%c0_8, %c0_9] : memref<8x1024xf32, #tpu.memory_space<vmem>>, vector<8x1024xf32>
    tpu.vector_store %arg5[%c0_8, %c0_9], %10 {strides = array<i32>} : memref<8x1024xf32, #tpu.memory_space<vmem>>, vector<8x1024xf32>,
    return
  }
  func.func @transform_0(%arg0: i32) -> (i32, i32) {
    %c0_i32 = arith.constant 0 : i32
    %c0_i32_0 = arith.constant 0 : i32
    %c0_i32_1 = arith.constant 0 : i32
    return %c0_i32, %c0_i32_0 : i32, i32
  }
  func.func @transform_1(%arg0: i32) -> (i32, i32) {
    %c0_i32 = arith.constant 0 : i32
    %c0_i32_0 = arith.constant 0 : i32
    return %c0_i32, %arg0 : i32, i32
  }
  func.func @transform_2(%arg0: i32) -> (i32, i32) {
    %c0_i32 = arith.constant 0 : i32
    %c0_i32_0 = arith.constant 0 : i32
    %c0_i32_1 = arith.constant 0 : i32
    return %c0_i32, %c0_i32_0 : i32, i32
  }
  func.func @transform_3(%arg0: i32) -> (i32, i32) {
    %c0_i32 = arith.constant 0 : i32
    %c0_i32_0 = arith.constant 0 : i32
    %c0_i32_1 = arith.constant 0 : i32
    return %c0_i32, %c0_i32_0 : i32, i32
  }
  func.func @transform_4(%arg0: i32) -> (i32, i32) {
    %c0_i32 = arith.constant 0 : i32
    %c0_i32_0 = arith.constant 0 : i32
    return %c0_i32, %arg0 : i32, i32
  }
}

</mosaic_0001>

<llo_original>
// kernel: unet_forward.15
$region0: #{unet_forward.15}
  #allocation0 [shape = 'u32[]', space=smem, size = 0x4, offset = 0x4, fixed_abs, tag = 'smem constant byte address 0x4 - core index']
  #allocation1 [shape = 'u32[72,128]{1,0:T(1,128)}', space=vmem, size = 0x9000, scoped, tag = 'internal scratch']
  %s0 = inlined_call_operand.vmem [shape: bf16[8,27], index: 0, kind: input, shape index: {}]
  %s1 = inlined_call_operand.vmem [shape: bf16[27,2048], index: 1, kind: input, shape index: {}]
  %s2 = inlined_call_operand.vmem [shape: f32[8,1], index: 2, kind: input, shape index: {}]
  %s3 = inlined_call_operand.vmem [shape: f32[8,1], index: 3, kind: input, shape index: {}]
  %s4 = inlined_call_operand.vmem [shape: bf16[8,2048], index: 4, kind: output, shape index: {}]
  %s5 = sld [smem:[#allocation0]]
  $region72: #{unet_forward.15} parent=0
    _
  %s7 = ssub.s32 1, %s5
  %s8 = scalar_select 0, %s7, %s5
  $region1: #{unet_forward.15} parent=0
    #allocation2 [shape = 'u8[65536]{0}', space=vmem, size = 0x10000, scoped, tag = 'input window, operand 1']
    loop: start=0, step=1, limit=6
    $region2: #{unet_forward.15} parent=1 // loop_pre_header
      _
    $region3: #{unet_forward.15} parent=1 // loop_header
      %s10 = sphi 0, %s14
      %p11 = scmp.ge.s32.totalorder %s10, 6
      %s18 = sphi 0, %s18
      %s20 = sphi 0, %s18
      %s21 = sphi 0, %s20
      %s35 = sphi 0, %s21
      %s41 = sphi 0, %s43
      %s44 = sphi 0, %s41
      %s45 = sphi 0, %s44
      %s61 = sphi 0, %s45
      %s65 = sphi 0, %s65
      %s67 = sphi 0, %s65
      %s68 = sphi 0, %s67
      %s82 = sphi 0, %s68
      %s86 = sphi 0, %s86
      %s88 = sphi 0, %s86
      %s89 = sphi 0, %s88
      %s103 = sphi 0, %s89
      %s109 = sphi 0, %s111
      %s112 = sphi 0, %s109
      %s113 = sphi 0, %s112
      %s129 = sphi 0, %s113
    $region4: #{unet_forward.15} parent=1 // loop_header_branch
      %13 = sbr.rel (%p11) target = $region8
    $region5: #{unet_forward.15} parent=1 // loop_body
      %s15 = ssub.s32 %s10, 1
      %s16 = ssub.s32 %s10, 2
      %s17 = sadd.s32 %s10, 1
      %s19 = sadd.s32 %s18, 1
      %p22 = scmp.eq.s32.totalorder %s10, 3
      %p23 = scmp.ne.s32.totalorder %s18, %s20
      %p24 = scmp.eq.s32.totalorder %s10, 0
      %p25 = por %p23, %p24
      %p26 = scmp.ne.s32.totalorder %s18, %s20
      %p27 = scmp.eq.s32.totalorder %s15, 3
      %p28 = por %p26, %p27
      %p29 = scmp.ne.s32.totalorder %s20, %s21
      %p30 = scmp.eq.s32.totalorder %s15, 0
      %p31 = por %p29, %p30
      %p32 = scmp.ne.s32.totalorder %s20, %s21
      %p33 = scmp.eq.s32.totalorder %s16, 3
      %p34 = por %p32, %p33
      %p36 = scmp.ne.s32.totalorder %s21, %s35
      %p37 = scmp.eq.s32.totalorder %s16, 0
      %p38 = por %p36, %p37
      %s39 = ssub.s32 %s10, %s17
      %p40 = scmp.eq.s32.totalorder %s39, 0
      %s42 = sadd.s32 %s41, 1
      %s43 = scalar_select %p40, %s41, %s42
      %p46 = pneg %p40
      %p47 = scmp.eq.s32.totalorder %s10, 3
      %p48 = por %p46, %p47
      %p49 = scmp.ne.s32.totalorder %s41, %s44
      %p50 = scmp.eq.s32.totalorder %s10, 0
      %p51 = por %p49, %p50
      %p52 = scmp.ne.s32.totalorder %s41, %s44
      %p53 = scmp.eq.s32.totalorder %s15, 3
      %p54 = por %p52, %p53
      %p55 = scmp.ne.s32.totalorder %s44, %s45
      %p56 = scmp.eq.s32.totalorder %s15, 0
      %p57 = por %p55, %p56
      %p58 = scmp.ne.s32.totalorder %s44, %s45
      %p59 = scmp.eq.s32.totalorder %s16, 3
      %p60 = por %p58, %p59
      %p62 = scmp.ne.s32.totalorder %s45, %s61
      %p63 = scmp.eq.s32.totalorder %s16, 0
      %p64 = por %p62, %p63
      %s66 = sadd.s32 %s65, 1
      %p69 = scmp.eq.s32.totalorder %s10, 3
      %p70 = scmp.ne.s32.totalorder %s65, %s67
      %p71 = scmp.eq.s32.totalorder %s10, 0
      %p72 = por %p70, %p71
      %p73 = scmp.ne.s32.totalorder %s65, %s67
      %p74 = scmp.eq.s32.totalorder %s15, 3
      %p75 = por %p73, %p74
      %p76 = scmp.ne.s32.totalorder %s67, %s68
      %p77 = scmp.eq.s32.totalorder %s15, 0
      %p78 = por %p76, %p77
      %p79 = scmp.ne.s32.totalorder %s67, %s68
      %p80 = scmp.eq.s32.totalorder %s16, 3
      %p81 = por %p79, %p80
      %p83 = scmp.ne.s32.totalorder %s68, %s82
      %p84 = scmp.eq.s32.totalorder %s16, 0
      %p85 = por %p83, %p84
      %s87 = sadd.s32 %s86, 1
      %p90 = scmp.eq.s32.totalorder %s10, 3
      %p91 = scmp.ne.s32.totalorder %s86, %s88
      %p92 = scmp.eq.s32.totalorder %s10, 0
      %p93 = por %p91, %p92
      %p94 = scmp.ne.s32.totalorder %s86, %s88
      %p95 = scmp.eq.s32.totalorder %s15, 3
      %p96 = por %p94, %p95
      %p97 = scmp.ne.s32.totalorder %s88, %s89
      %p98 = scmp.eq.s32.totalorder %s15, 0
      %p99 = por %p97, %p98
      %p100 = scmp.ne.s32.totalorder %s88, %s89
      %p101 = scmp.eq.s32.totalorder %s16, 3
      %p102 = por %p100, %p101
      %p104 = scmp.ne.s32.totalorder %s89, %s103
      %p105 = scmp.eq.s32.totalorder %s16, 0
      %p106 = por %p104, %p105
      %s107 = ssub.s32 %s10, %s17
      %p108 = scmp.eq.s32.totalorder %s107, 0
      %s110 = sadd.s32 %s109, 1
      %s111 = scalar_select %p108, %s109, %s110
      %p114 = pneg %p108
      %p115 = scmp.eq.s32.totalorder %s10, 3
      %p116 = por %p114, %p115
      %p117 = scmp.ne.s32.totalorder %s109, %s112
      %p118 = scmp.eq.s32.totalorder %s10, 0
      %p119 = por %p117, %p118
      %p120 = scmp.ne.s32.totalorder %s109, %s112
      %p121 = scmp.eq.s32.totalorder %s15, 3
      %p122 = por %p120, %p121
      %p123 = scmp.ne.s32.totalorder %s112, %s113
      %p124 = scmp.eq.s32.totalorder %s15, 0
      %p125 = por %p123, %p124
      %p126 = scmp.ne.s32.totalorder %s112, %s113
      %p127 = scmp.eq.s32.totalorder %s16, 3
      %p128 = por %p126, %p127
      %p130 = scmp.ne.s32.totalorder %s113, %s129
      %p131 = scmp.eq.s32.totalorder %s16, 0
      %p132 = por %p130, %p131
      %p133 = scmp.le.s32.totalorder 1, %s10
      %p134 = scmp.lt.s32.totalorder %s10, 5
      %p135 = pnand %p133, %p134
      %p136 = pneg %p135
      // Predicated region
      $region9: #{unet_forward.15} parent=5 // pred_check
        _
      $region10: #{unet_forward.15} parent=5 // pred_check_branch
        %138 = sbr.rel (%p135) target = $region12
      $region11: #{unet_forward.15} parent=5 // pred_region
        %s139 = ssub.s32 %s10, 1
        // Predicated region
        $region13: #{unet_forward.15} parent=11 // pred_check
          %p140 = pneg %p31
        $region14: #{unet_forward.15} parent=11 // pred_check_branch
          %142 = sbr.rel (%p140) target = $region16
        $region15: #{unet_forward.15} parent=11 // pred_region
          _
        $region16: #{unet_forward.15} parent=11 // pred_fallthru
          _
        // Predicated region
        $region17: #{unet_forward.15} parent=11 // pred_check
          %p143 = pneg %p78
        $region18: #{unet_forward.15} parent=11 // pred_check_branch
          %145 = sbr.rel (%p143) target = $region20
        $region19: #{unet_forward.15} parent=11 // pred_region
          _
        $region20: #{unet_forward.15} parent=11 // pred_fallthru
          _
        // Predicated region
        $region21: #{unet_forward.15} parent=11 // pred_check
          %p146 = pneg %p99
        $region22: #{unet_forward.15} parent=11 // pred_check_branch
          %148 = sbr.rel (%p146) target = $region24
        $region23: #{unet_forward.15} parent=11 // pred_region
          _
        $region24: #{unet_forward.15} parent=11 // pred_fallthru
          _
      $region12: #{unet_forward.15} parent=5 // pred_fallthru
        _
      %p149 = scmp.lt.s32.totalorder %s10, 4
      // Predicated region
      $region25: #{unet_forward.15} parent=5 // pred_check
        %p150 = pneg %p149
      $region26: #{unet_forward.15} parent=5 // pred_check_branch
        %152 = sbr.rel (%p150) target = $region28
      $region27: #{unet_forward.15} parent=5 // pred_region
        // Predicated region
        $region29: #{unet_forward.15} parent=27 // pred_check
          %p153 = pneg %p51
        $region30: #{unet_forward.15} parent=27 // pred_check_branch
          %155 = sbr.rel (%p153) target = $region32
        $region31: #{unet_forward.15} parent=27 // pred_region
          %s156 = sand.u32 %s41, 1
          %s157 = sand.u32 %s41, 1
          %s158 = smul.addr %s157, 64
          %s159 = scalar_lea.vmem [#allocation2], %s158
          %s160 = smul.u32 4, %s10
          %s161 = smul.addr %s160, 4
          %s162 = scalar_lea.vmem %s1, %s161
          // Predicated region
          $region33: #{unet_forward.15} parent=31 // pred_check
            _
          $region34: #{unet_forward.15} parent=31 // pred_check_branch
            %164 = sbr.rel (0) target = $region36
          $region35: #{unet_forward.15} parent=31 // pred_region
            // Predicated region
            $region37: #{unet_forward.15} parent=35 // pred_check
              _
            $region38: #{unet_forward.15} parent=35 // pred_check_branch
              %166 = sbr.rel (0) target = $region40
            $region39: #{unet_forward.15} parent=35 // pred_region
              loop: start=0, step=1, limit=1
              $region41: #{unet_forward.15} parent=39 // loop_pre_header
                _
              $region42: #{unet_forward.15} parent=39 // loop_header
                %s168 = sphi 0, %s172
                %p169 = scmp.ge.s32.totalorder %s168, 1
                %s173 = sphi %s162, %s162
                %s174 = sphi %s159, %s159
              $region43: #{unet_forward.15} parent=39 // loop_header_branch
                %171 = sbr.rel (%p169) target = $region47
              $region44: #{unet_forward.15} parent=39 // loop_body
                %v175 = vld [vmem:[%s173] sm:$0xff]
                %176 = vst [vmem:[%s174] sm:$0xff] %v175
                %v177 = vld [vmem:[%s173 + $0x8] sm:$0xff]
                %178 = vst [vmem:[%s174 + $0x8] sm:$0xff] %v177
                %v179 = vld [vmem:[%s173 + $0x40] sm:$0xff]
                %180 = vst [vmem:[%s174 + $0x10] sm:$0xff] %v179
                %v181 = vld [vmem:[%s173 + $0x48] sm:$0xff]
                %182 = vst [vmem:[%s174 + $0x18] sm:$0xff] %v181
                %v183 = vld [vmem:[%s173 + $0x80] sm:$0xff]
                %184 = vst [vmem:[%s174 + $0x20] sm:$0xff] %v183
                %v185 = vld [vmem:[%s173 + $0x88] sm:$0xff]
                %186 = vst [vmem:[%s174 + $0x28] sm:$0xff] %v185
                %v187 = vld [vmem:[%s173 + $0xc0] sm:$0xff]
                %188 = vst [vmem:[%s174 + $0x30] sm:$0xff] %v187
                %v189 = vld [vmem:[%s173 + $0xc8] sm:$0xff]
                %190 = vst [vmem:[%s174 + $0x38] sm:$0xff] %v189
              $region45: #{unet_forward.15} parent=39 // loop_footer
                %s172 = sadd.s32 1, %s168
              $region46: #{unet_forward.15} parent=39 // loop_footer_branch
                %167 = sbr.rel target = $region42
              $region47: #{unet_forward.15} parent=39 // loop_exit
                _
            $region40: #{unet_forward.15} parent=35 // pred_fallthru
              _
            // Predicated region
            $region48: #{unet_forward.15} parent=35 // pred_check
              _
            $region49: #{unet_forward.15} parent=35 // pred_check_branch
              %192 = sbr.rel target = $region51
            $region50: #{unet_forward.15} parent=35 // pred_region
              _
            $region51: #{unet_forward.15} parent=35 // pred_fallthru
              _
          $region36: #{unet_forward.15} parent=31 // pred_fallthru
            _
          %193 = vnop
        $region32: #{unet_forward.15} parent=27 // pred_fallthru
          _
      $region28: #{unet_forward.15} parent=5 // pred_fallthru
        _
      %p194 = scmp.le.s32.totalorder 1, %s10
      %p195 = scmp.lt.s32.totalorder %s10, 5
      %p196 = pnand %p194, %p195
      %p197 = pneg %p196
      // Predicated region
      $region52: #{unet_forward.15} parent=5 // pred_check
        _
      $region53: #{unet_forward.15} parent=5 // pred_check_branch
        %199 = sbr.rel (%p196) target = $region55
      $region54: #{unet_forward.15} parent=5 // pred_region
        %s200 = ssub.s32 %s10, 1
        %s201 = sand.u32 %s44, 1
        %s202 = sand.u32 %s44, 1
        %s203 = smul.addr %s202, 64
        %s204 = scalar_lea.vmem [#allocation2], %s203
        // Predicated region
        $region56: #{unet_forward.15} parent=54 // pred_check
          %p205 = pneg %p57
        $region57: #{unet_forward.15} parent=54 // pred_check_branch
          %207 = sbr.rel (%p205) target = $region59
        $region58: #{unet_forward.15} parent=54 // pred_region
          _
        $region59: #{unet_forward.15} parent=54 // pred_fallthru
          _
        %p208 = pneg %p31
        %p209 = pneg %p28
        %s210 = sand.u32 %s44, 1
        %s211 = sand.u32 %s44, 1
        %s212 = smul.addr %s211, 64
        %s213 = scalar_lea.vmem [#allocation2], %s212
        %p214 = pneg %p57
        %p215 = pneg %p54
        %p216 = pneg %p78
        %p217 = pneg %p75
        %p218 = pneg %p99
        %p219 = pneg %p96
        %p220 = pneg %p125
        %p221 = pneg %p122
        %s222 = smul.u32 4, %s15
        %p223 = scmp.lt.s32.totalorder %s222, 15
        %s224 = scalar_select %p223, %s222, 15
        %s225 = smul.addr %s224, 4
        %s226 = scalar_lea.vmem %s4, %s225
        %s227 = smul.u32 4, %s15
        %s228 = smul.u32 4, %s15
        %p229 = scmp.lt.s32.totalorder %s228, 15
        %s230 = scalar_select %p229, %s228, 15
        %s231 = smul.addr %s230, 4
        %s232 = scalar_lea.vmem %s4, %s231
        %s233 = smul.u32 4, %s15
        %v235 = vld [vmem:[%s0] sm:$0xf]
        %v236 = vld [vmem:[%s204] sm:$0xff]
        %v237 = vld [vmem:[%s204 + $0x8] sm:$0xff]
        %v238 = vld [vmem:[%s204 + $0x10] sm:$0xff]
        %v239 = vld [vmem:[%s204 + $0x18] sm:$0xff]
        %v240 = vld [vmem:[%s204 + $0x20] sm:$0xff]
        %v241 = vld [vmem:[%s204 + $0x28] sm:$0xff]
        %v242 = vld [vmem:[%s204 + $0x30] sm:$0x33]
        %v243 = vld [vmem:[%s204 + $0x38] sm:$0x33]
        %v252 = vunpack.c.l.b16 %v236
        %v253 = vunpack.c.h.b16 %v236
        %v254 = vunpack.c.l.b16 %v237
        %v255 = vunpack.c.h.b16 %v237
        %v256 = vunpack.c.l.b16 %v238
        %v257 = vunpack.c.h.b16 %v238
        %v258 = vunpack.c.l.b16 %v239
        %v259 = vunpack.c.h.b16 %v239
        %v260 = vunpack.c.l.b16 %v240
        %v261 = vunpack.c.h.b16 %v240
        %v262 = vunpack.c.l.b16 %v241
        %v263 = vunpack.c.h.b16 %v241
        %v264 = vunpack.c.l.b16 %v242
        %v265 = vunpack.c.h.b16 %v242
        %v266 = vunpack.c.l.b16 %v243
        %v267 = vunpack.c.h.b16 %v243
        %v268 = vpack.c.b16 %v256, %v252
        %v269 = vpack.c.b16 %v257, %v253
        %v270 = vpack.c.b16 %v258, %v254
        %v271 = vpack.c.b16 %v259, %v255
        %v272 = vpack.c.b16 %v264, %v260
        %v273 = vpack.c.b16 %v265, %v261
        %v274 = vpack.c.b16 %v266, %v262
        %v275 = vpack.c.b16 %v267, %v263
        %vm280 = vcmask 220160
        %v282 = vsel %vm280, %v235, 0
        %vm284 = vcmask 1044480
        %vm285 = vcmask 1045504
        %v286 = vsel %vm284, 4294967295, 65535
        %v287 = vsel %vm285, %v286, 0
        %v289 = vand.u32 %v272, %v287
        %v292 = vand.u32 %v273, %v287
        %v295 = vand.u32 %v274, %v287
        %v298 = vand.u32 %v275, %v287
        %300 = vmatpush.bf16.msra.mxu0 0
        %301 = vmatpush.bf16.msra.mxu0 0
        %302 = vmatpush.bf16.msra.mxu0 0
        %303 = vmatpush.bf16.msra.mxu0 0
        %304 = vmatpush.bf16.msra.mxu0 0
        %305 = vmatpush.bf16.msra.mxu0 0
        %306 = vmatpush.bf16.msra.mxu0 %v289
        %307 = vmatpush.bf16.msra.mxu0 %v268
        %308 = vmatmul.bf16.gmra.mxu0 %v282
        %v309 = vpop.f32.mrf.mxu0
        %v310 = vadd.f32 0.0, %v309
        %v311 = vpop.f32.mrf.mxu0
        %312 = vdwg.mxu0
        %313 = vmatpush.bf16.msra.mxu0 0
        %314 = vmatpush.bf16.msra.mxu0 0
        %315 = vmatpush.bf16.msra.mxu0 0
        %316 = vmatpush.bf16.msra.mxu0 0
        %317 = vmatpush.bf16.msra.mxu0 0
        %318 = vmatpush.bf16.msra.mxu0 0
        %319 = vmatpush.bf16.msra.mxu0 %v292
        %320 = vmatpush.bf16.msra.mxu0 %v269
        %321 = vmatmul.bf16.gmra.mxu0 %v282
        %v322 = vpop.f32.mrf.mxu0
        %v323 = vadd.f32 0.0, %v322
        %v324 = vpop.f32.mrf.mxu0
        %325 = vdwg.mxu0
        %326 = vmatpush.bf16.msra.mxu0 0
        %327 = vmatpush.bf16.msra.mxu0 0
        %328 = vmatpush.bf16.msra.mxu0 0
        %329 = vmatpush.bf16.msra.mxu0 0
        %330 = vmatpush.bf16.msra.mxu0 0
        %331 = vmatpush.bf16.msra.mxu0 0
        %332 = vmatpush.bf16.msra.mxu0 %v295
        %333 = vmatpush.bf16.msra.mxu0 %v270
        %334 = vmatmul.bf16.gmra.mxu0 %v282
        %v335 = vpop.f32.mrf.mxu0
        %v336 = vadd.f32 0.0, %v335
        %v337 = vpop.f32.mrf.mxu0
        %338 = vdwg.mxu0
        %339 = vmatpush.bf16.msra.mxu0 0
        %340 = vmatpush.bf16.msra.mxu0 0
        %341 = vmatpush.bf16.msra.mxu0 0
        %342 = vmatpush.bf16.msra.mxu0 0
        %343 = vmatpush.bf16.msra.mxu0 0
        %344 = vmatpush.bf16.msra.mxu0 0
        %345 = vmatpush.bf16.msra.mxu0 %v298
        %346 = vmatpush.bf16.msra.mxu0 %v271
        %347 = vmatmul.bf16.gmra.mxu0 %v282
        %v348 = vpop.f32.mrf.mxu0
        %v349 = vadd.f32 0.0, %v348
        %v350 = vpop.f32.mrf.mxu0
        %351 = vdwg.mxu0
        %v352 = vld [vmem:[%s2] sm:$0xff]
        %354 = vset.pattern.permute.xlu0 0
        %355 = vperm.xlu0 %354, %v352
        %v356 = vpop.permute.xlu0 %355
        %v358 = vmul.f32 %v310, %v356
        %v359 = vmul.f32 %v323, %v356
        %v360 = vmul.f32 %v336, %v356
        %v361 = vmul.f32 %v349, %v356
        %v362 = vld [vmem:[%s3] sm:$0xff]
        %364 = vset.pattern.permute.xlu0 0
        %365 = vperm.xlu0 %364, %v362
        %v366 = vpop.permute.xlu0 %365
        %v368 = vadd.f32 %v358, %v366
        %v369 = vadd.f32 %v359, %v366
        %v370 = vadd.f32 %v360, %v366
        %v371 = vadd.f32 %v361, %v366
        %v372 = vmax.f32 %v368, 0.0
        %v373 = vmax.f32 %v369, 0.0
        %v374 = vmax.f32 %v370, 0.0
        %v375 = vmax.f32 %v371, 0.0
        %v376 = vpack.c.bf16 %v373, %v372
        %v377 = vpack.c.bf16 %v375, %v374
        %378 = vst [vmem:[%s232] sm:$0xff] %v376
        %379 = vst [vmem:[%s232 + $0x8] sm:$0xff] %v377
        %s380 = smul.u32 4, %s15
        %p381 = scmp.lt.s32.totalorder %s380, 15
        %s382 = scalar_select %p381, %s380, 15
        %s383 = smul.addr %s382, 4
        %s384 = scalar_lea.vmem %s4, %s383
        // Predicated region
        $region60: #{unet_forward.15} parent=54 // pred_check
          %p385 = pneg %p122
        $region61: #{unet_forward.15} parent=54 // pred_check_branch
          %387 = sbr.rel (%p385) target = $region63
        $region62: #{unet_forward.15} parent=54 // pred_region
          %s388 = smul.u32 4, %s15
        $region63: #{unet_forward.15} parent=54 // pred_fallthru
          _
      $region55: #{unet_forward.15} parent=5 // pred_fallthru
        _
      %p389 = scmp.le.s32.totalorder 2, %s10
      // Predicated region
      $region64: #{unet_forward.15} parent=5 // pred_check
        %p390 = pneg %p389
      $region65: #{unet_forward.15} parent=5 // pred_check_branch
        %392 = sbr.rel (%p390) target = $region67
      $region66: #{unet_forward.15} parent=5 // pred_region
        %s393 = ssub.s32 %s10, 2
        // Predicated region
        $region68: #{unet_forward.15} parent=66 // pred_check
          %p394 = pneg %p128
        $region69: #{unet_forward.15} parent=66 // pred_check_branch
          %396 = sbr.rel (%p394) target = $region71
        $region70: #{unet_forward.15} parent=66 // pred_region
          %s397 = smul.u32 4, %s16
          %p398 = scmp.lt.s32.totalorder %s397, 15
          %s399 = scalar_select %p398, %s397, 15
          %s400 = smul.addr %s399, 4
          %s401 = scalar_lea.vmem %s4, %s400
        $region71: #{unet_forward.15} parent=66 // pred_fallthru
          _
      $region67: #{unet_forward.15} parent=5 // pred_fallthru
        _
    $region6: #{unet_forward.15} parent=1 // loop_footer
      %s14 = sadd.s32 1, %s10
    $region7: #{unet_forward.15} parent=1 // loop_footer_branch
      %9 = sbr.rel target = $region3
    $region8: #{unet_forward.15} parent=1 // loop_exit
      _

// kernel: unet_forward.16
$region0: #{unet_forward.16}
  #allocation0 [shape = 'u32[]', space=smem, size = 0x4, offset = 0x4, fixed_abs, tag = 'smem constant byte address 0x4 - core index']
  #allocation1 [shape = 'u32[72,128]{1,0:T(1,128)}', space=vmem, size = 0x9000, scoped, tag = 'internal scratch']
  %s0 = inlined_call_operand.vmem [shape: bf16[16,72], index: 0, kind: input, shape index: {}]
  %s1 = inlined_call_operand.vmem [shape: bf16[72,512], index: 1, kind: input, shape index: {}]
  %s2 = inlined_call_operand.vmem [shape: f32[16,1], index: 2, kind: input, shape index: {}]
  %s3 = inlined_call_operand.vmem [shape: f32[16,1], index: 3, kind: input, shape index: {}]
  %s4 = inlined_call_operand.vmem [shape: bf16[16,512], index: 4, kind: output, shape index: {}]
  %s5 = sld [smem:[#allocation0]]
  $region26: #{unet_forward.16} parent=0
    _
  %s7 = ssub.s32 1, %s5
  %s8 = scalar_select 0, %s7, %s5
  // Predicated region
  $region2: #{unet_forward.16} parent=0 // pred_check
    _
  $region3: #{unet_forward.16} parent=0 // pred_check_branch
    %10 = sbr.rel (0) target = $region5
  $region4: #{unet_forward.16} parent=0 // pred_region
    _
  $region5: #{unet_forward.16} parent=0 // pred_fallthru
    _
  // Predicated region
  $region6: #{unet_forward.16} parent=0 // pred_check
    _
  $region7: #{unet_forward.16} parent=0 // pred_check_branch
    %12 = sbr.rel (0) target = $region9
  $region8: #{unet_forward.16} parent=0 // pred_region
    _
  $region9: #{unet_forward.16} parent=0 // pred_fallthru
    _
  // Predicated region
  $region10: #{unet_forward.16} parent=0 // pred_check
    _
  $region11: #{unet_forward.16} parent=0 // pred_check_branch
    %14 = sbr.rel (0) target = $region13
  $region12: #{unet_forward.16} parent=0 // pred_region
    _
  $region13: #{unet_forward.16} parent=0 // pred_fallthru
    _
  // Predicated region
  $region14: #{unet_forward.16} parent=0 // pred_check
    _
  $region15: #{unet_forward.16} parent=0 // pred_check_branch
    %16 = sbr.rel (0) target = $region17
  $region16: #{unet_forward.16} parent=0 // pred_region
    _
  $region17: #{unet_forward.16} parent=0 // pred_fallthru
    _
  %v18 = vld [vmem:[%s0] sm:$0xf]
  %v19 = vld [vmem:[%s0 + $0x4] sm:$0xf]
  %v20 = vld [vmem:[%s1] sm:$0xff]
  %v21 = vld [vmem:[%s1 + $0x8] sm:$0xff]
  %v22 = vld [vmem:[%s1 + $0x10] sm:$0xff]
  %v23 = vld [vmem:[%s1 + $0x18] sm:$0xff]
  %v24 = vld [vmem:[%s1 + $0x20] sm:$0xff]
  %v25 = vld [vmem:[%s1 + $0x28] sm:$0xff]
  %v26 = vld [vmem:[%s1 + $0x30] sm:$0xff]
  %v27 = vld [vmem:[%s1 + $0x38] sm:$0xff]
  %v28 = vld [vmem:[%s1 + $0x40] sm:$0xff]
  %v29 = vld [vmem:[%s1 + $0x48] sm:$0xff]
  %v30 = vld [vmem:[%s1 + $0x50] sm:$0xff]
  %v31 = vld [vmem:[%s1 + $0x58] sm:$0xff]
  %v32 = vld [vmem:[%s1 + $0x60] sm:$0xff]
  %v33 = vld [vmem:[%s1 + $0x68] sm:$0xff]
  %v34 = vld [vmem:[%s1 + $0x70] sm:$0xff]
  %v35 = vld [vmem:[%s1 + $0x78] sm:$0xff]
  %v36 = vld [vmem:[%s1 + $0x80] sm:$0xff]
  %v37 = vld [vmem:[%s1 + $0x88] sm:$0xff]
  %v40 = vunpack.c.l.b16 %v18
  %v41 = vunpack.c.l.b16 %v19
  %v42 = vpack.c.b16 %v41, %v40
  %v61 = vunpack.c.l.b16 %v20
  %v62 = vunpack.c.h.b16 %v20
  %v63 = vunpack.c.l.b16 %v21
  %v64 = vunpack.c.h.b16 %v21
  %v65 = vunpack.c.l.b16 %v22
  %v66 = vunpack.c.h.b16 %v22
  %v67 = vunpack.c.l.b16 %v23
  %v68 = vunpack.c.h.b16 %v23
  %v69 = vunpack.c.l.b16 %v24
  %v70 = vunpack.c.h.b16 %v24
  %v71 = vunpack.c.l.b16 %v25
  %v72 = vunpack.c.h.b16 %v25
  %v73 = vunpack.c.l.b16 %v26
  %v74 = vunpack.c.h.b16 %v26
  %v75 = vunpack.c.l.b16 %v27
  %v76 = vunpack.c.h.b16 %v27
  %v77 = vunpack.c.l.b16 %v28
  %v78 = vunpack.c.h.b16 %v28
  %v79 = vunpack.c.l.b16 %v29
  %v80 = vunpack.c.h.b16 %v29
  %v81 = vunpack.c.l.b16 %v30
  %v82 = vunpack.c.h.b16 %v30
  %v83 = vunpack.c.l.b16 %v31
  %v84 = vunpack.c.h.b16 %v31
  %v85 = vunpack.c.l.b16 %v32
  %v86 = vunpack.c.h.b16 %v32
  %v87 = vunpack.c.l.b16 %v33
  %v88 = vunpack.c.h.b16 %v33
  %v89 = vunpack.c.l.b16 %v34
  %v90 = vunpack.c.h.b16 %v34
  %v91 = vunpack.c.l.b16 %v35
  %v92 = vunpack.c.h.b16 %v35
  %v93 = vunpack.c.l.b16 %v36
  %v94 = vunpack.c.h.b16 %v36
  %v95 = vunpack.c.l.b16 %v37
  %v96 = vunpack.c.h.b16 %v37
  %v97 = vpack.c.b16 %v65, %v61
  %v98 = vpack.c.b16 %v66, %v62
  %v99 = vpack.c.b16 %v67, %v63
  %v100 = vpack.c.b16 %v68, %v64
  %v101 = vpack.c.b16 %v73, %v69
  %v102 = vpack.c.b16 %v74, %v70
  %v103 = vpack.c.b16 %v75, %v71
  %v104 = vpack.c.b16 %v76, %v72
  %v105 = vpack.c.b16 %v81, %v77
  %v106 = vpack.c.b16 %v82, %v78
  %v107 = vpack.c.b16 %v83, %v79
  %v108 = vpack.c.b16 %v84, %v80
  %v109 = vpack.c.b16 %v89, %v85
  %v110 = vpack.c.b16 %v90, %v86
  %v111 = vpack.c.b16 %v91, %v87
  %v112 = vpack.c.b16 %v92, %v88
  %v113 = vpack.c.b16 %v93, %v93
  %v114 = vpack.c.b16 %v94, %v94
  %v115 = vpack.c.b16 %v95, %v95
  %v116 = vpack.c.b16 %v96, %v96
  %vm133 = vcmask 588800
  %v135 = vsel %vm133, %v42, 0
  %vm137 = vcmask 1043456
  %v139 = vsel %vm137, %v113, 0
  %v142 = vsel %vm137, %v114, 0
  %v145 = vsel %vm137, %v115, 0
  %v148 = vsel %vm137, %v116, 0
  %150 = vmatpush.bf16.msra.mxu0 0
  %151 = vmatpush.bf16.msra.mxu0 0
  %152 = vmatpush.bf16.msra.mxu0 0
  %153 = vmatpush.bf16.msra.mxu0 %v139
  %154 = vmatpush.bf16.msra.mxu0 %v109
  %155 = vmatpush.bf16.msra.mxu0 %v105
  %156 = vmatpush.bf16.msra.mxu0 %v101
  %157 = vmatpush.bf16.msra.mxu0 %v97
  %158 = vmatmul.bf16.gmra.mxu0 %v135
  %v159 = vpop.f32.mrf.mxu0
  %v160 = vadd.f32 0.0, %v159
  %v161 = vpop.f32.mrf.mxu0
  %v162 = vadd.f32 0.0, %v161
  %163 = vdwg.mxu0
  %164 = vmatpush.bf16.msra.mxu0 0
  %165 = vmatpush.bf16.msra.mxu0 0
  %166 = vmatpush.bf16.msra.mxu0 0
  %167 = vmatpush.bf16.msra.mxu0 %v142
  %168 = vmatpush.bf16.msra.mxu0 %v110
  %169 = vmatpush.bf16.msra.mxu0 %v106
  %170 = vmatpush.bf16.msra.mxu0 %v102
  %171 = vmatpush.bf16.msra.mxu0 %v98
  %172 = vmatmul.bf16.gmra.mxu0 %v135
  %v173 = vpop.f32.mrf.mxu0
  %v174 = vadd.f32 0.0, %v173
  %v175 = vpop.f32.mrf.mxu0
  %v176 = vadd.f32 0.0, %v175
  %177 = vdwg.mxu0
  %178 = vmatpush.bf16.msra.mxu0 0
  %179 = vmatpush.bf16.msra.mxu0 0
  %180 = vmatpush.bf16.msra.mxu0 0
  %181 = vmatpush.bf16.msra.mxu0 %v145
  %182 = vmatpush.bf16.msra.mxu0 %v111
  %183 = vmatpush.bf16.msra.mxu0 %v107
  %184 = vmatpush.bf16.msra.mxu0 %v103
  %185 = vmatpush.bf16.msra.mxu0 %v99
  %186 = vmatmul.bf16.gmra.mxu0 %v135
  %v187 = vpop.f32.mrf.mxu0
  %v188 = vadd.f32 0.0, %v187
  %v189 = vpop.f32.mrf.mxu0
  %v190 = vadd.f32 0.0, %v189
  %191 = vdwg.mxu0
  %192 = vmatpush.bf16.msra.mxu0 0
  %193 = vmatpush.bf16.msra.mxu0 0
  %194 = vmatpush.bf16.msra.mxu0 0
  %195 = vmatpush.bf16.msra.mxu0 %v148
  %196 = vmatpush.bf16.msra.mxu0 %v112
  %197 = vmatpush.bf16.msra.mxu0 %v108
  %198 = vmatpush.bf16.msra.mxu0 %v104
  %199 = vmatpush.bf16.msra.mxu0 %v100
  %200 = vmatmul.bf16.gmra.mxu0 %v135
  %v201 = vpop.f32.mrf.mxu0
  %v202 = vadd.f32 0.0, %v201
  %v203 = vpop.f32.mrf.mxu0
  %v204 = vadd.f32 0.0, %v203
  %205 = vdwg.mxu0
  %v206 = vld [vmem:[%s2] sm:$0xff]
  %v207 = vld [vmem:[%s2 + $0x8] sm:$0xff]
  %209 = vset.pattern.permute.xlu0 0
  %210 = vperm.xlu0 %209, %v206
  %v211 = vpop.permute.xlu0 %210
  %214 = vset.pattern.permute.xlu0 0
  %215 = vperm.xlu0 %214, %v207
  %v216 = vpop.permute.xlu0 %215
  %v218 = vmul.f32 %v160, %v211
  %v219 = vmul.f32 %v174, %v211
  %v220 = vmul.f32 %v188, %v211
  %v221 = vmul.f32 %v202, %v211
  %v222 = vmul.f32 %v162, %v216
  %v223 = vmul.f32 %v176, %v216
  %v224 = vmul.f32 %v190, %v216
  %v225 = vmul.f32 %v204, %v216
  %v226 = vld [vmem:[%s3] sm:$0xff]
  %v227 = vld [vmem:[%s3 + $0x8] sm:$0xff]
  %229 = vset.pattern.permute.xlu0 0
  %230 = vperm.xlu0 %229, %v226
  %v231 = vpop.permute.xlu0 %230
  %234 = vset.pattern.permute.xlu0 0
  %235 = vperm.xlu0 %234, %v227
  %v236 = vpop.permute.xlu0 %235
  %v238 = vadd.f32 %v218, %v231
  %v239 = vadd.f32 %v219, %v231
  %v240 = vadd.f32 %v220, %v231
  %v241 = vadd.f32 %v221, %v231
  %v242 = vadd.f32 %v222, %v236
  %v243 = vadd.f32 %v223, %v236
  %v244 = vadd.f32 %v224, %v236
  %v245 = vadd.f32 %v225, %v236
  %v246 = vmax.f32 %v238, 0.0
  %v247 = vmax.f32 %v239, 0.0
  %v248 = vmax.f32 %v240, 0.0
  %v249 = vmax.f32 %v241, 0.0
  %v250 = vmax.f32 %v242, 0.0
  %v251 = vmax.f32 %v243, 0.0
  %v252 = vmax.f32 %v244, 0.0
  %v253 = vmax.f32 %v245, 0.0
  %v254 = vpack.c.bf16 %v247, %v246
  %v255 = vpack.c.bf16 %v249, %v248
  %v256 = vpack.c.bf16 %v251, %v250
  %v257 = vpack.c.bf16 %v253, %v252
  %258 = vst [vmem:[%s4] sm:$0xff] %v254
  %259 = vst [vmem:[%s4 + $0x8] sm:$0xff] %v255
  %260 = vst [vmem:[%s4 + $0x10] sm:$0xff] %v256
  %261 = vst [vmem:[%s4 + $0x18] sm:$0xff] %v257
  // Predicated region
  $region18: #{unet_forward.16} parent=0 // pred_check
    _
  $region19: #{unet_forward.16} parent=0 // pred_check_branch
    %263 = sbr.rel (0) target = $region21
  $region20: #{unet_forward.16} parent=0 // pred_region
    _
  $region21: #{unet_forward.16} parent=0 // pred_fallthru
    _
  // Predicated region
  $region22: #{unet_forward.16} parent=0 // pred_check
    _
  $region23: #{unet_forward.16} parent=0 // pred_check_branch
    %265 = sbr.rel (0) target = $region25
  $region24: #{unet_forward.16} parent=0 // pred_region
    _
  $region25: #{unet_forward.16} parent=0 // pred_fallthru
    _

// kernel: unet_forward.17
$region0: #{unet_forward.17}
  #allocation0 [shape = 'u32[]', space=smem, size = 0x4, offset = 0x4, fixed_abs, tag = 'smem constant byte address 0x4 - core index']
  #allocation1 [shape = 'u32[72,128]{1,0:T(1,128)}', space=vmem, size = 0x9000, scoped, tag = 'internal scratch']
  %s0 = inlined_call_operand.vmem [shape: bf16[16,144], index: 0, kind: input, shape index: {}]
  %s1 = inlined_call_operand.vmem [shape: bf16[144,128], index: 1, kind: input, shape index: {}]
  %s2 = inlined_call_operand.vmem [shape: f32[16,1], index: 2, kind: input, shape index: {}]
  %s3 = inlined_call_operand.vmem [shape: f32[16,1], index: 3, kind: input, shape index: {}]
  %s4 = inlined_call_operand.vmem [shape: bf16[16,128], index: 4, kind: output, shape index: {}]
  %s5 = sld [smem:[#allocation0]]
  $region26: #{unet_forward.17} parent=0
    _
  %s7 = ssub.s32 1, %s5
  %s8 = scalar_select 0, %s7, %s5
  // Predicated region
  $region2: #{unet_forward.17} parent=0 // pred_check
    _
  $region3: #{unet_forward.17} parent=0 // pred_check_branch
    %10 = sbr.rel (0) target = $region5
  $region4: #{unet_forward.17} parent=0 // pred_region
    _
  $region5: #{unet_forward.17} parent=0 // pred_fallthru
    _
  // Predicated region
  $region6: #{unet_forward.17} parent=0 // pred_check
    _
  $region7: #{unet_forward.17} parent=0 // pred_check_branch
    %12 = sbr.rel (0) target = $region9
  $region8: #{unet_forward.17} parent=0 // pred_region
    _
  $region9: #{unet_forward.17} parent=0 // pred_fallthru
    _
  // Predicated region
  $region10: #{unet_forward.17} parent=0 // pred_check
    _
  $region11: #{unet_forward.17} parent=0 // pred_check_branch
    %14 = sbr.rel (0) target = $region13
  $region12: #{unet_forward.17} parent=0 // pred_region
    _
  $region13: #{unet_forward.17} parent=0 // pred_fallthru
    _
  // Predicated region
  $region14: #{unet_forward.17} parent=0 // pred_check
    _
  $region15: #{unet_forward.17} parent=0 // pred_check_branch
    %16 = sbr.rel (0) target = $region17
  $region16: #{unet_forward.17} parent=0 // pred_region
    _
  $region17: #{unet_forward.17} parent=0 // pred_fallthru
    _
  %v18 = vld [vmem:[%s0] sm:$0xff]
  %v19 = vld [vmem:[%s0 + $0x8] sm:$0xff]
  %v20 = vld [vmem:[%s1] sm:$0xf]
  %v21 = vld [vmem:[%s1 + $0x4] sm:$0xf]
  %v22 = vld [vmem:[%s1 + $0x8] sm:$0xf]
  %v23 = vld [vmem:[%s1 + $0xc] sm:$0xf]
  %v24 = vld [vmem:[%s1 + $0x10] sm:$0xf]
  %v25 = vld [vmem:[%s1 + $0x14] sm:$0xf]
  %v26 = vld [vmem:[%s1 + $0x18] sm:$0xf]
  %v27 = vld [vmem:[%s1 + $0x1c] sm:$0xf]
  %v28 = vld [vmem:[%s1 + $0x20] sm:$0xf]
  %v29 = vld [vmem:[%s1 + $0x24] sm:$0xf]
  %v30 = vld [vmem:[%s1 + $0x28] sm:$0xf]
  %v31 = vld [vmem:[%s1 + $0x2c] sm:$0xf]
  %v32 = vld [vmem:[%s1 + $0x30] sm:$0xf]
  %v33 = vld [vmem:[%s1 + $0x34] sm:$0xf]
  %v34 = vld [vmem:[%s1 + $0x38] sm:$0xf]
  %v35 = vld [vmem:[%s1 + $0x3c] sm:$0xf]
  %v36 = vld [vmem:[%s1 + $0x40] sm:$0xf]
  %v37 = vld [vmem:[%s1 + $0x44] sm:$0xf]
  %v40 = vunpack.c.l.b16 %v18
  %v41 = vunpack.c.h.b16 %v18
  %v42 = vunpack.c.l.b16 %v19
  %v43 = vunpack.c.h.b16 %v19
  %v44 = vpack.c.b16 %v42, %v40
  %v45 = vpack.c.b16 %v43, %v41
  %v65 = vunpack.c.l.b16 %v20
  %v66 = vunpack.c.l.b16 %v21
  %v67 = vunpack.c.l.b16 %v22
  %v68 = vunpack.c.l.b16 %v23
  %v69 = vunpack.c.l.b16 %v24
  %v70 = vunpack.c.l.b16 %v25
  %v71 = vunpack.c.l.b16 %v26
  %v72 = vunpack.c.l.b16 %v27
  %v73 = vunpack.c.l.b16 %v28
  %v74 = vunpack.c.l.b16 %v29
  %v75 = vunpack.c.l.b16 %v30
  %v76 = vunpack.c.l.b16 %v31
  %v77 = vunpack.c.l.b16 %v32
  %v78 = vunpack.c.l.b16 %v33
  %v79 = vunpack.c.l.b16 %v34
  %v80 = vunpack.c.l.b16 %v35
  %v81 = vunpack.c.l.b16 %v36
  %v82 = vunpack.c.l.b16 %v37
  %v83 = vpack.c.b16 %v66, %v65
  %v84 = vpack.c.b16 %v68, %v67
  %v85 = vpack.c.b16 %v70, %v69
  %v86 = vpack.c.b16 %v72, %v71
  %v87 = vpack.c.b16 %v74, %v73
  %v88 = vpack.c.b16 %v76, %v75
  %v89 = vpack.c.b16 %v78, %v77
  %v90 = vpack.c.b16 %v80, %v79
  %v91 = vpack.c.b16 %v82, %v81
  %vm101 = vcmask 130048
  %v103 = vsel %vm101, %v45, 0
  %105 = vmatpush.bf16.msra.mxu0 %v90
  %106 = vmatpush.bf16.msra.mxu0 %v89
  %107 = vmatpush.bf16.msra.mxu0 %v88
  %108 = vmatpush.bf16.msra.mxu0 %v87
  %109 = vmatpush.bf16.msra.mxu0 %v86
  %110 = vmatpush.bf16.msra.mxu0 %v85
  %111 = vmatpush.bf16.msra.mxu0 %v84
  %112 = vmatpush.bf16.msra.mxu0 %v83
  %113 = vmatmul.bf16.gmra.mxu0 %v44
  %v114 = vpop.f32.mrf.mxu0
  %v115 = vadd.f32 0.0, %v114
  %v116 = vpop.f32.mrf.mxu0
  %v117 = vadd.f32 0.0, %v116
  %118 = vdwg.mxu0
  %119 = vmatpush.bf16.msra.mxu0 0
  %120 = vmatpush.bf16.msra.mxu0 0
  %121 = vmatpush.bf16.msra.mxu0 0
  %122 = vmatpush.bf16.msra.mxu0 0
  %123 = vmatpush.bf16.msra.mxu0 0
  %124 = vmatpush.bf16.msra.mxu0 0
  %125 = vmatpush.bf16.msra.mxu0 0
  %126 = vmatpush.bf16.msra.mxu0 %v91
  %127 = vmatmul.bf16.gmra.mxu0 %v103
  %v128 = vpop.f32.mrf.mxu0
  %v129 = vadd.f32 %v115, %v128
  %v130 = vpop.f32.mrf.mxu0
  %v131 = vadd.f32 %v117, %v130
  %132 = vdwg.mxu0
  %v133 = vld [vmem:[%s2] sm:$0xff]
  %v134 = vld [vmem:[%s2 + $0x8] sm:$0xff]
  %136 = vset.pattern.permute.xlu0 0
  %137 = vperm.xlu0 %136, %v133
  %v138 = vpop.permute.xlu0 %137
  %141 = vset.pattern.permute.xlu0 0
  %142 = vperm.xlu0 %141, %v134
  %v143 = vpop.permute.xlu0 %142
  %v145 = vmul.f32 %v129, %v138
  %v146 = vmul.f32 %v131, %v143
  %v147 = vld [vmem:[%s3] sm:$0xff]
  %v148 = vld [vmem:[%s3 + $0x8] sm:$0xff]
  %150 = vset.pattern.permute.xlu0 0
  %151 = vperm.xlu0 %150, %v147
  %v152 = vpop.permute.xlu0 %151
  %155 = vset.pattern.permute.xlu0 0
  %156 = vperm.xlu0 %155, %v148
  %v157 = vpop.permute.xlu0 %156
  %v159 = vadd.f32 %v145, %v152
  %v160 = vadd.f32 %v146, %v157
  %v161 = vmax.f32 %v159, 0.0
  %v162 = vmax.f32 %v160, 0.0
  %v163 = vpack.c.bf16 %v161, %v161
  %v164 = vpack.c.bf16 %v162, %v162
  %165 = vst [vmem:[%s4] sm:$0xf] %v163
  %166 = vst [vmem:[%s4 + $0x4] sm:$0xf] %v164
  // Predicated region
  $region18: #{unet_forward.17} parent=0 // pred_check
    _
  $region19: #{unet_forward.17} parent=0 // pred_check_branch
    %168 = sbr.rel (0) target = $region21
  $region20: #{unet_forward.17} parent=0 // pred_region
    _
  $region21: #{unet_forward.17} parent=0 // pred_fallthru
    _
  // Predicated region
  $region22: #{unet_forward.17} parent=0 // pred_check
    _
  $region23: #{unet_forward.17} parent=0 // pred_check_branch
    %170 = sbr.rel (0) target = $region25
  $region24: #{unet_forward.17} parent=0 // pred_region
    _
  $region25: #{unet_forward.17} parent=0 // pred_fallthru
    _

// kernel: unet_forward.18
$region0: #{unet_forward.18}
  #allocation0 [shape = 'u32[]', space=smem, size = 0x4, offset = 0x4, fixed_abs, tag = 'smem constant byte address 0x4 - core index']
  #allocation1 [shape = 'u32[72,128]{1,0:T(1,128)}', space=vmem, size = 0x9000, scoped, tag = 'internal scratch']
  %s0 = inlined_call_operand.vmem [shape: bf16[32,144], index: 0, kind: input, shape index: {}]
  %s1 = inlined_call_operand.vmem [shape: bf16[144,32], index: 1, kind: input, shape index: {}]
  %s2 = inlined_call_operand.vmem [shape: f32[32,1], index: 2, kind: input, shape index: {}]
  %s3 = inlined_call_operand.vmem [shape: f32[32,1], index: 3, kind: input, shape index: {}]
  %s4 = inlined_call_operand.vmem [shape: bf16[32,32], index: 4, kind: output, shape index: {}]
  %s5 = sld [smem:[#allocation0]]
  $region26: #{unet_forward.18} parent=0
    _
  %s7 = ssub.s32 1, %s5
  %s8 = scalar_select 0, %s7, %s5
  // Predicated region
  $region2: #{unet_forward.18} parent=0 // pred_check
    _
  $region3: #{unet_forward.18} parent=0 // pred_check_branch
    %10 = sbr.rel (0) target = $region5
  $region4: #{unet_forward.18} parent=0 // pred_region
    _
  $region5: #{unet_forward.18} parent=0 // pred_fallthru
    _
  // Predicated region
  $region6: #{unet_forward.18} parent=0 // pred_check
    _
  $region7: #{unet_forward.18} parent=0 // pred_check_branch
    %12 = sbr.rel (0) target = $region9
  $region8: #{unet_forward.18} parent=0 // pred_region
    _
  $region9: #{unet_forward.18} parent=0 // pred_fallthru
    _
  // Predicated region
  $region10: #{unet_forward.18} parent=0 // pred_check
    _
  $region11: #{unet_forward.18} parent=0 // pred_check_branch
    %14 = sbr.rel (0) target = $region13
  $region12: #{unet_forward.18} parent=0 // pred_region
    _
  $region13: #{unet_forward.18} parent=0 // pred_fallthru
    _
  // Predicated region
  $region14: #{unet_forward.18} parent=0 // pred_check
    _
  $region15: #{unet_forward.18} parent=0 // pred_check_branch
    %16 = sbr.rel (0) target = $region17
  $region16: #{unet_forward.18} parent=0 // pred_region
    _
  $region17: #{unet_forward.18} parent=0 // pred_fallthru
    _
  %v18 = vld [vmem:[%s0] sm:$0xff]
  %v19 = vld [vmem:[%s0 + $0x8] sm:$0xff]
  %v20 = vld [vmem:[%s0 + $0x10] sm:$0xff]
  %v21 = vld [vmem:[%s0 + $0x18] sm:$0xff]
  %v22 = vld [vmem:[%s1] sm:$0xf]
  %v23 = vld [vmem:[%s1 + $0x4] sm:$0xf]
  %v24 = vld [vmem:[%s1 + $0x8] sm:$0xf]
  %v25 = vld [vmem:[%s1 + $0xc] sm:$0xf]
  %v26 = vld [vmem:[%s1 + $0x10] sm:$0xf]
  %v27 = vld [vmem:[%s1 + $0x14] sm:$0xf]
  %v28 = vld [vmem:[%s1 + $0x18] sm:$0xf]
  %v29 = vld [vmem:[%s1 + $0x1c] sm:$0xf]
  %v30 = vld [vmem:[%s1 + $0x20] sm:$0xf]
  %v31 = vld [vmem:[%s1 + $0x24] sm:$0xf]
  %v32 = vld [vmem:[%s1 + $0x28] sm:$0xf]
  %v33 = vld [vmem:[%s1 + $0x2c] sm:$0xf]
  %v34 = vld [vmem:[%s1 + $0x30] sm:$0xf]
  %v35 = vld [vmem:[%s1 + $0x34] sm:$0xf]
  %v36 = vld [vmem:[%s1 + $0x38] sm:$0xf]
  %v37 = vld [vmem:[%s1 + $0x3c] sm:$0xf]
  %v38 = vld [vmem:[%s1 + $0x40] sm:$0xf]
  %v39 = vld [vmem:[%s1 + $0x44] sm:$0xf]
  %v44 = vunpack.c.l.b16 %v18
  %v45 = vunpack.c.h.b16 %v18
  %v46 = vunpack.c.l.b16 %v19
  %v47 = vunpack.c.h.b16 %v19
  %v48 = vunpack.c.l.b16 %v20
  %v49 = vunpack.c.h.b16 %v20
  %v50 = vunpack.c.l.b16 %v21
  %v51 = vunpack.c.h.b16 %v21
  %v52 = vpack.c.b16 %v46, %v44
  %v53 = vpack.c.b16 %v47, %v45
  %v54 = vpack.c.b16 %v50, %v48
  %v55 = vpack.c.b16 %v51, %v49
  %v76 = vunpack.c.l.b16 %v22
  %v77 = vunpack.c.l.b16 %v23
  %v78 = vunpack.c.l.b16 %v24
  %v79 = vunpack.c.l.b16 %v25
  %v80 = vunpack.c.l.b16 %v26
  %v81 = vunpack.c.l.b16 %v27
  %v82 = vunpack.c.l.b16 %v28
  %v83 = vunpack.c.l.b16 %v29
  %v84 = vunpack.c.l.b16 %v30
  %v85 = vunpack.c.l.b16 %v31
  %v86 = vunpack.c.l.b16 %v32
  %v87 = vunpack.c.l.b16 %v33
  %v88 = vunpack.c.l.b16 %v34
  %v89 = vunpack.c.l.b16 %v35
  %v90 = vunpack.c.l.b16 %v36
  %v91 = vunpack.c.l.b16 %v37
  %v92 = vunpack.c.l.b16 %v38
  %v93 = vunpack.c.l.b16 %v39
  %v94 = vpack.c.b16 %v77, %v76
  %v95 = vpack.c.b16 %v79, %v78
  %v96 = vpack.c.b16 %v81, %v80
  %v97 = vpack.c.b16 %v83, %v82
  %v98 = vpack.c.b16 %v85, %v84
  %v99 = vpack.c.b16 %v87, %v86
  %v100 = vpack.c.b16 %v89, %v88
  %v101 = vpack.c.b16 %v91, %v90
  %v102 = vpack.c.b16 %v93, %v92
  %vm112 = vcmask 130048
  %v114 = vsel %vm112, %v53, 0
  %v117 = vsel %vm112, %v55, 0
  %119 = vmatpush.bf16.msra.mxu0 %v101
  %120 = vmatpush.bf16.msra.mxu0 %v100
  %121 = vmatpush.bf16.msra.mxu0 %v99
  %122 = vmatpush.bf16.msra.mxu0 %v98
  %123 = vmatpush.bf16.msra.mxu0 %v97
  %124 = vmatpush.bf16.msra.mxu0 %v96
  %125 = vmatpush.bf16.msra.mxu0 %v95
  %126 = vmatpush.bf16.msra.mxu0 %v94
  %127 = vmatmul.bf16.gmra.mxu0 %v52
  %v128 = vpop.f32.mrf.mxu0
  %v129 = vadd.f32 0.0, %v128
  %v130 = vpop.f32.mrf.mxu0
  %v131 = vadd.f32 0.0, %v130
  %132 = vmatmul.bf16.gmra.mxu0 %v54
  %v133 = vpop.f32.mrf.mxu0
  %v134 = vadd.f32 0.0, %v133
  %v135 = vpop.f32.mrf.mxu0
  %v136 = vadd.f32 0.0, %v135
  %137 = vdwg.mxu0
  %138 = vmatpush.bf16.msra.mxu0 0
  %139 = vmatpush.bf16.msra.mxu0 0
  %140 = vmatpush.bf16.msra.mxu0 0
  %141 = vmatpush.bf16.msra.mxu0 0
  %142 = vmatpush.bf16.msra.mxu0 0
  %143 = vmatpush.bf16.msra.mxu0 0
  %144 = vmatpush.bf16.msra.mxu0 0
  %145 = vmatpush.bf16.msra.mxu0 %v102
  %146 = vmatmul.bf16.gmra.mxu0 %v114
  %v147 = vpop.f32.mrf.mxu0
  %v148 = vadd.f32 %v129, %v147
  %v149 = vpop.f32.mrf.mxu0
  %v150 = vadd.f32 %v131, %v149
  %151 = vmatmul.bf16.gmra.mxu0 %v117
  %v152 = vpop.f32.mrf.mxu0
  %v153 = vadd.f32 %v134, %v152
  %v154 = vpop.f32.mrf.mxu0
  %v155 = vadd.f32 %v136, %v154
  %156 = vdwg.mxu0
  %v157 = vld [vmem:[%s2] sm:$0xff]
  %v158 = vld [vmem:[%s2 + $0x8] sm:$0xff]
  %v159 = vld [vmem:[%s2 + $0x10] sm:$0xff]
  %v160 = vld [vmem:[%s2 + $0x18] sm:$0xff]
  %162 = vset.pattern.permute.xlu0 0
  %163 = vperm.xlu0 %162, %v157
  %v164 = vpop.permute.xlu0 %163
  %167 = vset.pattern.permute.xlu0 0
  %168 = vperm.xlu0 %167, %v158
  %v169 = vpop.permute.xlu0 %168
  %172 = vset.pattern.permute.xlu0 0
  %173 = vperm.xlu0 %172, %v159
  %v174 = vpop.permute.xlu0 %173
  %177 = vset.pattern.permute.xlu0 0
  %178 = vperm.xlu0 %177, %v160
  %v179 = vpop.permute.xlu0 %178
  %v181 = vmul.f32 %v148, %v164
  %v182 = vmul.f32 %v150, %v169
  %v183 = vmul.f32 %v153, %v174
  %v184 = vmul.f32 %v155, %v179
  %v185 = vld [vmem:[%s3] sm:$0xff]
  %v186 = vld [vmem:[%s3 + $0x8] sm:$0xff]
  %v187 = vld [vmem:[%s3 + $0x10] sm:$0xff]
  %v188 = vld [vmem:[%s3 + $0x18] sm:$0xff]
  %190 = vset.pattern.permute.xlu0 0
  %191 = vperm.xlu0 %190, %v185
  %v192 = vpop.permute.xlu0 %191
  %195 = vset.pattern.permute.xlu0 0
  %196 = vperm.xlu0 %195, %v186
  %v197 = vpop.permute.xlu0 %196
  %200 = vset.pattern.permute.xlu0 0
  %201 = vperm.xlu0 %200, %v187
  %v202 = vpop.permute.xlu0 %201
  %205 = vset.pattern.permute.xlu0 0
  %206 = vperm.xlu0 %205, %v188
  %v207 = vpop.permute.xlu0 %206
  %v209 = vadd.f32 %v181, %v192
  %v210 = vadd.f32 %v182, %v197
  %v211 = vadd.f32 %v183, %v202
  %v212 = vadd.f32 %v184, %v207
  %v213 = vmax.f32 %v209, 0.0
  %v214 = vmax.f32 %v210, 0.0
  %v215 = vmax.f32 %v211, 0.0
  %v216 = vmax.f32 %v212, 0.0
  %v217 = vpack.c.bf16 %v213, %v213
  %v218 = vpack.c.bf16 %v214, %v214
  %v219 = vpack.c.bf16 %v215, %v215
  %v220 = vpack.c.bf16 %v216, %v216
  %vm221 = vcmask 257024
  %222 = vst.msk [vmem:[%s4] sm:$0xf] %vm221, %v217
  %223 = vst.msk [vmem:[%s4 + $0x4] sm:$0xf] %vm221, %v218
  %224 = vst.msk [vmem:[%s4 + $0x8] sm:$0xf] %vm221, %v219
  %225 = vst.msk [vmem:[%s4 + $0xc] sm:$0xf] %vm221, %v220
  // Predicated region
  $region18: #{unet_forward.18} parent=0 // pred_check
    _
  $region19: #{unet_forward.18} parent=0 // pred_check_branch
    %227 = sbr.rel (0) target = $region21
  $region20: #{unet_forward.18} parent=0 // pred_region
    _
  $region21: #{unet_forward.18} parent=0 // pred_fallthru
    _
  // Predicated region
  $region22: #{unet_forward.18} parent=0 // pred_check
    _
  $region23: #{unet_forward.18} parent=0 // pred_check_branch
    %229 = sbr.rel (0) target = $region25
  $region24: #{unet_forward.18} parent=0 // pred_region
    _
  $region25: #{unet_forward.18} parent=0 // pred_fallthru
    _

// kernel: unet_forward.19
$region0: #{unet_forward.19}
  #allocation0 [shape = 'u32[]', space=smem, size = 0x4, offset = 0x4, fixed_abs, tag = 'smem constant byte address 0x4 - core index']
  #allocation1 [shape = 'u32[72,128]{1,0:T(1,128)}', space=vmem, size = 0x9000, scoped, tag = 'internal scratch']
  %s0 = inlined_call_operand.vmem [shape: bf16[32,288], index: 0, kind: input, shape index: {}]
  %s1 = inlined_call_operand.vmem [shape: bf16[288,8], index: 1, kind: input, shape index: {}]
  %s2 = inlined_call_operand.vmem [shape: f32[32,1], index: 2, kind: input, shape index: {}]
  %s3 = inlined_call_operand.vmem [shape: f32[32,1], index: 3, kind: input, shape index: {}]
  %s4 = inlined_call_operand.vmem [shape: bf16[32,8], index: 4, kind: output, shape index: {}]
  %s5 = sld [smem:[#allocation0]]
  $region26: #{unet_forward.19} parent=0
    _
  %s7 = ssub.s32 1, %s5
  %s8 = scalar_select 0, %s7, %s5
  // Predicated region
  $region2: #{unet_forward.19} parent=0 // pred_check
    _
  $region3: #{unet_forward.19} parent=0 // pred_check_branch
    %10 = sbr.rel (0) target = $region5
  $region4: #{unet_forward.19} parent=0 // pred_region
    _
  $region5: #{unet_forward.19} parent=0 // pred_fallthru
    _
  // Predicated region
  $region6: #{unet_forward.19} parent=0 // pred_check
    _
  $region7: #{unet_forward.19} parent=0 // pred_check_branch
    %12 = sbr.rel (0) target = $region9
  $region8: #{unet_forward.19} parent=0 // pred_region
    _
  $region9: #{unet_forward.19} parent=0 // pred_fallthru
    _
  // Predicated region
  $region10: #{unet_forward.19} parent=0 // pred_check
    _
  $region11: #{unet_forward.19} parent=0 // pred_check_branch
    %14 = sbr.rel (0) target = $region13
  $region12: #{unet_forward.19} parent=0 // pred_region
    _
  $region13: #{unet_forward.19} parent=0 // pred_fallthru
    _
  // Predicated region
  $region14: #{unet_forward.19} parent=0 // pred_check
    _
  $region15: #{unet_forward.19} parent=0 // pred_check_branch
    %16 = sbr.rel (0) target = $region17
  $region16: #{unet_forward.19} parent=0 // pred_region
    _
  $region17: #{unet_forward.19} parent=0 // pred_fallthru
    _
  %v18 = vld [vmem:[%s0] sm:$0xff]
  %v19 = vld [vmem:[%s0 + $0x8] sm:$0xf]
  %v20 = vld [vmem:[%s0 + $0xc] sm:$0xff]
  %v21 = vld [vmem:[%s0 + $0x14] sm:$0xf]
  %v22 = vld [vmem:[%s0 + $0x18] sm:$0xff]
  %v23 = vld [vmem:[%s0 + $0x20] sm:$0xf]
  %v24 = vld [vmem:[%s0 + $0x24] sm:$0xff]
  %v25 = vld [vmem:[%s0 + $0x2c] sm:$0xf]
  %v26 = vld [vmem:[%s1] sm:$0xf]
  %v27 = vld [vmem:[%s1 + $0x4] sm:$0xf]
  %v28 = vld [vmem:[%s1 + $0x8] sm:$0xf]
  %v29 = vld [vmem:[%s1 + $0xc] sm:$0xf]
  %v30 = vld [vmem:[%s1 + $0x10] sm:$0xf]
  %v31 = vld [vmem:[%s1 + $0x14] sm:$0xf]
  %v32 = vld [vmem:[%s1 + $0x18] sm:$0xf]
  %v33 = vld [vmem:[%s1 + $0x1c] sm:$0xf]
  %v34 = vld [vmem:[%s1 + $0x20] sm:$0xf]
  %v35 = vld [vmem:[%s1 + $0x24] sm:$0xf]
  %v36 = vld [vmem:[%s1 + $0x28] sm:$0xf]
  %v37 = vld [vmem:[%s1 + $0x2c] sm:$0xf]
  %v38 = vld [vmem:[%s1 + $0x30] sm:$0xf]
  %v39 = vld [vmem:[%s1 + $0x34] sm:$0xf]
  %v40 = vld [vmem:[%s1 + $0x38] sm:$0xf]
  %v41 = vld [vmem:[%s1 + $0x3c] sm:$0xf]
  %v42 = vld [vmem:[%s1 + $0x40] sm:$0xf]
  %v43 = vld [vmem:[%s1 + $0x44] sm:$0xf]
  %v44 = vld [vmem:[%s1 + $0x48] sm:$0xf]
  %v45 = vld [vmem:[%s1 + $0x4c] sm:$0xf]
  %v46 = vld [vmem:[%s1 + $0x50] sm:$0xf]
  %v47 = vld [vmem:[%s1 + $0x54] sm:$0xf]
  %v48 = vld [vmem:[%s1 + $0x58] sm:$0xf]
  %v49 = vld [vmem:[%s1 + $0x5c] sm:$0xf]
  %v50 = vld [vmem:[%s1 + $0x60] sm:$0xf]
  %v51 = vld [vmem:[%s1 + $0x64] sm:$0xf]
  %v52 = vld [vmem:[%s1 + $0x68] sm:$0xf]
  %v53 = vld [vmem:[%s1 + $0x6c] sm:$0xf]
  %v54 = vld [vmem:[%s1 + $0x70] sm:$0xf]
  %v55 = vld [vmem:[%s1 + $0x74] sm:$0xf]
  %v56 = vld [vmem:[%s1 + $0x78] sm:$0xf]
  %v57 = vld [vmem:[%s1 + $0x7c] sm:$0xf]
  %v58 = vld [vmem:[%s1 + $0x80] sm:$0xf]
  %v59 = vld [vmem:[%s1 + $0x84] sm:$0xf]
  %v60 = vld [vmem:[%s1 + $0x88] sm:$0xf]
  %v61 = vld [vmem:[%s1 + $0x8c] sm:$0xf]
  %v70 = vunpack.c.l.b16 %v18
  %v71 = vunpack.c.h.b16 %v18
  %v72 = vunpack.c.l.b16 %v19
  %v73 = vunpack.c.l.b16 %v20
  %v74 = vunpack.c.h.b16 %v20
  %v75 = vunpack.c.l.b16 %v21
  %v76 = vunpack.c.l.b16 %v22
  %v77 = vunpack.c.h.b16 %v22
  %v78 = vunpack.c.l.b16 %v23
  %v79 = vunpack.c.l.b16 %v24
  %v80 = vunpack.c.h.b16 %v24
  %v81 = vunpack.c.l.b16 %v25
  %v82 = vpack.c.b16 %v73, %v70
  %v83 = vpack.c.b16 %v74, %v71
  %v84 = vpack.c.b16 %v75, %v72
  %v85 = vpack.c.b16 %v79, %v76
  %v86 = vpack.c.b16 %v80, %v77
  %v87 = vpack.c.b16 %v81, %v78
  %v128 = vunpack.c.l.b16 %v26
  %v129 = vunpack.c.l.b16 %v27
  %v130 = vunpack.c.l.b16 %v28
  %v131 = vunpack.c.l.b16 %v29
  %v132 = vunpack.c.l.b16 %v30
  %v133 = vunpack.c.l.b16 %v31
  %v134 = vunpack.c.l.b16 %v32
  %v135 = vunpack.c.l.b16 %v33
  %v136 = vunpack.c.l.b16 %v34
  %v137 = vunpack.c.l.b16 %v35
  %v138 = vunpack.c.l.b16 %v36
  %v139 = vunpack.c.l.b16 %v37
  %v140 = vunpack.c.l.b16 %v38
  %v141 = vunpack.c.l.b16 %v39
  %v142 = vunpack.c.l.b16 %v40
  %v143 = vunpack.c.l.b16 %v41
  %v144 = vunpack.c.l.b16 %v42
  %v145 = vunpack.c.l.b16 %v43
  %v146 = vunpack.c.l.b16 %v44
  %v147 = vunpack.c.l.b16 %v45
  %v148 = vunpack.c.l.b16 %v46
  %v149 = vunpack.c.l.b16 %v47
  %v150 = vunpack.c.l.b16 %v48
  %v151 = vunpack.c.l.b16 %v49
  %v152 = vunpack.c.l.b16 %v50
  %v153 = vunpack.c.l.b16 %v51
  %v154 = vunpack.c.l.b16 %v52
  %v155 = vunpack.c.l.b16 %v53
  %v156 = vunpack.c.l.b16 %v54
  %v157 = vunpack.c.l.b16 %v55
  %v158 = vunpack.c.l.b16 %v56
  %v159 = vunpack.c.l.b16 %v57
  %v160 = vunpack.c.l.b16 %v58
  %v161 = vunpack.c.l.b16 %v59
  %v162 = vunpack.c.l.b16 %v60
  %v163 = vunpack.c.l.b16 %v61
  %v164 = vpack.c.b16 %v129, %v128
  %v165 = vpack.c.b16 %v131, %v130
  %v166 = vpack.c.b16 %v133, %v132
  %v167 = vpack.c.b16 %v135, %v134
  %v168 = vpack.c.b16 %v137, %v136
  %v169 = vpack.c.b16 %v139, %v138
  %v170 = vpack.c.b16 %v141, %v140
  %v171 = vpack.c.b16 %v143, %v142
  %v172 = vpack.c.b16 %v145, %v144
  %v173 = vpack.c.b16 %v147, %v146
  %v174 = vpack.c.b16 %v149, %v148
  %v175 = vpack.c.b16 %v151, %v150
  %v176 = vpack.c.b16 %v153, %v152
  %v177 = vpack.c.b16 %v155, %v154
  %v178 = vpack.c.b16 %v157, %v156
  %v179 = vpack.c.b16 %v159, %v158
  %v180 = vpack.c.b16 %v161, %v160
  %v181 = vpack.c.b16 %v163, %v162
  %vm200 = vcmask 261120
  %v202 = vsel %vm200, %v84, 0
  %v205 = vsel %vm200, %v87, 0
  %207 = vmatpush.bf16.msra.mxu0 %v171
  %208 = vmatpush.bf16.msra.mxu0 %v170
  %209 = vmatpush.bf16.msra.mxu0 %v169
  %210 = vmatpush.bf16.msra.mxu0 %v168
  %211 = vmatpush.bf16.msra.mxu0 %v167
  %212 = vmatpush.bf16.msra.mxu0 %v166
  %213 = vmatpush.bf16.msra.mxu0 %v165
  %214 = vmatpush.bf16.msra.mxu0 %v164
  %215 = vmatmul.bf16.gmra.mxu0 %v82
  %v216 = vpop.f32.mrf.mxu0
  %v217 = vadd.f32 0.0, %v216
  %v218 = vpop.f32.mrf.mxu0
  %v219 = vadd.f32 0.0, %v218
  %220 = vmatmul.bf16.gmra.mxu0 %v85
  %v221 = vpop.f32.mrf.mxu0
  %v222 = vadd.f32 0.0, %v221
  %v223 = vpop.f32.mrf.mxu0
  %v224 = vadd.f32 0.0, %v223
  %225 = vdwg.mxu0
  %226 = vmatpush.bf16.msra.mxu0 %v179
  %227 = vmatpush.bf16.msra.mxu0 %v178
  %228 = vmatpush.bf16.msra.mxu0 %v177
  %229 = vmatpush.bf16.msra.mxu0 %v176
  %230 = vmatpush.bf16.msra.mxu0 %v175
  %231 = vmatpush.bf16.msra.mxu0 %v174
  %232 = vmatpush.bf16.msra.mxu0 %v173
  %233 = vmatpush.bf16.msra.mxu0 %v172
  %234 = vmatmul.bf16.gmra.mxu0 %v83
  %v235 = vpop.f32.mrf.mxu0
  %v236 = vadd.f32 %v217, %v235
  %v237 = vpop.f32.mrf.mxu0
  %v238 = vadd.f32 %v219, %v237
  %239 = vmatmul.bf16.gmra.mxu0 %v86
  %v240 = vpop.f32.mrf.mxu0
  %v241 = vadd.f32 %v222, %v240
  %v242 = vpop.f32.mrf.mxu0
  %v243 = vadd.f32 %v224, %v242
  %244 = vdwg.mxu0
  %245 = vmatpush.bf16.msra.mxu0 0
  %246 = vmatpush.bf16.msra.mxu0 0
  %247 = vmatpush.bf16.msra.mxu0 0
  %248 = vmatpush.bf16.msra.mxu0 0
  %249 = vmatpush.bf16.msra.mxu0 0
  %250 = vmatpush.bf16.msra.mxu0 0
  %251 = vmatpush.bf16.msra.mxu0 %v181
  %252 = vmatpush.bf16.msra.mxu0 %v180
  %253 = vmatmul.bf16.gmra.mxu0 %v202
  %v254 = vpop.f32.mrf.mxu0
  %v255 = vadd.f32 %v236, %v254
  %v256 = vpop.f32.mrf.mxu0
  %v257 = vadd.f32 %v238, %v256
  %258 = vmatmul.bf16.gmra.mxu0 %v205
  %v259 = vpop.f32.mrf.mxu0
  %v260 = vadd.f32 %v241, %v259
  %v261 = vpop.f32.mrf.mxu0
  %v262 = vadd.f32 %v243, %v261
  %263 = vdwg.mxu0
  %v264 = vld [vmem:[%s2] sm:$0xff]
  %v265 = vld [vmem:[%s2 + $0x8] sm:$0xff]
  %v266 = vld [vmem:[%s2 + $0x10] sm:$0xff]
  %v267 = vld [vmem:[%s2 + $0x18] sm:$0xff]
  %269 = vset.pattern.permute.xlu0 0
  %270 = vperm.xlu0 %269, %v264
  %v271 = vpop.permute.xlu0 %270
  %274 = vset.pattern.permute.xlu0 0
  %275 = vperm.xlu0 %274, %v265
  %v276 = vpop.permute.xlu0 %275
  %279 = vset.pattern.permute.xlu0 0
  %280 = vperm.xlu0 %279, %v266
  %v281 = vpop.permute.xlu0 %280
  %284 = vset.pattern.permute.xlu0 0
  %285 = vperm.xlu0 %284, %v267
  %v286 = vpop.permute.xlu0 %285
  %v288 = vmul.f32 %v255, %v271
  %v289 = vmul.f32 %v257, %v276
  %v290 = vmul.f32 %v260, %v281
  %v291 = vmul.f32 %v262, %v286
  %v292 = vld [vmem:[%s3] sm:$0xff]
  %v293 = vld [vmem:[%s3 + $0x8] sm:$0xff]
  %v294 = vld [vmem:[%s3 + $0x10] sm:$0xff]
  %v295 = vld [vmem:[%s3 + $0x18] sm:$0xff]
  %297 = vset.pattern.permute.xlu0 0
  %298 = vperm.xlu0 %297, %v292
  %v299 = vpop.permute.xlu0 %298
  %302 = vset.pattern.permute.xlu0 0
  %303 = vperm.xlu0 %302, %v293
  %v304 = vpop.permute.xlu0 %303
  %307 = vset.pattern.permute.xlu0 0
  %308 = vperm.xlu0 %307, %v294
  %v309 = vpop.permute.xlu0 %308
  %312 = vset.pattern.permute.xlu0 0
  %313 = vperm.xlu0 %312, %v295
  %v314 = vpop.permute.xlu0 %313
  %v316 = vadd.f32 %v288, %v299
  %v317 = vadd.f32 %v289, %v304
  %v318 = vadd.f32 %v290, %v309
  %v319 = vadd.f32 %v291, %v314
  %v320 = vmax.f32 %v316, 0.0
  %v321 = vmax.f32 %v317, 0.0
  %v322 = vmax.f32 %v318, 0.0
  %v323 = vmax.f32 %v319, 0.0
  %v324 = vpack.c.bf16 %v320, %v320
  %v325 = vpack.c.bf16 %v321, %v321
  %v326 = vpack.c.bf16 %v322, %v322
  %v327 = vpack.c.bf16 %v323, %v323
  %vm328 = vcmask 60416
  %329 = vst.msk [vmem:[%s4] sm:$0xf] %vm328, %v324
  %330 = vst.msk [vmem:[%s4 + $0x4] sm:$0xf] %vm328, %v325
  %331 = vst.msk [vmem:[%s4 + $0x8] sm:$0xf] %vm328, %v326
  %332 = vst.msk [vmem:[%s4 + $0xc] sm:$0xf] %vm328, %v327
  // Predicated region
  $region18: #{unet_forward.19} parent=0 // pred_check
    _
  $region19: #{unet_forward.19} parent=0 // pred_check_branch
    %334 = sbr.rel (0) target = $region21
  $region20: #{unet_forward.19} parent=0 // pred_region
    _
  $region21: #{unet_forward.19} parent=0 // pred_fallthru
    _
  // Predicated region
  $region22: #{unet_forward.19} parent=0 // pred_check
    _
  $region23: #{unet_forward.19} parent=0 // pred_check_branch
    %336 = sbr.rel (0) target = $region25
  $region24: #{unet_forward.19} parent=0 // pred_region
    _
  $region25: #{unet_forward.19} parent=0 // pred_fallthru
    _

// kernel: unet_forward.20
$region0: #{unet_forward.20}
  #allocation0 [shape = 'u32[]', space=smem, size = 0x4, offset = 0x4, fixed_abs, tag = 'smem constant byte address 0x4 - core index']
  #allocation1 [shape = 'u32[72,128]{1,0:T(1,128)}', space=vmem, size = 0x9000, scoped, tag = 'internal scratch']
  %s0 = inlined_call_operand.vmem [shape: bf16[128,288], index: 0, kind: input, shape index: {}]
  %s1 = inlined_call_operand.vmem [shape: bf16[288,8], index: 1, kind: input, shape index: {}]
  %s2 = inlined_call_operand.vmem [shape: f32[128,1], index: 2, kind: input, shape index: {}]
  %s3 = inlined_call_operand.vmem [shape: f32[128,1], index: 3, kind: input, shape index: {}]
  %s4 = inlined_call_operand.vmem [shape: bf16[128,8], index: 4, kind: output, shape index: {}]
  %s5 = sld [smem:[#allocation0]]
  $region26: #{unet_forward.20} parent=0
    _
  %s7 = ssub.s32 1, %s5
  %s8 = scalar_select 0, %s7, %s5
  // Predicated region
  $region2: #{unet_forward.20} parent=0 // pred_check
    _
  $region3: #{unet_forward.20} parent=0 // pred_check_branch
    %10 = sbr.rel (0) target = $region5
  $region4: #{unet_forward.20} parent=0 // pred_region
    _
  $region5: #{unet_forward.20} parent=0 // pred_fallthru
    _
  // Predicated region
  $region6: #{unet_forward.20} parent=0 // pred_check
    _
  $region7: #{unet_forward.20} parent=0 // pred_check_branch
    %12 = sbr.rel (0) target = $region9
  $region8: #{unet_forward.20} parent=0 // pred_region
    _
  $region9: #{unet_forward.20} parent=0 // pred_fallthru
    _
  // Predicated region
  $region10: #{unet_forward.20} parent=0 // pred_check
    _
  $region11: #{unet_forward.20} parent=0 // pred_check_branch
    %14 = sbr.rel (0) target = $region13
  $region12: #{unet_forward.20} parent=0 // pred_region
    _
  $region13: #{unet_forward.20} parent=0 // pred_fallthru
    _
  // Predicated region
  $region14: #{unet_forward.20} parent=0 // pred_check
    _
  $region15: #{unet_forward.20} parent=0 // pred_check_branch
    %16 = sbr.rel (0) target = $region17
  $region16: #{unet_forward.20} parent=0 // pred_region
    _
  $region17: #{unet_forward.20} parent=0 // pred_fallthru
    _
  %v18 = vld [vmem:[%s0] sm:$0xff]
  %v19 = vld [vmem:[%s0 + $0x8] sm:$0xf]
  %v20 = vld [vmem:[%s0 + $0xc] sm:$0xff]
  %v21 = vld [vmem:[%s0 + $0x14] sm:$0xf]
  %v22 = vld [vmem:[%s0 + $0x18] sm:$0xff]
  %v23 = vld [vmem:[%s0 + $0x20] sm:$0xf]
  %v24 = vld [vmem:[%s0 + $0x24] sm:$0xff]
  %v25 = vld [vmem:[%s0 + $0x2c] sm:$0xf]
  %v26 = vld [vmem:[%s0 + $0x30] sm:$0xff]
  %v27 = vld [vmem:[%s0 + $0x38] sm:$0xf]
  %v28 = vld [vmem:[%s0 + $0x3c] sm:$0xff]
  %v29 = vld [vmem:[%s0 + $0x44] sm:$0xf]
  %v30 = vld [vmem:[%s0 + $0x48] sm:$0xff]
  %v31 = vld [vmem:[%s0 + $0x50] sm:$0xf]
  %v32 = vld [vmem:[%s0 + $0x54] sm:$0xff]
  %v33 = vld [vmem:[%s0 + $0x5c] sm:$0xf]
  %v34 = vld [vmem:[%s0 + $0x60] sm:$0xff]
  %v35 = vld [vmem:[%s0 + $0x68] sm:$0xf]
  %v36 = vld [vmem:[%s0 + $0x6c] sm:$0xff]
  %v37 = vld [vmem:[%s0 + $0x74] sm:$0xf]
  %v38 = vld [vmem:[%s0 + $0x78] sm:$0xff]
  %v39 = vld [vmem:[%s0 + $0x80] sm:$0xf]
  %v40 = vld [vmem:[%s0 + $0x84] sm:$0xff]
  %v41 = vld [vmem:[%s0 + $0x8c] sm:$0xf]
  %v42 = vld [vmem:[%s0 + $0x90] sm:$0xff]
  %v43 = vld [vmem:[%s0 + $0x98] sm:$0xf]
  %v44 = vld [vmem:[%s0 + $0x9c] sm:$0xff]
  %v45 = vld [vmem:[%s0 + $0xa4] sm:$0xf]
  %v46 = vld [vmem:[%s0 + $0xa8] sm:$0xff]
  %v47 = vld [vmem:[%s0 + $0xb0] sm:$0xf]
  %v48 = vld [vmem:[%s0 + $0xb4] sm:$0xff]
  %v49 = vld [vmem:[%s0 + $0xbc] sm:$0xf]
  %v50 = vld [vmem:[%s1] sm:$0xf]
  %v51 = vld [vmem:[%s1 + $0x4] sm:$0xf]
  %v52 = vld [vmem:[%s1 + $0x8] sm:$0xf]
  %v53 = vld [vmem:[%s1 + $0xc] sm:$0xf]
  %v54 = vld [vmem:[%s1 + $0x10] sm:$0xf]
  %v55 = vld [vmem:[%s1 + $0x14] sm:$0xf]
  %v56 = vld [vmem:[%s1 + $0x18] sm:$0xf]
  %v57 = vld [vmem:[%s1 + $0x1c] sm:$0xf]
  %v58 = vld [vmem:[%s1 + $0x20] sm:$0xf]
  %v59 = vld [vmem:[%s1 + $0x24] sm:$0xf]
  %v60 = vld [vmem:[%s1 + $0x28] sm:$0xf]
  %v61 = vld [vmem:[%s1 + $0x2c] sm:$0xf]
  %v62 = vld [vmem:[%s1 + $0x30] sm:$0xf]
  %v63 = vld [vmem:[%s1 + $0x34] sm:$0xf]
  %v64 = vld [vmem:[%s1 + $0x38] sm:$0xf]
  %v65 = vld [vmem:[%s1 + $0x3c] sm:$0xf]
  %v66 = vld [vmem:[%s1 + $0x40] sm:$0xf]
  %v67 = vld [vmem:[%s1 + $0x44] sm:$0xf]
  %v68 = vld [vmem:[%s1 + $0x48] sm:$0xf]
  %v69 = vld [vmem:[%s1 + $0x4c] sm:$0xf]
  %v70 = vld [vmem:[%s1 + $0x50] sm:$0xf]
  %v71 = vld [vmem:[%s1 + $0x54] sm:$0xf]
  %v72 = vld [vmem:[%s1 + $0x58] sm:$0xf]
  %v73 = vld [vmem:[%s1 + $0x5c] sm:$0xf]
  %v74 = vld [vmem:[%s1 + $0x60] sm:$0xf]
  %v75 = vld [vmem:[%s1 + $0x64] sm:$0xf]
  %v76 = vld [vmem:[%s1 + $0x68] sm:$0xf]
  %v77 = vld [vmem:[%s1 + $0x6c] sm:$0xf]
  %v78 = vld [vmem:[%s1 + $0x70] sm:$0xf]
  %v79 = vld [vmem:[%s1 + $0x74] sm:$0xf]
  %v80 = vld [vmem:[%s1 + $0x78] sm:$0xf]
  %v81 = vld [vmem:[%s1 + $0x7c] sm:$0xf]
  %v82 = vld [vmem:[%s1 + $0x80] sm:$0xf]
  %v83 = vld [vmem:[%s1 + $0x84] sm:$0xf]
  %v84 = vld [vmem:[%s1 + $0x88] sm:$0xf]
  %v85 = vld [vmem:[%s1 + $0x8c] sm:$0xf]
  %v118 = vunpack.c.l.b16 %v18
  %v119 = vunpack.c.h.b16 %v18
  %v120 = vunpack.c.l.b16 %v19
  %v121 = vunpack.c.l.b16 %v20
  %v122 = vunpack.c.h.b16 %v20
  %v123 = vunpack.c.l.b16 %v21
  %v124 = vunpack.c.l.b16 %v22
  %v125 = vunpack.c.h.b16 %v22
  %v126 = vunpack.c.l.b16 %v23
  %v127 = vunpack.c.l.b16 %v24
  %v128 = vunpack.c.h.b16 %v24
  %v129 = vunpack.c.l.b16 %v25
  %v130 = vunpack.c.l.b16 %v26
  %v131 = vunpack.c.h.b16 %v26
  %v132 = vunpack.c.l.b16 %v27
  %v133 = vunpack.c.l.b16 %v28
  %v134 = vunpack.c.h.b16 %v28
  %v135 = vunpack.c.l.b16 %v29
  %v136 = vunpack.c.l.b16 %v30
  %v137 = vunpack.c.h.b16 %v30
  %v138 = vunpack.c.l.b16 %v31
  %v139 = vunpack.c.l.b16 %v32
  %v140 = vunpack.c.h.b16 %v32
  %v141 = vunpack.c.l.b16 %v33
  %v142 = vunpack.c.l.b16 %v34
  %v143 = vunpack.c.h.b16 %v34
  %v144 = vunpack.c.l.b16 %v35
  %v145 = vunpack.c.l.b16 %v36
  %v146 = vunpack.c.h.b16 %v36
  %v147 = vunpack.c.l.b16 %v37
  %v148 = vunpack.c.l.b16 %v38
  %v149 = vunpack.c.h.b16 %v38
  %v150 = vunpack.c.l.b16 %v39
  %v151 = vunpack.c.l.b16 %v40
  %v152 = vunpack.c.h.b16 %v40
  %v153 = vunpack.c.l.b16 %v41
  %v154 = vunpack.c.l.b16 %v42
  %v155 = vunpack.c.h.b16 %v42
  %v156 = vunpack.c.l.b16 %v43
  %v157 = vunpack.c.l.b16 %v44
  %v158 = vunpack.c.h.b16 %v44
  %v159 = vunpack.c.l.b16 %v45
  %v160 = vunpack.c.l.b16 %v46
  %v161 = vunpack.c.h.b16 %v46
  %v162 = vunpack.c.l.b16 %v47
  %v163 = vunpack.c.l.b16 %v48
  %v164 = vunpack.c.h.b16 %v48
  %v165 = vunpack.c.l.b16 %v49
  %v166 = vpack.c.b16 %v121, %v118
  %v167 = vpack.c.b16 %v122, %v119
  %v168 = vpack.c.b16 %v123, %v120
  %v169 = vpack.c.b16 %v127, %v124
  %v170 = vpack.c.b16 %v128, %v125
  %v171 = vpack.c.b16 %v129, %v126
  %v172 = vpack.c.b16 %v133, %v130
  %v173 = vpack.c.b16 %v134, %v131
  %v174 = vpack.c.b16 %v135, %v132
  %v175 = vpack.c.b16 %v139, %v136
  %v176 = vpack.c.b16 %v140, %v137
  %v177 = vpack.c.b16 %v141, %v138
  %v178 = vpack.c.b16 %v145, %v142
  %v179 = vpack.c.b16 %v146, %v143
  %v180 = vpack.c.b16 %v147, %v144
  %v181 = vpack.c.b16 %v151, %v148
  %v182 = vpack.c.b16 %v152, %v149
  %v183 = vpack.c.b16 %v153, %v150
  %v184 = vpack.c.b16 %v157, %v154
  %v185 = vpack.c.b16 %v158, %v155
  %v186 = vpack.c.b16 %v159, %v156
  %v187 = vpack.c.b16 %v163, %v160
  %v188 = vpack.c.b16 %v164, %v161
  %v189 = vpack.c.b16 %v165, %v162
  %v242 = vunpack.c.l.b16 %v50
  %v243 = vunpack.c.l.b16 %v51
  %v244 = vunpack.c.l.b16 %v52
  %v245 = vunpack.c.l.b16 %v53
  %v246 = vunpack.c.l.b16 %v54
  %v247 = vunpack.c.l.b16 %v55
  %v248 = vunpack.c.l.b16 %v56
  %v249 = vunpack.c.l.b16 %v57
  %v250 = vunpack.c.l.b16 %v58
  %v251 = vunpack.c.l.b16 %v59
  %v252 = vunpack.c.l.b16 %v60
  %v253 = vunpack.c.l.b16 %v61
  %v254 = vunpack.c.l.b16 %v62
  %v255 = vunpack.c.l.b16 %v63
  %v256 = vunpack.c.l.b16 %v64
  %v257 = vunpack.c.l.b16 %v65
  %v258 = vunpack.c.l.b16 %v66
  %v259 = vunpack.c.l.b16 %v67
  %v260 = vunpack.c.l.b16 %v68
  %v261 = vunpack.c.l.b16 %v69
  %v262 = vunpack.c.l.b16 %v70
  %v263 = vunpack.c.l.b16 %v71
  %v264 = vunpack.c.l.b16 %v72
  %v265 = vunpack.c.l.b16 %v73
  %v266 = vunpack.c.l.b16 %v74
  %v267 = vunpack.c.l.b16 %v75
  %v268 = vunpack.c.l.b16 %v76
  %v269 = vunpack.c.l.b16 %v77
  %v270 = vunpack.c.l.b16 %v78
  %v271 = vunpack.c.l.b16 %v79
  %v272 = vunpack.c.l.b16 %v80
  %v273 = vunpack.c.l.b16 %v81
  %v274 = vunpack.c.l.b16 %v82
  %v275 = vunpack.c.l.b16 %v83
  %v276 = vunpack.c.l.b16 %v84
  %v277 = vunpack.c.l.b16 %v85
  %v278 = vpack.c.b16 %v243, %v242
  %v279 = vpack.c.b16 %v245, %v244
  %v280 = vpack.c.b16 %v247, %v246
  %v281 = vpack.c.b16 %v249, %v248
  %v282 = vpack.c.b16 %v251, %v250
  %v283 = vpack.c.b16 %v253, %v252
  %v284 = vpack.c.b16 %v255, %v254
  %v285 = vpack.c.b16 %v257, %v256
  %v286 = vpack.c.b16 %v259, %v258
  %v287 = vpack.c.b16 %v261, %v260
  %v288 = vpack.c.b16 %v263, %v262
  %v289 = vpack.c.b16 %v265, %v264
  %v290 = vpack.c.b16 %v267, %v266
  %v291 = vpack.c.b16 %v269, %v268
  %v292 = vpack.c.b16 %v271, %v270
  %v293 = vpack.c.b16 %v273, %v272
  %v294 = vpack.c.b16 %v275, %v274
  %v295 = vpack.c.b16 %v277, %v276
  %vm314 = vcmask 261120
  %v316 = vsel %vm314, %v168, 0
  %v319 = vsel %vm314, %v171, 0
  %v322 = vsel %vm314, %v174, 0
  %v325 = vsel %vm314, %v177, 0
  %v328 = vsel %vm314, %v180, 0
  %v331 = vsel %vm314, %v183, 0
  %v334 = vsel %vm314, %v186, 0
  %v337 = vsel %vm314, %v189, 0
  %339 = vmatpush.bf16.msra.mxu0 %v285
  %340 = vmatpush.bf16.msra.mxu0 %v284
  %341 = vmatpush.bf16.msra.mxu0 %v283
  %342 = vmatpush.bf16.msra.mxu0 %v282
  %343 = vmatpush.bf16.msra.mxu0 %v281
  %344 = vmatpush.bf16.msra.mxu0 %v280
  %345 = vmatpush.bf16.msra.mxu0 %v279
  %346 = vmatpush.bf16.msra.mxu0 %v278
  %347 = vmatmul.bf16.gmra.mxu0 %v166
  %v348 = vpop.f32.mrf.mxu0
  %v349 = vadd.f32 0.0, %v348
  %v350 = vpop.f32.mrf.mxu0
  %v351 = vadd.f32 0.0, %v350
  %352 = vmatmul.bf16.gmra.mxu0 %v169
  %v353 = vpop.f32.mrf.mxu0
  %v354 = vadd.f32 0.0, %v353
  %v355 = vpop.f32.mrf.mxu0
  %v356 = vadd.f32 0.0, %v355
  %357 = vmatmul.bf16.gmra.mxu0 %v172
  %v358 = vpop.f32.mrf.mxu0
  %v359 = vadd.f32 0.0, %v358
  %v360 = vpop.f32.mrf.mxu0
  %v361 = vadd.f32 0.0, %v360
  %362 = vmatmul.bf16.gmra.mxu0 %v175
  %v363 = vpop.f32.mrf.mxu0
  %v364 = vadd.f32 0.0, %v363
  %v365 = vpop.f32.mrf.mxu0
  %v366 = vadd.f32 0.0, %v365
  %367 = vmatmul.bf16.gmra.mxu0 %v178
  %v368 = vpop.f32.mrf.mxu0
  %v369 = vadd.f32 0.0, %v368
  %v370 = vpop.f32.mrf.mxu0
  %v371 = vadd.f32 0.0, %v370
  %372 = vmatmul.bf16.gmra.mxu0 %v181
  %v373 = vpop.f32.mrf.mxu0
  %v374 = vadd.f32 0.0, %v373
  %v375 = vpop.f32.mrf.mxu0
  %v376 = vadd.f32 0.0, %v375
  %377 = vmatmul.bf16.gmra.mxu0 %v184
  %v378 = vpop.f32.mrf.mxu0
  %v379 = vadd.f32 0.0, %v378
  %v380 = vpop.f32.mrf.mxu0
  %v381 = vadd.f32 0.0, %v380
  %382 = vmatmul.bf16.gmra.mxu0 %v187
  %v383 = vpop.f32.mrf.mxu0
  %v384 = vadd.f32 0.0, %v383
  %v385 = vpop.f32.mrf.mxu0
  %v386 = vadd.f32 0.0, %v385
  %387 = vdwg.mxu0
  %388 = vmatpush.bf16.msra.mxu0 %v293
  %389 = vmatpush.bf16.msra.mxu0 %v292
  %390 = vmatpush.bf16.msra.mxu0 %v291
  %391 = vmatpush.bf16.msra.mxu0 %v290
  %392 = vmatpush.bf16.msra.mxu0 %v289
  %393 = vmatpush.bf16.msra.mxu0 %v288
  %394 = vmatpush.bf16.msra.mxu0 %v287
  %395 = vmatpush.bf16.msra.mxu0 %v286
  %396 = vmatmul.bf16.gmra.mxu0 %v167
  %v397 = vpop.f32.mrf.mxu0
  %v398 = vadd.f32 %v349, %v397
  %v399 = vpop.f32.mrf.mxu0
  %v400 = vadd.f32 %v351, %v399
  %401 = vmatmul.bf16.gmra.mxu0 %v170
  %v402 = vpop.f32.mrf.mxu0
  %v403 = vadd.f32 %v354, %v402
  %v404 = vpop.f32.mrf.mxu0
  %v405 = vadd.f32 %v356, %v404
  %406 = vmatmul.bf16.gmra.mxu0 %v173
  %v407 = vpop.f32.mrf.mxu0
  %v408 = vadd.f32 %v359, %v407
  %v409 = vpop.f32.mrf.mxu0
  %v410 = vadd.f32 %v361, %v409
  %411 = vmatmul.bf16.gmra.mxu0 %v176
  %v412 = vpop.f32.mrf.mxu0
  %v413 = vadd.f32 %v364, %v412
  %v414 = vpop.f32.mrf.mxu0
  %v415 = vadd.f32 %v366, %v414
  %416 = vmatmul.bf16.gmra.mxu0 %v179
  %v417 = vpop.f32.mrf.mxu0
  %v418 = vadd.f32 %v369, %v417
  %v419 = vpop.f32.mrf.mxu0
  %v420 = vadd.f32 %v371, %v419
  %421 = vmatmul.bf16.gmra.mxu0 %v182
  %v422 = vpop.f32.mrf.mxu0
  %v423 = vadd.f32 %v374, %v422
  %v424 = vpop.f32.mrf.mxu0
  %v425 = vadd.f32 %v376, %v424
  %426 = vmatmul.bf16.gmra.mxu0 %v185
  %v427 = vpop.f32.mrf.mxu0
  %v428 = vadd.f32 %v379, %v427
  %v429 = vpop.f32.mrf.mxu0
  %v430 = vadd.f32 %v381, %v429
  %431 = vmatmul.bf16.gmra.mxu0 %v188
  %v432 = vpop.f32.mrf.mxu0
  %v433 = vadd.f32 %v384, %v432
  %v434 = vpop.f32.mrf.mxu0
  %v435 = vadd.f32 %v386, %v434
  %436 = vdwg.mxu0
  %437 = vmatpush.bf16.msra.mxu0 0
  %438 = vmatpush.bf16.msra.mxu0 0
  %439 = vmatpush.bf16.msra.mxu0 0
  %440 = vmatpush.bf16.msra.mxu0 0
  %441 = vmatpush.bf16.msra.mxu0 0
  %442 = vmatpush.bf16.msra.mxu0 0
  %443 = vmatpush.bf16.msra.mxu0 %v295
  %444 = vmatpush.bf16.msra.mxu0 %v294
  %445 = vmatmul.bf16.gmra.mxu0 %v316
  %v446 = vpop.f32.mrf.mxu0
  %v447 = vadd.f32 %v398, %v446
  %v448 = vpop.f32.mrf.mxu0
  %v449 = vadd.f32 %v400, %v448
  %450 = vmatmul.bf16.gmra.mxu0 %v319
  %v451 = vpop.f32.mrf.mxu0
  %v452 = vadd.f32 %v403, %v451
  %v453 = vpop.f32.mrf.mxu0
  %v454 = vadd.f32 %v405, %v453
  %455 = vmatmul.bf16.gmra.mxu0 %v322
  %v456 = vpop.f32.mrf.mxu0
  %v457 = vadd.f32 %v408, %v456
  %v458 = vpop.f32.mrf.mxu0
  %v459 = vadd.f32 %v410, %v458
  %460 = vmatmul.bf16.gmra.mxu0 %v325
  %v461 = vpop.f32.mrf.mxu0
  %v462 = vadd.f32 %v413, %v461
  %v463 = vpop.f32.mrf.mxu0
  %v464 = vadd.f32 %v415, %v463
  %465 = vmatmul.bf16.gmra.mxu0 %v328
  %v466 = vpop.f32.mrf.mxu0
  %v467 = vadd.f32 %v418, %v466
  %v468 = vpop.f32.mrf.mxu0
  %v469 = vadd.f32 %v420, %v468
  %470 = vmatmul.bf16.gmra.mxu0 %v331
  %v471 = vpop.f32.mrf.mxu0
  %v472 = vadd.f32 %v423, %v471
  %v473 = vpop.f32.mrf.mxu0
  %v474 = vadd.f32 %v425, %v473
  %475 = vmatmul.bf16.gmra.mxu0 %v334
  %v476 = vpop.f32.mrf.mxu0
  %v477 = vadd.f32 %v428, %v476
  %v478 = vpop.f32.mrf.mxu0
  %v479 = vadd.f32 %v430, %v478
  %480 = vmatmul.bf16.gmra.mxu0 %v337
  %v481 = vpop.f32.mrf.mxu0
  %v482 = vadd.f32 %v433, %v481
  %v483 = vpop.f32.mrf.mxu0
  %v484 = vadd.f32 %v435, %v483
  %485 = vdwg.mxu0
  %v486 = vld [vmem:[%s2] sm:$0xff]
  %v487 = vld [vmem:[%s2 + $0x8] sm:$0xff]
  %v488 = vld [vmem:[%s2 + $0x10] sm:$0xff]
  %v489 = vld [vmem:[%s2 + $0x18] sm:$0xff]
  %v490 = vld [vmem:[%s2 + $0x20] sm:$0xff]
  %v491 = vld [vmem:[%s2 + $0x28] sm:$0xff]
  %v492 = vld [vmem:[%s2 + $0x30] sm:$0xff]
  %v493 = vld [vmem:[%s2 + $0x38] sm:$0xff]
  %v494 = vld [vmem:[%s2 + $0x40] sm:$0xff]
  %v495 = vld [vmem:[%s2 + $0x48] sm:$0xff]
  %v496 = vld [vmem:[%s2 + $0x50] sm:$0xff]
  %v497 = vld [vmem:[%s2 + $0x58] sm:$0xff]
  %v498 = vld [vmem:[%s2 + $0x60] sm:$0xff]
  %v499 = vld [vmem:[%s2 + $0x68] sm:$0xff]
  %v500 = vld [vmem:[%s2 + $0x70] sm:$0xff]
  %v501 = vld [vmem:[%s2 + $0x78] sm:$0xff]
  %503 = vset.pattern.permute.xlu0 0
  %504 = vperm.xlu0 %503, %v486
  %v505 = vpop.permute.xlu0 %504
  %508 = vset.pattern.permute.xlu0 0
  %509 = vperm.xlu0 %508, %v487
  %v510 = vpop.permute.xlu0 %509
  %513 = vset.pattern.permute.xlu0 0
  %514 = vperm.xlu0 %513, %v488
  %v515 = vpop.permute.xlu0 %514
  %518 = vset.pattern.permute.xlu0 0
  %519 = vperm.xlu0 %518, %v489
  %v520 = vpop.permute.xlu0 %519
  %523 = vset.pattern.permute.xlu0 0
  %524 = vperm.xlu0 %523, %v490
  %v525 = vpop.permute.xlu0 %524
  %528 = vset.pattern.permute.xlu0 0
  %529 = vperm.xlu0 %528, %v491
  %v530 = vpop.permute.xlu0 %529
  %533 = vset.pattern.permute.xlu0 0
  %534 = vperm.xlu0 %533, %v492
  %v535 = vpop.permute.xlu0 %534
  %538 = vset.pattern.permute.xlu0 0
  %539 = vperm.xlu0 %538, %v493
  %v540 = vpop.permute.xlu0 %539
  %543 = vset.pattern.permute.xlu0 0
  %544 = vperm.xlu0 %543, %v494
  %v545 = vpop.permute.xlu0 %544
  %548 = vset.pattern.permute.xlu0 0
  %549 = vperm.xlu0 %548, %v495
  %v550 = vpop.permute.xlu0 %549
  %553 = vset.pattern.permute.xlu0 0
  %554 = vperm.xlu0 %553, %v496
  %v555 = vpop.permute.xlu0 %554
  %558 = vset.pattern.permute.xlu0 0
  %559 = vperm.xlu0 %558, %v497
  %v560 = vpop.permute.xlu0 %559
  %563 = vset.pattern.permute.xlu0 0
  %564 = vperm.xlu0 %563, %v498
  %v565 = vpop.permute.xlu0 %564
  %568 = vset.pattern.permute.xlu0 0
  %569 = vperm.xlu0 %568, %v499
  %v570 = vpop.permute.xlu0 %569
  %573 = vset.pattern.permute.xlu0 0
  %574 = vperm.xlu0 %573, %v500
  %v575 = vpop.permute.xlu0 %574
  %578 = vset.pattern.permute.xlu0 0
  %579 = vperm.xlu0 %578, %v501
  %v580 = vpop.permute.xlu0 %579
  %v582 = vmul.f32 %v447, %v505
  %v583 = vmul.f32 %v449, %v510
  %v584 = vmul.f32 %v452, %v515
  %v585 = vmul.f32 %v454, %v520
  %v586 = vmul.f32 %v457, %v525
  %v587 = vmul.f32 %v459, %v530
  %v588 = vmul.f32 %v462, %v535
  %v589 = vmul.f32 %v464, %v540
  %v590 = vmul.f32 %v467, %v545
  %v591 = vmul.f32 %v469, %v550
  %v592 = vmul.f32 %v472, %v555
  %v593 = vmul.f32 %v474, %v560
  %v594 = vmul.f32 %v477, %v565
  %v595 = vmul.f32 %v479, %v570
  %v596 = vmul.f32 %v482, %v575
  %v597 = vmul.f32 %v484, %v580
  %v598 = vld [vmem:[%s3] sm:$0xff]
  %v599 = vld [vmem:[%s3 + $0x8] sm:$0xff]
  %v600 = vld [vmem:[%s3 + $0x10] sm:$0xff]
  %v601 = vld [vmem:[%s3 + $0x18] sm:$0xff]
  %v602 = vld [vmem:[%s3 + $0x20] sm:$0xff]
  %v603 = vld [vmem:[%s3 + $0x28] sm:$0xff]
  %v604 = vld [vmem:[%s3 + $0x30] sm:$0xff]
  %v605 = vld [vmem:[%s3 + $0x38] sm:$0xff]
  %v606 = vld [vmem:[%s3 + $0x40] sm:$0xff]
  %v607 = vld [vmem:[%s3 + $0x48] sm:$0xff]
  %v608 = vld [vmem:[%s3 + $0x50] sm:$0xff]
  %v609 = vld [vmem:[%s3 + $0x58] sm:$0xff]
  %v610 = vld [vmem:[%s3 + $0x60] sm:$0xff]
  %v611 = vld [vmem:[%s3 + $0x68] sm:$0xff]
  %v612 = vld [vmem:[%s3 + $0x70] sm:$0xff]
  %v613 = vld [vmem:[%s3 + $0x78] sm:$0xff]
  %615 = vset.pattern.permute.xlu0 0
  %616 = vperm.xlu0 %615, %v598
  %v617 = vpop.permute.xlu0 %616
  %620 = vset.pattern.permute.xlu0 0
  %621 = vperm.xlu0 %620, %v599
  %v622 = vpop.permute.xlu0 %621
  %625 = vset.pattern.permute.xlu0 0
  %626 = vperm.xlu0 %625, %v600
  %v627 = vpop.permute.xlu0 %626
  %630 = vset.pattern.permute.xlu0 0
  %631 = vperm.xlu0 %630, %v601
  %v632 = vpop.permute.xlu0 %631
  %635 = vset.pattern.permute.xlu0 0
  %636 = vperm.xlu0 %635, %v602
  %v637 = vpop.permute.xlu0 %636
  %640 = vset.pattern.permute.xlu0 0
  %641 = vperm.xlu0 %640, %v603
  %v642 = vpop.permute.xlu0 %641
  %645 = vset.pattern.permute.xlu0 0
  %646 = vperm.xlu0 %645, %v604
  %v647 = vpop.permute.xlu0 %646
  %650 = vset.pattern.permute.xlu0 0
  %651 = vperm.xlu0 %650, %v605
  %v652 = vpop.permute.xlu0 %651
  %655 = vset.pattern.permute.xlu0 0
  %656 = vperm.xlu0 %655, %v606
  %v657 = vpop.permute.xlu0 %656
  %660 = vset.pattern.permute.xlu0 0
  %661 = vperm.xlu0 %660, %v607
  %v662 = vpop.permute.xlu0 %661
  %665 = vset.pattern.permute.xlu0 0
  %666 = vperm.xlu0 %665, %v608
  %v667 = vpop.permute.xlu0 %666
  %670 = vset.pattern.permute.xlu0 0
  %671 = vperm.xlu0 %670, %v609
  %v672 = vpop.permute.xlu0 %671
  %675 = vset.pattern.permute.xlu0 0
  %676 = vperm.xlu0 %675, %v610
  %v677 = vpop.permute.xlu0 %676
  %680 = vset.pattern.permute.xlu0 0
  %681 = vperm.xlu0 %680, %v611
  %v682 = vpop.permute.xlu0 %681
  %685 = vset.pattern.permute.xlu0 0
  %686 = vperm.xlu0 %685, %v612
  %v687 = vpop.permute.xlu0 %686
  %690 = vset.pattern.permute.xlu0 0
  %691 = vperm.xlu0 %690, %v613
  %v692 = vpop.permute.xlu0 %691
  %v694 = vadd.f32 %v582, %v617
  %v695 = vadd.f32 %v583, %v622
  %v696 = vadd.f32 %v584, %v627
  %v697 = vadd.f32 %v585, %v632
  %v698 = vadd.f32 %v586, %v637
  %v699 = vadd.f32 %v587, %v642
  %v700 = vadd.f32 %v588, %v647
  %v701 = vadd.f32 %v589, %v652
  %v702 = vadd.f32 %v590, %v657
  %v703 = vadd.f32 %v591, %v662
  %v704 = vadd.f32 %v592, %v667
  %v705 = vadd.f32 %v593, %v672
  %v706 = vadd.f32 %v594, %v677
  %v707 = vadd.f32 %v595, %v682
  %v708 = vadd.f32 %v596, %v687
  %v709 = vadd.f32 %v597, %v692
  %v710 = vmax.f32 %v694, 0.0
  %v711 = vmax.f32 %v695, 0.0
  %v712 = vmax.f32 %v696, 0.0
  %v713 = vmax.f32 %v697, 0.0
  %v714 = vmax.f32 %v698, 0.0
  %v715 = vmax.f32 %v699, 0.0
  %v716 = vmax.f32 %v700, 0.0
  %v717 = vmax.f32 %v701, 0.0
  %v718 = vmax.f32 %v702, 0.0
  %v719 = vmax.f32 %v703, 0.0
  %v720 = vmax.f32 %v704, 0.0
  %v721 = vmax.f32 %v705, 0.0
  %v722 = vmax.f32 %v706, 0.0
  %v723 = vmax.f32 %v707, 0.0
  %v724 = vmax.f32 %v708, 0.0
  %v725 = vmax.f32 %v709, 0.0
  %v726 = vpack.c.bf16 %v710, %v710
  %v727 = vpack.c.bf16 %v711, %v711
  %v728 = vpack.c.bf16 %v712, %v712
  %v729 = vpack.c.bf16 %v713, %v713
  %v730 = vpack.c.bf16 %v714, %v714
  %v731 = vpack.c.bf16 %v715, %v715
  %v732 = vpack.c.bf16 %v716, %v716
  %v733 = vpack.c.bf16 %v717, %v717
  %v734 = vpack.c.bf16 %v718, %v718
  %v735 = vpack.c.bf16 %v719, %v719
  %v736 = vpack.c.bf16 %v720, %v720
  %v737 = vpack.c.bf16 %v721, %v721
  %v738 = vpack.c.bf16 %v722, %v722
  %v739 = vpack.c.bf16 %v723, %v723
  %v740 = vpack.c.bf16 %v724, %v724
  %v741 = vpack.c.bf16 %v725, %v725
  %vm742 = vcmask 60416
  %743 = vst.msk [vmem:[%s4] sm:$0xf] %vm742, %v726
  %744 = vst.msk [vmem:[%s4 + $0x4] sm:$0xf] %vm742, %v727
  %745 = vst.msk [vmem:[%s4 + $0x8] sm:$0xf] %vm742, %v728
  %746 = vst.msk [vmem:[%s4 + $0xc] sm:$0xf] %vm742, %v729
  %747 = vst.msk [vmem:[%s4 + $0x10] sm:$0xf] %vm742, %v730
  %748 = vst.msk [vmem:[%s4 + $0x14] sm:$0xf] %vm742, %v731
  %749 = vst.msk [vmem:[%s4 + $0x18] sm:$0xf] %vm742, %v732
  %750 = vst.msk [vmem:[%s4 + $0x1c] sm:$0xf] %vm742, %v733
  %751 = vst.msk [vmem:[%s4 + $0x20] sm:$0xf] %vm742, %v734
  %752 = vst.msk [vmem:[%s4 + $0x24] sm:$0xf] %vm742, %v735
  %753 = vst.msk [vmem:[%s4 + $0x28] sm:$0xf] %vm742, %v736
  %754 = vst.msk [vmem:[%s4 + $0x2c] sm:$0xf] %vm742, %v737
  %755 = vst.msk [vmem:[%s4 + $0x30] sm:$0xf] %vm742, %v738
  %756 = vst.msk [vmem:[%s4 + $0x34] sm:$0xf] %vm742, %v739
  %757 = vst.msk [vmem:[%s4 + $0x38] sm:$0xf] %vm742, %v740
  %758 = vst.msk [vmem:[%s4 + $0x3c] sm:$0xf] %vm742, %v741
  // Predicated region
  $region18: #{unet_forward.20} parent=0 // pred_check
    _
  $region19: #{unet_forward.20} parent=0 // pred_check_branch
    %760 = sbr.rel (0) target = $region21
  $region20: #{unet_forward.20} parent=0 // pred_region
    _
  $region21: #{unet_forward.20} parent=0 // pred_fallthru
    _
  // Predicated region
  $region22: #{unet_forward.20} parent=0 // pred_check
    _
  $region23: #{unet_forward.20} parent=0 // pred_check_branch
    %762 = sbr.rel (0) target = $region25
  $region24: #{unet_forward.20} parent=0 // pred_region
    _
  $region25: #{unet_forward.20} parent=0 // pred_fallthru
    _

// kernel: unet_forward.21
$region0: #{unet_forward.21}
  #allocation0 [shape = 'u32[]', space=smem, size = 0x4, offset = 0x4, fixed_abs, tag = 'smem constant byte address 0x4 - core index']
  #allocation1 [shape = 'u32[72,128]{1,0:T(1,128)}', space=vmem, size = 0x9000, scoped, tag = 'internal scratch']
  %s0 = inlined_call_operand.vmem [shape: bf16[32,576], index: 0, kind: input, shape index: {}]
  %s1 = inlined_call_operand.vmem [shape: bf16[576,32], index: 1, kind: input, shape index: {}]
  %s2 = inlined_call_operand.vmem [shape: f32[32,1], index: 2, kind: input, shape index: {}]
  %s3 = inlined_call_operand.vmem [shape: f32[32,1], index: 3, kind: input, shape index: {}]
  %s4 = inlined_call_operand.vmem [shape: bf16[32,32], index: 4, kind: output, shape index: {}]
  %s5 = sld [smem:[#allocation0]]
  $region26: #{unet_forward.21} parent=0
    _
  %s7 = ssub.s32 1, %s5
  %s8 = scalar_select 0, %s7, %s5
  // Predicated region
  $region2: #{unet_forward.21} parent=0 // pred_check
    _
  $region3: #{unet_forward.21} parent=0 // pred_check_branch
    %10 = sbr.rel (0) target = $region5
  $region4: #{unet_forward.21} parent=0 // pred_region
    _
  $region5: #{unet_forward.21} parent=0 // pred_fallthru
    _
  // Predicated region
  $region6: #{unet_forward.21} parent=0 // pred_check
    _
  $region7: #{unet_forward.21} parent=0 // pred_check_branch
    %12 = sbr.rel (0) target = $region9
  $region8: #{unet_forward.21} parent=0 // pred_region
    _
  $region9: #{unet_forward.21} parent=0 // pred_fallthru
    _
  // Predicated region
  $region10: #{unet_forward.21} parent=0 // pred_check
    _
  $region11: #{unet_forward.21} parent=0 // pred_check_branch
    %14 = sbr.rel (0) target = $region13
  $region12: #{unet_forward.21} parent=0 // pred_region
    _
  $region13: #{unet_forward.21} parent=0 // pred_fallthru
    _
  // Predicated region
  $region14: #{unet_forward.21} parent=0 // pred_check
    _
  $region15: #{unet_forward.21} parent=0 // pred_check_branch
    %16 = sbr.rel (0) target = $region17
  $region16: #{unet_forward.21} parent=0 // pred_region
    _
  $region17: #{unet_forward.21} parent=0 // pred_fallthru
    _
  %v18 = vld [vmem:[%s0] sm:$0xff]
  %v19 = vld [vmem:[%s0 + $0x8] sm:$0xff]
  %v20 = vld [vmem:[%s0 + $0x10] sm:$0xf]
  %v21 = vld [vmem:[%s0 + $0x14] sm:$0xff]
  %v22 = vld [vmem:[%s0 + $0x1c] sm:$0xff]
  %v23 = vld [vmem:[%s0 + $0x24] sm:$0xf]
  %v24 = vld [vmem:[%s0 + $0x28] sm:$0xff]
  %v25 = vld [vmem:[%s0 + $0x30] sm:$0xff]
  %v26 = vld [vmem:[%s0 + $0x38] sm:$0xf]
  %v27 = vld [vmem:[%s0 + $0x3c] sm:$0xff]
  %v28 = vld [vmem:[%s0 + $0x44] sm:$0xff]
  %v29 = vld [vmem:[%s0 + $0x4c] sm:$0xf]
  %v30 = vld [vmem:[%s1] sm:$0xf]
  %v31 = vld [vmem:[%s1 + $0x4] sm:$0xf]
  %v32 = vld [vmem:[%s1 + $0x8] sm:$0xf]
  %v33 = vld [vmem:[%s1 + $0xc] sm:$0xf]
  %v34 = vld [vmem:[%s1 + $0x10] sm:$0xf]
  %v35 = vld [vmem:[%s1 + $0x14] sm:$0xf]
  %v36 = vld [vmem:[%s1 + $0x18] sm:$0xf]
  %v37 = vld [vmem:[%s1 + $0x1c] sm:$0xf]
  %v38 = vld [vmem:[%s1 + $0x20] sm:$0xf]
  %v39 = vld [vmem:[%s1 + $0x24] sm:$0xf]
  %v40 = vld [vmem:[%s1 + $0x28] sm:$0xf]
  %v41 = vld [vmem:[%s1 + $0x2c] sm:$0xf]
  %v42 = vld [vmem:[%s1 + $0x30] sm:$0xf]
  %v43 = vld [vmem:[%s1 + $0x34] sm:$0xf]
  %v44 = vld [vmem:[%s1 + $0x38] sm:$0xf]
  %v45 = vld [vmem:[%s1 + $0x3c] sm:$0xf]
  %v46 = vld [vmem:[%s1 + $0x40] sm:$0xf]
  %v47 = vld [vmem:[%s1 + $0x44] sm:$0xf]
  %v48 = vld [vmem:[%s1 + $0x48] sm:$0xf]
  %v49 = vld [vmem:[%s1 + $0x4c] sm:$0xf]
  %v50 = vld [vmem:[%s1 + $0x50] sm:$0xf]
  %v51 = vld [vmem:[%s1 + $0x54] sm:$0xf]
  %v52 = vld [vmem:[%s1 + $0x58] sm:$0xf]
  %v53 = vld [vmem:[%s1 + $0x5c] sm:$0xf]
  %v54 = vld [vmem:[%s1 + $0x60] sm:$0xf]
  %v55 = vld [vmem:[%s1 + $0x64] sm:$0xf]
  %v56 = vld [vmem:[%s1 + $0x68] sm:$0xf]
  %v57 = vld [vmem:[%s1 + $0x6c] sm:$0xf]
  %v58 = vld [vmem:[%s1 + $0x70] sm:$0xf]
  %v59 = vld [vmem:[%s1 + $0x74] sm:$0xf]
  %v60 = vld [vmem:[%s1 + $0x78] sm:$0xf]
  %v61 = vld [vmem:[%s1 + $0x7c] sm:$0xf]
  %v62 = vld [vmem:[%s1 + $0x80] sm:$0xf]
  %v63 = vld [vmem:[%s1 + $0x84] sm:$0xf]
  %v64 = vld [vmem:[%s1 + $0x88] sm:$0xf]
  %v65 = vld [vmem:[%s1 + $0x8c] sm:$0xf]
  %v66 = vld [vmem:[%s1 + $0x90] sm:$0xf]
  %v67 = vld [vmem:[%s1 + $0x94] sm:$0xf]
  %v68 = vld [vmem:[%s1 + $0x98] sm:$0xf]
  %v69 = vld [vmem:[%s1 + $0x9c] sm:$0xf]
  %v70 = vld [vmem:[%s1 + $0xa0] sm:$0xf]
  %v71 = vld [vmem:[%s1 + $0xa4] sm:$0xf]
  %v72 = vld [vmem:[%s1 + $0xa8] sm:$0xf]
  %v73 = vld [vmem:[%s1 + $0xac] sm:$0xf]
  %v74 = vld [vmem:[%s1 + $0xb0] sm:$0xf]
  %v75 = vld [vmem:[%s1 + $0xb4] sm:$0xf]
  %v76 = vld [vmem:[%s1 + $0xb8] sm:$0xf]
  %v77 = vld [vmem:[%s1 + $0xbc] sm:$0xf]
  %v78 = vld [vmem:[%s1 + $0xc0] sm:$0xf]
  %v79 = vld [vmem:[%s1 + $0xc4] sm:$0xf]
  %v80 = vld [vmem:[%s1 + $0xc8] sm:$0xf]
  %v81 = vld [vmem:[%s1 + $0xcc] sm:$0xf]
  %v82 = vld [vmem:[%s1 + $0xd0] sm:$0xf]
  %v83 = vld [vmem:[%s1 + $0xd4] sm:$0xf]
  %v84 = vld [vmem:[%s1 + $0xd8] sm:$0xf]
  %v85 = vld [vmem:[%s1 + $0xdc] sm:$0xf]
  %v86 = vld [vmem:[%s1 + $0xe0] sm:$0xf]
  %v87 = vld [vmem:[%s1 + $0xe4] sm:$0xf]
  %v88 = vld [vmem:[%s1 + $0xe8] sm:$0xf]
  %v89 = vld [vmem:[%s1 + $0xec] sm:$0xf]
  %v90 = vld [vmem:[%s1 + $0xf0] sm:$0xf]
  %v91 = vld [vmem:[%s1 + $0xf4] sm:$0xf]
  %v92 = vld [vmem:[%s1 + $0xf8] sm:$0xf]
  %v93 = vld [vmem:[%s1 + $0xfc] sm:$0xf]
  %v94 = vld [vmem:[%s1 + $0x100] sm:$0xf]
  %v95 = vld [vmem:[%s1 + $0x104] sm:$0xf]
  %v96 = vld [vmem:[%s1 + $0x108] sm:$0xf]
  %v97 = vld [vmem:[%s1 + $0x10c] sm:$0xf]
  %v98 = vld [vmem:[%s1 + $0x110] sm:$0xf]
  %v99 = vld [vmem:[%s1 + $0x114] sm:$0xf]
  %v100 = vld [vmem:[%s1 + $0x118] sm:$0xf]
  %v101 = vld [vmem:[%s1 + $0x11c] sm:$0xf]
  %v114 = vunpack.c.l.b16 %v18
  %v115 = vunpack.c.h.b16 %v18
  %v116 = vunpack.c.l.b16 %v19
  %v117 = vunpack.c.h.b16 %v19
  %v118 = vunpack.c.l.b16 %v20
  %v119 = vunpack.c.l.b16 %v21
  %v120 = vunpack.c.h.b16 %v21
  %v121 = vunpack.c.l.b16 %v22
  %v122 = vunpack.c.h.b16 %v22
  %v123 = vunpack.c.l.b16 %v23
  %v124 = vunpack.c.l.b16 %v24
  %v125 = vunpack.c.h.b16 %v24
  %v126 = vunpack.c.l.b16 %v25
  %v127 = vunpack.c.h.b16 %v25
  %v128 = vunpack.c.l.b16 %v26
  %v129 = vunpack.c.l.b16 %v27
  %v130 = vunpack.c.h.b16 %v27
  %v131 = vunpack.c.l.b16 %v28
  %v132 = vunpack.c.h.b16 %v28
  %v133 = vunpack.c.l.b16 %v29
  %v134 = vpack.c.b16 %v119, %v114
  %v135 = vpack.c.b16 %v120, %v115
  %v136 = vpack.c.b16 %v121, %v116
  %v137 = vpack.c.b16 %v122, %v117
  %v138 = vpack.c.b16 %v123, %v118
  %v139 = vpack.c.b16 %v129, %v124
  %v140 = vpack.c.b16 %v130, %v125
  %v141 = vpack.c.b16 %v131, %v126
  %v142 = vpack.c.b16 %v132, %v127
  %v143 = vpack.c.b16 %v133, %v128
  %v224 = vunpack.c.l.b16 %v30
  %v225 = vunpack.c.l.b16 %v31
  %v226 = vunpack.c.l.b16 %v32
  %v227 = vunpack.c.l.b16 %v33
  %v228 = vunpack.c.l.b16 %v34
  %v229 = vunpack.c.l.b16 %v35
  %v230 = vunpack.c.l.b16 %v36
  %v231 = vunpack.c.l.b16 %v37
  %v232 = vunpack.c.l.b16 %v38
  %v233 = vunpack.c.l.b16 %v39
  %v234 = vunpack.c.l.b16 %v40
  %v235 = vunpack.c.l.b16 %v41
  %v236 = vunpack.c.l.b16 %v42
  %v237 = vunpack.c.l.b16 %v43
  %v238 = vunpack.c.l.b16 %v44
  %v239 = vunpack.c.l.b16 %v45
  %v240 = vunpack.c.l.b16 %v46
  %v241 = vunpack.c.l.b16 %v47
  %v242 = vunpack.c.l.b16 %v48
  %v243 = vunpack.c.l.b16 %v49
  %v244 = vunpack.c.l.b16 %v50
  %v245 = vunpack.c.l.b16 %v51
  %v246 = vunpack.c.l.b16 %v52
  %v247 = vunpack.c.l.b16 %v53
  %v248 = vunpack.c.l.b16 %v54
  %v249 = vunpack.c.l.b16 %v55
  %v250 = vunpack.c.l.b16 %v56
  %v251 = vunpack.c.l.b16 %v57
  %v252 = vunpack.c.l.b16 %v58
  %v253 = vunpack.c.l.b16 %v59
  %v254 = vunpack.c.l.b16 %v60
  %v255 = vunpack.c.l.b16 %v61
  %v256 = vunpack.c.l.b16 %v62
  %v257 = vunpack.c.l.b16 %v63
  %v258 = vunpack.c.l.b16 %v64
  %v259 = vunpack.c.l.b16 %v65
  %v260 = vunpack.c.l.b16 %v66
  %v261 = vunpack.c.l.b16 %v67
  %v262 = vunpack.c.l.b16 %v68
  %v263 = vunpack.c.l.b16 %v69
  %v264 = vunpack.c.l.b16 %v70
  %v265 = vunpack.c.l.b16 %v71
  %v266 = vunpack.c.l.b16 %v72
  %v267 = vunpack.c.l.b16 %v73
  %v268 = vunpack.c.l.b16 %v74
  %v269 = vunpack.c.l.b16 %v75
  %v270 = vunpack.c.l.b16 %v76
  %v271 = vunpack.c.l.b16 %v77
  %v272 = vunpack.c.l.b16 %v78
  %v273 = vunpack.c.l.b16 %v79
  %v274 = vunpack.c.l.b16 %v80
  %v275 = vunpack.c.l.b16 %v81
  %v276 = vunpack.c.l.b16 %v82
  %v277 = vunpack.c.l.b16 %v83
  %v278 = vunpack.c.l.b16 %v84
  %v279 = vunpack.c.l.b16 %v85
  %v280 = vunpack.c.l.b16 %v86
  %v281 = vunpack.c.l.b16 %v87
  %v282 = vunpack.c.l.b16 %v88
  %v283 = vunpack.c.l.b16 %v89
  %v284 = vunpack.c.l.b16 %v90
  %v285 = vunpack.c.l.b16 %v91
  %v286 = vunpack.c.l.b16 %v92
  %v287 = vunpack.c.l.b16 %v93
  %v288 = vunpack.c.l.b16 %v94
  %v289 = vunpack.c.l.b16 %v95
  %v290 = vunpack.c.l.b16 %v96
  %v291 = vunpack.c.l.b16 %v97
  %v292 = vunpack.c.l.b16 %v98
  %v293 = vunpack.c.l.b16 %v99
  %v294 = vunpack.c.l.b16 %v100
  %v295 = vunpack.c.l.b16 %v101
  %v296 = vpack.c.b16 %v225, %v224
  %v297 = vpack.c.b16 %v227, %v226
  %v298 = vpack.c.b16 %v229, %v228
  %v299 = vpack.c.b16 %v231, %v230
  %v300 = vpack.c.b16 %v233, %v232
  %v301 = vpack.c.b16 %v235, %v234
  %v302 = vpack.c.b16 %v237, %v236
  %v303 = vpack.c.b16 %v239, %v238
  %v304 = vpack.c.b16 %v241, %v240
  %v305 = vpack.c.b16 %v243, %v242
  %v306 = vpack.c.b16 %v245, %v244
  %v307 = vpack.c.b16 %v247, %v246
  %v308 = vpack.c.b16 %v249, %v248
  %v309 = vpack.c.b16 %v251, %v250
  %v310 = vpack.c.b16 %v253, %v252
  %v311 = vpack.c.b16 %v255, %v254
  %v312 = vpack.c.b16 %v257, %v256
  %v313 = vpack.c.b16 %v259, %v258
  %v314 = vpack.c.b16 %v261, %v260
  %v315 = vpack.c.b16 %v263, %v262
  %v316 = vpack.c.b16 %v265, %v264
  %v317 = vpack.c.b16 %v267, %v266
  %v318 = vpack.c.b16 %v269, %v268
  %v319 = vpack.c.b16 %v271, %v270
  %v320 = vpack.c.b16 %v273, %v272
  %v321 = vpack.c.b16 %v275, %v274
  %v322 = vpack.c.b16 %v277, %v276
  %v323 = vpack.c.b16 %v279, %v278
  %v324 = vpack.c.b16 %v281, %v280
  %v325 = vpack.c.b16 %v283, %v282
  %v326 = vpack.c.b16 %v285, %v284
  %v327 = vpack.c.b16 %v287, %v286
  %v328 = vpack.c.b16 %v289, %v288
  %v329 = vpack.c.b16 %v291, %v290
  %v330 = vpack.c.b16 %v293, %v292
  %v331 = vpack.c.b16 %v295, %v294
  %vm368 = vcmask 523264
  %v370 = vsel %vm368, %v138, 0
  %v373 = vsel %vm368, %v143, 0
  %375 = vmatpush.bf16.msra.mxu0 %v303
  %376 = vmatpush.bf16.msra.mxu0 %v302
  %377 = vmatpush.bf16.msra.mxu0 %v301
  %378 = vmatpush.bf16.msra.mxu0 %v300
  %379 = vmatpush.bf16.msra.mxu0 %v299
  %380 = vmatpush.bf16.msra.mxu0 %v298
  %381 = vmatpush.bf16.msra.mxu0 %v297
  %382 = vmatpush.bf16.msra.mxu0 %v296
  %383 = vmatmul.bf16.gmra.mxu0 %v134
  %v384 = vpop.f32.mrf.mxu0
  %v385 = vadd.f32 0.0, %v384
  %v386 = vpop.f32.mrf.mxu0
  %v387 = vadd.f32 0.0, %v386
  %388 = vmatmul.bf16.gmra.mxu0 %v139
  %v389 = vpop.f32.mrf.mxu0
  %v390 = vadd.f32 0.0, %v389
  %v391 = vpop.f32.mrf.mxu0
  %v392 = vadd.f32 0.0, %v391
  %393 = vdwg.mxu0
  %394 = vmatpush.bf16.msra.mxu0 %v311
  %395 = vmatpush.bf16.msra.mxu0 %v310
  %396 = vmatpush.bf16.msra.mxu0 %v309
  %397 = vmatpush.bf16.msra.mxu0 %v308
  %398 = vmatpush.bf16.msra.mxu0 %v307
  %399 = vmatpush.bf16.msra.mxu0 %v306
  %400 = vmatpush.bf16.msra.mxu0 %v305
  %401 = vmatpush.bf16.msra.mxu0 %v304
  %402 = vmatmul.bf16.gmra.mxu0 %v135
  %v403 = vpop.f32.mrf.mxu0
  %v404 = vadd.f32 %v385, %v403
  %v405 = vpop.f32.mrf.mxu0
  %v406 = vadd.f32 %v387, %v405
  %407 = vmatmul.bf16.gmra.mxu0 %v140
  %v408 = vpop.f32.mrf.mxu0
  %v409 = vadd.f32 %v390, %v408
  %v410 = vpop.f32.mrf.mxu0
  %v411 = vadd.f32 %v392, %v410
  %412 = vdwg.mxu0
  %413 = vmatpush.bf16.msra.mxu0 %v319
  %414 = vmatpush.bf16.msra.mxu0 %v318
  %415 = vmatpush.bf16.msra.mxu0 %v317
  %416 = vmatpush.bf16.msra.mxu0 %v316
  %417 = vmatpush.bf16.msra.mxu0 %v315
  %418 = vmatpush.bf16.msra.mxu0 %v314
  %419 = vmatpush.bf16.msra.mxu0 %v313
  %420 = vmatpush.bf16.msra.mxu0 %v312
  %421 = vmatmul.bf16.gmra.mxu0 %v136
  %v422 = vpop.f32.mrf.mxu0
  %v423 = vadd.f32 %v404, %v422
  %v424 = vpop.f32.mrf.mxu0
  %v425 = vadd.f32 %v406, %v424
  %426 = vmatmul.bf16.gmra.mxu0 %v141
  %v427 = vpop.f32.mrf.mxu0
  %v428 = vadd.f32 %v409, %v427
  %v429 = vpop.f32.mrf.mxu0
  %v430 = vadd.f32 %v411, %v429
  %431 = vdwg.mxu0
  %432 = vmatpush.bf16.msra.mxu0 %v327
  %433 = vmatpush.bf16.msra.mxu0 %v326
  %434 = vmatpush.bf16.msra.mxu0 %v325
  %435 = vmatpush.bf16.msra.mxu0 %v324
  %436 = vmatpush.bf16.msra.mxu0 %v323
  %437 = vmatpush.bf16.msra.mxu0 %v322
  %438 = vmatpush.bf16.msra.mxu0 %v321
  %439 = vmatpush.bf16.msra.mxu0 %v320
  %440 = vmatmul.bf16.gmra.mxu0 %v137
  %v441 = vpop.f32.mrf.mxu0
  %v442 = vadd.f32 %v423, %v441
  %v443 = vpop.f32.mrf.mxu0
  %v444 = vadd.f32 %v425, %v443
  %445 = vmatmul.bf16.gmra.mxu0 %v142
  %v446 = vpop.f32.mrf.mxu0
  %v447 = vadd.f32 %v428, %v446
  %v448 = vpop.f32.mrf.mxu0
  %v449 = vadd.f32 %v430, %v448
  %450 = vdwg.mxu0
  %451 = vmatpush.bf16.msra.mxu0 0
  %452 = vmatpush.bf16.msra.mxu0 0
  %453 = vmatpush.bf16.msra.mxu0 0
  %454 = vmatpush.bf16.msra.mxu0 0
  %455 = vmatpush.bf16.msra.mxu0 %v331
  %456 = vmatpush.bf16.msra.mxu0 %v330
  %457 = vmatpush.bf16.msra.mxu0 %v329
  %458 = vmatpush.bf16.msra.mxu0 %v328
  %459 = vmatmul.bf16.gmra.mxu0 %v370
  %v460 = vpop.f32.mrf.mxu0
  %v461 = vadd.f32 %v442, %v460
  %v462 = vpop.f32.mrf.mxu0
  %v463 = vadd.f32 %v444, %v462
  %464 = vmatmul.bf16.gmra.mxu0 %v373
  %v465 = vpop.f32.mrf.mxu0
  %v466 = vadd.f32 %v447, %v465
  %v467 = vpop.f32.mrf.mxu0
  %v468 = vadd.f32 %v449, %v467
  %469 = vdwg.mxu0
  %v470 = vld [vmem:[%s2] sm:$0xff]
  %v471 = vld [vmem:[%s2 + $0x8] sm:$0xff]
  %v472 = vld [vmem:[%s2 + $0x10] sm:$0xff]
  %v473 = vld [vmem:[%s2 + $0x18] sm:$0xff]
  %475 = vset.pattern.permute.xlu0 0
  %476 = vperm.xlu0 %475, %v470
  %v477 = vpop.permute.xlu0 %476
  %480 = vset.pattern.permute.xlu0 0
  %481 = vperm.xlu0 %480, %v471
  %v482 = vpop.permute.xlu0 %481
  %485 = vset.pattern.permute.xlu0 0
  %486 = vperm.xlu0 %485, %v472
  %v487 = vpop.permute.xlu0 %486
  %490 = vset.pattern.permute.xlu0 0
  %491 = vperm.xlu0 %490, %v473
  %v492 = vpop.permute.xlu0 %491
  %v494 = vmul.f32 %v461, %v477
  %v495 = vmul.f32 %v463, %v482
  %v496 = vmul.f32 %v466, %v487
  %v497 = vmul.f32 %v468, %v492
  %v498 = vld [vmem:[%s3] sm:$0xff]
  %v499 = vld [vmem:[%s3 + $0x8] sm:$0xff]
  %v500 = vld [vmem:[%s3 + $0x10] sm:$0xff]
  %v501 = vld [vmem:[%s3 + $0x18] sm:$0xff]
  %503 = vset.pattern.permute.xlu0 0
  %504 = vperm.xlu0 %503, %v498
  %v505 = vpop.permute.xlu0 %504
  %508 = vset.pattern.permute.xlu0 0
  %509 = vperm.xlu0 %508, %v499
  %v510 = vpop.permute.xlu0 %509
  %513 = vset.pattern.permute.xlu0 0
  %514 = vperm.xlu0 %513, %v500
  %v515 = vpop.permute.xlu0 %514
  %518 = vset.pattern.permute.xlu0 0
  %519 = vperm.xlu0 %518, %v501
  %v520 = vpop.permute.xlu0 %519
  %v522 = vadd.f32 %v494, %v505
  %v523 = vadd.f32 %v495, %v510
  %v524 = vadd.f32 %v496, %v515
  %v525 = vadd.f32 %v497, %v520
  %v526 = vmax.f32 %v522, 0.0
  %v527 = vmax.f32 %v523, 0.0
  %v528 = vmax.f32 %v524, 0.0
  %v529 = vmax.f32 %v525, 0.0
  %v530 = vpack.c.bf16 %v526, %v526
  %v531 = vpack.c.bf16 %v527, %v527
  %v532 = vpack.c.bf16 %v528, %v528
  %v533 = vpack.c.bf16 %v529, %v529
  %vm534 = vcmask 257024
  %535 = vst.msk [vmem:[%s4] sm:$0xf] %vm534, %v530
  %536 = vst.msk [vmem:[%s4 + $0x4] sm:$0xf] %vm534, %v531
  %537 = vst.msk [vmem:[%s4 + $0x8] sm:$0xf] %vm534, %v532
  %538 = vst.msk [vmem:[%s4 + $0xc] sm:$0xf] %vm534, %v533
  // Predicated region
  $region18: #{unet_forward.21} parent=0 // pred_check
    _
  $region19: #{unet_forward.21} parent=0 // pred_check_branch
    %540 = sbr.rel (0) target = $region21
  $region20: #{unet_forward.21} parent=0 // pred_region
    _
  $region21: #{unet_forward.21} parent=0 // pred_fallthru
    _
  // Predicated region
  $region22: #{unet_forward.21} parent=0 // pred_check
    _
  $region23: #{unet_forward.21} parent=0 // pred_check_branch
    %542 = sbr.rel (0) target = $region25
  $region24: #{unet_forward.21} parent=0 // pred_region
    _
  $region25: #{unet_forward.21} parent=0 // pred_fallthru
    _

// kernel: unet_forward.22
$region0: #{unet_forward.22}
  #allocation0 [shape = 'u32[]', space=smem, size = 0x4, offset = 0x4, fixed_abs, tag = 'smem constant byte address 0x4 - core index']
  #allocation1 [shape = 'u32[72,128]{1,0:T(1,128)}', space=vmem, size = 0x9000, scoped, tag = 'internal scratch']
  %s0 = inlined_call_operand.vmem [shape: bf16[128,288], index: 0, kind: input, shape index: {}]
  %s1 = inlined_call_operand.vmem [shape: bf16[288,32], index: 1, kind: input, shape index: {}]
  %s2 = inlined_call_operand.vmem [shape: f32[128,1], index: 2, kind: input, shape index: {}]
  %s3 = inlined_call_operand.vmem [shape: f32[128,1], index: 3, kind: input, shape index: {}]
  %s4 = inlined_call_operand.vmem [shape: bf16[128,32], index: 4, kind: output, shape index: {}]
  %s5 = sld [smem:[#allocation0]]
  $region26: #{unet_forward.22} parent=0
    _
  %s7 = ssub.s32 1, %s5
  %s8 = scalar_select 0, %s7, %s5
  // Predicated region
  $region2: #{unet_forward.22} parent=0 // pred_check
    _
  $region3: #{unet_forward.22} parent=0 // pred_check_branch
    %10 = sbr.rel (0) target = $region5
  $region4: #{unet_forward.22} parent=0 // pred_region
    _
  $region5: #{unet_forward.22} parent=0 // pred_fallthru
    _
  // Predicated region
  $region6: #{unet_forward.22} parent=0 // pred_check
    _
  $region7: #{unet_forward.22} parent=0 // pred_check_branch
    %12 = sbr.rel (0) target = $region9
  $region8: #{unet_forward.22} parent=0 // pred_region
    _
  $region9: #{unet_forward.22} parent=0 // pred_fallthru
    _
  // Predicated region
  $region10: #{unet_forward.22} parent=0 // pred_check
    _
  $region11: #{unet_forward.22} parent=0 // pred_check_branch
    %14 = sbr.rel (0) target = $region13
  $region12: #{unet_forward.22} parent=0 // pred_region
    _
  $region13: #{unet_forward.22} parent=0 // pred_fallthru
    _
  // Predicated region
  $region14: #{unet_forward.22} parent=0 // pred_check
    _
  $region15: #{unet_forward.22} parent=0 // pred_check_branch
    %16 = sbr.rel (0) target = $region17
  $region16: #{unet_forward.22} parent=0 // pred_region
    _
  $region17: #{unet_forward.22} parent=0 // pred_fallthru
    _
  %v18 = vld [vmem:[%s0] sm:$0xff]
  %v19 = vld [vmem:[%s0 + $0x8] sm:$0xf]
  %v20 = vld [vmem:[%s0 + $0xc] sm:$0xff]
  %v21 = vld [vmem:[%s0 + $0x14] sm:$0xf]
  %v22 = vld [vmem:[%s0 + $0x18] sm:$0xff]
  %v23 = vld [vmem:[%s0 + $0x20] sm:$0xf]
  %v24 = vld [vmem:[%s0 + $0x24] sm:$0xff]
  %v25 = vld [vmem:[%s0 + $0x2c] sm:$0xf]
  %v26 = vld [vmem:[%s0 + $0x30] sm:$0xff]
  %v27 = vld [vmem:[%s0 + $0x38] sm:$0xf]
  %v28 = vld [vmem:[%s0 + $0x3c] sm:$0xff]
  %v29 = vld [vmem:[%s0 + $0x44] sm:$0xf]
  %v30 = vld [vmem:[%s0 + $0x48] sm:$0xff]
  %v31 = vld [vmem:[%s0 + $0x50] sm:$0xf]
  %v32 = vld [vmem:[%s0 + $0x54] sm:$0xff]
  %v33 = vld [vmem:[%s0 + $0x5c] sm:$0xf]
  %v34 = vld [vmem:[%s0 + $0x60] sm:$0xff]
  %v35 = vld [vmem:[%s0 + $0x68] sm:$0xf]
  %v36 = vld [vmem:[%s0 + $0x6c] sm:$0xff]
  %v37 = vld [vmem:[%s0 + $0x74] sm:$0xf]
  %v38 = vld [vmem:[%s0 + $0x78] sm:$0xff]
  %v39 = vld [vmem:[%s0 + $0x80] sm:$0xf]
  %v40 = vld [vmem:[%s0 + $0x84] sm:$0xff]
  %v41 = vld [vmem:[%s0 + $0x8c] sm:$0xf]
  %v42 = vld [vmem:[%s0 + $0x90] sm:$0xff]
  %v43 = vld [vmem:[%s0 + $0x98] sm:$0xf]
  %v44 = vld [vmem:[%s0 + $0x9c] sm:$0xff]
  %v45 = vld [vmem:[%s0 + $0xa4] sm:$0xf]
  %v46 = vld [vmem:[%s0 + $0xa8] sm:$0xff]
  %v47 = vld [vmem:[%s0 + $0xb0] sm:$0xf]
  %v48 = vld [vmem:[%s0 + $0xb4] sm:$0xff]
  %v49 = vld [vmem:[%s0 + $0xbc] sm:$0xf]
  %v50 = vld [vmem:[%s1] sm:$0xf]
  %v51 = vld [vmem:[%s1 + $0x4] sm:$0xf]
  %v52 = vld [vmem:[%s1 + $0x8] sm:$0xf]
  %v53 = vld [vmem:[%s1 + $0xc] sm:$0xf]
  %v54 = vld [vmem:[%s1 + $0x10] sm:$0xf]
  %v55 = vld [vmem:[%s1 + $0x14] sm:$0xf]
  %v56 = vld [vmem:[%s1 + $0x18] sm:$0xf]
  %v57 = vld [vmem:[%s1 + $0x1c] sm:$0xf]
  %v58 = vld [vmem:[%s1 + $0x20] sm:$0xf]
  %v59 = vld [vmem:[%s1 + $0x24] sm:$0xf]
  %v60 = vld [vmem:[%s1 + $0x28] sm:$0xf]
  %v61 = vld [vmem:[%s1 + $0x2c] sm:$0xf]
  %v62 = vld [vmem:[%s1 + $0x30] sm:$0xf]
  %v63 = vld [vmem:[%s1 + $0x34] sm:$0xf]
  %v64 = vld [vmem:[%s1 + $0x38] sm:$0xf]
  %v65 = vld [vmem:[%s1 + $0x3c] sm:$0xf]
  %v66 = vld [vmem:[%s1 + $0x40] sm:$0xf]
  %v67 = vld [vmem:[%s1 + $0x44] sm:$0xf]
  %v68 = vld [vmem:[%s1 + $0x48] sm:$0xf]
  %v69 = vld [vmem:[%s1 + $0x4c] sm:$0xf]
  %v70 = vld [vmem:[%s1 + $0x50] sm:$0xf]
  %v71 = vld [vmem:[%s1 + $0x54] sm:$0xf]
  %v72 = vld [vmem:[%s1 + $0x58] sm:$0xf]
  %v73 = vld [vmem:[%s1 + $0x5c] sm:$0xf]
  %v74 = vld [vmem:[%s1 + $0x60] sm:$0xf]
  %v75 = vld [vmem:[%s1 + $0x64] sm:$0xf]
  %v76 = vld [vmem:[%s1 + $0x68] sm:$0xf]
  %v77 = vld [vmem:[%s1 + $0x6c] sm:$0xf]
  %v78 = vld [vmem:[%s1 + $0x70] sm:$0xf]
  %v79 = vld [vmem:[%s1 + $0x74] sm:$0xf]
  %v80 = vld [vmem:[%s1 + $0x78] sm:$0xf]
  %v81 = vld [vmem:[%s1 + $0x7c] sm:$0xf]
  %v82 = vld [vmem:[%s1 + $0x80] sm:$0xf]
  %v83 = vld [vmem:[%s1 + $0x84] sm:$0xf]
  %v84 = vld [vmem:[%s1 + $0x88] sm:$0xf]
  %v85 = vld [vmem:[%s1 + $0x8c] sm:$0xf]
  %v118 = vunpack.c.l.b16 %v18
  %v119 = vunpack.c.h.b16 %v18
  %v120 = vunpack.c.l.b16 %v19
  %v121 = vunpack.c.l.b16 %v20
  %v122 = vunpack.c.h.b16 %v20
  %v123 = vunpack.c.l.b16 %v21
  %v124 = vunpack.c.l.b16 %v22
  %v125 = vunpack.c.h.b16 %v22
  %v126 = vunpack.c.l.b16 %v23
  %v127 = vunpack.c.l.b16 %v24
  %v128 = vunpack.c.h.b16 %v24
  %v129 = vunpack.c.l.b16 %v25
  %v130 = vunpack.c.l.b16 %v26
  %v131 = vunpack.c.h.b16 %v26
  %v132 = vunpack.c.l.b16 %v27
  %v133 = vunpack.c.l.b16 %v28
  %v134 = vunpack.c.h.b16 %v28
  %v135 = vunpack.c.l.b16 %v29
  %v136 = vunpack.c.l.b16 %v30
  %v137 = vunpack.c.h.b16 %v30
  %v138 = vunpack.c.l.b16 %v31
  %v139 = vunpack.c.l.b16 %v32
  %v140 = vunpack.c.h.b16 %v32
  %v141 = vunpack.c.l.b16 %v33
  %v142 = vunpack.c.l.b16 %v34
  %v143 = vunpack.c.h.b16 %v34
  %v144 = vunpack.c.l.b16 %v35
  %v145 = vunpack.c.l.b16 %v36
  %v146 = vunpack.c.h.b16 %v36
  %v147 = vunpack.c.l.b16 %v37
  %v148 = vunpack.c.l.b16 %v38
  %v149 = vunpack.c.h.b16 %v38
  %v150 = vunpack.c.l.b16 %v39
  %v151 = vunpack.c.l.b16 %v40
  %v152 = vunpack.c.h.b16 %v40
  %v153 = vunpack.c.l.b16 %v41
  %v154 = vunpack.c.l.b16 %v42
  %v155 = vunpack.c.h.b16 %v42
  %v156 = vunpack.c.l.b16 %v43
  %v157 = vunpack.c.l.b16 %v44
  %v158 = vunpack.c.h.b16 %v44
  %v159 = vunpack.c.l.b16 %v45
  %v160 = vunpack.c.l.b16 %v46
  %v161 = vunpack.c.h.b16 %v46
  %v162 = vunpack.c.l.b16 %v47
  %v163 = vunpack.c.l.b16 %v48
  %v164 = vunpack.c.h.b16 %v48
  %v165 = vunpack.c.l.b16 %v49
  %v166 = vpack.c.b16 %v121, %v118
  %v167 = vpack.c.b16 %v122, %v119
  %v168 = vpack.c.b16 %v123, %v120
  %v169 = vpack.c.b16 %v127, %v124
  %v170 = vpack.c.b16 %v128, %v125
  %v171 = vpack.c.b16 %v129, %v126
  %v172 = vpack.c.b16 %v133, %v130
  %v173 = vpack.c.b16 %v134, %v131
  %v174 = vpack.c.b16 %v135, %v132
  %v175 = vpack.c.b16 %v139, %v136
  %v176 = vpack.c.b16 %v140, %v137
  %v177 = vpack.c.b16 %v141, %v138
  %v178 = vpack.c.b16 %v145, %v142
  %v179 = vpack.c.b16 %v146, %v143
  %v180 = vpack.c.b16 %v147, %v144
  %v181 = vpack.c.b16 %v151, %v148
  %v182 = vpack.c.b16 %v152, %v149
  %v183 = vpack.c.b16 %v153, %v150
  %v184 = vpack.c.b16 %v157, %v154
  %v185 = vpack.c.b16 %v158, %v155
  %v186 = vpack.c.b16 %v159, %v156
  %v187 = vpack.c.b16 %v163, %v160
  %v188 = vpack.c.b16 %v164, %v161
  %v189 = vpack.c.b16 %v165, %v162
  %v242 = vunpack.c.l.b16 %v50
  %v243 = vunpack.c.l.b16 %v51
  %v244 = vunpack.c.l.b16 %v52
  %v245 = vunpack.c.l.b16 %v53
  %v246 = vunpack.c.l.b16 %v54
  %v247 = vunpack.c.l.b16 %v55
  %v248 = vunpack.c.l.b16 %v56
  %v249 = vunpack.c.l.b16 %v57
  %v250 = vunpack.c.l.b16 %v58
  %v251 = vunpack.c.l.b16 %v59
  %v252 = vunpack.c.l.b16 %v60
  %v253 = vunpack.c.l.b16 %v61
  %v254 = vunpack.c.l.b16 %v62
  %v255 = vunpack.c.l.b16 %v63
  %v256 = vunpack.c.l.b16 %v64
  %v257 = vunpack.c.l.b16 %v65
  %v258 = vunpack.c.l.b16 %v66
  %v259 = vunpack.c.l.b16 %v67
  %v260 = vunpack.c.l.b16 %v68
  %v261 = vunpack.c.l.b16 %v69
  %v262 = vunpack.c.l.b16 %v70
  %v263 = vunpack.c.l.b16 %v71
  %v264 = vunpack.c.l.b16 %v72
  %v265 = vunpack.c.l.b16 %v73
  %v266 = vunpack.c.l.b16 %v74
  %v267 = vunpack.c.l.b16 %v75
  %v268 = vunpack.c.l.b16 %v76
  %v269 = vunpack.c.l.b16 %v77
  %v270 = vunpack.c.l.b16 %v78
  %v271 = vunpack.c.l.b16 %v79
  %v272 = vunpack.c.l.b16 %v80
  %v273 = vunpack.c.l.b16 %v81
  %v274 = vunpack.c.l.b16 %v82
  %v275 = vunpack.c.l.b16 %v83
  %v276 = vunpack.c.l.b16 %v84
  %v277 = vunpack.c.l.b16 %v85
  %v278 = vpack.c.b16 %v243, %v242
  %v279 = vpack.c.b16 %v245, %v244
  %v280 = vpack.c.b16 %v247, %v246
  %v281 = vpack.c.b16 %v249, %v248
  %v282 = vpack.c.b16 %v251, %v250
  %v283 = vpack.c.b16 %v253, %v252
  %v284 = vpack.c.b16 %v255, %v254
  %v285 = vpack.c.b16 %v257, %v256
  %v286 = vpack.c.b16 %v259, %v258
  %v287 = vpack.c.b16 %v261, %v260
  %v288 = vpack.c.b16 %v263, %v262
  %v289 = vpack.c.b16 %v265, %v264
  %v290 = vpack.c.b16 %v267, %v266
  %v291 = vpack.c.b16 %v269, %v268
  %v292 = vpack.c.b16 %v271, %v270
  %v293 = vpack.c.b16 %v273, %v272
  %v294 = vpack.c.b16 %v275, %v274
  %v295 = vpack.c.b16 %v277, %v276
  %vm314 = vcmask 261120
  %v316 = vsel %vm314, %v168, 0
  %v319 = vsel %vm314, %v171, 0
  %v322 = vsel %vm314, %v174, 0
  %v325 = vsel %vm314, %v177, 0
  %v328 = vsel %vm314, %v180, 0
  %v331 = vsel %vm314, %v183, 0
  %v334 = vsel %vm314, %v186, 0
  %v337 = vsel %vm314, %v189, 0
  %339 = vmatpush.bf16.msra.mxu0 %v285
  %340 = vmatpush.bf16.msra.mxu0 %v284
  %341 = vmatpush.bf16.msra.mxu0 %v283
  %342 = vmatpush.bf16.msra.mxu0 %v282
  %343 = vmatpush.bf16.msra.mxu0 %v281
  %344 = vmatpush.bf16.msra.mxu0 %v280
  %345 = vmatpush.bf16.msra.mxu0 %v279
  %346 = vmatpush.bf16.msra.mxu0 %v278
  %347 = vmatmul.bf16.gmra.mxu0 %v166
  %v348 = vpop.f32.mrf.mxu0
  %v349 = vadd.f32 0.0, %v348
  %v350 = vpop.f32.mrf.mxu0
  %v351 = vadd.f32 0.0, %v350
  %352 = vmatmul.bf16.gmra.mxu0 %v169
  %v353 = vpop.f32.mrf.mxu0
  %v354 = vadd.f32 0.0, %v353
  %v355 = vpop.f32.mrf.mxu0
  %v356 = vadd.f32 0.0, %v355
  %357 = vmatmul.bf16.gmra.mxu0 %v172
  %v358 = vpop.f32.mrf.mxu0
  %v359 = vadd.f32 0.0, %v358
  %v360 = vpop.f32.mrf.mxu0
  %v361 = vadd.f32 0.0, %v360
  %362 = vmatmul.bf16.gmra.mxu0 %v175
  %v363 = vpop.f32.mrf.mxu0
  %v364 = vadd.f32 0.0, %v363
  %v365 = vpop.f32.mrf.mxu0
  %v366 = vadd.f32 0.0, %v365
  %367 = vmatmul.bf16.gmra.mxu0 %v178
  %v368 = vpop.f32.mrf.mxu0
  %v369 = vadd.f32 0.0, %v368
  %v370 = vpop.f32.mrf.mxu0
  %v371 = vadd.f32 0.0, %v370
  %372 = vmatmul.bf16.gmra.mxu0 %v181
  %v373 = vpop.f32.mrf.mxu0
  %v374 = vadd.f32 0.0, %v373
  %v375 = vpop.f32.mrf.mxu0
  %v376 = vadd.f32 0.0, %v375
  %377 = vmatmul.bf16.gmra.mxu0 %v184
  %v378 = vpop.f32.mrf.mxu0
  %v379 = vadd.f32 0.0, %v378
  %v380 = vpop.f32.mrf.mxu0
  %v381 = vadd.f32 0.0, %v380
  %382 = vmatmul.bf16.gmra.mxu0 %v187
  %v383 = vpop.f32.mrf.mxu0
  %v384 = vadd.f32 0.0, %v383
  %v385 = vpop.f32.mrf.mxu0
  %v386 = vadd.f32 0.0, %v385
  %387 = vdwg.mxu0
  %388 = vmatpush.bf16.msra.mxu0 %v293
  %389 = vmatpush.bf16.msra.mxu0 %v292
  %390 = vmatpush.bf16.msra.mxu0 %v291
  %391 = vmatpush.bf16.msra.mxu0 %v290
  %392 = vmatpush.bf16.msra.mxu0 %v289
  %393 = vmatpush.bf16.msra.mxu0 %v288
  %394 = vmatpush.bf16.msra.mxu0 %v287
  %395 = vmatpush.bf16.msra.mxu0 %v286
  %396 = vmatmul.bf16.gmra.mxu0 %v167
  %v397 = vpop.f32.mrf.mxu0
  %v398 = vadd.f32 %v349, %v397
  %v399 = vpop.f32.mrf.mxu0
  %v400 = vadd.f32 %v351, %v399
  %401 = vmatmul.bf16.gmra.mxu0 %v170
  %v402 = vpop.f32.mrf.mxu0
  %v403 = vadd.f32 %v354, %v402
  %v404 = vpop.f32.mrf.mxu0
  %v405 = vadd.f32 %v356, %v404
  %406 = vmatmul.bf16.gmra.mxu0 %v173
  %v407 = vpop.f32.mrf.mxu0
  %v408 = vadd.f32 %v359, %v407
  %v409 = vpop.f32.mrf.mxu0
  %v410 = vadd.f32 %v361, %v409
  %411 = vmatmul.bf16.gmra.mxu0 %v176
  %v412 = vpop.f32.mrf.mxu0
  %v413 = vadd.f32 %v364, %v412
  %v414 = vpop.f32.mrf.mxu0
  %v415 = vadd.f32 %v366, %v414
  %416 = vmatmul.bf16.gmra.mxu0 %v179
  %v417 = vpop.f32.mrf.mxu0
  %v418 = vadd.f32 %v369, %v417
  %v419 = vpop.f32.mrf.mxu0
  %v420 = vadd.f32 %v371, %v419
  %421 = vmatmul.bf16.gmra.mxu0 %v182
  %v422 = vpop.f32.mrf.mxu0
  %v423 = vadd.f32 %v374, %v422
  %v424 = vpop.f32.mrf.mxu0
  %v425 = vadd.f32 %v376, %v424
  %426 = vmatmul.bf16.gmra.mxu0 %v185
  %v427 = vpop.f32.mrf.mxu0
  %v428 = vadd.f32 %v379, %v427
  %v429 = vpop.f32.mrf.mxu0
  %v430 = vadd.f32 %v381, %v429
  %431 = vmatmul.bf16.gmra.mxu0 %v188
  %v432 = vpop.f32.mrf.mxu0
  %v433 = vadd.f32 %v384, %v432
  %v434 = vpop.f32.mrf.mxu0
  %v435 = vadd.f32 %v386, %v434
  %436 = vdwg.mxu0
  %437 = vmatpush.bf16.msra.mxu0 0
  %438 = vmatpush.bf16.msra.mxu0 0
  %439 = vmatpush.bf16.msra.mxu0 0
  %440 = vmatpush.bf16.msra.mxu0 0
  %441 = vmatpush.bf16.msra.mxu0 0
  %442 = vmatpush.bf16.msra.mxu0 0
  %443 = vmatpush.bf16.msra.mxu0 %v295
  %444 = vmatpush.bf16.msra.mxu0 %v294
  %445 = vmatmul.bf16.gmra.mxu0 %v316
  %v446 = vpop.f32.mrf.mxu0
  %v447 = vadd.f32 %v398, %v446
  %v448 = vpop.f32.mrf.mxu0
  %v449 = vadd.f32 %v400, %v448
  %450 = vmatmul.bf16.gmra.mxu0 %v319
  %v451 = vpop.f32.mrf.mxu0
  %v452 = vadd.f32 %v403, %v451
  %v453 = vpop.f32.mrf.mxu0
  %v454 = vadd.f32 %v405, %v453
  %455 = vmatmul.bf16.gmra.mxu0 %v322
  %v456 = vpop.f32.mrf.mxu0
  %v457 = vadd.f32 %v408, %v456
  %v458 = vpop.f32.mrf.mxu0
  %v459 = vadd.f32 %v410, %v458
  %460 = vmatmul.bf16.gmra.mxu0 %v325
  %v461 = vpop.f32.mrf.mxu0
  %v462 = vadd.f32 %v413, %v461
  %v463 = vpop.f32.mrf.mxu0
  %v464 = vadd.f32 %v415, %v463
  %465 = vmatmul.bf16.gmra.mxu0 %v328
  %v466 = vpop.f32.mrf.mxu0
  %v467 = vadd.f32 %v418, %v466
  %v468 = vpop.f32.mrf.mxu0
  %v469 = vadd.f32 %v420, %v468
  %470 = vmatmul.bf16.gmra.mxu0 %v331
  %v471 = vpop.f32.mrf.mxu0
  %v472 = vadd.f32 %v423, %v471
  %v473 = vpop.f32.mrf.mxu0
  %v474 = vadd.f32 %v425, %v473
  %475 = vmatmul.bf16.gmra.mxu0 %v334
  %v476 = vpop.f32.mrf.mxu0
  %v477 = vadd.f32 %v428, %v476
  %v478 = vpop.f32.mrf.mxu0
  %v479 = vadd.f32 %v430, %v478
  %480 = vmatmul.bf16.gmra.mxu0 %v337
  %v481 = vpop.f32.mrf.mxu0
  %v482 = vadd.f32 %v433, %v481
  %v483 = vpop.f32.mrf.mxu0
  %v484 = vadd.f32 %v435, %v483
  %485 = vdwg.mxu0
  %v486 = vld [vmem:[%s2] sm:$0xff]
  %v487 = vld [vmem:[%s2 + $0x8] sm:$0xff]
  %v488 = vld [vmem:[%s2 + $0x10] sm:$0xff]
  %v489 = vld [vmem:[%s2 + $0x18] sm:$0xff]
  %v490 = vld [vmem:[%s2 + $0x20] sm:$0xff]
  %v491 = vld [vmem:[%s2 + $0x28] sm:$0xff]
  %v492 = vld [vmem:[%s2 + $0x30] sm:$0xff]
  %v493 = vld [vmem:[%s2 + $0x38] sm:$0xff]
  %v494 = vld [vmem:[%s2 + $0x40] sm:$0xff]
  %v495 = vld [vmem:[%s2 + $0x48] sm:$0xff]
  %v496 = vld [vmem:[%s2 + $0x50] sm:$0xff]
  %v497 = vld [vmem:[%s2 + $0x58] sm:$0xff]
  %v498 = vld [vmem:[%s2 + $0x60] sm:$0xff]
  %v499 = vld [vmem:[%s2 + $0x68] sm:$0xff]
  %v500 = vld [vmem:[%s2 + $0x70] sm:$0xff]
  %v501 = vld [vmem:[%s2 + $0x78] sm:$0xff]
  %503 = vset.pattern.permute.xlu0 0
  %504 = vperm.xlu0 %503, %v486
  %v505 = vpop.permute.xlu0 %504
  %508 = vset.pattern.permute.xlu0 0
  %509 = vperm.xlu0 %508, %v487
  %v510 = vpop.permute.xlu0 %509
  %513 = vset.pattern.permute.xlu0 0
  %514 = vperm.xlu0 %513, %v488
  %v515 = vpop.permute.xlu0 %514
  %518 = vset.pattern.permute.xlu0 0
  %519 = vperm.xlu0 %518, %v489
  %v520 = vpop.permute.xlu0 %519
  %523 = vset.pattern.permute.xlu0 0
  %524 = vperm.xlu0 %523, %v490
  %v525 = vpop.permute.xlu0 %524
  %528 = vset.pattern.permute.xlu0 0
  %529 = vperm.xlu0 %528, %v491
  %v530 = vpop.permute.xlu0 %529
  %533 = vset.pattern.permute.xlu0 0
  %534 = vperm.xlu0 %533, %v492
  %v535 = vpop.permute.xlu0 %534
  %538 = vset.pattern.permute.xlu0 0
  %539 = vperm.xlu0 %538, %v493
  %v540 = vpop.permute.xlu0 %539
  %543 = vset.pattern.permute.xlu0 0
  %544 = vperm.xlu0 %543, %v494
  %v545 = vpop.permute.xlu0 %544
  %548 = vset.pattern.permute.xlu0 0
  %549 = vperm.xlu0 %548, %v495
  %v550 = vpop.permute.xlu0 %549
  %553 = vset.pattern.permute.xlu0 0
  %554 = vperm.xlu0 %553, %v496
  %v555 = vpop.permute.xlu0 %554
  %558 = vset.pattern.permute.xlu0 0
  %559 = vperm.xlu0 %558, %v497
  %v560 = vpop.permute.xlu0 %559
  %563 = vset.pattern.permute.xlu0 0
  %564 = vperm.xlu0 %563, %v498
  %v565 = vpop.permute.xlu0 %564
  %568 = vset.pattern.permute.xlu0 0
  %569 = vperm.xlu0 %568, %v499
  %v570 = vpop.permute.xlu0 %569
  %573 = vset.pattern.permute.xlu0 0
  %574 = vperm.xlu0 %573, %v500
  %v575 = vpop.permute.xlu0 %574
  %578 = vset.pattern.permute.xlu0 0
  %579 = vperm.xlu0 %578, %v501
  %v580 = vpop.permute.xlu0 %579
  %v582 = vmul.f32 %v447, %v505
  %v583 = vmul.f32 %v449, %v510
  %v584 = vmul.f32 %v452, %v515
  %v585 = vmul.f32 %v454, %v520
  %v586 = vmul.f32 %v457, %v525
  %v587 = vmul.f32 %v459, %v530
  %v588 = vmul.f32 %v462, %v535
  %v589 = vmul.f32 %v464, %v540
  %v590 = vmul.f32 %v467, %v545
  %v591 = vmul.f32 %v469, %v550
  %v592 = vmul.f32 %v472, %v555
  %v593 = vmul.f32 %v474, %v560
  %v594 = vmul.f32 %v477, %v565
  %v595 = vmul.f32 %v479, %v570
  %v596 = vmul.f32 %v482, %v575
  %v597 = vmul.f32 %v484, %v580
  %v598 = vld [vmem:[%s3] sm:$0xff]
  %v599 = vld [vmem:[%s3 + $0x8] sm:$0xff]
  %v600 = vld [vmem:[%s3 + $0x10] sm:$0xff]
  %v601 = vld [vmem:[%s3 + $0x18] sm:$0xff]
  %v602 = vld [vmem:[%s3 + $0x20] sm:$0xff]
  %v603 = vld [vmem:[%s3 + $0x28] sm:$0xff]
  %v604 = vld [vmem:[%s3 + $0x30] sm:$0xff]
  %v605 = vld [vmem:[%s3 + $0x38] sm:$0xff]
  %v606 = vld [vmem:[%s3 + $0x40] sm:$0xff]
  %v607 = vld [vmem:[%s3 + $0x48] sm:$0xff]
  %v608 = vld [vmem:[%s3 + $0x50] sm:$0xff]
  %v609 = vld [vmem:[%s3 + $0x58] sm:$0xff]
  %v610 = vld [vmem:[%s3 + $0x60] sm:$0xff]
  %v611 = vld [vmem:[%s3 + $0x68] sm:$0xff]
  %v612 = vld [vmem:[%s3 + $0x70] sm:$0xff]
  %v613 = vld [vmem:[%s3 + $0x78] sm:$0xff]
  %615 = vset.pattern.permute.xlu0 0
  %616 = vperm.xlu0 %615, %v598
  %v617 = vpop.permute.xlu0 %616
  %620 = vset.pattern.permute.xlu0 0
  %621 = vperm.xlu0 %620, %v599
  %v622 = vpop.permute.xlu0 %621
  %625 = vset.pattern.permute.xlu0 0
  %626 = vperm.xlu0 %625, %v600
  %v627 = vpop.permute.xlu0 %626
  %630 = vset.pattern.permute.xlu0 0
  %631 = vperm.xlu0 %630, %v601
  %v632 = vpop.permute.xlu0 %631
  %635 = vset.pattern.permute.xlu0 0
  %636 = vperm.xlu0 %635, %v602
  %v637 = vpop.permute.xlu0 %636
  %640 = vset.pattern.permute.xlu0 0
  %641 = vperm.xlu0 %640, %v603
  %v642 = vpop.permute.xlu0 %641
  %645 = vset.pattern.permute.xlu0 0
  %646 = vperm.xlu0 %645, %v604
  %v647 = vpop.permute.xlu0 %646
  %650 = vset.pattern.permute.xlu0 0
  %651 = vperm.xlu0 %650, %v605
  %v652 = vpop.permute.xlu0 %651
  %655 = vset.pattern.permute.xlu0 0
  %656 = vperm.xlu0 %655, %v606
  %v657 = vpop.permute.xlu0 %656
  %660 = vset.pattern.permute.xlu0 0
  %661 = vperm.xlu0 %660, %v607
  %v662 = vpop.permute.xlu0 %661
  %665 = vset.pattern.permute.xlu0 0
  %666 = vperm.xlu0 %665, %v608
  %v667 = vpop.permute.xlu0 %666
  %670 = vset.pattern.permute.xlu0 0
  %671 = vperm.xlu0 %670, %v609
  %v672 = vpop.permute.xlu0 %671
  %675 = vset.pattern.permute.xlu0 0
  %676 = vperm.xlu0 %675, %v610
  %v677 = vpop.permute.xlu0 %676
  %680 = vset.pattern.permute.xlu0 0
  %681 = vperm.xlu0 %680, %v611
  %v682 = vpop.permute.xlu0 %681
  %685 = vset.pattern.permute.xlu0 0
  %686 = vperm.xlu0 %685, %v612
  %v687 = vpop.permute.xlu0 %686
  %690 = vset.pattern.permute.xlu0 0
  %691 = vperm.xlu0 %690, %v613
  %v692 = vpop.permute.xlu0 %691
  %v694 = vadd.f32 %v582, %v617
  %v695 = vadd.f32 %v583, %v622
  %v696 = vadd.f32 %v584, %v627
  %v697 = vadd.f32 %v585, %v632
  %v698 = vadd.f32 %v586, %v637
  %v699 = vadd.f32 %v587, %v642
  %v700 = vadd.f32 %v588, %v647
  %v701 = vadd.f32 %v589, %v652
  %v702 = vadd.f32 %v590, %v657
  %v703 = vadd.f32 %v591, %v662
  %v704 = vadd.f32 %v592, %v667
  %v705 = vadd.f32 %v593, %v672
  %v706 = vadd.f32 %v594, %v677
  %v707 = vadd.f32 %v595, %v682
  %v708 = vadd.f32 %v596, %v687
  %v709 = vadd.f32 %v597, %v692
  %v710 = vmax.f32 %v694, 0.0
  %v711 = vmax.f32 %v695, 0.0
  %v712 = vmax.f32 %v696, 0.0
  %v713 = vmax.f32 %v697, 0.0
  %v714 = vmax.f32 %v698, 0.0
  %v715 = vmax.f32 %v699, 0.0
  %v716 = vmax.f32 %v700, 0.0
  %v717 = vmax.f32 %v701, 0.0
  %v718 = vmax.f32 %v702, 0.0
  %v719 = vmax.f32 %v703, 0.0
  %v720 = vmax.f32 %v704, 0.0
  %v721 = vmax.f32 %v705, 0.0
  %v722 = vmax.f32 %v706, 0.0
  %v723 = vmax.f32 %v707, 0.0
  %v724 = vmax.f32 %v708, 0.0
  %v725 = vmax.f32 %v709, 0.0
  %v726 = vpack.c.bf16 %v710, %v710
  %v727 = vpack.c.bf16 %v711, %v711
  %v728 = vpack.c.bf16 %v712, %v712
  %v729 = vpack.c.bf16 %v713, %v713
  %v730 = vpack.c.bf16 %v714, %v714
  %v731 = vpack.c.bf16 %v715, %v715
  %v732 = vpack.c.bf16 %v716, %v716
  %v733 = vpack.c.bf16 %v717, %v717
  %v734 = vpack.c.bf16 %v718, %v718
  %v735 = vpack.c.bf16 %v719, %v719
  %v736 = vpack.c.bf16 %v720, %v720
  %v737 = vpack.c.bf16 %v721, %v721
  %v738 = vpack.c.bf16 %v722, %v722
  %v739 = vpack.c.bf16 %v723, %v723
  %v740 = vpack.c.bf16 %v724, %v724
  %v741 = vpack.c.bf16 %v725, %v725
  %vm742 = vcmask 257024
  %743 = vst.msk [vmem:[%s4] sm:$0xf] %vm742, %v726
  %744 = vst.msk [vmem:[%s4 + $0x4] sm:$0xf] %vm742, %v727
  %745 = vst.msk [vmem:[%s4 + $0x8] sm:$0xf] %vm742, %v728
  %746 = vst.msk [vmem:[%s4 + $0xc] sm:$0xf] %vm742, %v729
  %747 = vst.msk [vmem:[%s4 + $0x10] sm:$0xf] %vm742, %v730
  %748 = vst.msk [vmem:[%s4 + $0x14] sm:$0xf] %vm742, %v731
  %749 = vst.msk [vmem:[%s4 + $0x18] sm:$0xf] %vm742, %v732
  %750 = vst.msk [vmem:[%s4 + $0x1c] sm:$0xf] %vm742, %v733
  %751 = vst.msk [vmem:[%s4 + $0x20] sm:$0xf] %vm742, %v734
  %752 = vst.msk [vmem:[%s4 + $0x24] sm:$0xf] %vm742, %v735
  %753 = vst.msk [vmem:[%s4 + $0x28] sm:$0xf] %vm742, %v736
  %754 = vst.msk [vmem:[%s4 + $0x2c] sm:$0xf] %vm742, %v737
  %755 = vst.msk [vmem:[%s4 + $0x30] sm:$0xf] %vm742, %v738
  %756 = vst.msk [vmem:[%s4 + $0x34] sm:$0xf] %vm742, %v739
  %757 = vst.msk [vmem:[%s4 + $0x38] sm:$0xf] %vm742, %v740
  %758 = vst.msk [vmem:[%s4 + $0x3c] sm:$0xf] %vm742, %v741
  // Predicated region
  $region18: #{unet_forward.22} parent=0 // pred_check
    _
  $region19: #{unet_forward.22} parent=0 // pred_check_branch
    %760 = sbr.rel (0) target = $region21
  $region20: #{unet_forward.22} parent=0 // pred_region
    _
  $region21: #{unet_forward.22} parent=0 // pred_fallthru
    _
  // Predicated region
  $region22: #{unet_forward.22} parent=0 // pred_check
    _
  $region23: #{unet_forward.22} parent=0 // pred_check_branch
    %762 = sbr.rel (0) target = $region25
  $region24: #{unet_forward.22} parent=0 // pred_region
    _
  $region25: #{unet_forward.22} parent=0 // pred_fallthru
    _

// kernel: unet_forward.23
$region0: #{unet_forward.23}
  #allocation0 [shape = 'u32[]', space=smem, size = 0x4, offset = 0x4, fixed_abs, tag = 'smem constant byte address 0x4 - core index']
  #allocation1 [shape = 'u32[72,128]{1,0:T(1,128)}', space=vmem, size = 0x9000, scoped, tag = 'internal scratch']
  %s0 = inlined_call_operand.vmem [shape: bf16[32,432], index: 0, kind: input, shape index: {}]
  %s1 = inlined_call_operand.vmem [shape: bf16[432,128], index: 1, kind: input, shape index: {}]
  %s2 = inlined_call_operand.vmem [shape: f32[32,1], index: 2, kind: input, shape index: {}]
  %s3 = inlined_call_operand.vmem [shape: f32[32,1], index: 3, kind: input, shape index: {}]
  %s4 = inlined_call_operand.vmem [shape: bf16[32,128], index: 4, kind: output, shape index: {}]
  %s5 = sld [smem:[#allocation0]]
  $region26: #{unet_forward.23} parent=0
    _
  %s7 = ssub.s32 1, %s5
  %s8 = scalar_select 0, %s7, %s5
  // Predicated region
  $region2: #{unet_forward.23} parent=0 // pred_check
    _
  $region3: #{unet_forward.23} parent=0 // pred_check_branch
    %10 = sbr.rel (0) target = $region5
  $region4: #{unet_forward.23} parent=0 // pred_region
    _
  $region5: #{unet_forward.23} parent=0 // pred_fallthru
    _
  // Predicated region
  $region6: #{unet_forward.23} parent=0 // pred_check
    _
  $region7: #{unet_forward.23} parent=0 // pred_check_branch
    %12 = sbr.rel (0) target = $region9
  $region8: #{unet_forward.23} parent=0 // pred_region
    _
  $region9: #{unet_forward.23} parent=0 // pred_fallthru
    _
  // Predicated region
  $region10: #{unet_forward.23} parent=0 // pred_check
    _
  $region11: #{unet_forward.23} parent=0 // pred_check_branch
    %14 = sbr.rel (0) target = $region13
  $region12: #{unet_forward.23} parent=0 // pred_region
    _
  $region13: #{unet_forward.23} parent=0 // pred_fallthru
    _
  // Predicated region
  $region14: #{unet_forward.23} parent=0 // pred_check
    _
  $region15: #{unet_forward.23} parent=0 // pred_check_branch
    %16 = sbr.rel (0) target = $region17
  $region16: #{unet_forward.23} parent=0 // pred_region
    _
  $region17: #{unet_forward.23} parent=0 // pred_fallthru
    _
  %v18 = vld [vmem:[%s0] sm:$0xff]
  %v19 = vld [vmem:[%s0 + $0x8] sm:$0xff]
  %v20 = vld [vmem:[%s0 + $0x10] sm:$0xff]
  %v21 = vld [vmem:[%s0 + $0x18] sm:$0xff]
  %v22 = vld [vmem:[%s0 + $0x20] sm:$0xff]
  %v23 = vld [vmem:[%s0 + $0x28] sm:$0xff]
  %v24 = vld [vmem:[%s0 + $0x30] sm:$0xff]
  %v25 = vld [vmem:[%s0 + $0x38] sm:$0xff]
  %v26 = vld [vmem:[%s1] sm:$0xf]
  %v27 = vld [vmem:[%s1 + $0x4] sm:$0xf]
  %v28 = vld [vmem:[%s1 + $0x8] sm:$0xf]
  %v29 = vld [vmem:[%s1 + $0xc] sm:$0xf]
  %v30 = vld [vmem:[%s1 + $0x10] sm:$0xf]
  %v31 = vld [vmem:[%s1 + $0x14] sm:$0xf]
  %v32 = vld [vmem:[%s1 + $0x18] sm:$0xf]
  %v33 = vld [vmem:[%s1 + $0x1c] sm:$0xf]
  %v34 = vld [vmem:[%s1 + $0x20] sm:$0xf]
  %v35 = vld [vmem:[%s1 + $0x24] sm:$0xf]
  %v36 = vld [vmem:[%s1 + $0x28] sm:$0xf]
  %v37 = vld [vmem:[%s1 + $0x2c] sm:$0xf]
  %v38 = vld [vmem:[%s1 + $0x30] sm:$0xf]
  %v39 = vld [vmem:[%s1 + $0x34] sm:$0xf]
  %v40 = vld [vmem:[%s1 + $0x38] sm:$0xf]
  %v41 = vld [vmem:[%s1 + $0x3c] sm:$0xf]
  %v42 = vld [vmem:[%s1 + $0x40] sm:$0xf]
  %v43 = vld [vmem:[%s1 + $0x44] sm:$0xf]
  %v44 = vld [vmem:[%s1 + $0x48] sm:$0xf]
  %v45 = vld [vmem:[%s1 + $0x4c] sm:$0xf]
  %v46 = vld [vmem:[%s1 + $0x50] sm:$0xf]
  %v47 = vld [vmem:[%s1 + $0x54] sm:$0xf]
  %v48 = vld [vmem:[%s1 + $0x58] sm:$0xf]
  %v49 = vld [vmem:[%s1 + $0x5c] sm:$0xf]
  %v50 = vld [vmem:[%s1 + $0x60] sm:$0xf]
  %v51 = vld [vmem:[%s1 + $0x64] sm:$0xf]
  %v52 = vld [vmem:[%s1 + $0x68] sm:$0xf]
  %v53 = vld [vmem:[%s1 + $0x6c] sm:$0xf]
  %v54 = vld [vmem:[%s1 + $0x70] sm:$0xf]
  %v55 = vld [vmem:[%s1 + $0x74] sm:$0xf]
  %v56 = vld [vmem:[%s1 + $0x78] sm:$0xf]
  %v57 = vld [vmem:[%s1 + $0x7c] sm:$0xf]
  %v58 = vld [vmem:[%s1 + $0x80] sm:$0xf]
  %v59 = vld [vmem:[%s1 + $0x84] sm:$0xf]
  %v60 = vld [vmem:[%s1 + $0x88] sm:$0xf]
  %v61 = vld [vmem:[%s1 + $0x8c] sm:$0xf]
  %v62 = vld [vmem:[%s1 + $0x90] sm:$0xf]
  %v63 = vld [vmem:[%s1 + $0x94] sm:$0xf]
  %v64 = vld [vmem:[%s1 + $0x98] sm:$0xf]
  %v65 = vld [vmem:[%s1 + $0x9c] sm:$0xf]
  %v66 = vld [vmem:[%s1 + $0xa0] sm:$0xf]
  %v67 = vld [vmem:[%s1 + $0xa4] sm:$0xf]
  %v68 = vld [vmem:[%s1 + $0xa8] sm:$0xf]
  %v69 = vld [vmem:[%s1 + $0xac] sm:$0xf]
  %v70 = vld [vmem:[%s1 + $0xb0] sm:$0xf]
  %v71 = vld [vmem:[%s1 + $0xb4] sm:$0xf]
  %v72 = vld [vmem:[%s1 + $0xb8] sm:$0xf]
  %v73 = vld [vmem:[%s1 + $0xbc] sm:$0xf]
  %v74 = vld [vmem:[%s1 + $0xc0] sm:$0xf]
  %v75 = vld [vmem:[%s1 + $0xc4] sm:$0xf]
  %v76 = vld [vmem:[%s1 + $0xc8] sm:$0xf]
  %v77 = vld [vmem:[%s1 + $0xcc] sm:$0xf]
  %v78 = vld [vmem:[%s1 + $0xd0] sm:$0xf]
  %v79 = vld [vmem:[%s1 + $0xd4] sm:$0xf]
  %v88 = vunpack.c.l.b16 %v18
  %v89 = vunpack.c.h.b16 %v18
  %v90 = vunpack.c.l.b16 %v19
  %v91 = vunpack.c.h.b16 %v19
  %v92 = vunpack.c.l.b16 %v20
  %v93 = vunpack.c.h.b16 %v20
  %v94 = vunpack.c.l.b16 %v21
  %v95 = vunpack.c.h.b16 %v21
  %v96 = vunpack.c.l.b16 %v22
  %v97 = vunpack.c.h.b16 %v22
  %v98 = vunpack.c.l.b16 %v23
  %v99 = vunpack.c.h.b16 %v23
  %v100 = vunpack.c.l.b16 %v24
  %v101 = vunpack.c.h.b16 %v24
  %v102 = vunpack.c.l.b16 %v25
  %v103 = vunpack.c.h.b16 %v25
  %v104 = vpack.c.b16 %v92, %v88
  %v105 = vpack.c.b16 %v93, %v89
  %v106 = vpack.c.b16 %v94, %v90
  %v107 = vpack.c.b16 %v95, %v91
  %v108 = vpack.c.b16 %v100, %v96
  %v109 = vpack.c.b16 %v101, %v97
  %v110 = vpack.c.b16 %v102, %v98
  %v111 = vpack.c.b16 %v103, %v99
  %v172 = vunpack.c.l.b16 %v26
  %v173 = vunpack.c.l.b16 %v27
  %v174 = vunpack.c.l.b16 %v28
  %v175 = vunpack.c.l.b16 %v29
  %v176 = vunpack.c.l.b16 %v30
  %v177 = vunpack.c.l.b16 %v31
  %v178 = vunpack.c.l.b16 %v32
  %v179 = vunpack.c.l.b16 %v33
  %v180 = vunpack.c.l.b16 %v34
  %v181 = vunpack.c.l.b16 %v35
  %v182 = vunpack.c.l.b16 %v36
  %v183 = vunpack.c.l.b16 %v37
  %v184 = vunpack.c.l.b16 %v38
  %v185 = vunpack.c.l.b16 %v39
  %v186 = vunpack.c.l.b16 %v40
  %v187 = vunpack.c.l.b16 %v41
  %v188 = vunpack.c.l.b16 %v42
  %v189 = vunpack.c.l.b16 %v43
  %v190 = vunpack.c.l.b16 %v44
  %v191 = vunpack.c.l.b16 %v45
  %v192 = vunpack.c.l.b16 %v46
  %v193 = vunpack.c.l.b16 %v47
  %v194 = vunpack.c.l.b16 %v48
  %v195 = vunpack.c.l.b16 %v49
  %v196 = vunpack.c.l.b16 %v50
  %v197 = vunpack.c.l.b16 %v51
  %v198 = vunpack.c.l.b16 %v52
  %v199 = vunpack.c.l.b16 %v53
  %v200 = vunpack.c.l.b16 %v54
  %v201 = vunpack.c.l.b16 %v55
  %v202 = vunpack.c.l.b16 %v56
  %v203 = vunpack.c.l.b16 %v57
  %v204 = vunpack.c.l.b16 %v58
  %v205 = vunpack.c.l.b16 %v59
  %v206 = vunpack.c.l.b16 %v60
  %v207 = vunpack.c.l.b16 %v61
  %v208 = vunpack.c.l.b16 %v62
  %v209 = vunpack.c.l.b16 %v63
  %v210 = vunpack.c.l.b16 %v64
  %v211 = vunpack.c.l.b16 %v65
  %v212 = vunpack.c.l.b16 %v66
  %v213 = vunpack.c.l.b16 %v67
  %v214 = vunpack.c.l.b16 %v68
  %v215 = vunpack.c.l.b16 %v69
  %v216 = vunpack.c.l.b16 %v70
  %v217 = vunpack.c.l.b16 %v71
  %v218 = vunpack.c.l.b16 %v72
  %v219 = vunpack.c.l.b16 %v73
  %v220 = vunpack.c.l.b16 %v74
  %v221 = vunpack.c.l.b16 %v75
  %v222 = vunpack.c.l.b16 %v76
  %v223 = vunpack.c.l.b16 %v77
  %v224 = vunpack.c.l.b16 %v78
  %v225 = vunpack.c.l.b16 %v79
  %v226 = vpack.c.b16 %v173, %v172
  %v227 = vpack.c.b16 %v175, %v174
  %v228 = vpack.c.b16 %v177, %v176
  %v229 = vpack.c.b16 %v179, %v178
  %v230 = vpack.c.b16 %v181, %v180
  %v231 = vpack.c.b16 %v183, %v182
  %v232 = vpack.c.b16 %v185, %v184
  %v233 = vpack.c.b16 %v187, %v186
  %v234 = vpack.c.b16 %v189, %v188
  %v235 = vpack.c.b16 %v191, %v190
  %v236 = vpack.c.b16 %v193, %v192
  %v237 = vpack.c.b16 %v195, %v194
  %v238 = vpack.c.b16 %v197, %v196
  %v239 = vpack.c.b16 %v199, %v198
  %v240 = vpack.c.b16 %v201, %v200
  %v241 = vpack.c.b16 %v203, %v202
  %v242 = vpack.c.b16 %v205, %v204
  %v243 = vpack.c.b16 %v207, %v206
  %v244 = vpack.c.b16 %v209, %v208
  %v245 = vpack.c.b16 %v211, %v210
  %v246 = vpack.c.b16 %v213, %v212
  %v247 = vpack.c.b16 %v215, %v214
  %v248 = vpack.c.b16 %v217, %v216
  %v249 = vpack.c.b16 %v219, %v218
  %v250 = vpack.c.b16 %v221, %v220
  %v251 = vpack.c.b16 %v223, %v222
  %v252 = vpack.c.b16 %v225, %v224
  %vm280 = vcmask 392192
  %v282 = vsel %vm280, %v107, 0
  %v285 = vsel %vm280, %v111, 0
  %287 = vmatpush.bf16.msra.mxu0 %v233
  %288 = vmatpush.bf16.msra.mxu0 %v232
  %289 = vmatpush.bf16.msra.mxu0 %v231
  %290 = vmatpush.bf16.msra.mxu0 %v230
  %291 = vmatpush.bf16.msra.mxu0 %v229
  %292 = vmatpush.bf16.msra.mxu0 %v228
  %293 = vmatpush.bf16.msra.mxu0 %v227
  %294 = vmatpush.bf16.msra.mxu0 %v226
  %295 = vmatmul.bf16.gmra.mxu0 %v104
  %v296 = vpop.f32.mrf.mxu0
  %v297 = vadd.f32 0.0, %v296
  %v298 = vpop.f32.mrf.mxu0
  %v299 = vadd.f32 0.0, %v298
  %300 = vmatmul.bf16.gmra.mxu0 %v108
  %v301 = vpop.f32.mrf.mxu0
  %v302 = vadd.f32 0.0, %v301
  %v303 = vpop.f32.mrf.mxu0
  %v304 = vadd.f32 0.0, %v303
  %305 = vdwg.mxu0
  %306 = vmatpush.bf16.msra.mxu0 %v241
  %307 = vmatpush.bf16.msra.mxu0 %v240
  %308 = vmatpush.bf16.msra.mxu0 %v239
  %309 = vmatpush.bf16.msra.mxu0 %v238
  %310 = vmatpush.bf16.msra.mxu0 %v237
  %311 = vmatpush.bf16.msra.mxu0 %v236
  %312 = vmatpush.bf16.msra.mxu0 %v235
  %313 = vmatpush.bf16.msra.mxu0 %v234
  %314 = vmatmul.bf16.gmra.mxu0 %v105
  %v315 = vpop.f32.mrf.mxu0
  %v316 = vadd.f32 %v297, %v315
  %v317 = vpop.f32.mrf.mxu0
  %v318 = vadd.f32 %v299, %v317
  %319 = vmatmul.bf16.gmra.mxu0 %v109
  %v320 = vpop.f32.mrf.mxu0
  %v321 = vadd.f32 %v302, %v320
  %v322 = vpop.f32.mrf.mxu0
  %v323 = vadd.f32 %v304, %v322
  %324 = vdwg.mxu0
  %325 = vmatpush.bf16.msra.mxu0 %v249
  %326 = vmatpush.bf16.msra.mxu0 %v248
  %327 = vmatpush.bf16.msra.mxu0 %v247
  %328 = vmatpush.bf16.msra.mxu0 %v246
  %329 = vmatpush.bf16.msra.mxu0 %v245
  %330 = vmatpush.bf16.msra.mxu0 %v244
  %331 = vmatpush.bf16.msra.mxu0 %v243
  %332 = vmatpush.bf16.msra.mxu0 %v242
  %333 = vmatmul.bf16.gmra.mxu0 %v106
  %v334 = vpop.f32.mrf.mxu0
  %v335 = vadd.f32 %v316, %v334
  %v336 = vpop.f32.mrf.mxu0
  %v337 = vadd.f32 %v318, %v336
  %338 = vmatmul.bf16.gmra.mxu0 %v110
  %v339 = vpop.f32.mrf.mxu0
  %v340 = vadd.f32 %v321, %v339
  %v341 = vpop.f32.mrf.mxu0
  %v342 = vadd.f32 %v323, %v341
  %343 = vdwg.mxu0
  %344 = vmatpush.bf16.msra.mxu0 0
  %345 = vmatpush.bf16.msra.mxu0 0
  %346 = vmatpush.bf16.msra.mxu0 0
  %347 = vmatpush.bf16.msra.mxu0 0
  %348 = vmatpush.bf16.msra.mxu0 0
  %349 = vmatpush.bf16.msra.mxu0 %v252
  %350 = vmatpush.bf16.msra.mxu0 %v251
  %351 = vmatpush.bf16.msra.mxu0 %v250
  %352 = vmatmul.bf16.gmra.mxu0 %v282
  %v353 = vpop.f32.mrf.mxu0
  %v354 = vadd.f32 %v335, %v353
  %v355 = vpop.f32.mrf.mxu0
  %v356 = vadd.f32 %v337, %v355
  %357 = vmatmul.bf16.gmra.mxu0 %v285
  %v358 = vpop.f32.mrf.mxu0
  %v359 = vadd.f32 %v340, %v358
  %v360 = vpop.f32.mrf.mxu0
  %v361 = vadd.f32 %v342, %v360
  %362 = vdwg.mxu0
  %v363 = vld [vmem:[%s2] sm:$0xff]
  %v364 = vld [vmem:[%s2 + $0x8] sm:$0xff]
  %v365 = vld [vmem:[%s2 + $0x10] sm:$0xff]
  %v366 = vld [vmem:[%s2 + $0x18] sm:$0xff]
  %368 = vset.pattern.permute.xlu0 0
  %369 = vperm.xlu0 %368, %v363
  %v370 = vpop.permute.xlu0 %369
  %373 = vset.pattern.permute.xlu0 0
  %374 = vperm.xlu0 %373, %v364
  %v375 = vpop.permute.xlu0 %374
  %378 = vset.pattern.permute.xlu0 0
  %379 = vperm.xlu0 %378, %v365
  %v380 = vpop.permute.xlu0 %379
  %383 = vset.pattern.permute.xlu0 0
  %384 = vperm.xlu0 %383, %v366
  %v385 = vpop.permute.xlu0 %384
  %v387 = vmul.f32 %v354, %v370
  %v388 = vmul.f32 %v356, %v375
  %v389 = vmul.f32 %v359, %v380
  %v390 = vmul.f32 %v361, %v385
  %v391 = vld [vmem:[%s3] sm:$0xff]
  %v392 = vld [vmem:[%s3 + $0x8] sm:$0xff]
  %v393 = vld [vmem:[%s3 + $0x10] sm:$0xff]
  %v394 = vld [vmem:[%s3 + $0x18] sm:$0xff]
  %396 = vset.pattern.permute.xlu0 0
  %397 = vperm.xlu0 %396, %v391
  %v398 = vpop.permute.xlu0 %397
  %401 = vset.pattern.permute.xlu0 0
  %402 = vperm.xlu0 %401, %v392
  %v403 = vpop.permute.xlu0 %402
  %406 = vset.pattern.permute.xlu0 0
  %407 = vperm.xlu0 %406, %v393
  %v408 = vpop.permute.xlu0 %407
  %411 = vset.pattern.permute.xlu0 0
  %412 = vperm.xlu0 %411, %v394
  %v413 = vpop.permute.xlu0 %412
  %v415 = vadd.f32 %v387, %v398
  %v416 = vadd.f32 %v388, %v403
  %v417 = vadd.f32 %v389, %v408
  %v418 = vadd.f32 %v390, %v413
  %v419 = vmax.f32 %v415, 0.0
  %v420 = vmax.f32 %v416, 0.0
  %v421 = vmax.f32 %v417, 0.0
  %v422 = vmax.f32 %v418, 0.0
  %v423 = vpack.c.bf16 %v419, %v419
  %v424 = vpack.c.bf16 %v420, %v420
  %v425 = vpack.c.bf16 %v421, %v421
  %v426 = vpack.c.bf16 %v422, %v422
  %427 = vst [vmem:[%s4] sm:$0xf] %v423
  %428 = vst [vmem:[%s4 + $0x4] sm:$0xf] %v424
  %429 = vst [vmem:[%s4 + $0x8] sm:$0xf] %v425
  %430 = vst [vmem:[%s4 + $0xc] sm:$0xf] %v426
  // Predicated region
  $region18: #{unet_forward.23} parent=0 // pred_check
    _
  $region19: #{unet_forward.23} parent=0 // pred_check_branch
    %432 = sbr.rel (0) target = $region21
  $region20: #{unet_forward.23} parent=0 // pred_region
    _
  $region21: #{unet_forward.23} parent=0 // pred_fallthru
    _
  // Predicated region
  $region22: #{unet_forward.23} parent=0 // pred_check
    _
  $region23: #{unet_forward.23} parent=0 // pred_check_branch
    %434 = sbr.rel (0) target = $region25
  $region24: #{unet_forward.23} parent=0 // pred_region
    _
  $region25: #{unet_forward.23} parent=0 // pred_fallthru
    _

// kernel: unet_forward.24
$region0: #{unet_forward.24}
  #allocation0 [shape = 'u32[]', space=smem, size = 0x4, offset = 0x4, fixed_abs, tag = 'smem constant byte address 0x4 - core index']
  #allocation1 [shape = 'u32[72,128]{1,0:T(1,128)}', space=vmem, size = 0x9000, scoped, tag = 'internal scratch']
  %s0 = inlined_call_operand.vmem [shape: bf16[64,288], index: 0, kind: input, shape index: {}]
  %s1 = inlined_call_operand.vmem [shape: bf16[288,128], index: 1, kind: input, shape index: {}]
  %s2 = inlined_call_operand.vmem [shape: f32[64,1], index: 2, kind: input, shape index: {}]
  %s3 = inlined_call_operand.vmem [shape: f32[64,1], index: 3, kind: input, shape index: {}]
  %s4 = inlined_call_operand.vmem [shape: bf16[64,128], index: 4, kind: output, shape index: {}]
  %s5 = sld [smem:[#allocation0]]
  $region26: #{unet_forward.24} parent=0
    _
  %s7 = ssub.s32 1, %s5
  %s8 = scalar_select 0, %s7, %s5
  // Predicated region
  $region2: #{unet_forward.24} parent=0 // pred_check
    _
  $region3: #{unet_forward.24} parent=0 // pred_check_branch
    %10 = sbr.rel (0) target = $region5
  $region4: #{unet_forward.24} parent=0 // pred_region
    _
  $region5: #{unet_forward.24} parent=0 // pred_fallthru
    _
  // Predicated region
  $region6: #{unet_forward.24} parent=0 // pred_check
    _
  $region7: #{unet_forward.24} parent=0 // pred_check_branch
    %12 = sbr.rel (0) target = $region9
  $region8: #{unet_forward.24} parent=0 // pred_region
    _
  $region9: #{unet_forward.24} parent=0 // pred_fallthru
    _
  // Predicated region
  $region10: #{unet_forward.24} parent=0 // pred_check
    _
  $region11: #{unet_forward.24} parent=0 // pred_check_branch
    %14 = sbr.rel (0) target = $region13
  $region12: #{unet_forward.24} parent=0 // pred_region
    _
  $region13: #{unet_forward.24} parent=0 // pred_fallthru
    _
  // Predicated region
  $region14: #{unet_forward.24} parent=0 // pred_check
    _
  $region15: #{unet_forward.24} parent=0 // pred_check_branch
    %16 = sbr.rel (0) target = $region17
  $region16: #{unet_forward.24} parent=0 // pred_region
    _
  $region17: #{unet_forward.24} parent=0 // pred_fallthru
    _
  %v18 = vld [vmem:[%s0] sm:$0xff]
  %v19 = vld [vmem:[%s0 + $0x8] sm:$0xf]
  %v20 = vld [vmem:[%s0 + $0xc] sm:$0xff]
  %v21 = vld [vmem:[%s0 + $0x14] sm:$0xf]
  %v22 = vld [vmem:[%s0 + $0x18] sm:$0xff]
  %v23 = vld [vmem:[%s0 + $0x20] sm:$0xf]
  %v24 = vld [vmem:[%s0 + $0x24] sm:$0xff]
  %v25 = vld [vmem:[%s0 + $0x2c] sm:$0xf]
  %v26 = vld [vmem:[%s0 + $0x30] sm:$0xff]
  %v27 = vld [vmem:[%s0 + $0x38] sm:$0xf]
  %v28 = vld [vmem:[%s0 + $0x3c] sm:$0xff]
  %v29 = vld [vmem:[%s0 + $0x44] sm:$0xf]
  %v30 = vld [vmem:[%s0 + $0x48] sm:$0xff]
  %v31 = vld [vmem:[%s0 + $0x50] sm:$0xf]
  %v32 = vld [vmem:[%s0 + $0x54] sm:$0xff]
  %v33 = vld [vmem:[%s0 + $0x5c] sm:$0xf]
  %v34 = vld [vmem:[%s1] sm:$0xf]
  %v35 = vld [vmem:[%s1 + $0x4] sm:$0xf]
  %v36 = vld [vmem:[%s1 + $0x8] sm:$0xf]
  %v37 = vld [vmem:[%s1 + $0xc] sm:$0xf]
  %v38 = vld [vmem:[%s1 + $0x10] sm:$0xf]
  %v39 = vld [vmem:[%s1 + $0x14] sm:$0xf]
  %v40 = vld [vmem:[%s1 + $0x18] sm:$0xf]
  %v41 = vld [vmem:[%s1 + $0x1c] sm:$0xf]
  %v42 = vld [vmem:[%s1 + $0x20] sm:$0xf]
  %v43 = vld [vmem:[%s1 + $0x24] sm:$0xf]
  %v44 = vld [vmem:[%s1 + $0x28] sm:$0xf]
  %v45 = vld [vmem:[%s1 + $0x2c] sm:$0xf]
  %v46 = vld [vmem:[%s1 + $0x30] sm:$0xf]
  %v47 = vld [vmem:[%s1 + $0x34] sm:$0xf]
  %v48 = vld [vmem:[%s1 + $0x38] sm:$0xf]
  %v49 = vld [vmem:[%s1 + $0x3c] sm:$0xf]
  %v50 = vld [vmem:[%s1 + $0x40] sm:$0xf]
  %v51 = vld [vmem:[%s1 + $0x44] sm:$0xf]
  %v52 = vld [vmem:[%s1 + $0x48] sm:$0xf]
  %v53 = vld [vmem:[%s1 + $0x4c] sm:$0xf]
  %v54 = vld [vmem:[%s1 + $0x50] sm:$0xf]
  %v55 = vld [vmem:[%s1 + $0x54] sm:$0xf]
  %v56 = vld [vmem:[%s1 + $0x58] sm:$0xf]
  %v57 = vld [vmem:[%s1 + $0x5c] sm:$0xf]
  %v58 = vld [vmem:[%s1 + $0x60] sm:$0xf]
  %v59 = vld [vmem:[%s1 + $0x64] sm:$0xf]
  %v60 = vld [vmem:[%s1 + $0x68] sm:$0xf]
  %v61 = vld [vmem:[%s1 + $0x6c] sm:$0xf]
  %v62 = vld [vmem:[%s1 + $0x70] sm:$0xf]
  %v63 = vld [vmem:[%s1 + $0x74] sm:$0xf]
  %v64 = vld [vmem:[%s1 + $0x78] sm:$0xf]
  %v65 = vld [vmem:[%s1 + $0x7c] sm:$0xf]
  %v66 = vld [vmem:[%s1 + $0x80] sm:$0xf]
  %v67 = vld [vmem:[%s1 + $0x84] sm:$0xf]
  %v68 = vld [vmem:[%s1 + $0x88] sm:$0xf]
  %v69 = vld [vmem:[%s1 + $0x8c] sm:$0xf]
  %v86 = vunpack.c.l.b16 %v18
  %v87 = vunpack.c.h.b16 %v18
  %v88 = vunpack.c.l.b16 %v19
  %v89 = vunpack.c.l.b16 %v20
  %v90 = vunpack.c.h.b16 %v20
  %v91 = vunpack.c.l.b16 %v21
  %v92 = vunpack.c.l.b16 %v22
  %v93 = vunpack.c.h.b16 %v22
  %v94 = vunpack.c.l.b16 %v23
  %v95 = vunpack.c.l.b16 %v24
  %v96 = vunpack.c.h.b16 %v24
  %v97 = vunpack.c.l.b16 %v25
  %v98 = vunpack.c.l.b16 %v26
  %v99 = vunpack.c.h.b16 %v26
  %v100 = vunpack.c.l.b16 %v27
  %v101 = vunpack.c.l.b16 %v28
  %v102 = vunpack.c.h.b16 %v28
  %v103 = vunpack.c.l.b16 %v29
  %v104 = vunpack.c.l.b16 %v30
  %v105 = vunpack.c.h.b16 %v30
  %v106 = vunpack.c.l.b16 %v31
  %v107 = vunpack.c.l.b16 %v32
  %v108 = vunpack.c.h.b16 %v32
  %v109 = vunpack.c.l.b16 %v33
  %v110 = vpack.c.b16 %v89, %v86
  %v111 = vpack.c.b16 %v90, %v87
  %v112 = vpack.c.b16 %v91, %v88
  %v113 = vpack.c.b16 %v95, %v92
  %v114 = vpack.c.b16 %v96, %v93
  %v115 = vpack.c.b16 %v97, %v94
  %v116 = vpack.c.b16 %v101, %v98
  %v117 = vpack.c.b16 %v102, %v99
  %v118 = vpack.c.b16 %v103, %v100
  %v119 = vpack.c.b16 %v107, %v104
  %v120 = vpack.c.b16 %v108, %v105
  %v121 = vpack.c.b16 %v109, %v106
  %v166 = vunpack.c.l.b16 %v34
  %v167 = vunpack.c.l.b16 %v35
  %v168 = vunpack.c.l.b16 %v36
  %v169 = vunpack.c.l.b16 %v37
  %v170 = vunpack.c.l.b16 %v38
  %v171 = vunpack.c.l.b16 %v39
  %v172 = vunpack.c.l.b16 %v40
  %v173 = vunpack.c.l.b16 %v41
  %v174 = vunpack.c.l.b16 %v42
  %v175 = vunpack.c.l.b16 %v43
  %v176 = vunpack.c.l.b16 %v44
  %v177 = vunpack.c.l.b16 %v45
  %v178 = vunpack.c.l.b16 %v46
  %v179 = vunpack.c.l.b16 %v47
  %v180 = vunpack.c.l.b16 %v48
  %v181 = vunpack.c.l.b16 %v49
  %v182 = vunpack.c.l.b16 %v50
  %v183 = vunpack.c.l.b16 %v51
  %v184 = vunpack.c.l.b16 %v52
  %v185 = vunpack.c.l.b16 %v53
  %v186 = vunpack.c.l.b16 %v54
  %v187 = vunpack.c.l.b16 %v55
  %v188 = vunpack.c.l.b16 %v56
  %v189 = vunpack.c.l.b16 %v57
  %v190 = vunpack.c.l.b16 %v58
  %v191 = vunpack.c.l.b16 %v59
  %v192 = vunpack.c.l.b16 %v60
  %v193 = vunpack.c.l.b16 %v61
  %v194 = vunpack.c.l.b16 %v62
  %v195 = vunpack.c.l.b16 %v63
  %v196 = vunpack.c.l.b16 %v64
  %v197 = vunpack.c.l.b16 %v65
  %v198 = vunpack.c.l.b16 %v66
  %v199 = vunpack.c.l.b16 %v67
  %v200 = vunpack.c.l.b16 %v68
  %v201 = vunpack.c.l.b16 %v69
  %v202 = vpack.c.b16 %v167, %v166
  %v203 = vpack.c.b16 %v169, %v168
  %v204 = vpack.c.b16 %v171, %v170
  %v205 = vpack.c.b16 %v173, %v172
  %v206 = vpack.c.b16 %v175, %v174
  %v207 = vpack.c.b16 %v177, %v176
  %v208 = vpack.c.b16 %v179, %v178
  %v209 = vpack.c.b16 %v181, %v180
  %v210 = vpack.c.b16 %v183, %v182
  %v211 = vpack.c.b16 %v185, %v184
  %v212 = vpack.c.b16 %v187, %v186
  %v213 = vpack.c.b16 %v189, %v188
  %v214 = vpack.c.b16 %v191, %v190
  %v215 = vpack.c.b16 %v193, %v192
  %v216 = vpack.c.b16 %v195, %v194
  %v217 = vpack.c.b16 %v197, %v196
  %v218 = vpack.c.b16 %v199, %v198
  %v219 = vpack.c.b16 %v201, %v200
  %vm238 = vcmask 261120
  %v240 = vsel %vm238, %v112, 0
  %v243 = vsel %vm238, %v115, 0
  %v246 = vsel %vm238, %v118, 0
  %v249 = vsel %vm238, %v121, 0
  %251 = vmatpush.bf16.msra.mxu0 %v209
  %252 = vmatpush.bf16.msra.mxu0 %v208
  %253 = vmatpush.bf16.msra.mxu0 %v207
  %254 = vmatpush.bf16.msra.mxu0 %v206
  %255 = vmatpush.bf16.msra.mxu0 %v205
  %256 = vmatpush.bf16.msra.mxu0 %v204
  %257 = vmatpush.bf16.msra.mxu0 %v203
  %258 = vmatpush.bf16.msra.mxu0 %v202
  %259 = vmatmul.bf16.gmra.mxu0 %v110
  %v260 = vpop.f32.mrf.mxu0
  %v261 = vadd.f32 0.0, %v260
  %v262 = vpop.f32.mrf.mxu0
  %v263 = vadd.f32 0.0, %v262
  %264 = vmatmul.bf16.gmra.mxu0 %v113
  %v265 = vpop.f32.mrf.mxu0
  %v266 = vadd.f32 0.0, %v265
  %v267 = vpop.f32.mrf.mxu0
  %v268 = vadd.f32 0.0, %v267
  %269 = vmatmul.bf16.gmra.mxu0 %v116
  %v270 = vpop.f32.mrf.mxu0
  %v271 = vadd.f32 0.0, %v270
  %v272 = vpop.f32.mrf.mxu0
  %v273 = vadd.f32 0.0, %v272
  %274 = vmatmul.bf16.gmra.mxu0 %v119
  %v275 = vpop.f32.mrf.mxu0
  %v276 = vadd.f32 0.0, %v275
  %v277 = vpop.f32.mrf.mxu0
  %v278 = vadd.f32 0.0, %v277
  %279 = vdwg.mxu0
  %280 = vmatpush.bf16.msra.mxu0 %v217
  %281 = vmatpush.bf16.msra.mxu0 %v216
  %282 = vmatpush.bf16.msra.mxu0 %v215
  %283 = vmatpush.bf16.msra.mxu0 %v214
  %284 = vmatpush.bf16.msra.mxu0 %v213
  %285 = vmatpush.bf16.msra.mxu0 %v212
  %286 = vmatpush.bf16.msra.mxu0 %v211
  %287 = vmatpush.bf16.msra.mxu0 %v210
  %288 = vmatmul.bf16.gmra.mxu0 %v111
  %v289 = vpop.f32.mrf.mxu0
  %v290 = vadd.f32 %v261, %v289
  %v291 = vpop.f32.mrf.mxu0
  %v292 = vadd.f32 %v263, %v291
  %293 = vmatmul.bf16.gmra.mxu0 %v114
  %v294 = vpop.f32.mrf.mxu0
  %v295 = vadd.f32 %v266, %v294
  %v296 = vpop.f32.mrf.mxu0
  %v297 = vadd.f32 %v268, %v296
  %298 = vmatmul.bf16.gmra.mxu0 %v117
  %v299 = vpop.f32.mrf.mxu0
  %v300 = vadd.f32 %v271, %v299
  %v301 = vpop.f32.mrf.mxu0
  %v302 = vadd.f32 %v273, %v301
  %303 = vmatmul.bf16.gmra.mxu0 %v120
  %v304 = vpop.f32.mrf.mxu0
  %v305 = vadd.f32 %v276, %v304
  %v306 = vpop.f32.mrf.mxu0
  %v307 = vadd.f32 %v278, %v306
  %308 = vdwg.mxu0
  %309 = vmatpush.bf16.msra.mxu0 0
  %310 = vmatpush.bf16.msra.mxu0 0
  %311 = vmatpush.bf16.msra.mxu0 0
  %312 = vmatpush.bf16.msra.mxu0 0
  %313 = vmatpush.bf16.msra.mxu0 0
  %314 = vmatpush.bf16.msra.mxu0 0
  %315 = vmatpush.bf16.msra.mxu0 %v219
  %316 = vmatpush.bf16.msra.mxu0 %v218
  %317 = vmatmul.bf16.gmra.mxu0 %v240
  %v318 = vpop.f32.mrf.mxu0
  %v319 = vadd.f32 %v290, %v318
  %v320 = vpop.f32.mrf.mxu0
  %v321 = vadd.f32 %v292, %v320
  %322 = vmatmul.bf16.gmra.mxu0 %v243
  %v323 = vpop.f32.mrf.mxu0
  %v324 = vadd.f32 %v295, %v323
  %v325 = vpop.f32.mrf.mxu0
  %v326 = vadd.f32 %v297, %v325
  %327 = vmatmul.bf16.gmra.mxu0 %v246
  %v328 = vpop.f32.mrf.mxu0
  %v329 = vadd.f32 %v300, %v328
  %v330 = vpop.f32.mrf.mxu0
  %v331 = vadd.f32 %v302, %v330
  %332 = vmatmul.bf16.gmra.mxu0 %v249
  %v333 = vpop.f32.mrf.mxu0
  %v334 = vadd.f32 %v305, %v333
  %v335 = vpop.f32.mrf.mxu0
  %v336 = vadd.f32 %v307, %v335
  %337 = vdwg.mxu0
  %v338 = vld [vmem:[%s2] sm:$0xff]
  %v339 = vld [vmem:[%s2 + $0x8] sm:$0xff]
  %v340 = vld [vmem:[%s2 + $0x10] sm:$0xff]
  %v341 = vld [vmem:[%s2 + $0x18] sm:$0xff]
  %v342 = vld [vmem:[%s2 + $0x20] sm:$0xff]
  %v343 = vld [vmem:[%s2 + $0x28] sm:$0xff]
  %v344 = vld [vmem:[%s2 + $0x30] sm:$0xff]
  %v345 = vld [vmem:[%s2 + $0x38] sm:$0xff]
  %347 = vset.pattern.permute.xlu0 0
  %348 = vperm.xlu0 %347, %v338
  %v349 = vpop.permute.xlu0 %348
  %352 = vset.pattern.permute.xlu0 0
  %353 = vperm.xlu0 %352, %v339
  %v354 = vpop.permute.xlu0 %353
  %357 = vset.pattern.permute.xlu0 0
  %358 = vperm.xlu0 %357, %v340
  %v359 = vpop.permute.xlu0 %358
  %362 = vset.pattern.permute.xlu0 0
  %363 = vperm.xlu0 %362, %v341
  %v364 = vpop.permute.xlu0 %363
  %367 = vset.pattern.permute.xlu0 0
  %368 = vperm.xlu0 %367, %v342
  %v369 = vpop.permute.xlu0 %368
  %372 = vset.pattern.permute.xlu0 0
  %373 = vperm.xlu0 %372, %v343
  %v374 = vpop.permute.xlu0 %373
  %377 = vset.pattern.permute.xlu0 0
  %378 = vperm.xlu0 %377, %v344
  %v379 = vpop.permute.xlu0 %378
  %382 = vset.pattern.permute.xlu0 0
  %383 = vperm.xlu0 %382, %v345
  %v384 = vpop.permute.xlu0 %383
  %v386 = vmul.f32 %v319, %v349
  %v387 = vmul.f32 %v321, %v354
  %v388 = vmul.f32 %v324, %v359
  %v389 = vmul.f32 %v326, %v364
  %v390 = vmul.f32 %v329, %v369
  %v391 = vmul.f32 %v331, %v374
  %v392 = vmul.f32 %v334, %v379
  %v393 = vmul.f32 %v336, %v384
  %v394 = vld [vmem:[%s3] sm:$0xff]
  %v395 = vld [vmem:[%s3 + $0x8] sm:$0xff]
  %v396 = vld [vmem:[%s3 + $0x10] sm:$0xff]
  %v397 = vld [vmem:[%s3 + $0x18] sm:$0xff]
  %v398 = vld [vmem:[%s3 + $0x20] sm:$0xff]
  %v399 = vld [vmem:[%s3 + $0x28] sm:$0xff]
  %v400 = vld [vmem:[%s3 + $0x30] sm:$0xff]
  %v401 = vld [vmem:[%s3 + $0x38] sm:$0xff]
  %403 = vset.pattern.permute.xlu0 0
  %404 = vperm.xlu0 %403, %v394
  %v405 = vpop.permute.xlu0 %404
  %408 = vset.pattern.permute.xlu0 0
  %409 = vperm.xlu0 %408, %v395
  %v410 = vpop.permute.xlu0 %409
  %413 = vset.pattern.permute.xlu0 0
  %414 = vperm.xlu0 %413, %v396
  %v415 = vpop.permute.xlu0 %414
  %418 = vset.pattern.permute.xlu0 0
  %419 = vperm.xlu0 %418, %v397
  %v420 = vpop.permute.xlu0 %419
  %423 = vset.pattern.permute.xlu0 0
  %424 = vperm.xlu0 %423, %v398
  %v425 = vpop.permute.xlu0 %424
  %428 = vset.pattern.permute.xlu0 0
  %429 = vperm.xlu0 %428, %v399
  %v430 = vpop.permute.xlu0 %429
  %433 = vset.pattern.permute.xlu0 0
  %434 = vperm.xlu0 %433, %v400
  %v435 = vpop.permute.xlu0 %434
  %438 = vset.pattern.permute.xlu0 0
  %439 = vperm.xlu0 %438, %v401
  %v440 = vpop.permute.xlu0 %439
  %v442 = vadd.f32 %v386, %v405
  %v443 = vadd.f32 %v387, %v410
  %v444 = vadd.f32 %v388, %v415
  %v445 = vadd.f32 %v389, %v420
  %v446 = vadd.f32 %v390, %v425
  %v447 = vadd.f32 %v391, %v430
  %v448 = vadd.f32 %v392, %v435
  %v449 = vadd.f32 %v393, %v440
  %v450 = vmax.f32 %v442, 0.0
  %v451 = vmax.f32 %v443, 0.0
  %v452 = vmax.f32 %v444, 0.0
  %v453 = vmax.f32 %v445, 0.0
  %v454 = vmax.f32 %v446, 0.0
  %v455 = vmax.f32 %v447, 0.0
  %v456 = vmax.f32 %v448, 0.0
  %v457 = vmax.f32 %v449, 0.0
  %v458 = vpack.c.bf16 %v450, %v450
  %v459 = vpack.c.bf16 %v451, %v451
  %v460 = vpack.c.bf16 %v452, %v452
  %v461 = vpack.c.bf16 %v453, %v453
  %v462 = vpack.c.bf16 %v454, %v454
  %v463 = vpack.c.bf16 %v455, %v455
  %v464 = vpack.c.bf16 %v456, %v456
  %v465 = vpack.c.bf16 %v457, %v457
  %466 = vst [vmem:[%s4] sm:$0xf] %v458
  %467 = vst [vmem:[%s4 + $0x4] sm:$0xf] %v459
  %468 = vst [vmem:[%s4 + $0x8] sm:$0xf] %v460
  %469 = vst [vmem:[%s4 + $0xc] sm:$0xf] %v461
  %470 = vst [vmem:[%s4 + $0x10] sm:$0xf] %v462
  %471 = vst [vmem:[%s4 + $0x14] sm:$0xf] %v463
  %472 = vst [vmem:[%s4 + $0x18] sm:$0xf] %v464
  %473 = vst [vmem:[%s4 + $0x1c] sm:$0xf] %v465
  // Predicated region
  $region18: #{unet_forward.24} parent=0 // pred_check
    _
  $region19: #{unet_forward.24} parent=0 // pred_check_branch
    %475 = sbr.rel (0) target = $region21
  $region20: #{unet_forward.24} parent=0 // pred_region
    _
  $region21: #{unet_forward.24} parent=0 // pred_fallthru
    _
  // Predicated region
  $region22: #{unet_forward.24} parent=0 // pred_check
    _
  $region23: #{unet_forward.24} parent=0 // pred_check_branch
    %477 = sbr.rel (0) target = $region25
  $region24: #{unet_forward.24} parent=0 // pred_region
    _
  $region25: #{unet_forward.24} parent=0 // pred_fallthru
    _

// kernel: unet_forward.25
$region0: #{unet_forward.25}
  #allocation0 [shape = 'u32[]', space=smem, size = 0x4, offset = 0x4, fixed_abs, tag = 'smem constant byte address 0x4 - core index']
  #allocation1 [shape = 'u32[72,128]{1,0:T(1,128)}', space=vmem, size = 0x9000, scoped, tag = 'internal scratch']
  %s0 = inlined_call_operand.vmem [shape: bf16[16,288], index: 0, kind: input, shape index: {}]
  %s1 = inlined_call_operand.vmem [shape: bf16[288,512], index: 1, kind: input, shape index: {}]
  %s2 = inlined_call_operand.vmem [shape: f32[16,1], index: 2, kind: input, shape index: {}]
  %s3 = inlined_call_operand.vmem [shape: f32[16,1], index: 3, kind: input, shape index: {}]
  %s4 = inlined_call_operand.vmem [shape: bf16[16,512], index: 4, kind: output, shape index: {}]
  %s5 = sld [smem:[#allocation0]]
  $region26: #{unet_forward.25} parent=0
    _
  %s7 = ssub.s32 1, %s5
  %s8 = scalar_select 0, %s7, %s5
  // Predicated region
  $region2: #{unet_forward.25} parent=0 // pred_check
    _
  $region3: #{unet_forward.25} parent=0 // pred_check_branch
    %10 = sbr.rel (0) target = $region5
  $region4: #{unet_forward.25} parent=0 // pred_region
    _
  $region5: #{unet_forward.25} parent=0 // pred_fallthru
    _
  // Predicated region
  $region6: #{unet_forward.25} parent=0 // pred_check
    _
  $region7: #{unet_forward.25} parent=0 // pred_check_branch
    %12 = sbr.rel (0) target = $region9
  $region8: #{unet_forward.25} parent=0 // pred_region
    _
  $region9: #{unet_forward.25} parent=0 // pred_fallthru
    _
  // Predicated region
  $region10: #{unet_forward.25} parent=0 // pred_check
    _
  $region11: #{unet_forward.25} parent=0 // pred_check_branch
    %14 = sbr.rel (0) target = $region13
  $region12: #{unet_forward.25} parent=0 // pred_region
    _
  $region13: #{unet_forward.25} parent=0 // pred_fallthru
    _
  // Predicated region
  $region14: #{unet_forward.25} parent=0 // pred_check
    _
  $region15: #{unet_forward.25} parent=0 // pred_check_branch
    %16 = sbr.rel (0) target = $region17
  $region16: #{unet_forward.25} parent=0 // pred_region
    _
  $region17: #{unet_forward.25} parent=0 // pred_fallthru
    _
  %v18 = vld [vmem:[%s0] sm:$0xff]
  %v19 = vld [vmem:[%s0 + $0x8] sm:$0xf]
  %v20 = vld [vmem:[%s0 + $0xc] sm:$0xff]
  %v21 = vld [vmem:[%s0 + $0x14] sm:$0xf]
  %v22 = vld [vmem:[%s1] sm:$0xff]
  %v23 = vld [vmem:[%s1 + $0x8] sm:$0xff]
  %v24 = vld [vmem:[%s1 + $0x10] sm:$0xff]
  %v25 = vld [vmem:[%s1 + $0x18] sm:$0xff]
  %v26 = vld [vmem:[%s1 + $0x20] sm:$0xff]
  %v27 = vld [vmem:[%s1 + $0x28] sm:$0xff]
  %v28 = vld [vmem:[%s1 + $0x30] sm:$0xff]
  %v29 = vld [vmem:[%s1 + $0x38] sm:$0xff]
  %v30 = vld [vmem:[%s1 + $0x40] sm:$0xff]
  %v31 = vld [vmem:[%s1 + $0x48] sm:$0xff]
  %v32 = vld [vmem:[%s1 + $0x50] sm:$0xff]
  %v33 = vld [vmem:[%s1 + $0x58] sm:$0xff]
  %v34 = vld [vmem:[%s1 + $0x60] sm:$0xff]
  %v35 = vld [vmem:[%s1 + $0x68] sm:$0xff]
  %v36 = vld [vmem:[%s1 + $0x70] sm:$0xff]
  %v37 = vld [vmem:[%s1 + $0x78] sm:$0xff]
  %v38 = vld [vmem:[%s1 + $0x80] sm:$0xff]
  %v39 = vld [vmem:[%s1 + $0x88] sm:$0xff]
  %v40 = vld [vmem:[%s1 + $0x90] sm:$0xff]
  %v41 = vld [vmem:[%s1 + $0x98] sm:$0xff]
  %v42 = vld [vmem:[%s1 + $0xa0] sm:$0xff]
  %v43 = vld [vmem:[%s1 + $0xa8] sm:$0xff]
  %v44 = vld [vmem:[%s1 + $0xb0] sm:$0xff]
  %v45 = vld [vmem:[%s1 + $0xb8] sm:$0xff]
  %v46 = vld [vmem:[%s1 + $0xc0] sm:$0xff]
  %v47 = vld [vmem:[%s1 + $0xc8] sm:$0xff]
  %v48 = vld [vmem:[%s1 + $0xd0] sm:$0xff]
  %v49 = vld [vmem:[%s1 + $0xd8] sm:$0xff]
  %v50 = vld [vmem:[%s1 + $0xe0] sm:$0xff]
  %v51 = vld [vmem:[%s1 + $0xe8] sm:$0xff]
  %v52 = vld [vmem:[%s1 + $0xf0] sm:$0xff]
  %v53 = vld [vmem:[%s1 + $0xf8] sm:$0xff]
  %v54 = vld [vmem:[%s1 + $0x100] sm:$0xff]
  %v55 = vld [vmem:[%s1 + $0x108] sm:$0xff]
  %v56 = vld [vmem:[%s1 + $0x110] sm:$0xff]
  %v57 = vld [vmem:[%s1 + $0x118] sm:$0xff]
  %v58 = vld [vmem:[%s1 + $0x120] sm:$0xff]
  %v59 = vld [vmem:[%s1 + $0x128] sm:$0xff]
  %v60 = vld [vmem:[%s1 + $0x130] sm:$0xff]
  %v61 = vld [vmem:[%s1 + $0x138] sm:$0xff]
  %v62 = vld [vmem:[%s1 + $0x140] sm:$0xff]
  %v63 = vld [vmem:[%s1 + $0x148] sm:$0xff]
  %v64 = vld [vmem:[%s1 + $0x150] sm:$0xff]
  %v65 = vld [vmem:[%s1 + $0x158] sm:$0xff]
  %v66 = vld [vmem:[%s1 + $0x160] sm:$0xff]
  %v67 = vld [vmem:[%s1 + $0x168] sm:$0xff]
  %v68 = vld [vmem:[%s1 + $0x170] sm:$0xff]
  %v69 = vld [vmem:[%s1 + $0x178] sm:$0xff]
  %v70 = vld [vmem:[%s1 + $0x180] sm:$0xff]
  %v71 = vld [vmem:[%s1 + $0x188] sm:$0xff]
  %v72 = vld [vmem:[%s1 + $0x190] sm:$0xff]
  %v73 = vld [vmem:[%s1 + $0x198] sm:$0xff]
  %v74 = vld [vmem:[%s1 + $0x1a0] sm:$0xff]
  %v75 = vld [vmem:[%s1 + $0x1a8] sm:$0xff]
  %v76 = vld [vmem:[%s1 + $0x1b0] sm:$0xff]
  %v77 = vld [vmem:[%s1 + $0x1b8] sm:$0xff]
  %v78 = vld [vmem:[%s1 + $0x1c0] sm:$0xff]
  %v79 = vld [vmem:[%s1 + $0x1c8] sm:$0xff]
  %v80 = vld [vmem:[%s1 + $0x1d0] sm:$0xff]
  %v81 = vld [vmem:[%s1 + $0x1d8] sm:$0xff]
  %v82 = vld [vmem:[%s1 + $0x1e0] sm:$0xff]
  %v83 = vld [vmem:[%s1 + $0x1e8] sm:$0xff]
  %v84 = vld [vmem:[%s1 + $0x1f0] sm:$0xff]
  %v85 = vld [vmem:[%s1 + $0x1f8] sm:$0xff]
  %v86 = vld [vmem:[%s1 + $0x200] sm:$0xff]
  %v87 = vld [vmem:[%s1 + $0x208] sm:$0xff]
  %v88 = vld [vmem:[%s1 + $0x210] sm:$0xff]
  %v89 = vld [vmem:[%s1 + $0x218] sm:$0xff]
  %v90 = vld [vmem:[%s1 + $0x220] sm:$0xff]
  %v91 = vld [vmem:[%s1 + $0x228] sm:$0xff]
  %v92 = vld [vmem:[%s1 + $0x230] sm:$0xff]
  %v93 = vld [vmem:[%s1 + $0x238] sm:$0xff]
  %v98 = vunpack.c.l.b16 %v18
  %v99 = vunpack.c.h.b16 %v18
  %v100 = vunpack.c.l.b16 %v19
  %v101 = vunpack.c.l.b16 %v20
  %v102 = vunpack.c.h.b16 %v20
  %v103 = vunpack.c.l.b16 %v21
  %v104 = vpack.c.b16 %v101, %v98
  %v105 = vpack.c.b16 %v102, %v99
  %v106 = vpack.c.b16 %v103, %v100
  %v181 = vunpack.c.l.b16 %v22
  %v182 = vunpack.c.h.b16 %v22
  %v183 = vunpack.c.l.b16 %v23
  %v184 = vunpack.c.h.b16 %v23
  %v185 = vunpack.c.l.b16 %v24
  %v186 = vunpack.c.h.b16 %v24
  %v187 = vunpack.c.l.b16 %v25
  %v188 = vunpack.c.h.b16 %v25
  %v189 = vunpack.c.l.b16 %v26
  %v190 = vunpack.c.h.b16 %v26
  %v191 = vunpack.c.l.b16 %v27
  %v192 = vunpack.c.h.b16 %v27
  %v193 = vunpack.c.l.b16 %v28
  %v194 = vunpack.c.h.b16 %v28
  %v195 = vunpack.c.l.b16 %v29
  %v196 = vunpack.c.h.b16 %v29
  %v197 = vunpack.c.l.b16 %v30
  %v198 = vunpack.c.h.b16 %v30
  %v199 = vunpack.c.l.b16 %v31
  %v200 = vunpack.c.h.b16 %v31
  %v201 = vunpack.c.l.b16 %v32
  %v202 = vunpack.c.h.b16 %v32
  %v203 = vunpack.c.l.b16 %v33
  %v204 = vunpack.c.h.b16 %v33
  %v205 = vunpack.c.l.b16 %v34
  %v206 = vunpack.c.h.b16 %v34
  %v207 = vunpack.c.l.b16 %v35
  %v208 = vunpack.c.h.b16 %v35
  %v209 = vunpack.c.l.b16 %v36
  %v210 = vunpack.c.h.b16 %v36
  %v211 = vunpack.c.l.b16 %v37
  %v212 = vunpack.c.h.b16 %v37
  %v213 = vunpack.c.l.b16 %v38
  %v214 = vunpack.c.h.b16 %v38
  %v215 = vunpack.c.l.b16 %v39
  %v216 = vunpack.c.h.b16 %v39
  %v217 = vunpack.c.l.b16 %v40
  %v218 = vunpack.c.h.b16 %v40
  %v219 = vunpack.c.l.b16 %v41
  %v220 = vunpack.c.h.b16 %v41
  %v221 = vunpack.c.l.b16 %v42
  %v222 = vunpack.c.h.b16 %v42
  %v223 = vunpack.c.l.b16 %v43
  %v224 = vunpack.c.h.b16 %v43
  %v225 = vunpack.c.l.b16 %v44
  %v226 = vunpack.c.h.b16 %v44
  %v227 = vunpack.c.l.b16 %v45
  %v228 = vunpack.c.h.b16 %v45
  %v229 = vunpack.c.l.b16 %v46
  %v230 = vunpack.c.h.b16 %v46
  %v231 = vunpack.c.l.b16 %v47
  %v232 = vunpack.c.h.b16 %v47
  %v233 = vunpack.c.l.b16 %v48
  %v234 = vunpack.c.h.b16 %v48
  %v235 = vunpack.c.l.b16 %v49
  %v236 = vunpack.c.h.b16 %v49
  %v237 = vunpack.c.l.b16 %v50
  %v238 = vunpack.c.h.b16 %v50
  %v239 = vunpack.c.l.b16 %v51
  %v240 = vunpack.c.h.b16 %v51
  %v241 = vunpack.c.l.b16 %v52
  %v242 = vunpack.c.h.b16 %v52
  %v243 = vunpack.c.l.b16 %v53
  %v244 = vunpack.c.h.b16 %v53
  %v245 = vunpack.c.l.b16 %v54
  %v246 = vunpack.c.h.b16 %v54
  %v247 = vunpack.c.l.b16 %v55
  %v248 = vunpack.c.h.b16 %v55
  %v249 = vunpack.c.l.b16 %v56
  %v250 = vunpack.c.h.b16 %v56
  %v251 = vunpack.c.l.b16 %v57
  %v252 = vunpack.c.h.b16 %v57
  %v253 = vunpack.c.l.b16 %v58
  %v254 = vunpack.c.h.b16 %v58
  %v255 = vunpack.c.l.b16 %v59
  %v256 = vunpack.c.h.b16 %v59
  %v257 = vunpack.c.l.b16 %v60
  %v258 = vunpack.c.h.b16 %v60
  %v259 = vunpack.c.l.b16 %v61
  %v260 = vunpack.c.h.b16 %v61
  %v261 = vunpack.c.l.b16 %v62
  %v262 = vunpack.c.h.b16 %v62
  %v263 = vunpack.c.l.b16 %v63
  %v264 = vunpack.c.h.b16 %v63
  %v265 = vunpack.c.l.b16 %v64
  %v266 = vunpack.c.h.b16 %v64
  %v267 = vunpack.c.l.b16 %v65
  %v268 = vunpack.c.h.b16 %v65
  %v269 = vunpack.c.l.b16 %v66
  %v270 = vunpack.c.h.b16 %v66
  %v271 = vunpack.c.l.b16 %v67
  %v272 = vunpack.c.h.b16 %v67
  %v273 = vunpack.c.l.b16 %v68
  %v274 = vunpack.c.h.b16 %v68
  %v275 = vunpack.c.l.b16 %v69
  %v276 = vunpack.c.h.b16 %v69
  %v277 = vunpack.c.l.b16 %v70
  %v278 = vunpack.c.h.b16 %v70
  %v279 = vunpack.c.l.b16 %v71
  %v280 = vunpack.c.h.b16 %v71
  %v281 = vunpack.c.l.b16 %v72
  %v282 = vunpack.c.h.b16 %v72
  %v283 = vunpack.c.l.b16 %v73
  %v284 = vunpack.c.h.b16 %v73
  %v285 = vunpack.c.l.b16 %v74
  %v286 = vunpack.c.h.b16 %v74
  %v287 = vunpack.c.l.b16 %v75
  %v288 = vunpack.c.h.b16 %v75
  %v289 = vunpack.c.l.b16 %v76
  %v290 = vunpack.c.h.b16 %v76
  %v291 = vunpack.c.l.b16 %v77
  %v292 = vunpack.c.h.b16 %v77
  %v293 = vunpack.c.l.b16 %v78
  %v294 = vunpack.c.h.b16 %v78
  %v295 = vunpack.c.l.b16 %v79
  %v296 = vunpack.c.h.b16 %v79
  %v297 = vunpack.c.l.b16 %v80
  %v298 = vunpack.c.h.b16 %v80
  %v299 = vunpack.c.l.b16 %v81
  %v300 = vunpack.c.h.b16 %v81
  %v301 = vunpack.c.l.b16 %v82
  %v302 = vunpack.c.h.b16 %v82
  %v303 = vunpack.c.l.b16 %v83
  %v304 = vunpack.c.h.b16 %v83
  %v305 = vunpack.c.l.b16 %v84
  %v306 = vunpack.c.h.b16 %v84
  %v307 = vunpack.c.l.b16 %v85
  %v308 = vunpack.c.h.b16 %v85
  %v309 = vunpack.c.l.b16 %v86
  %v310 = vunpack.c.h.b16 %v86
  %v311 = vunpack.c.l.b16 %v87
  %v312 = vunpack.c.h.b16 %v87
  %v313 = vunpack.c.l.b16 %v88
  %v314 = vunpack.c.h.b16 %v88
  %v315 = vunpack.c.l.b16 %v89
  %v316 = vunpack.c.h.b16 %v89
  %v317 = vunpack.c.l.b16 %v90
  %v318 = vunpack.c.h.b16 %v90
  %v319 = vunpack.c.l.b16 %v91
  %v320 = vunpack.c.h.b16 %v91
  %v321 = vunpack.c.l.b16 %v92
  %v322 = vunpack.c.h.b16 %v92
  %v323 = vunpack.c.l.b16 %v93
  %v324 = vunpack.c.h.b16 %v93
  %v325 = vpack.c.b16 %v185, %v181
  %v326 = vpack.c.b16 %v186, %v182
  %v327 = vpack.c.b16 %v187, %v183
  %v328 = vpack.c.b16 %v188, %v184
  %v329 = vpack.c.b16 %v193, %v189
  %v330 = vpack.c.b16 %v194, %v190
  %v331 = vpack.c.b16 %v195, %v191
  %v332 = vpack.c.b16 %v196, %v192
  %v333 = vpack.c.b16 %v201, %v197
  %v334 = vpack.c.b16 %v202, %v198
  %v335 = vpack.c.b16 %v203, %v199
  %v336 = vpack.c.b16 %v204, %v200
  %v337 = vpack.c.b16 %v209, %v205
  %v338 = vpack.c.b16 %v210, %v206
  %v339 = vpack.c.b16 %v211, %v207
  %v340 = vpack.c.b16 %v212, %v208
  %v341 = vpack.c.b16 %v217, %v213
  %v342 = vpack.c.b16 %v218, %v214
  %v343 = vpack.c.b16 %v219, %v215
  %v344 = vpack.c.b16 %v220, %v216
  %v345 = vpack.c.b16 %v225, %v221
  %v346 = vpack.c.b16 %v226, %v222
  %v347 = vpack.c.b16 %v227, %v223
  %v348 = vpack.c.b16 %v228, %v224
  %v349 = vpack.c.b16 %v233, %v229
  %v350 = vpack.c.b16 %v234, %v230
  %v351 = vpack.c.b16 %v235, %v231
  %v352 = vpack.c.b16 %v236, %v232
  %v353 = vpack.c.b16 %v241, %v237
  %v354 = vpack.c.b16 %v242, %v238
  %v355 = vpack.c.b16 %v243, %v239
  %v356 = vpack.c.b16 %v244, %v240
  %v357 = vpack.c.b16 %v249, %v245
  %v358 = vpack.c.b16 %v250, %v246
  %v359 = vpack.c.b16 %v251, %v247
  %v360 = vpack.c.b16 %v252, %v248
  %v361 = vpack.c.b16 %v257, %v253
  %v362 = vpack.c.b16 %v258, %v254
  %v363 = vpack.c.b16 %v259, %v255
  %v364 = vpack.c.b16 %v260, %v256
  %v365 = vpack.c.b16 %v265, %v261
  %v366 = vpack.c.b16 %v266, %v262
  %v367 = vpack.c.b16 %v267, %v263
  %v368 = vpack.c.b16 %v268, %v264
  %v369 = vpack.c.b16 %v273, %v269
  %v370 = vpack.c.b16 %v274, %v270
  %v371 = vpack.c.b16 %v275, %v271
  %v372 = vpack.c.b16 %v276, %v272
  %v373 = vpack.c.b16 %v281, %v277
  %v374 = vpack.c.b16 %v282, %v278
  %v375 = vpack.c.b16 %v283, %v279
  %v376 = vpack.c.b16 %v284, %v280
  %v377 = vpack.c.b16 %v289, %v285
  %v378 = vpack.c.b16 %v290, %v286
  %v379 = vpack.c.b16 %v291, %v287
  %v380 = vpack.c.b16 %v292, %v288
  %v381 = vpack.c.b16 %v297, %v293
  %v382 = vpack.c.b16 %v298, %v294
  %v383 = vpack.c.b16 %v299, %v295
  %v384 = vpack.c.b16 %v300, %v296
  %v385 = vpack.c.b16 %v305, %v301
  %v386 = vpack.c.b16 %v306, %v302
  %v387 = vpack.c.b16 %v307, %v303
  %v388 = vpack.c.b16 %v308, %v304
  %v389 = vpack.c.b16 %v313, %v309
  %v390 = vpack.c.b16 %v314, %v310
  %v391 = vpack.c.b16 %v315, %v311
  %v392 = vpack.c.b16 %v316, %v312
  %v393 = vpack.c.b16 %v321, %v317
  %v394 = vpack.c.b16 %v322, %v318
  %v395 = vpack.c.b16 %v323, %v319
  %v396 = vpack.c.b16 %v324, %v320
  %vm469 = vcmask 261120
  %v471 = vsel %vm469, %v106, 0
  %473 = vmatpush.bf16.msra.mxu0 %v353
  %474 = vmatpush.bf16.msra.mxu0 %v349
  %475 = vmatpush.bf16.msra.mxu0 %v345
  %476 = vmatpush.bf16.msra.mxu0 %v341
  %477 = vmatpush.bf16.msra.mxu0 %v337
  %478 = vmatpush.bf16.msra.mxu0 %v333
  %479 = vmatpush.bf16.msra.mxu0 %v329
  %480 = vmatpush.bf16.msra.mxu0 %v325
  %481 = vmatmul.bf16.gmra.mxu0 %v104
  %v482 = vpop.f32.mrf.mxu0
  %v483 = vadd.f32 0.0, %v482
  %v484 = vpop.f32.mrf.mxu0
  %v485 = vadd.f32 0.0, %v484
  %486 = vdwg.mxu0
  %487 = vmatpush.bf16.msra.mxu0 %v385
  %488 = vmatpush.bf16.msra.mxu0 %v381
  %489 = vmatpush.bf16.msra.mxu0 %v377
  %490 = vmatpush.bf16.msra.mxu0 %v373
  %491 = vmatpush.bf16.msra.mxu0 %v369
  %492 = vmatpush.bf16.msra.mxu0 %v365
  %493 = vmatpush.bf16.msra.mxu0 %v361
  %494 = vmatpush.bf16.msra.mxu0 %v357
  %495 = vmatmul.bf16.gmra.mxu0 %v105
  %v496 = vpop.f32.mrf.mxu0
  %v497 = vadd.f32 %v483, %v496
  %v498 = vpop.f32.mrf.mxu0
  %v499 = vadd.f32 %v485, %v498
  %500 = vdwg.mxu0
  %501 = vmatpush.bf16.msra.mxu0 0
  %502 = vmatpush.bf16.msra.mxu0 0
  %503 = vmatpush.bf16.msra.mxu0 0
  %504 = vmatpush.bf16.msra.mxu0 0
  %505 = vmatpush.bf16.msra.mxu0 0
  %506 = vmatpush.bf16.msra.mxu0 0
  %507 = vmatpush.bf16.msra.mxu0 %v393
  %508 = vmatpush.bf16.msra.mxu0 %v389
  %509 = vmatmul.bf16.gmra.mxu0 %v471
  %v510 = vpop.f32.mrf.mxu0
  %v511 = vadd.f32 %v497, %v510
  %v512 = vpop.f32.mrf.mxu0
  %v513 = vadd.f32 %v499, %v512
  %514 = vdwg.mxu0
  %515 = vmatpush.bf16.msra.mxu0 %v354
  %516 = vmatpush.bf16.msra.mxu0 %v350
  %517 = vmatpush.bf16.msra.mxu0 %v346
  %518 = vmatpush.bf16.msra.mxu0 %v342
  %519 = vmatpush.bf16.msra.mxu0 %v338
  %520 = vmatpush.bf16.msra.mxu0 %v334
  %521 = vmatpush.bf16.msra.mxu0 %v330
  %522 = vmatpush.bf16.msra.mxu0 %v326
  %523 = vmatmul.bf16.gmra.mxu0 %v104
  %v524 = vpop.f32.mrf.mxu0
  %v525 = vadd.f32 0.0, %v524
  %v526 = vpop.f32.mrf.mxu0
  %v527 = vadd.f32 0.0, %v526
  %528 = vdwg.mxu0
  %529 = vmatpush.bf16.msra.mxu0 %v386
  %530 = vmatpush.bf16.msra.mxu0 %v382
  %531 = vmatpush.bf16.msra.mxu0 %v378
  %532 = vmatpush.bf16.msra.mxu0 %v374
  %533 = vmatpush.bf16.msra.mxu0 %v370
  %534 = vmatpush.bf16.msra.mxu0 %v366
  %535 = vmatpush.bf16.msra.mxu0 %v362
  %536 = vmatpush.bf16.msra.mxu0 %v358
  %537 = vmatmul.bf16.gmra.mxu0 %v105
  %v538 = vpop.f32.mrf.mxu0
  %v539 = vadd.f32 %v525, %v538
  %v540 = vpop.f32.mrf.mxu0
  %v541 = vadd.f32 %v527, %v540
  %542 = vdwg.mxu0
  %543 = vmatpush.bf16.msra.mxu0 0
  %544 = vmatpush.bf16.msra.mxu0 0
  %545 = vmatpush.bf16.msra.mxu0 0
  %546 = vmatpush.bf16.msra.mxu0 0
  %547 = vmatpush.bf16.msra.mxu0 0
  %548 = vmatpush.bf16.msra.mxu0 0
  %549 = vmatpush.bf16.msra.mxu0 %v394
  %550 = vmatpush.bf16.msra.mxu0 %v390
  %551 = vmatmul.bf16.gmra.mxu0 %v471
  %v552 = vpop.f32.mrf.mxu0
  %v553 = vadd.f32 %v539, %v552
  %v554 = vpop.f32.mrf.mxu0
  %v555 = vadd.f32 %v541, %v554
  %556 = vdwg.mxu0
  %557 = vmatpush.bf16.msra.mxu0 %v355
  %558 = vmatpush.bf16.msra.mxu0 %v351
  %559 = vmatpush.bf16.msra.mxu0 %v347
  %560 = vmatpush.bf16.msra.mxu0 %v343
  %561 = vmatpush.bf16.msra.mxu0 %v339
  %562 = vmatpush.bf16.msra.mxu0 %v335
  %563 = vmatpush.bf16.msra.mxu0 %v331
  %564 = vmatpush.bf16.msra.mxu0 %v327
  %565 = vmatmul.bf16.gmra.mxu0 %v104
  %v566 = vpop.f32.mrf.mxu0
  %v567 = vadd.f32 0.0, %v566
  %v568 = vpop.f32.mrf.mxu0
  %v569 = vadd.f32 0.0, %v568
  %570 = vdwg.mxu0
  %571 = vmatpush.bf16.msra.mxu0 %v387
  %572 = vmatpush.bf16.msra.mxu0 %v383
  %573 = vmatpush.bf16.msra.mxu0 %v379
  %574 = vmatpush.bf16.msra.mxu0 %v375
  %575 = vmatpush.bf16.msra.mxu0 %v371
  %576 = vmatpush.bf16.msra.mxu0 %v367
  %577 = vmatpush.bf16.msra.mxu0 %v363
  %578 = vmatpush.bf16.msra.mxu0 %v359
  %579 = vmatmul.bf16.gmra.mxu0 %v105
  %v580 = vpop.f32.mrf.mxu0
  %v581 = vadd.f32 %v567, %v580
  %v582 = vpop.f32.mrf.mxu0
  %v583 = vadd.f32 %v569, %v582
  %584 = vdwg.mxu0
  %585 = vmatpush.bf16.msra.mxu0 0
  %586 = vmatpush.bf16.msra.mxu0 0
  %587 = vmatpush.bf16.msra.mxu0 0
  %588 = vmatpush.bf16.msra.mxu0 0
  %589 = vmatpush.bf16.msra.mxu0 0
  %590 = vmatpush.bf16.msra.mxu0 0
  %591 = vmatpush.bf16.msra.mxu0 %v395
  %592 = vmatpush.bf16.msra.mxu0 %v391
  %593 = vmatmul.bf16.gmra.mxu0 %v471
  %v594 = vpop.f32.mrf.mxu0
  %v595 = vadd.f32 %v581, %v594
  %v596 = vpop.f32.mrf.mxu0
  %v597 = vadd.f32 %v583, %v596
  %598 = vdwg.mxu0
  %599 = vmatpush.bf16.msra.mxu0 %v356
  %600 = vmatpush.bf16.msra.mxu0 %v352
  %601 = vmatpush.bf16.msra.mxu0 %v348
  %602 = vmatpush.bf16.msra.mxu0 %v344
  %603 = vmatpush.bf16.msra.mxu0 %v340
  %604 = vmatpush.bf16.msra.mxu0 %v336
  %605 = vmatpush.bf16.msra.mxu0 %v332
  %606 = vmatpush.bf16.msra.mxu0 %v328
  %607 = vmatmul.bf16.gmra.mxu0 %v104
  %v608 = vpop.f32.mrf.mxu0
  %v609 = vadd.f32 0.0, %v608
  %v610 = vpop.f32.mrf.mxu0
  %v611 = vadd.f32 0.0, %v610
  %612 = vdwg.mxu0
  %613 = vmatpush.bf16.msra.mxu0 %v388
  %614 = vmatpush.bf16.msra.mxu0 %v384
  %615 = vmatpush.bf16.msra.mxu0 %v380
  %616 = vmatpush.bf16.msra.mxu0 %v376
  %617 = vmatpush.bf16.msra.mxu0 %v372
  %618 = vmatpush.bf16.msra.mxu0 %v368
  %619 = vmatpush.bf16.msra.mxu0 %v364
  %620 = vmatpush.bf16.msra.mxu0 %v360
  %621 = vmatmul.bf16.gmra.mxu0 %v105
  %v622 = vpop.f32.mrf.mxu0
  %v623 = vadd.f32 %v609, %v622
  %v624 = vpop.f32.mrf.mxu0
  %v625 = vadd.f32 %v611, %v624
  %626 = vdwg.mxu0
  %627 = vmatpush.bf16.msra.mxu0 0
  %628 = vmatpush.bf16.msra.mxu0 0
  %629 = vmatpush.bf16.msra.mxu0 0
  %630 = vmatpush.bf16.msra.mxu0 0
  %631 = vmatpush.bf16.msra.mxu0 0
  %632 = vmatpush.bf16.msra.mxu0 0
  %633 = vmatpush.bf16.msra.mxu0 %v396
  %634 = vmatpush.bf16.msra.mxu0 %v392
  %635 = vmatmul.bf16.gmra.mxu0 %v471
  %v636 = vpop.f32.mrf.mxu0
  %v637 = vadd.f32 %v623, %v636
  %v638 = vpop.f32.mrf.mxu0
  %v639 = vadd.f32 %v625, %v638
  %640 = vdwg.mxu0
  %v641 = vld [vmem:[%s2] sm:$0xff]
  %v642 = vld [vmem:[%s2 + $0x8] sm:$0xff]
  %644 = vset.pattern.permute.xlu0 0
  %645 = vperm.xlu0 %644, %v641
  %v646 = vpop.permute.xlu0 %645
  %649 = vset.pattern.permute.xlu0 0
  %650 = vperm.xlu0 %649, %v642
  %v651 = vpop.permute.xlu0 %650
  %v653 = vmul.f32 %v511, %v646
  %v654 = vmul.f32 %v553, %v646
  %v655 = vmul.f32 %v595, %v646
  %v656 = vmul.f32 %v637, %v646
  %v657 = vmul.f32 %v513, %v651
  %v658 = vmul.f32 %v555, %v651
  %v659 = vmul.f32 %v597, %v651
  %v660 = vmul.f32 %v639, %v651
  %v661 = vld [vmem:[%s3] sm:$0xff]
  %v662 = vld [vmem:[%s3 + $0x8] sm:$0xff]
  %664 = vset.pattern.permute.xlu0 0
  %665 = vperm.xlu0 %664, %v661
  %v666 = vpop.permute.xlu0 %665
  %669 = vset.pattern.permute.xlu0 0
  %670 = vperm.xlu0 %669, %v662
  %v671 = vpop.permute.xlu0 %670
  %v673 = vadd.f32 %v653, %v666
  %v674 = vadd.f32 %v654, %v666
  %v675 = vadd.f32 %v655, %v666
  %v676 = vadd.f32 %v656, %v666
  %v677 = vadd.f32 %v657, %v671
  %v678 = vadd.f32 %v658, %v671
  %v679 = vadd.f32 %v659, %v671
  %v680 = vadd.f32 %v660, %v671
  %v681 = vmax.f32 %v673, 0.0
  %v682 = vmax.f32 %v674, 0.0
  %v683 = vmax.f32 %v675, 0.0
  %v684 = vmax.f32 %v676, 0.0
  %v685 = vmax.f32 %v677, 0.0
  %v686 = vmax.f32 %v678, 0.0
  %v687 = vmax.f32 %v679, 0.0
  %v688 = vmax.f32 %v680, 0.0
  %v689 = vpack.c.bf16 %v682, %v681
  %v690 = vpack.c.bf16 %v684, %v683
  %v691 = vpack.c.bf16 %v686, %v685
  %v692 = vpack.c.bf16 %v688, %v687
  %693 = vst [vmem:[%s4] sm:$0xff] %v689
  %694 = vst [vmem:[%s4 + $0x8] sm:$0xff] %v690
  %695 = vst [vmem:[%s4 + $0x10] sm:$0xff] %v691
  %696 = vst [vmem:[%s4 + $0x18] sm:$0xff] %v692
  // Predicated region
  $region18: #{unet_forward.25} parent=0 // pred_check
    _
  $region19: #{unet_forward.25} parent=0 // pred_check_branch
    %698 = sbr.rel (0) target = $region21
  $region20: #{unet_forward.25} parent=0 // pred_region
    _
  $region21: #{unet_forward.25} parent=0 // pred_fallthru
    _
  // Predicated region
  $region22: #{unet_forward.25} parent=0 // pred_check
    _
  $region23: #{unet_forward.25} parent=0 // pred_check_branch
    %700 = sbr.rel (0) target = $region25
  $region24: #{unet_forward.25} parent=0 // pred_region
    _
  $region25: #{unet_forward.25} parent=0 // pred_fallthru
    _

// kernel: unet_forward.26
$region0: #{unet_forward.26}
  #allocation0 [shape = 'u32[]', space=smem, size = 0x4, offset = 0x4, fixed_abs, tag = 'smem constant byte address 0x4 - core index']
  #allocation1 [shape = 'u32[72,128]{1,0:T(1,128)}', space=vmem, size = 0x9000, scoped, tag = 'internal scratch']
  %s0 = inlined_call_operand.vmem [shape: bf16[64,144], index: 0, kind: input, shape index: {}]
  %s1 = inlined_call_operand.vmem [shape: bf16[144,512], index: 1, kind: input, shape index: {}]
  %s2 = inlined_call_operand.vmem [shape: f32[64,1], index: 2, kind: input, shape index: {}]
  %s3 = inlined_call_operand.vmem [shape: f32[64,1], index: 3, kind: input, shape index: {}]
  %s4 = inlined_call_operand.vmem [shape: bf16[64,512], index: 4, kind: output, shape index: {}]
  %s5 = sld [smem:[#allocation0]]
  $region26: #{unet_forward.26} parent=0
    _
  %s7 = ssub.s32 1, %s5
  %s8 = scalar_select 0, %s7, %s5
  // Predicated region
  $region2: #{unet_forward.26} parent=0 // pred_check
    _
  $region3: #{unet_forward.26} parent=0 // pred_check_branch
    %10 = sbr.rel (0) target = $region5
  $region4: #{unet_forward.26} parent=0 // pred_region
    _
  $region5: #{unet_forward.26} parent=0 // pred_fallthru
    _
  // Predicated region
  $region6: #{unet_forward.26} parent=0 // pred_check
    _
  $region7: #{unet_forward.26} parent=0 // pred_check_branch
    %12 = sbr.rel (0) target = $region9
  $region8: #{unet_forward.26} parent=0 // pred_region
    _
  $region9: #{unet_forward.26} parent=0 // pred_fallthru
    _
  // Predicated region
  $region10: #{unet_forward.26} parent=0 // pred_check
    _
  $region11: #{unet_forward.26} parent=0 // pred_check_branch
    %14 = sbr.rel (0) target = $region13
  $region12: #{unet_forward.26} parent=0 // pred_region
    _
  $region13: #{unet_forward.26} parent=0 // pred_fallthru
    _
  // Predicated region
  $region14: #{unet_forward.26} parent=0 // pred_check
    _
  $region15: #{unet_forward.26} parent=0 // pred_check_branch
    %16 = sbr.rel (0) target = $region17
  $region16: #{unet_forward.26} parent=0 // pred_region
    _
  $region17: #{unet_forward.26} parent=0 // pred_fallthru
    _
  %v18 = vld [vmem:[%s0] sm:$0xff]
  %v19 = vld [vmem:[%s0 + $0x8] sm:$0xff]
  %v20 = vld [vmem:[%s0 + $0x10] sm:$0xff]
  %v21 = vld [vmem:[%s0 + $0x18] sm:$0xff]
  %v22 = vld [vmem:[%s0 + $0x20] sm:$0xff]
  %v23 = vld [vmem:[%s0 + $0x28] sm:$0xff]
  %v24 = vld [vmem:[%s0 + $0x30] sm:$0xff]
  %v25 = vld [vmem:[%s0 + $0x38] sm:$0xff]
  %v26 = vld [vmem:[%s1] sm:$0xff]
  %v27 = vld [vmem:[%s1 + $0x8] sm:$0xff]
  %v28 = vld [vmem:[%s1 + $0x10] sm:$0xff]
  %v29 = vld [vmem:[%s1 + $0x18] sm:$0xff]
  %v30 = vld [vmem:[%s1 + $0x20] sm:$0xff]
  %v31 = vld [vmem:[%s1 + $0x28] sm:$0xff]
  %v32 = vld [vmem:[%s1 + $0x30] sm:$0xff]
  %v33 = vld [vmem:[%s1 + $0x38] sm:$0xff]
  %v34 = vld [vmem:[%s1 + $0x40] sm:$0xff]
  %v35 = vld [vmem:[%s1 + $0x48] sm:$0xff]
  %v36 = vld [vmem:[%s1 + $0x50] sm:$0xff]
  %v37 = vld [vmem:[%s1 + $0x58] sm:$0xff]
  %v38 = vld [vmem:[%s1 + $0x60] sm:$0xff]
  %v39 = vld [vmem:[%s1 + $0x68] sm:$0xff]
  %v40 = vld [vmem:[%s1 + $0x70] sm:$0xff]
  %v41 = vld [vmem:[%s1 + $0x78] sm:$0xff]
  %v42 = vld [vmem:[%s1 + $0x80] sm:$0xff]
  %v43 = vld [vmem:[%s1 + $0x88] sm:$0xff]
  %v44 = vld [vmem:[%s1 + $0x90] sm:$0xff]
  %v45 = vld [vmem:[%s1 + $0x98] sm:$0xff]
  %v46 = vld [vmem:[%s1 + $0xa0] sm:$0xff]
  %v47 = vld [vmem:[%s1 + $0xa8] sm:$0xff]
  %v48 = vld [vmem:[%s1 + $0xb0] sm:$0xff]
  %v49 = vld [vmem:[%s1 + $0xb8] sm:$0xff]
  %v50 = vld [vmem:[%s1 + $0xc0] sm:$0xff]
  %v51 = vld [vmem:[%s1 + $0xc8] sm:$0xff]
  %v52 = vld [vmem:[%s1 + $0xd0] sm:$0xff]
  %v53 = vld [vmem:[%s1 + $0xd8] sm:$0xff]
  %v54 = vld [vmem:[%s1 + $0xe0] sm:$0xff]
  %v55 = vld [vmem:[%s1 + $0xe8] sm:$0xff]
  %v56 = vld [vmem:[%s1 + $0xf0] sm:$0xff]
  %v57 = vld [vmem:[%s1 + $0xf8] sm:$0xff]
  %v58 = vld [vmem:[%s1 + $0x100] sm:$0xff]
  %v59 = vld [vmem:[%s1 + $0x108] sm:$0xff]
  %v60 = vld [vmem:[%s1 + $0x110] sm:$0xff]
  %v61 = vld [vmem:[%s1 + $0x118] sm:$0xff]
  %v70 = vunpack.c.l.b16 %v18
  %v71 = vunpack.c.h.b16 %v18
  %v72 = vunpack.c.l.b16 %v19
  %v73 = vunpack.c.h.b16 %v19
  %v74 = vunpack.c.l.b16 %v20
  %v75 = vunpack.c.h.b16 %v20
  %v76 = vunpack.c.l.b16 %v21
  %v77 = vunpack.c.h.b16 %v21
  %v78 = vunpack.c.l.b16 %v22
  %v79 = vunpack.c.h.b16 %v22
  %v80 = vunpack.c.l.b16 %v23
  %v81 = vunpack.c.h.b16 %v23
  %v82 = vunpack.c.l.b16 %v24
  %v83 = vunpack.c.h.b16 %v24
  %v84 = vunpack.c.l.b16 %v25
  %v85 = vunpack.c.h.b16 %v25
  %v86 = vpack.c.b16 %v72, %v70
  %v87 = vpack.c.b16 %v73, %v71
  %v88 = vpack.c.b16 %v76, %v74
  %v89 = vpack.c.b16 %v77, %v75
  %v90 = vpack.c.b16 %v80, %v78
  %v91 = vpack.c.b16 %v81, %v79
  %v92 = vpack.c.b16 %v84, %v82
  %v93 = vpack.c.b16 %v85, %v83
  %v134 = vunpack.c.l.b16 %v26
  %v135 = vunpack.c.h.b16 %v26
  %v136 = vunpack.c.l.b16 %v27
  %v137 = vunpack.c.h.b16 %v27
  %v138 = vunpack.c.l.b16 %v28
  %v139 = vunpack.c.h.b16 %v28
  %v140 = vunpack.c.l.b16 %v29
  %v141 = vunpack.c.h.b16 %v29
  %v142 = vunpack.c.l.b16 %v30
  %v143 = vunpack.c.h.b16 %v30
  %v144 = vunpack.c.l.b16 %v31
  %v145 = vunpack.c.h.b16 %v31
  %v146 = vunpack.c.l.b16 %v32
  %v147 = vunpack.c.h.b16 %v32
  %v148 = vunpack.c.l.b16 %v33
  %v149 = vunpack.c.h.b16 %v33
  %v150 = vunpack.c.l.b16 %v34
  %v151 = vunpack.c.h.b16 %v34
  %v152 = vunpack.c.l.b16 %v35
  %v153 = vunpack.c.h.b16 %v35
  %v154 = vunpack.c.l.b16 %v36
  %v155 = vunpack.c.h.b16 %v36
  %v156 = vunpack.c.l.b16 %v37
  %v157 = vunpack.c.h.b16 %v37
  %v158 = vunpack.c.l.b16 %v38
  %v159 = vunpack.c.h.b16 %v38
  %v160 = vunpack.c.l.b16 %v39
  %v161 = vunpack.c.h.b16 %v39
  %v162 = vunpack.c.l.b16 %v40
  %v163 = vunpack.c.h.b16 %v40
  %v164 = vunpack.c.l.b16 %v41
  %v165 = vunpack.c.h.b16 %v41
  %v166 = vunpack.c.l.b16 %v42
  %v167 = vunpack.c.h.b16 %v42
  %v168 = vunpack.c.l.b16 %v43
  %v169 = vunpack.c.h.b16 %v43
  %v170 = vunpack.c.l.b16 %v44
  %v171 = vunpack.c.h.b16 %v44
  %v172 = vunpack.c.l.b16 %v45
  %v173 = vunpack.c.h.b16 %v45
  %v174 = vunpack.c.l.b16 %v46
  %v175 = vunpack.c.h.b16 %v46
  %v176 = vunpack.c.l.b16 %v47
  %v177 = vunpack.c.h.b16 %v47
  %v178 = vunpack.c.l.b16 %v48
  %v179 = vunpack.c.h.b16 %v48
  %v180 = vunpack.c.l.b16 %v49
  %v181 = vunpack.c.h.b16 %v49
  %v182 = vunpack.c.l.b16 %v50
  %v183 = vunpack.c.h.b16 %v50
  %v184 = vunpack.c.l.b16 %v51
  %v185 = vunpack.c.h.b16 %v51
  %v186 = vunpack.c.l.b16 %v52
  %v187 = vunpack.c.h.b16 %v52
  %v188 = vunpack.c.l.b16 %v53
  %v189 = vunpack.c.h.b16 %v53
  %v190 = vunpack.c.l.b16 %v54
  %v191 = vunpack.c.h.b16 %v54
  %v192 = vunpack.c.l.b16 %v55
  %v193 = vunpack.c.h.b16 %v55
  %v194 = vunpack.c.l.b16 %v56
  %v195 = vunpack.c.h.b16 %v56
  %v196 = vunpack.c.l.b16 %v57
  %v197 = vunpack.c.h.b16 %v57
  %v198 = vunpack.c.l.b16 %v58
  %v199 = vunpack.c.h.b16 %v58
  %v200 = vunpack.c.l.b16 %v59
  %v201 = vunpack.c.h.b16 %v59
  %v202 = vunpack.c.l.b16 %v60
  %v203 = vunpack.c.h.b16 %v60
  %v204 = vunpack.c.l.b16 %v61
  %v205 = vunpack.c.h.b16 %v61
  %v206 = vpack.c.b16 %v138, %v134
  %v207 = vpack.c.b16 %v139, %v135
  %v208 = vpack.c.b16 %v140, %v136
  %v209 = vpack.c.b16 %v141, %v137
  %v210 = vpack.c.b16 %v146, %v142
  %v211 = vpack.c.b16 %v147, %v143
  %v212 = vpack.c.b16 %v148, %v144
  %v213 = vpack.c.b16 %v149, %v145
  %v214 = vpack.c.b16 %v154, %v150
  %v215 = vpack.c.b16 %v155, %v151
  %v216 = vpack.c.b16 %v156, %v152
  %v217 = vpack.c.b16 %v157, %v153
  %v218 = vpack.c.b16 %v162, %v158
  %v219 = vpack.c.b16 %v163, %v159
  %v220 = vpack.c.b16 %v164, %v160
  %v221 = vpack.c.b16 %v165, %v161
  %v222 = vpack.c.b16 %v170, %v166
  %v223 = vpack.c.b16 %v171, %v167
  %v224 = vpack.c.b16 %v172, %v168
  %v225 = vpack.c.b16 %v173, %v169
  %v226 = vpack.c.b16 %v178, %v174
  %v227 = vpack.c.b16 %v179, %v175
  %v228 = vpack.c.b16 %v180, %v176
  %v229 = vpack.c.b16 %v181, %v177
  %v230 = vpack.c.b16 %v186, %v182
  %v231 = vpack.c.b16 %v187, %v183
  %v232 = vpack.c.b16 %v188, %v184
  %v233 = vpack.c.b16 %v189, %v185
  %v234 = vpack.c.b16 %v194, %v190
  %v235 = vpack.c.b16 %v195, %v191
  %v236 = vpack.c.b16 %v196, %v192
  %v237 = vpack.c.b16 %v197, %v193
  %v238 = vpack.c.b16 %v202, %v198
  %v239 = vpack.c.b16 %v203, %v199
  %v240 = vpack.c.b16 %v204, %v200
  %v241 = vpack.c.b16 %v205, %v201
  %vm278 = vcmask 130048
  %v280 = vsel %vm278, %v87, 0
  %v283 = vsel %vm278, %v89, 0
  %v286 = vsel %vm278, %v91, 0
  %v289 = vsel %vm278, %v93, 0
  %291 = vmatpush.bf16.msra.mxu0 %v234
  %292 = vmatpush.bf16.msra.mxu0 %v230
  %293 = vmatpush.bf16.msra.mxu0 %v226
  %294 = vmatpush.bf16.msra.mxu0 %v222
  %295 = vmatpush.bf16.msra.mxu0 %v218
  %296 = vmatpush.bf16.msra.mxu0 %v214
  %297 = vmatpush.bf16.msra.mxu0 %v210
  %298 = vmatpush.bf16.msra.mxu0 %v206
  %299 = vmatmul.bf16.gmra.mxu0 %v86
  %v300 = vpop.f32.mrf.mxu0
  %v301 = vadd.f32 0.0, %v300
  %v302 = vpop.f32.mrf.mxu0
  %v303 = vadd.f32 0.0, %v302
  %304 = vmatmul.bf16.gmra.mxu0 %v88
  %v305 = vpop.f32.mrf.mxu0
  %v306 = vadd.f32 0.0, %v305
  %v307 = vpop.f32.mrf.mxu0
  %v308 = vadd.f32 0.0, %v307
  %309 = vmatmul.bf16.gmra.mxu0 %v90
  %v310 = vpop.f32.mrf.mxu0
  %v311 = vadd.f32 0.0, %v310
  %v312 = vpop.f32.mrf.mxu0
  %v313 = vadd.f32 0.0, %v312
  %314 = vmatmul.bf16.gmra.mxu0 %v92
  %v315 = vpop.f32.mrf.mxu0
  %v316 = vadd.f32 0.0, %v315
  %v317 = vpop.f32.mrf.mxu0
  %v318 = vadd.f32 0.0, %v317
  %319 = vdwg.mxu0
  %320 = vmatpush.bf16.msra.mxu0 0
  %321 = vmatpush.bf16.msra.mxu0 0
  %322 = vmatpush.bf16.msra.mxu0 0
  %323 = vmatpush.bf16.msra.mxu0 0
  %324 = vmatpush.bf16.msra.mxu0 0
  %325 = vmatpush.bf16.msra.mxu0 0
  %326 = vmatpush.bf16.msra.mxu0 0
  %327 = vmatpush.bf16.msra.mxu0 %v238
  %328 = vmatmul.bf16.gmra.mxu0 %v280
  %v329 = vpop.f32.mrf.mxu0
  %v330 = vadd.f32 %v301, %v329
  %v331 = vpop.f32.mrf.mxu0
  %v332 = vadd.f32 %v303, %v331
  %333 = vmatmul.bf16.gmra.mxu0 %v283
  %v334 = vpop.f32.mrf.mxu0
  %v335 = vadd.f32 %v306, %v334
  %v336 = vpop.f32.mrf.mxu0
  %v337 = vadd.f32 %v308, %v336
  %338 = vmatmul.bf16.gmra.mxu0 %v286
  %v339 = vpop.f32.mrf.mxu0
  %v340 = vadd.f32 %v311, %v339
  %v341 = vpop.f32.mrf.mxu0
  %v342 = vadd.f32 %v313, %v341
  %343 = vmatmul.bf16.gmra.mxu0 %v289
  %v344 = vpop.f32.mrf.mxu0
  %v345 = vadd.f32 %v316, %v344
  %v346 = vpop.f32.mrf.mxu0
  %v347 = vadd.f32 %v318, %v346
  %348 = vdwg.mxu0
  %349 = vmatpush.bf16.msra.mxu0 %v235
  %350 = vmatpush.bf16.msra.mxu0 %v231
  %351 = vmatpush.bf16.msra.mxu0 %v227
  %352 = vmatpush.bf16.msra.mxu0 %v223
  %353 = vmatpush.bf16.msra.mxu0 %v219
  %354 = vmatpush.bf16.msra.mxu0 %v215
  %355 = vmatpush.bf16.msra.mxu0 %v211
  %356 = vmatpush.bf16.msra.mxu0 %v207
  %357 = vmatmul.bf16.gmra.mxu0 %v86
  %v358 = vpop.f32.mrf.mxu0
  %v359 = vadd.f32 0.0, %v358
  %v360 = vpop.f32.mrf.mxu0
  %v361 = vadd.f32 0.0, %v360
  %362 = vmatmul.bf16.gmra.mxu0 %v88
  %v363 = vpop.f32.mrf.mxu0
  %v364 = vadd.f32 0.0, %v363
  %v365 = vpop.f32.mrf.mxu0
  %v366 = vadd.f32 0.0, %v365
  %367 = vmatmul.bf16.gmra.mxu0 %v90
  %v368 = vpop.f32.mrf.mxu0
  %v369 = vadd.f32 0.0, %v368
  %v370 = vpop.f32.mrf.mxu0
  %v371 = vadd.f32 0.0, %v370
  %372 = vmatmul.bf16.gmra.mxu0 %v92
  %v373 = vpop.f32.mrf.mxu0
  %v374 = vadd.f32 0.0, %v373
  %v375 = vpop.f32.mrf.mxu0
  %v376 = vadd.f32 0.0, %v375
  %377 = vdwg.mxu0
  %378 = vmatpush.bf16.msra.mxu0 0
  %379 = vmatpush.bf16.msra.mxu0 0
  %380 = vmatpush.bf16.msra.mxu0 0
  %381 = vmatpush.bf16.msra.mxu0 0
  %382 = vmatpush.bf16.msra.mxu0 0
  %383 = vmatpush.bf16.msra.mxu0 0
  %384 = vmatpush.bf16.msra.mxu0 0
  %385 = vmatpush.bf16.msra.mxu0 %v239
  %386 = vmatmul.bf16.gmra.mxu0 %v280
  %v387 = vpop.f32.mrf.mxu0
  %v388 = vadd.f32 %v359, %v387
  %v389 = vpop.f32.mrf.mxu0
  %v390 = vadd.f32 %v361, %v389
  %391 = vmatmul.bf16.gmra.mxu0 %v283
  %v392 = vpop.f32.mrf.mxu0
  %v393 = vadd.f32 %v364, %v392
  %v394 = vpop.f32.mrf.mxu0
  %v395 = vadd.f32 %v366, %v394
  %396 = vmatmul.bf16.gmra.mxu0 %v286
  %v397 = vpop.f32.mrf.mxu0
  %v398 = vadd.f32 %v369, %v397
  %v399 = vpop.f32.mrf.mxu0
  %v400 = vadd.f32 %v371, %v399
  %401 = vmatmul.bf16.gmra.mxu0 %v289
  %v402 = vpop.f32.mrf.mxu0
  %v403 = vadd.f32 %v374, %v402
  %v404 = vpop.f32.mrf.mxu0
  %v405 = vadd.f32 %v376, %v404
  %406 = vdwg.mxu0
  %407 = vmatpush.bf16.msra.mxu0 %v236
  %408 = vmatpush.bf16.msra.mxu0 %v232
  %409 = vmatpush.bf16.msra.mxu0 %v228
  %410 = vmatpush.bf16.msra.mxu0 %v224
  %411 = vmatpush.bf16.msra.mxu0 %v220
  %412 = vmatpush.bf16.msra.mxu0 %v216
  %413 = vmatpush.bf16.msra.mxu0 %v212
  %414 = vmatpush.bf16.msra.mxu0 %v208
  %415 = vmatmul.bf16.gmra.mxu0 %v86
  %v416 = vpop.f32.mrf.mxu0
  %v417 = vadd.f32 0.0, %v416
  %v418 = vpop.f32.mrf.mxu0
  %v419 = vadd.f32 0.0, %v418
  %420 = vmatmul.bf16.gmra.mxu0 %v88
  %v421 = vpop.f32.mrf.mxu0
  %v422 = vadd.f32 0.0, %v421
  %v423 = vpop.f32.mrf.mxu0
  %v424 = vadd.f32 0.0, %v423
  %425 = vmatmul.bf16.gmra.mxu0 %v90
  %v426 = vpop.f32.mrf.mxu0
  %v427 = vadd.f32 0.0, %v426
  %v428 = vpop.f32.mrf.mxu0
  %v429 = vadd.f32 0.0, %v428
  %430 = vmatmul.bf16.gmra.mxu0 %v92
  %v431 = vpop.f32.mrf.mxu0
  %v432 = vadd.f32 0.0, %v431
  %v433 = vpop.f32.mrf.mxu0
  %v434 = vadd.f32 0.0, %v433
  %435 = vdwg.mxu0
  %436 = vmatpush.bf16.msra.mxu0 0
  %437 = vmatpush.bf16.msra.mxu0 0
  %438 = vmatpush.bf16.msra.mxu0 0
  %439 = vmatpush.bf16.msra.mxu0 0
  %440 = vmatpush.bf16.msra.mxu0 0
  %441 = vmatpush.bf16.msra.mxu0 0
  %442 = vmatpush.bf16.msra.mxu0 0
  %443 = vmatpush.bf16.msra.mxu0 %v240
  %444 = vmatmul.bf16.gmra.mxu0 %v280
  %v445 = vpop.f32.mrf.mxu0
  %v446 = vadd.f32 %v417, %v445
  %v447 = vpop.f32.mrf.mxu0
  %v448 = vadd.f32 %v419, %v447
  %449 = vmatmul.bf16.gmra.mxu0 %v283
  %v450 = vpop.f32.mrf.mxu0
  %v451 = vadd.f32 %v422, %v450
  %v452 = vpop.f32.mrf.mxu0
  %v453 = vadd.f32 %v424, %v452
  %454 = vmatmul.bf16.gmra.mxu0 %v286
  %v455 = vpop.f32.mrf.mxu0
  %v456 = vadd.f32 %v427, %v455
  %v457 = vpop.f32.mrf.mxu0
  %v458 = vadd.f32 %v429, %v457
  %459 = vmatmul.bf16.gmra.mxu0 %v289
  %v460 = vpop.f32.mrf.mxu0
  %v461 = vadd.f32 %v432, %v460
  %v462 = vpop.f32.mrf.mxu0
  %v463 = vadd.f32 %v434, %v462
  %464 = vdwg.mxu0
  %465 = vmatpush.bf16.msra.mxu0 %v237
  %466 = vmatpush.bf16.msra.mxu0 %v233
  %467 = vmatpush.bf16.msra.mxu0 %v229
  %468 = vmatpush.bf16.msra.mxu0 %v225
  %469 = vmatpush.bf16.msra.mxu0 %v221
  %470 = vmatpush.bf16.msra.mxu0 %v217
  %471 = vmatpush.bf16.msra.mxu0 %v213
  %472 = vmatpush.bf16.msra.mxu0 %v209
  %473 = vmatmul.bf16.gmra.mxu0 %v86
  %v474 = vpop.f32.mrf.mxu0
  %v475 = vadd.f32 0.0, %v474
  %v476 = vpop.f32.mrf.mxu0
  %v477 = vadd.f32 0.0, %v476
  %478 = vmatmul.bf16.gmra.mxu0 %v88
  %v479 = vpop.f32.mrf.mxu0
  %v480 = vadd.f32 0.0, %v479
  %v481 = vpop.f32.mrf.mxu0
  %v482 = vadd.f32 0.0, %v481
  %483 = vmatmul.bf16.gmra.mxu0 %v90
  %v484 = vpop.f32.mrf.mxu0
  %v485 = vadd.f32 0.0, %v484
  %v486 = vpop.f32.mrf.mxu0
  %v487 = vadd.f32 0.0, %v486
  %488 = vmatmul.bf16.gmra.mxu0 %v92
  %v489 = vpop.f32.mrf.mxu0
  %v490 = vadd.f32 0.0, %v489
  %v491 = vpop.f32.mrf.mxu0
  %v492 = vadd.f32 0.0, %v491
  %493 = vdwg.mxu0
  %494 = vmatpush.bf16.msra.mxu0 0
  %495 = vmatpush.bf16.msra.mxu0 0
  %496 = vmatpush.bf16.msra.mxu0 0
  %497 = vmatpush.bf16.msra.mxu0 0
  %498 = vmatpush.bf16.msra.mxu0 0
  %499 = vmatpush.bf16.msra.mxu0 0
  %500 = vmatpush.bf16.msra.mxu0 0
  %501 = vmatpush.bf16.msra.mxu0 %v241
  %502 = vmatmul.bf16.gmra.mxu0 %v280
  %v503 = vpop.f32.mrf.mxu0
  %v504 = vadd.f32 %v475, %v503
  %v505 = vpop.f32.mrf.mxu0
  %v506 = vadd.f32 %v477, %v505
  %507 = vmatmul.bf16.gmra.mxu0 %v283
  %v508 = vpop.f32.mrf.mxu0
  %v509 = vadd.f32 %v480, %v508
  %v510 = vpop.f32.mrf.mxu0
  %v511 = vadd.f32 %v482, %v510
  %512 = vmatmul.bf16.gmra.mxu0 %v286
  %v513 = vpop.f32.mrf.mxu0
  %v514 = vadd.f32 %v485, %v513
  %v515 = vpop.f32.mrf.mxu0
  %v516 = vadd.f32 %v487, %v515
  %517 = vmatmul.bf16.gmra.mxu0 %v289
  %v518 = vpop.f32.mrf.mxu0
  %v519 = vadd.f32 %v490, %v518
  %v520 = vpop.f32.mrf.mxu0
  %v521 = vadd.f32 %v492, %v520
  %522 = vdwg.mxu0
  %v523 = vld [vmem:[%s2] sm:$0xff]
  %v524 = vld [vmem:[%s2 + $0x8] sm:$0xff]
  %v525 = vld [vmem:[%s2 + $0x10] sm:$0xff]
  %v526 = vld [vmem:[%s2 + $0x18] sm:$0xff]
  %v527 = vld [vmem:[%s2 + $0x20] sm:$0xff]
  %v528 = vld [vmem:[%s2 + $0x28] sm:$0xff]
  %v529 = vld [vmem:[%s2 + $0x30] sm:$0xff]
  %v530 = vld [vmem:[%s2 + $0x38] sm:$0xff]
  %532 = vset.pattern.permute.xlu0 0
  %533 = vperm.xlu0 %532, %v523
  %v534 = vpop.permute.xlu0 %533
  %537 = vset.pattern.permute.xlu0 0
  %538 = vperm.xlu0 %537, %v524
  %v539 = vpop.permute.xlu0 %538
  %542 = vset.pattern.permute.xlu0 0
  %543 = vperm.xlu0 %542, %v525
  %v544 = vpop.permute.xlu0 %543
  %547 = vset.pattern.permute.xlu0 0
  %548 = vperm.xlu0 %547, %v526
  %v549 = vpop.permute.xlu0 %548
  %552 = vset.pattern.permute.xlu0 0
  %553 = vperm.xlu0 %552, %v527
  %v554 = vpop.permute.xlu0 %553
  %557 = vset.pattern.permute.xlu0 0
  %558 = vperm.xlu0 %557, %v528
  %v559 = vpop.permute.xlu0 %558
  %562 = vset.pattern.permute.xlu0 0
  %563 = vperm.xlu0 %562, %v529
  %v564 = vpop.permute.xlu0 %563
  %567 = vset.pattern.permute.xlu0 0
  %568 = vperm.xlu0 %567, %v530
  %v569 = vpop.permute.xlu0 %568
  %v571 = vmul.f32 %v330, %v534
  %v572 = vmul.f32 %v388, %v534
  %v573 = vmul.f32 %v446, %v534
  %v574 = vmul.f32 %v504, %v534
  %v575 = vmul.f32 %v332, %v539
  %v576 = vmul.f32 %v390, %v539
  %v577 = vmul.f32 %v448, %v539
  %v578 = vmul.f32 %v506, %v539
  %v579 = vmul.f32 %v335, %v544
  %v580 = vmul.f32 %v393, %v544
  %v581 = vmul.f32 %v451, %v544
  %v582 = vmul.f32 %v509, %v544
  %v583 = vmul.f32 %v337, %v549
  %v584 = vmul.f32 %v395, %v549
  %v585 = vmul.f32 %v453, %v549
  %v586 = vmul.f32 %v511, %v549
  %v587 = vmul.f32 %v340, %v554
  %v588 = vmul.f32 %v398, %v554
  %v589 = vmul.f32 %v456, %v554
  %v590 = vmul.f32 %v514, %v554
  %v591 = vmul.f32 %v342, %v559
  %v592 = vmul.f32 %v400, %v559
  %v593 = vmul.f32 %v458, %v559
  %v594 = vmul.f32 %v516, %v559
  %v595 = vmul.f32 %v345, %v564
  %v596 = vmul.f32 %v403, %v564
  %v597 = vmul.f32 %v461, %v564
  %v598 = vmul.f32 %v519, %v564
  %v599 = vmul.f32 %v347, %v569
  %v600 = vmul.f32 %v405, %v569
  %v601 = vmul.f32 %v463, %v569
  %v602 = vmul.f32 %v521, %v569
  %v603 = vld [vmem:[%s3] sm:$0xff]
  %v604 = vld [vmem:[%s3 + $0x8] sm:$0xff]
  %v605 = vld [vmem:[%s3 + $0x10] sm:$0xff]
  %v606 = vld [vmem:[%s3 + $0x18] sm:$0xff]
  %v607 = vld [vmem:[%s3 + $0x20] sm:$0xff]
  %v608 = vld [vmem:[%s3 + $0x28] sm:$0xff]
  %v609 = vld [vmem:[%s3 + $0x30] sm:$0xff]
  %v610 = vld [vmem:[%s3 + $0x38] sm:$0xff]
  %612 = vset.pattern.permute.xlu0 0
  %613 = vperm.xlu0 %612, %v603
  %v614 = vpop.permute.xlu0 %613
  %617 = vset.pattern.permute.xlu0 0
  %618 = vperm.xlu0 %617, %v604
  %v619 = vpop.permute.xlu0 %618
  %622 = vset.pattern.permute.xlu0 0
  %623 = vperm.xlu0 %622, %v605
  %v624 = vpop.permute.xlu0 %623
  %627 = vset.pattern.permute.xlu0 0
  %628 = vperm.xlu0 %627, %v606
  %v629 = vpop.permute.xlu0 %628
  %632 = vset.pattern.permute.xlu0 0
  %633 = vperm.xlu0 %632, %v607
  %v634 = vpop.permute.xlu0 %633
  %637 = vset.pattern.permute.xlu0 0
  %638 = vperm.xlu0 %637, %v608
  %v639 = vpop.permute.xlu0 %638
  %642 = vset.pattern.permute.xlu0 0
  %643 = vperm.xlu0 %642, %v609
  %v644 = vpop.permute.xlu0 %643
  %647 = vset.pattern.permute.xlu0 0
  %648 = vperm.xlu0 %647, %v610
  %v649 = vpop.permute.xlu0 %648
  %v651 = vadd.f32 %v571, %v614
  %v652 = vadd.f32 %v572, %v614
  %v653 = vadd.f32 %v573, %v614
  %v654 = vadd.f32 %v574, %v614
  %v655 = vadd.f32 %v575, %v619
  %v656 = vadd.f32 %v576, %v619
  %v657 = vadd.f32 %v577, %v619
  %v658 = vadd.f32 %v578, %v619
  %v659 = vadd.f32 %v579, %v624
  %v660 = vadd.f32 %v580, %v624
  %v661 = vadd.f32 %v581, %v624
  %v662 = vadd.f32 %v582, %v624
  %v663 = vadd.f32 %v583, %v629
  %v664 = vadd.f32 %v584, %v629
  %v665 = vadd.f32 %v585, %v629
  %v666 = vadd.f32 %v586, %v629
  %v667 = vadd.f32 %v587, %v634
  %v668 = vadd.f32 %v588, %v634
  %v669 = vadd.f32 %v589, %v634
  %v670 = vadd.f32 %v590, %v634
  %v671 = vadd.f32 %v591, %v639
  %v672 = vadd.f32 %v592, %v639
  %v673 = vadd.f32 %v593, %v639
  %v674 = vadd.f32 %v594, %v639
  %v675 = vadd.f32 %v595, %v644
  %v676 = vadd.f32 %v596, %v644
  %v677 = vadd.f32 %v597, %v644
  %v678 = vadd.f32 %v598, %v644
  %v679 = vadd.f32 %v599, %v649
  %v680 = vadd.f32 %v600, %v649
  %v681 = vadd.f32 %v601, %v649
  %v682 = vadd.f32 %v602, %v649
  %v683 = vmax.f32 %v651, 0.0
  %v684 = vmax.f32 %v652, 0.0
  %v685 = vmax.f32 %v653, 0.0
  %v686 = vmax.f32 %v654, 0.0
  %v687 = vmax.f32 %v655, 0.0
  %v688 = vmax.f32 %v656, 0.0
  %v689 = vmax.f32 %v657, 0.0
  %v690 = vmax.f32 %v658, 0.0
  %v691 = vmax.f32 %v659, 0.0
  %v692 = vmax.f32 %v660, 0.0
  %v693 = vmax.f32 %v661, 0.0
  %v694 = vmax.f32 %v662, 0.0
  %v695 = vmax.f32 %v663, 0.0
  %v696 = vmax.f32 %v664, 0.0
  %v697 = vmax.f32 %v665, 0.0
  %v698 = vmax.f32 %v666, 0.0
  %v699 = vmax.f32 %v667, 0.0
  %v700 = vmax.f32 %v668, 0.0
  %v701 = vmax.f32 %v669, 0.0
  %v702 = vmax.f32 %v670, 0.0
  %v703 = vmax.f32 %v671, 0.0
  %v704 = vmax.f32 %v672, 0.0
  %v705 = vmax.f32 %v673, 0.0
  %v706 = vmax.f32 %v674, 0.0
  %v707 = vmax.f32 %v675, 0.0
  %v708 = vmax.f32 %v676, 0.0
  %v709 = vmax.f32 %v677, 0.0
  %v710 = vmax.f32 %v678, 0.0
  %v711 = vmax.f32 %v679, 0.0
  %v712 = vmax.f32 %v680, 0.0
  %v713 = vmax.f32 %v681, 0.0
  %v714 = vmax.f32 %v682, 0.0
  %v715 = vpack.c.bf16 %v684, %v683
  %v716 = vpack.c.bf16 %v686, %v685
  %v717 = vpack.c.bf16 %v688, %v687
  %v718 = vpack.c.bf16 %v690, %v689
  %v719 = vpack.c.bf16 %v692, %v691
  %v720 = vpack.c.bf16 %v694, %v693
  %v721 = vpack.c.bf16 %v696, %v695
  %v722 = vpack.c.bf16 %v698, %v697
  %v723 = vpack.c.bf16 %v700, %v699
  %v724 = vpack.c.bf16 %v702, %v701
  %v725 = vpack.c.bf16 %v704, %v703
  %v726 = vpack.c.bf16 %v706, %v705
  %v727 = vpack.c.bf16 %v708, %v707
  %v728 = vpack.c.bf16 %v710, %v709
  %v729 = vpack.c.bf16 %v712, %v711
  %v730 = vpack.c.bf16 %v714, %v713
  %731 = vst [vmem:[%s4] sm:$0xff] %v715
  %732 = vst [vmem:[%s4 + $0x8] sm:$0xff] %v716
  %733 = vst [vmem:[%s4 + $0x10] sm:$0xff] %v717
  %734 = vst [vmem:[%s4 + $0x18] sm:$0xff] %v718
  %735 = vst [vmem:[%s4 + $0x20] sm:$0xff] %v719
  %736 = vst [vmem:[%s4 + $0x28] sm:$0xff] %v720
  %737 = vst [vmem:[%s4 + $0x30] sm:$0xff] %v721
  %738 = vst [vmem:[%s4 + $0x38] sm:$0xff] %v722
  %739 = vst [vmem:[%s4 + $0x40] sm:$0xff] %v723
  %740 = vst [vmem:[%s4 + $0x48] sm:$0xff] %v724
  %741 = vst [vmem:[%s4 + $0x50] sm:$0xff] %v725
  %742 = vst [vmem:[%s4 + $0x58] sm:$0xff] %v726
  %743 = vst [vmem:[%s4 + $0x60] sm:$0xff] %v727
  %744 = vst [vmem:[%s4 + $0x68] sm:$0xff] %v728
  %745 = vst [vmem:[%s4 + $0x70] sm:$0xff] %v729
  %746 = vst [vmem:[%s4 + $0x78] sm:$0xff] %v730
  // Predicated region
  $region18: #{unet_forward.26} parent=0 // pred_check
    _
  $region19: #{unet_forward.26} parent=0 // pred_check_branch
    %748 = sbr.rel (0) target = $region21
  $region20: #{unet_forward.26} parent=0 // pred_region
    _
  $region21: #{unet_forward.26} parent=0 // pred_fallthru
    _
  // Predicated region
  $region22: #{unet_forward.26} parent=0 // pred_check
    _
  $region23: #{unet_forward.26} parent=0 // pred_check_branch
    %750 = sbr.rel (0) target = $region25
  $region24: #{unet_forward.26} parent=0 // pred_region
    _
  $region25: #{unet_forward.26} parent=0 // pred_fallthru
    _

// kernel: unet_forward.27
$region0: #{unet_forward.27}
  #allocation0 [shape = 'u32[]', space=smem, size = 0x4, offset = 0x4, fixed_abs, tag = 'smem constant byte address 0x4 - core index']
  #allocation1 [shape = 'u32[72,128]{1,0:T(1,128)}', space=vmem, size = 0x9000, scoped, tag = 'internal scratch']
  %s0 = inlined_call_operand.vmem [shape: bf16[16,216], index: 0, kind: input, shape index: {}]
  %s1 = inlined_call_operand.vmem [shape: bf16[216,2048], index: 1, kind: input, shape index: {}]
  %s2 = inlined_call_operand.vmem [shape: f32[16,1], index: 2, kind: input, shape index: {}]
  %s3 = inlined_call_operand.vmem [shape: f32[16,1], index: 3, kind: input, shape index: {}]
  %s4 = inlined_call_operand.vmem [shape: bf16[16,2048], index: 4, kind: output, shape index: {}]
  %s5 = sld [smem:[#allocation0]]
  $region91: #{unet_forward.27} parent=0
    _
  %s7 = ssub.s32 1, %s5
  %s8 = scalar_select 0, %s7, %s5
  $region1: #{unet_forward.27} parent=0
    #allocation2 [shape = 'u8[442368]{0}', space=vmem, size = 0x6c000, scoped, tag = 'input window, operand 1']
    #allocation3 [shape = 'u8[32768]{0}', space=vmem, size = 0x8000, scoped, tag = 'output window, operand 0']
    loop: start=0, step=1, limit=6
    $region2: #{unet_forward.27} parent=1 // loop_pre_header
      _
    $region3: #{unet_forward.27} parent=1 // loop_header
      %s10 = sphi 0, %s14
      %p11 = scmp.ge.s32.totalorder %s10, 6
      %s18 = sphi 0, %s18
      %s20 = sphi 0, %s18
      %s21 = sphi 0, %s20
      %s35 = sphi 0, %s21
      %s41 = sphi 0, %s43
      %s44 = sphi 0, %s41
      %s45 = sphi 0, %s44
      %s61 = sphi 0, %s45
      %s65 = sphi 0, %s65
      %s67 = sphi 0, %s65
      %s68 = sphi 0, %s67
      %s82 = sphi 0, %s68
      %s86 = sphi 0, %s86
      %s88 = sphi 0, %s86
      %s89 = sphi 0, %s88
      %s103 = sphi 0, %s89
      %s109 = sphi 0, %s111
      %s112 = sphi 0, %s109
      %s113 = sphi 0, %s112
      %s129 = sphi 0, %s113
    $region4: #{unet_forward.27} parent=1 // loop_header_branch
      %13 = sbr.rel (%p11) target = $region8
    $region5: #{unet_forward.27} parent=1 // loop_body
      %s15 = ssub.s32 %s10, 1
      %s16 = ssub.s32 %s10, 2
      %s17 = sadd.s32 %s10, 1
      %s19 = sadd.s32 %s18, 1
      %p22 = scmp.eq.s32.totalorder %s10, 3
      %p23 = scmp.ne.s32.totalorder %s18, %s20
      %p24 = scmp.eq.s32.totalorder %s10, 0
      %p25 = por %p23, %p24
      %p26 = scmp.ne.s32.totalorder %s18, %s20
      %p27 = scmp.eq.s32.totalorder %s15, 3
      %p28 = por %p26, %p27
      %p29 = scmp.ne.s32.totalorder %s20, %s21
      %p30 = scmp.eq.s32.totalorder %s15, 0
      %p31 = por %p29, %p30
      %p32 = scmp.ne.s32.totalorder %s20, %s21
      %p33 = scmp.eq.s32.totalorder %s16, 3
      %p34 = por %p32, %p33
      %p36 = scmp.ne.s32.totalorder %s21, %s35
      %p37 = scmp.eq.s32.totalorder %s16, 0
      %p38 = por %p36, %p37
      %s39 = ssub.s32 %s10, %s17
      %p40 = scmp.eq.s32.totalorder %s39, 0
      %s42 = sadd.s32 %s41, 1
      %s43 = scalar_select %p40, %s41, %s42
      %p46 = pneg %p40
      %p47 = scmp.eq.s32.totalorder %s10, 3
      %p48 = por %p46, %p47
      %p49 = scmp.ne.s32.totalorder %s41, %s44
      %p50 = scmp.eq.s32.totalorder %s10, 0
      %p51 = por %p49, %p50
      %p52 = scmp.ne.s32.totalorder %s41, %s44
      %p53 = scmp.eq.s32.totalorder %s15, 3
      %p54 = por %p52, %p53
      %p55 = scmp.ne.s32.totalorder %s44, %s45
      %p56 = scmp.eq.s32.totalorder %s15, 0
      %p57 = por %p55, %p56
      %p58 = scmp.ne.s32.totalorder %s44, %s45
      %p59 = scmp.eq.s32.totalorder %s16, 3
      %p60 = por %p58, %p59
      %p62 = scmp.ne.s32.totalorder %s45, %s61
      %p63 = scmp.eq.s32.totalorder %s16, 0
      %p64 = por %p62, %p63
      %s66 = sadd.s32 %s65, 1
      %p69 = scmp.eq.s32.totalorder %s10, 3
      %p70 = scmp.ne.s32.totalorder %s65, %s67
      %p71 = scmp.eq.s32.totalorder %s10, 0
      %p72 = por %p70, %p71
      %p73 = scmp.ne.s32.totalorder %s65, %s67
      %p74 = scmp.eq.s32.totalorder %s15, 3
      %p75 = por %p73, %p74
      %p76 = scmp.ne.s32.totalorder %s67, %s68
      %p77 = scmp.eq.s32.totalorder %s15, 0
      %p78 = por %p76, %p77
      %p79 = scmp.ne.s32.totalorder %s67, %s68
      %p80 = scmp.eq.s32.totalorder %s16, 3
      %p81 = por %p79, %p80
      %p83 = scmp.ne.s32.totalorder %s68, %s82
      %p84 = scmp.eq.s32.totalorder %s16, 0
      %p85 = por %p83, %p84
      %s87 = sadd.s32 %s86, 1
      %p90 = scmp.eq.s32.totalorder %s10, 3
      %p91 = scmp.ne.s32.totalorder %s86, %s88
      %p92 = scmp.eq.s32.totalorder %s10, 0
      %p93 = por %p91, %p92
      %p94 = scmp.ne.s32.totalorder %s86, %s88
      %p95 = scmp.eq.s32.totalorder %s15, 3
      %p96 = por %p94, %p95
      %p97 = scmp.ne.s32.totalorder %s88, %s89
      %p98 = scmp.eq.s32.totalorder %s15, 0
      %p99 = por %p97, %p98
      %p100 = scmp.ne.s32.totalorder %s88, %s89
      %p101 = scmp.eq.s32.totalorder %s16, 3
      %p102 = por %p100, %p101
      %p104 = scmp.ne.s32.totalorder %s89, %s103
      %p105 = scmp.eq.s32.totalorder %s16, 0
      %p106 = por %p104, %p105
      %s107 = ssub.s32 %s10, %s17
      %p108 = scmp.eq.s32.totalorder %s107, 0
      %s110 = sadd.s32 %s109, 1
      %s111 = scalar_select %p108, %s109, %s110
      %p114 = pneg %p108
      %p115 = scmp.eq.s32.totalorder %s10, 3
      %p116 = por %p114, %p115
      %p117 = scmp.ne.s32.totalorder %s109, %s112
      %p118 = scmp.eq.s32.totalorder %s10, 0
      %p119 = por %p117, %p118
      %p120 = scmp.ne.s32.totalorder %s109, %s112
      %p121 = scmp.eq.s32.totalorder %s15, 3
      %p122 = por %p120, %p121
      %p123 = scmp.ne.s32.totalorder %s112, %s113
      %p124 = scmp.eq.s32.totalorder %s15, 0
      %p125 = por %p123, %p124
      %p126 = scmp.ne.s32.totalorder %s112, %s113
      %p127 = scmp.eq.s32.totalorder %s16, 3
      %p128 = por %p126, %p127
      %p130 = scmp.ne.s32.totalorder %s113, %s129
      %p131 = scmp.eq.s32.totalorder %s16, 0
      %p132 = por %p130, %p131
      %p133 = scmp.le.s32.totalorder 1, %s10
      %p134 = scmp.lt.s32.totalorder %s10, 5
      %p135 = pnand %p133, %p134
      %p136 = pneg %p135
      // Predicated region
      $region9: #{unet_forward.27} parent=5 // pred_check
        _
      $region10: #{unet_forward.27} parent=5 // pred_check_branch
        %138 = sbr.rel (%p135) target = $region12
      $region11: #{unet_forward.27} parent=5 // pred_region
        %s139 = ssub.s32 %s10, 1
        // Predicated region
        $region13: #{unet_forward.27} parent=11 // pred_check
          %p140 = pneg %p31
        $region14: #{unet_forward.27} parent=11 // pred_check_branch
          %142 = sbr.rel (%p140) target = $region16
        $region15: #{unet_forward.27} parent=11 // pred_region
          _
        $region16: #{unet_forward.27} parent=11 // pred_fallthru
          _
        // Predicated region
        $region17: #{unet_forward.27} parent=11 // pred_check
          %p143 = pneg %p78
        $region18: #{unet_forward.27} parent=11 // pred_check_branch
          %145 = sbr.rel (%p143) target = $region20
        $region19: #{unet_forward.27} parent=11 // pred_region
          _
        $region20: #{unet_forward.27} parent=11 // pred_fallthru
          _
        // Predicated region
        $region21: #{unet_forward.27} parent=11 // pred_check
          %p146 = pneg %p99
        $region22: #{unet_forward.27} parent=11 // pred_check_branch
          %148 = sbr.rel (%p146) target = $region24
        $region23: #{unet_forward.27} parent=11 // pred_region
          _
        $region24: #{unet_forward.27} parent=11 // pred_fallthru
          _
      $region12: #{unet_forward.27} parent=5 // pred_fallthru
        _
      %p149 = scmp.lt.s32.totalorder %s10, 4
      // Predicated region
      $region25: #{unet_forward.27} parent=5 // pred_check
        %p150 = pneg %p149
      $region26: #{unet_forward.27} parent=5 // pred_check_branch
        %152 = sbr.rel (%p150) target = $region28
      $region27: #{unet_forward.27} parent=5 // pred_region
        // Predicated region
        $region29: #{unet_forward.27} parent=27 // pred_check
          %p153 = pneg %p51
        $region30: #{unet_forward.27} parent=27 // pred_check_branch
          %155 = sbr.rel (%p153) target = $region32
        $region31: #{unet_forward.27} parent=27 // pred_region
          %s156 = sand.u32 %s41, 1
          %s157 = sand.u32 %s41, 1
          %s158 = smul.addr %s157, 432
          %s159 = scalar_lea.vmem [#allocation2], %s158
          %s160 = smul.u32 4, %s10
          %s161 = smul.addr %s160, 4
          %s162 = scalar_lea.vmem %s1, %s161
          // Predicated region
          $region33: #{unet_forward.27} parent=31 // pred_check
            _
          $region34: #{unet_forward.27} parent=31 // pred_check_branch
            %164 = sbr.rel (0) target = $region36
          $region35: #{unet_forward.27} parent=31 // pred_region
            // Predicated region
            $region37: #{unet_forward.27} parent=35 // pred_check
              _
            $region38: #{unet_forward.27} parent=35 // pred_check_branch
              %166 = sbr.rel (0) target = $region40
            $region39: #{unet_forward.27} parent=35 // pred_region
              loop: start=0, step=1, limit=1
              $region41: #{unet_forward.27} parent=39 // loop_pre_header
                _
              $region42: #{unet_forward.27} parent=39 // loop_header
                %s168 = sphi 0, %s172
                %p169 = scmp.ge.s32.totalorder %s168, 1
                %s173 = sphi %s162, %s162
                %s174 = sphi %s159, %s159
              $region43: #{unet_forward.27} parent=39 // loop_header_branch
                %171 = sbr.rel (%p169) target = $region47
              $region44: #{unet_forward.27} parent=39 // loop_body
                %v175 = vld [vmem:[%s173] sm:$0xff]
                %176 = vst [vmem:[%s174] sm:$0xff] %v175
                %v177 = vld [vmem:[%s173 + $0x8] sm:$0xff]
                %178 = vst [vmem:[%s174 + $0x8] sm:$0xff] %v177
                %v179 = vld [vmem:[%s173 + $0x40] sm:$0xff]
                %180 = vst [vmem:[%s174 + $0x10] sm:$0xff] %v179
                %v181 = vld [vmem:[%s173 + $0x48] sm:$0xff]
                %182 = vst [vmem:[%s174 + $0x18] sm:$0xff] %v181
                %v183 = vld [vmem:[%s173 + $0x80] sm:$0xff]
                %184 = vst [vmem:[%s174 + $0x20] sm:$0xff] %v183
                %v185 = vld [vmem:[%s173 + $0x88] sm:$0xff]
                %186 = vst [vmem:[%s174 + $0x28] sm:$0xff] %v185
                %v187 = vld [vmem:[%s173 + $0xc0] sm:$0xff]
                %188 = vst [vmem:[%s174 + $0x30] sm:$0xff] %v187
                %v189 = vld [vmem:[%s173 + $0xc8] sm:$0xff]
                %190 = vst [vmem:[%s174 + $0x38] sm:$0xff] %v189
                %v191 = vld [vmem:[%s173 + $0x100] sm:$0xff]
                %192 = vst [vmem:[%s174 + $0x40] sm:$0xff] %v191
                %v193 = vld [vmem:[%s173 + $0x108] sm:$0xff]
                %194 = vst [vmem:[%s174 + $0x48] sm:$0xff] %v193
                %v195 = vld [vmem:[%s173 + $0x140] sm:$0xff]
                %196 = vst [vmem:[%s174 + $0x50] sm:$0xff] %v195
                %v197 = vld [vmem:[%s173 + $0x148] sm:$0xff]
                %198 = vst [vmem:[%s174 + $0x58] sm:$0xff] %v197
                %v199 = vld [vmem:[%s173 + $0x180] sm:$0xff]
                %200 = vst [vmem:[%s174 + $0x60] sm:$0xff] %v199
                %v201 = vld [vmem:[%s173 + $0x188] sm:$0xff]
                %202 = vst [vmem:[%s174 + $0x68] sm:$0xff] %v201
                %v203 = vld [vmem:[%s173 + $0x1c0] sm:$0xff]
                %204 = vst [vmem:[%s174 + $0x70] sm:$0xff] %v203
                %v205 = vld [vmem:[%s173 + $0x1c8] sm:$0xff]
                %206 = vst [vmem:[%s174 + $0x78] sm:$0xff] %v205
                %v207 = vld [vmem:[%s173 + $0x200] sm:$0xff]
                %208 = vst [vmem:[%s174 + $0x80] sm:$0xff] %v207
                %v209 = vld [vmem:[%s173 + $0x208] sm:$0xff]
                %210 = vst [vmem:[%s174 + $0x88] sm:$0xff] %v209
                %v211 = vld [vmem:[%s173 + $0x240] sm:$0xff]
                %212 = vst [vmem:[%s174 + $0x90] sm:$0xff] %v211
                %v213 = vld [vmem:[%s173 + $0x248] sm:$0xff]
                %214 = vst [vmem:[%s174 + $0x98] sm:$0xff] %v213
                %v215 = vld [vmem:[%s173 + $0x280] sm:$0xff]
                %216 = vst [vmem:[%s174 + $0xa0] sm:$0xff] %v215
                %v217 = vld [vmem:[%s173 + $0x288] sm:$0xff]
                %218 = vst [vmem:[%s174 + $0xa8] sm:$0xff] %v217
                %v219 = vld [vmem:[%s173 + $0x2c0] sm:$0xff]
                %220 = vst [vmem:[%s174 + $0xb0] sm:$0xff] %v219
                %v221 = vld [vmem:[%s173 + $0x2c8] sm:$0xff]
                %222 = vst [vmem:[%s174 + $0xb8] sm:$0xff] %v221
                %v223 = vld [vmem:[%s173 + $0x300] sm:$0xff]
                %224 = vst [vmem:[%s174 + $0xc0] sm:$0xff] %v223
                %v225 = vld [vmem:[%s173 + $0x308] sm:$0xff]
                %226 = vst [vmem:[%s174 + $0xc8] sm:$0xff] %v225
                %v227 = vld [vmem:[%s173 + $0x340] sm:$0xff]
                %228 = vst [vmem:[%s174 + $0xd0] sm:$0xff] %v227
                %v229 = vld [vmem:[%s173 + $0x348] sm:$0xff]
                %230 = vst [vmem:[%s174 + $0xd8] sm:$0xff] %v229
                %v231 = vld [vmem:[%s173 + $0x380] sm:$0xff]
                %232 = vst [vmem:[%s174 + $0xe0] sm:$0xff] %v231
                %v233 = vld [vmem:[%s173 + $0x388] sm:$0xff]
                %234 = vst [vmem:[%s174 + $0xe8] sm:$0xff] %v233
                %v235 = vld [vmem:[%s173 + $0x3c0] sm:$0xff]
                %236 = vst [vmem:[%s174 + $0xf0] sm:$0xff] %v235
                %v237 = vld [vmem:[%s173 + $0x3c8] sm:$0xff]
                %238 = vst [vmem:[%s174 + $0xf8] sm:$0xff] %v237
                %v239 = vld [vmem:[%s173 + $0x400] sm:$0xff]
                %240 = vst [vmem:[%s174 + $0x100] sm:$0xff] %v239
                %v241 = vld [vmem:[%s173 + $0x408] sm:$0xff]
                %242 = vst [vmem:[%s174 + $0x108] sm:$0xff] %v241
                %v243 = vld [vmem:[%s173 + $0x440] sm:$0xff]
                %244 = vst [vmem:[%s174 + $0x110] sm:$0xff] %v243
                %v245 = vld [vmem:[%s173 + $0x448] sm:$0xff]
                %246 = vst [vmem:[%s174 + $0x118] sm:$0xff] %v245
                %v247 = vld [vmem:[%s173 + $0x480] sm:$0xff]
                %248 = vst [vmem:[%s174 + $0x120] sm:$0xff] %v247
                %v249 = vld [vmem:[%s173 + $0x488] sm:$0xff]
                %250 = vst [vmem:[%s174 + $0x128] sm:$0xff] %v249
                %v251 = vld [vmem:[%s173 + $0x4c0] sm:$0xff]
                %252 = vst [vmem:[%s174 + $0x130] sm:$0xff] %v251
                %v253 = vld [vmem:[%s173 + $0x4c8] sm:$0xff]
                %254 = vst [vmem:[%s174 + $0x138] sm:$0xff] %v253
                %v255 = vld [vmem:[%s173 + $0x500] sm:$0xff]
                %256 = vst [vmem:[%s174 + $0x140] sm:$0xff] %v255
                %v257 = vld [vmem:[%s173 + $0x508] sm:$0xff]
                %258 = vst [vmem:[%s174 + $0x148] sm:$0xff] %v257
                %v259 = vld [vmem:[%s173 + $0x540] sm:$0xff]
                %260 = vst [vmem:[%s174 + $0x150] sm:$0xff] %v259
                %v261 = vld [vmem:[%s173 + $0x548] sm:$0xff]
                %262 = vst [vmem:[%s174 + $0x158] sm:$0xff] %v261
                %v263 = vld [vmem:[%s173 + $0x580] sm:$0xff]
                %264 = vst [vmem:[%s174 + $0x160] sm:$0xff] %v263
                %v265 = vld [vmem:[%s173 + $0x588] sm:$0xff]
                %266 = vst [vmem:[%s174 + $0x168] sm:$0xff] %v265
                %v267 = vld [vmem:[%s173 + $0x5c0] sm:$0xff]
                %268 = vst [vmem:[%s174 + $0x170] sm:$0xff] %v267
                %v269 = vld [vmem:[%s173 + $0x5c8] sm:$0xff]
                %270 = vst [vmem:[%s174 + $0x178] sm:$0xff] %v269
                %v271 = vld [vmem:[%s173 + $0x600] sm:$0xff]
                %272 = vst [vmem:[%s174 + $0x180] sm:$0xff] %v271
                %v273 = vld [vmem:[%s173 + $0x608] sm:$0xff]
                %274 = vst [vmem:[%s174 + $0x188] sm:$0xff] %v273
                %v275 = vld [vmem:[%s173 + $0x640] sm:$0xff]
                %276 = vst [vmem:[%s174 + $0x190] sm:$0xff] %v275
                %v277 = vld [vmem:[%s173 + $0x648] sm:$0xff]
                %278 = vst [vmem:[%s174 + $0x198] sm:$0xff] %v277
                %v279 = vld [vmem:[%s173 + $0x680] sm:$0xff]
                %280 = vst [vmem:[%s174 + $0x1a0] sm:$0xff] %v279
                %v281 = vld [vmem:[%s173 + $0x688] sm:$0xff]
                %282 = vst [vmem:[%s174 + $0x1a8] sm:$0xff] %v281
              $region45: #{unet_forward.27} parent=39 // loop_footer
                %s172 = sadd.s32 1, %s168
              $region46: #{unet_forward.27} parent=39 // loop_footer_branch
                %167 = sbr.rel target = $region42
              $region47: #{unet_forward.27} parent=39 // loop_exit
                _
            $region40: #{unet_forward.27} parent=35 // pred_fallthru
              _
            // Predicated region
            $region48: #{unet_forward.27} parent=35 // pred_check
              _
            $region49: #{unet_forward.27} parent=35 // pred_check_branch
              %284 = sbr.rel target = $region51
            $region50: #{unet_forward.27} parent=35 // pred_region
              _
            $region51: #{unet_forward.27} parent=35 // pred_fallthru
              _
          $region36: #{unet_forward.27} parent=31 // pred_fallthru
            _
          %285 = vnop
        $region32: #{unet_forward.27} parent=27 // pred_fallthru
          _
      $region28: #{unet_forward.27} parent=5 // pred_fallthru
        _
      %p286 = scmp.le.s32.totalorder 1, %s10
      %p287 = scmp.lt.s32.totalorder %s10, 5
      %p288 = pnand %p286, %p287
      %p289 = pneg %p288
      // Predicated region
      $region52: #{unet_forward.27} parent=5 // pred_check
        _
      $region53: #{unet_forward.27} parent=5 // pred_check_branch
        %291 = sbr.rel (%p288) target = $region55
      $region54: #{unet_forward.27} parent=5 // pred_region
        %s292 = ssub.s32 %s10, 1
        %s293 = sand.u32 %s44, 1
        %s294 = sand.u32 %s44, 1
        %s295 = smul.addr %s294, 432
        %s296 = scalar_lea.vmem [#allocation2], %s295
        // Predicated region
        $region56: #{unet_forward.27} parent=54 // pred_check
          %p297 = pneg %p57
        $region57: #{unet_forward.27} parent=54 // pred_check_branch
          %299 = sbr.rel (%p297) target = $region59
        $region58: #{unet_forward.27} parent=54 // pred_region
          _
        $region59: #{unet_forward.27} parent=54 // pred_fallthru
          _
        %p300 = pneg %p31
        %p301 = pneg %p28
        %s302 = sand.u32 %s44, 1
        %s303 = sand.u32 %s44, 1
        %s304 = smul.addr %s303, 432
        %s305 = scalar_lea.vmem [#allocation2], %s304
        %p306 = pneg %p57
        %p307 = pneg %p54
        %p308 = pneg %p78
        %p309 = pneg %p75
        %p310 = pneg %p99
        %p311 = pneg %p96
        %p312 = pneg %p125
        %p313 = pneg %p122
        %s314 = sand.u32 %s112, 1
        %s315 = sand.u32 %s112, 1
        %s316 = smul.addr %s315, 32
        %s317 = scalar_lea.vmem [#allocation3], %s316
        %s318 = smul.u32 4, %s15
        %s319 = smul.u32 4, %s15
        %v321 = vld [vmem:[%s0] sm:$0xff]
        %v322 = vld [vmem:[%s0 + $0x8] sm:$0xff]
        %v323 = vld [vmem:[%s296] sm:$0xff]
        %v324 = vld [vmem:[%s296 + $0x8] sm:$0xff]
        %v325 = vld [vmem:[%s296 + $0x10] sm:$0xff]
        %v326 = vld [vmem:[%s296 + $0x18] sm:$0xff]
        %v327 = vld [vmem:[%s296 + $0x20] sm:$0xff]
        %v328 = vld [vmem:[%s296 + $0x28] sm:$0xff]
        %v329 = vld [vmem:[%s296 + $0x30] sm:$0xff]
        %v330 = vld [vmem:[%s296 + $0x38] sm:$0xff]
        %v331 = vld [vmem:[%s296 + $0x40] sm:$0xff]
        %v332 = vld [vmem:[%s296 + $0x48] sm:$0xff]
        %v333 = vld [vmem:[%s296 + $0x50] sm:$0xff]
        %v334 = vld [vmem:[%s296 + $0x58] sm:$0xff]
        %v335 = vld [vmem:[%s296 + $0x60] sm:$0xff]
        %v336 = vld [vmem:[%s296 + $0x68] sm:$0xff]
        %v337 = vld [vmem:[%s296 + $0x70] sm:$0xff]
        %v338 = vld [vmem:[%s296 + $0x78] sm:$0xff]
        %v339 = vld [vmem:[%s296 + $0x80] sm:$0xff]
        %v340 = vld [vmem:[%s296 + $0x88] sm:$0xff]
        %v341 = vld [vmem:[%s296 + $0x90] sm:$0xff]
        %v342 = vld [vmem:[%s296 + $0x98] sm:$0xff]
        %v343 = vld [vmem:[%s296 + $0xa0] sm:$0xff]
        %v344 = vld [vmem:[%s296 + $0xa8] sm:$0xff]
        %v345 = vld [vmem:[%s296 + $0xb0] sm:$0xff]
        %v346 = vld [vmem:[%s296 + $0xb8] sm:$0xff]
        %v347 = vld [vmem:[%s296 + $0xc0] sm:$0xff]
        %v348 = vld [vmem:[%s296 + $0xc8] sm:$0xff]
        %v349 = vld [vmem:[%s296 + $0xd0] sm:$0xff]
        %v350 = vld [vmem:[%s296 + $0xd8] sm:$0xff]
        %v351 = vld [vmem:[%s296 + $0xe0] sm:$0xff]
        %v352 = vld [vmem:[%s296 + $0xe8] sm:$0xff]
        %v353 = vld [vmem:[%s296 + $0xf0] sm:$0xff]
        %v354 = vld [vmem:[%s296 + $0xf8] sm:$0xff]
        %v355 = vld [vmem:[%s296 + $0x100] sm:$0xff]
        %v356 = vld [vmem:[%s296 + $0x108] sm:$0xff]
        %v357 = vld [vmem:[%s296 + $0x110] sm:$0xff]
        %v358 = vld [vmem:[%s296 + $0x118] sm:$0xff]
        %v359 = vld [vmem:[%s296 + $0x120] sm:$0xff]
        %v360 = vld [vmem:[%s296 + $0x128] sm:$0xff]
        %v361 = vld [vmem:[%s296 + $0x130] sm:$0xff]
        %v362 = vld [vmem:[%s296 + $0x138] sm:$0xff]
        %v363 = vld [vmem:[%s296 + $0x140] sm:$0xff]
        %v364 = vld [vmem:[%s296 + $0x148] sm:$0xff]
        %v365 = vld [vmem:[%s296 + $0x150] sm:$0xff]
        %v366 = vld [vmem:[%s296 + $0x158] sm:$0xff]
        %v367 = vld [vmem:[%s296 + $0x160] sm:$0xff]
        %v368 = vld [vmem:[%s296 + $0x168] sm:$0xff]
        %v369 = vld [vmem:[%s296 + $0x170] sm:$0xff]
        %v370 = vld [vmem:[%s296 + $0x178] sm:$0xff]
        %v371 = vld [vmem:[%s296 + $0x180] sm:$0xff]
        %v372 = vld [vmem:[%s296 + $0x188] sm:$0xff]
        %v373 = vld [vmem:[%s296 + $0x190] sm:$0xff]
        %v374 = vld [vmem:[%s296 + $0x198] sm:$0xff]
        %v375 = vld [vmem:[%s296 + $0x1a0] sm:$0xff]
        %v376 = vld [vmem:[%s296 + $0x1a8] sm:$0xff]
        %v379 = vunpack.c.l.b16 %v321
        %v380 = vunpack.c.h.b16 %v321
        %v381 = vunpack.c.l.b16 %v322
        %v382 = vunpack.c.h.b16 %v322
        %v383 = vpack.c.b16 %v381, %v379
        %v384 = vpack.c.b16 %v382, %v380
        %v440 = vunpack.c.l.b16 %v323
        %v441 = vunpack.c.h.b16 %v323
        %v442 = vunpack.c.l.b16 %v324
        %v443 = vunpack.c.h.b16 %v324
        %v444 = vunpack.c.l.b16 %v325
        %v445 = vunpack.c.h.b16 %v325
        %v446 = vunpack.c.l.b16 %v326
        %v447 = vunpack.c.h.b16 %v326
        %v448 = vunpack.c.l.b16 %v327
        %v449 = vunpack.c.h.b16 %v327
        %v450 = vunpack.c.l.b16 %v328
        %v451 = vunpack.c.h.b16 %v328
        %v452 = vunpack.c.l.b16 %v329
        %v453 = vunpack.c.h.b16 %v329
        %v454 = vunpack.c.l.b16 %v330
        %v455 = vunpack.c.h.b16 %v330
        %v456 = vunpack.c.l.b16 %v331
        %v457 = vunpack.c.h.b16 %v331
        %v458 = vunpack.c.l.b16 %v332
        %v459 = vunpack.c.h.b16 %v332
        %v460 = vunpack.c.l.b16 %v333
        %v461 = vunpack.c.h.b16 %v333
        %v462 = vunpack.c.l.b16 %v334
        %v463 = vunpack.c.h.b16 %v334
        %v464 = vunpack.c.l.b16 %v335
        %v465 = vunpack.c.h.b16 %v335
        %v466 = vunpack.c.l.b16 %v336
        %v467 = vunpack.c.h.b16 %v336
        %v468 = vunpack.c.l.b16 %v337
        %v469 = vunpack.c.h.b16 %v337
        %v470 = vunpack.c.l.b16 %v338
        %v471 = vunpack.c.h.b16 %v338
        %v472 = vunpack.c.l.b16 %v339
        %v473 = vunpack.c.h.b16 %v339
        %v474 = vunpack.c.l.b16 %v340
        %v475 = vunpack.c.h.b16 %v340
        %v476 = vunpack.c.l.b16 %v341
        %v477 = vunpack.c.h.b16 %v341
        %v478 = vunpack.c.l.b16 %v342
        %v479 = vunpack.c.h.b16 %v342
        %v480 = vunpack.c.l.b16 %v343
        %v481 = vunpack.c.h.b16 %v343
        %v482 = vunpack.c.l.b16 %v344
        %v483 = vunpack.c.h.b16 %v344
        %v484 = vunpack.c.l.b16 %v345
        %v485 = vunpack.c.h.b16 %v345
        %v486 = vunpack.c.l.b16 %v346
        %v487 = vunpack.c.h.b16 %v346
        %v488 = vunpack.c.l.b16 %v347
        %v489 = vunpack.c.h.b16 %v347
        %v490 = vunpack.c.l.b16 %v348
        %v491 = vunpack.c.h.b16 %v348
        %v492 = vunpack.c.l.b16 %v349
        %v493 = vunpack.c.h.b16 %v349
        %v494 = vunpack.c.l.b16 %v350
        %v495 = vunpack.c.h.b16 %v350
        %v496 = vunpack.c.l.b16 %v351
        %v497 = vunpack.c.h.b16 %v351
        %v498 = vunpack.c.l.b16 %v352
        %v499 = vunpack.c.h.b16 %v352
        %v500 = vunpack.c.l.b16 %v353
        %v501 = vunpack.c.h.b16 %v353
        %v502 = vunpack.c.l.b16 %v354
        %v503 = vunpack.c.h.b16 %v354
        %v504 = vunpack.c.l.b16 %v355
        %v505 = vunpack.c.h.b16 %v355
        %v506 = vunpack.c.l.b16 %v356
        %v507 = vunpack.c.h.b16 %v356
        %v508 = vunpack.c.l.b16 %v357
        %v509 = vunpack.c.h.b16 %v357
        %v510 = vunpack.c.l.b16 %v358
        %v511 = vunpack.c.h.b16 %v358
        %v512 = vunpack.c.l.b16 %v359
        %v513 = vunpack.c.h.b16 %v359
        %v514 = vunpack.c.l.b16 %v360
        %v515 = vunpack.c.h.b16 %v360
        %v516 = vunpack.c.l.b16 %v361
        %v517 = vunpack.c.h.b16 %v361
        %v518 = vunpack.c.l.b16 %v362
        %v519 = vunpack.c.h.b16 %v362
        %v520 = vunpack.c.l.b16 %v363
        %v521 = vunpack.c.h.b16 %v363
        %v522 = vunpack.c.l.b16 %v364
        %v523 = vunpack.c.h.b16 %v364
        %v524 = vunpack.c.l.b16 %v365
        %v525 = vunpack.c.h.b16 %v365
        %v526 = vunpack.c.l.b16 %v366
        %v527 = vunpack.c.h.b16 %v366
        %v528 = vunpack.c.l.b16 %v367
        %v529 = vunpack.c.h.b16 %v367
        %v530 = vunpack.c.l.b16 %v368
        %v531 = vunpack.c.h.b16 %v368
        %v532 = vunpack.c.l.b16 %v369
        %v533 = vunpack.c.h.b16 %v369
        %v534 = vunpack.c.l.b16 %v370
        %v535 = vunpack.c.h.b16 %v370
        %v536 = vunpack.c.l.b16 %v371
        %v537 = vunpack.c.h.b16 %v371
        %v538 = vunpack.c.l.b16 %v372
        %v539 = vunpack.c.h.b16 %v372
        %v540 = vunpack.c.l.b16 %v373
        %v541 = vunpack.c.h.b16 %v373
        %v542 = vunpack.c.l.b16 %v374
        %v543 = vunpack.c.h.b16 %v374
        %v544 = vunpack.c.l.b16 %v375
        %v545 = vunpack.c.h.b16 %v375
        %v546 = vunpack.c.l.b16 %v376
        %v547 = vunpack.c.h.b16 %v376
        %v548 = vpack.c.b16 %v444, %v440
        %v549 = vpack.c.b16 %v445, %v441
        %v550 = vpack.c.b16 %v446, %v442
        %v551 = vpack.c.b16 %v447, %v443
        %v552 = vpack.c.b16 %v452, %v448
        %v553 = vpack.c.b16 %v453, %v449
        %v554 = vpack.c.b16 %v454, %v450
        %v555 = vpack.c.b16 %v455, %v451
        %v556 = vpack.c.b16 %v460, %v456
        %v557 = vpack.c.b16 %v461, %v457
        %v558 = vpack.c.b16 %v462, %v458
        %v559 = vpack.c.b16 %v463, %v459
        %v560 = vpack.c.b16 %v468, %v464
        %v561 = vpack.c.b16 %v469, %v465
        %v562 = vpack.c.b16 %v470, %v466
        %v563 = vpack.c.b16 %v471, %v467
        %v564 = vpack.c.b16 %v476, %v472
        %v565 = vpack.c.b16 %v477, %v473
        %v566 = vpack.c.b16 %v478, %v474
        %v567 = vpack.c.b16 %v479, %v475
        %v568 = vpack.c.b16 %v484, %v480
        %v569 = vpack.c.b16 %v485, %v481
        %v570 = vpack.c.b16 %v486, %v482
        %v571 = vpack.c.b16 %v487, %v483
        %v572 = vpack.c.b16 %v492, %v488
        %v573 = vpack.c.b16 %v493, %v489
        %v574 = vpack.c.b16 %v494, %v490
        %v575 = vpack.c.b16 %v495, %v491
        %v576 = vpack.c.b16 %v500, %v496
        %v577 = vpack.c.b16 %v501, %v497
        %v578 = vpack.c.b16 %v502, %v498
        %v579 = vpack.c.b16 %v503, %v499
        %v580 = vpack.c.b16 %v508, %v504
        %v581 = vpack.c.b16 %v509, %v505
        %v582 = vpack.c.b16 %v510, %v506
        %v583 = vpack.c.b16 %v511, %v507
        %v584 = vpack.c.b16 %v516, %v512
        %v585 = vpack.c.b16 %v517, %v513
        %v586 = vpack.c.b16 %v518, %v514
        %v587 = vpack.c.b16 %v519, %v515
        %v588 = vpack.c.b16 %v524, %v520
        %v589 = vpack.c.b16 %v525, %v521
        %v590 = vpack.c.b16 %v526, %v522
        %v591 = vpack.c.b16 %v527, %v523
        %v592 = vpack.c.b16 %v532, %v528
        %v593 = vpack.c.b16 %v533, %v529
        %v594 = vpack.c.b16 %v534, %v530
        %v595 = vpack.c.b16 %v535, %v531
        %v596 = vpack.c.b16 %v540, %v536
        %v597 = vpack.c.b16 %v541, %v537
        %v598 = vpack.c.b16 %v542, %v538
        %v599 = vpack.c.b16 %v543, %v539
        %v600 = vpack.c.b16 %v544, %v544
        %v601 = vpack.c.b16 %v545, %v545
        %v602 = vpack.c.b16 %v546, %v546
        %v603 = vpack.c.b16 %v547, %v547
        %vm656 = vcmask 719872
        %v658 = vsel %vm656, %v384, 0
        %vm660 = vcmask 1043456
        %v662 = vsel %vm660, %v600, 0
        %v665 = vsel %vm660, %v601, 0
        %v668 = vsel %vm660, %v602, 0
        %v671 = vsel %vm660, %v603, 0
        %673 = vmatpush.bf16.msra.mxu0 %v576
        %674 = vmatpush.bf16.msra.mxu0 %v572
        %675 = vmatpush.bf16.msra.mxu0 %v568
        %676 = vmatpush.bf16.msra.mxu0 %v564
        %677 = vmatpush.bf16.msra.mxu0 %v560
        %678 = vmatpush.bf16.msra.mxu0 %v556
        %679 = vmatpush.bf16.msra.mxu0 %v552
        %680 = vmatpush.bf16.msra.mxu0 %v548
        %681 = vmatmul.bf16.gmra.mxu0 %v383
        %v682 = vpop.f32.mrf.mxu0
        %v683 = vadd.f32 0.0, %v682
        %v684 = vpop.f32.mrf.mxu0
        %v685 = vadd.f32 0.0, %v684
        %686 = vdwg.mxu0
        %687 = vmatpush.bf16.msra.mxu0 0
        %688 = vmatpush.bf16.msra.mxu0 0
        %689 = vmatpush.bf16.msra.mxu0 %v662
        %690 = vmatpush.bf16.msra.mxu0 %v596
        %691 = vmatpush.bf16.msra.mxu0 %v592
        %692 = vmatpush.bf16.msra.mxu0 %v588
        %693 = vmatpush.bf16.msra.mxu0 %v584
        %694 = vmatpush.bf16.msra.mxu0 %v580
        %695 = vmatmul.bf16.gmra.mxu0 %v658
        %v696 = vpop.f32.mrf.mxu0
        %v697 = vadd.f32 %v683, %v696
        %v698 = vpop.f32.mrf.mxu0
        %v699 = vadd.f32 %v685, %v698
        %700 = vdwg.mxu0
        %701 = vmatpush.bf16.msra.mxu0 %v577
        %702 = vmatpush.bf16.msra.mxu0 %v573
        %703 = vmatpush.bf16.msra.mxu0 %v569
        %704 = vmatpush.bf16.msra.mxu0 %v565
        %705 = vmatpush.bf16.msra.mxu0 %v561
        %706 = vmatpush.bf16.msra.mxu0 %v557
        %707 = vmatpush.bf16.msra.mxu0 %v553
        %708 = vmatpush.bf16.msra.mxu0 %v549
        %709 = vmatmul.bf16.gmra.mxu0 %v383
        %v710 = vpop.f32.mrf.mxu0
        %v711 = vadd.f32 0.0, %v710
        %v712 = vpop.f32.mrf.mxu0
        %v713 = vadd.f32 0.0, %v712
        %714 = vdwg.mxu0
        %715 = vmatpush.bf16.msra.mxu0 0
        %716 = vmatpush.bf16.msra.mxu0 0
        %717 = vmatpush.bf16.msra.mxu0 %v665
        %718 = vmatpush.bf16.msra.mxu0 %v597
        %719 = vmatpush.bf16.msra.mxu0 %v593
        %720 = vmatpush.bf16.msra.mxu0 %v589
        %721 = vmatpush.bf16.msra.mxu0 %v585
        %722 = vmatpush.bf16.msra.mxu0 %v581
        %723 = vmatmul.bf16.gmra.mxu0 %v658
        %v724 = vpop.f32.mrf.mxu0
        %v725 = vadd.f32 %v711, %v724
        %v726 = vpop.f32.mrf.mxu0
        %v727 = vadd.f32 %v713, %v726
        %728 = vdwg.mxu0
        %729 = vmatpush.bf16.msra.mxu0 %v578
        %730 = vmatpush.bf16.msra.mxu0 %v574
        %731 = vmatpush.bf16.msra.mxu0 %v570
        %732 = vmatpush.bf16.msra.mxu0 %v566
        %733 = vmatpush.bf16.msra.mxu0 %v562
        %734 = vmatpush.bf16.msra.mxu0 %v558
        %735 = vmatpush.bf16.msra.mxu0 %v554
        %736 = vmatpush.bf16.msra.mxu0 %v550
        %737 = vmatmul.bf16.gmra.mxu0 %v383
        %v738 = vpop.f32.mrf.mxu0
        %v739 = vadd.f32 0.0, %v738
        %v740 = vpop.f32.mrf.mxu0
        %v741 = vadd.f32 0.0, %v740
        %742 = vdwg.mxu0
        %743 = vmatpush.bf16.msra.mxu0 0
        %744 = vmatpush.bf16.msra.mxu0 0
        %745 = vmatpush.bf16.msra.mxu0 %v668
        %746 = vmatpush.bf16.msra.mxu0 %v598
        %747 = vmatpush.bf16.msra.mxu0 %v594
        %748 = vmatpush.bf16.msra.mxu0 %v590
        %749 = vmatpush.bf16.msra.mxu0 %v586
        %750 = vmatpush.bf16.msra.mxu0 %v582
        %751 = vmatmul.bf16.gmra.mxu0 %v658
        %v752 = vpop.f32.mrf.mxu0
        %v753 = vadd.f32 %v739, %v752
        %v754 = vpop.f32.mrf.mxu0
        %v755 = vadd.f32 %v741, %v754
        %756 = vdwg.mxu0
        %757 = vmatpush.bf16.msra.mxu0 %v579
        %758 = vmatpush.bf16.msra.mxu0 %v575
        %759 = vmatpush.bf16.msra.mxu0 %v571
        %760 = vmatpush.bf16.msra.mxu0 %v567
        %761 = vmatpush.bf16.msra.mxu0 %v563
        %762 = vmatpush.bf16.msra.mxu0 %v559
        %763 = vmatpush.bf16.msra.mxu0 %v555
        %764 = vmatpush.bf16.msra.mxu0 %v551
        %765 = vmatmul.bf16.gmra.mxu0 %v383
        %v766 = vpop.f32.mrf.mxu0
        %v767 = vadd.f32 0.0, %v766
        %v768 = vpop.f32.mrf.mxu0
        %v769 = vadd.f32 0.0, %v768
        %770 = vdwg.mxu0
        %771 = vmatpush.bf16.msra.mxu0 0
        %772 = vmatpush.bf16.msra.mxu0 0
        %773 = vmatpush.bf16.msra.mxu0 %v671
        %774 = vmatpush.bf16.msra.mxu0 %v599
        %775 = vmatpush.bf16.msra.mxu0 %v595
        %776 = vmatpush.bf16.msra.mxu0 %v591
        %777 = vmatpush.bf16.msra.mxu0 %v587
        %778 = vmatpush.bf16.msra.mxu0 %v583
        %779 = vmatmul.bf16.gmra.mxu0 %v658
        %v780 = vpop.f32.mrf.mxu0
        %v781 = vadd.f32 %v767, %v780
        %v782 = vpop.f32.mrf.mxu0
        %v783 = vadd.f32 %v769, %v782
        %784 = vdwg.mxu0
        %v785 = vld [vmem:[%s2] sm:$0xff]
        %v786 = vld [vmem:[%s2 + $0x8] sm:$0xff]
        %788 = vset.pattern.permute.xlu0 0
        %789 = vperm.xlu0 %788, %v785
        %v790 = vpop.permute.xlu0 %789
        %793 = vset.pattern.permute.xlu0 0
        %794 = vperm.xlu0 %793, %v786
        %v795 = vpop.permute.xlu0 %794
        %v797 = vmul.f32 %v697, %v790
        %v798 = vmul.f32 %v725, %v790
        %v799 = vmul.f32 %v753, %v790
        %v800 = vmul.f32 %v781, %v790
        %v801 = vmul.f32 %v699, %v795
        %v802 = vmul.f32 %v727, %v795
        %v803 = vmul.f32 %v755, %v795
        %v804 = vmul.f32 %v783, %v795
        %v805 = vld [vmem:[%s3] sm:$0xff]
        %v806 = vld [vmem:[%s3 + $0x8] sm:$0xff]
        %808 = vset.pattern.permute.xlu0 0
        %809 = vperm.xlu0 %808, %v805
        %v810 = vpop.permute.xlu0 %809
        %813 = vset.pattern.permute.xlu0 0
        %814 = vperm.xlu0 %813, %v806
        %v815 = vpop.permute.xlu0 %814
        %v817 = vadd.f32 %v797, %v810
        %v818 = vadd.f32 %v798, %v810
        %v819 = vadd.f32 %v799, %v810
        %v820 = vadd.f32 %v800, %v810
        %v821 = vadd.f32 %v801, %v815
        %v822 = vadd.f32 %v802, %v815
        %v823 = vadd.f32 %v803, %v815
        %v824 = vadd.f32 %v804, %v815
        %v825 = vmax.f32 %v817, 0.0
        %v826 = vmax.f32 %v818, 0.0
        %v827 = vmax.f32 %v819, 0.0
        %v828 = vmax.f32 %v820, 0.0
        %v829 = vmax.f32 %v821, 0.0
        %v830 = vmax.f32 %v822, 0.0
        %v831 = vmax.f32 %v823, 0.0
        %v832 = vmax.f32 %v824, 0.0
        %v833 = vpack.c.bf16 %v826, %v825
        %v834 = vpack.c.bf16 %v828, %v827
        %v835 = vpack.c.bf16 %v830, %v829
        %v836 = vpack.c.bf16 %v832, %v831
        %837 = vst [vmem:[%s317] sm:$0xff] %v833
        %838 = vst [vmem:[%s317 + $0x8] sm:$0xff] %v834
        %839 = vst [vmem:[%s317 + $0x10] sm:$0xff] %v835
        %840 = vst [vmem:[%s317 + $0x18] sm:$0xff] %v836
        %s841 = sand.u32 %s112, 1
        %s842 = sand.u32 %s112, 1
        %s843 = smul.addr %s842, 32
        %s844 = scalar_lea.vmem [#allocation3], %s843
        // Predicated region
        $region60: #{unet_forward.27} parent=54 // pred_check
          %p845 = pneg %p122
        $region61: #{unet_forward.27} parent=54 // pred_check_branch
          %847 = sbr.rel (%p845) target = $region63
        $region62: #{unet_forward.27} parent=54 // pred_region
          %s848 = smul.u32 4, %s15
          %s849 = smul.addr %s848, 4
          %s850 = scalar_lea.vmem %s4, %s849
          // Predicated region
          $region64: #{unet_forward.27} parent=62 // pred_check
            _
          $region65: #{unet_forward.27} parent=62 // pred_check_branch
            %852 = sbr.rel (0) target = $region67
          $region66: #{unet_forward.27} parent=62 // pred_region
            // Predicated region
            $region68: #{unet_forward.27} parent=66 // pred_check
              _
            $region69: #{unet_forward.27} parent=66 // pred_check_branch
              %854 = sbr.rel (0) target = $region71
            $region70: #{unet_forward.27} parent=66 // pred_region
              loop: start=0, step=1, limit=1
              $region72: #{unet_forward.27} parent=70 // loop_pre_header
                _
              $region73: #{unet_forward.27} parent=70 // loop_header
                %s856 = sphi 0, %s860
                %p857 = scmp.ge.s32.totalorder %s856, 1
                %s861 = sphi %s844, %s844
                %s862 = sphi %s850, %s850
              $region74: #{unet_forward.27} parent=70 // loop_header_branch
                %859 = sbr.rel (%p857) target = $region78
              $region75: #{unet_forward.27} parent=70 // loop_body
                %v863 = vld [vmem:[%s861] sm:$0xff]
                %864 = vst [vmem:[%s862] sm:$0xff] %v863
                %v865 = vld [vmem:[%s861 + $0x8] sm:$0xff]
                %866 = vst [vmem:[%s862 + $0x8] sm:$0xff] %v865
                %v867 = vld [vmem:[%s861 + $0x10] sm:$0xff]
                %868 = vst [vmem:[%s862 + $0x40] sm:$0xff] %v867
                %v869 = vld [vmem:[%s861 + $0x18] sm:$0xff]
                %870 = vst [vmem:[%s862 + $0x48] sm:$0xff] %v869
              $region76: #{unet_forward.27} parent=70 // loop_footer
                %s860 = sadd.s32 1, %s856
              $region77: #{unet_forward.27} parent=70 // loop_footer_branch
                %855 = sbr.rel target = $region73
              $region78: #{unet_forward.27} parent=70 // loop_exit
                _
            $region71: #{unet_forward.27} parent=66 // pred_fallthru
              _
            // Predicated region
            $region79: #{unet_forward.27} parent=66 // pred_check
              _
            $region80: #{unet_forward.27} parent=66 // pred_check_branch
              %872 = sbr.rel target = $region82
            $region81: #{unet_forward.27} parent=66 // pred_region
              _
            $region82: #{unet_forward.27} parent=66 // pred_fallthru
              _
          $region67: #{unet_forward.27} parent=62 // pred_fallthru
            _
          %873 = vnop
        $region63: #{unet_forward.27} parent=54 // pred_fallthru
          _
      $region55: #{unet_forward.27} parent=5 // pred_fallthru
        _
      %p874 = scmp.le.s32.totalorder 2, %s10
      // Predicated region
      $region83: #{unet_forward.27} parent=5 // pred_check
        %p875 = pneg %p874
      $region84: #{unet_forward.27} parent=5 // pred_check_branch
        %877 = sbr.rel (%p875) target = $region86
      $region85: #{unet_forward.27} parent=5 // pred_region
        %s878 = ssub.s32 %s10, 2
        // Predicated region
        $region87: #{unet_forward.27} parent=85 // pred_check
          %p879 = pneg %p128
        $region88: #{unet_forward.27} parent=85 // pred_check_branch
          %881 = sbr.rel (%p879) target = $region90
        $region89: #{unet_forward.27} parent=85 // pred_region
          %s882 = sand.u32 %s113, 1
          %s883 = sand.u32 %s113, 1
          %s884 = smul.addr %s883, 32
          %s885 = scalar_lea.vmem [#allocation3], %s884
        $region90: #{unet_forward.27} parent=85 // pred_fallthru
          _
      $region86: #{unet_forward.27} parent=5 // pred_fallthru
        _
    $region6: #{unet_forward.27} parent=1 // loop_footer
      %s14 = sadd.s32 1, %s10
    $region7: #{unet_forward.27} parent=1 // loop_footer_branch
      %9 = sbr.rel target = $region3
    $region8: #{unet_forward.27} parent=1 // loop_exit
      _

// kernel: unet_forward.28
$region0: #{unet_forward.28}
  #allocation0 [shape = 'u32[]', space=smem, size = 0x4, offset = 0x4, fixed_abs, tag = 'smem constant byte address 0x4 - core index']
  #allocation1 [shape = 'u32[72,128]{1,0:T(1,128)}', space=vmem, size = 0x9000, scoped, tag = 'internal scratch']
  %s0 = inlined_call_operand.vmem [shape: bf16[32,144], index: 0, kind: input, shape index: {}]
  %s1 = inlined_call_operand.vmem [shape: bf16[144,2048], index: 1, kind: input, shape index: {}]
  %s2 = inlined_call_operand.vmem [shape: f32[32,1], index: 2, kind: input, shape index: {}]
  %s3 = inlined_call_operand.vmem [shape: f32[32,1], index: 3, kind: input, shape index: {}]
  %s4 = inlined_call_operand.vmem [shape: bf16[32,2048], index: 4, kind: output, shape index: {}]
  %s5 = sld [smem:[#allocation0]]
  $region91: #{unet_forward.28} parent=0
    _
  %s7 = ssub.s32 1, %s5
  %s8 = scalar_select 0, %s7, %s5
  $region1: #{unet_forward.28} parent=0
    #allocation2 [shape = 'u8[294912]{0}', space=vmem, size = 0x48000, scoped, tag = 'input window, operand 1']
    #allocation3 [shape = 'u8[65536]{0}', space=vmem, size = 0x10000, scoped, tag = 'output window, operand 0']
    loop: start=0, step=1, limit=6
    $region2: #{unet_forward.28} parent=1 // loop_pre_header
      _
    $region3: #{unet_forward.28} parent=1 // loop_header
      %s10 = sphi 0, %s14
      %p11 = scmp.ge.s32.totalorder %s10, 6
      %s18 = sphi 0, %s18
      %s20 = sphi 0, %s18
      %s21 = sphi 0, %s20
      %s35 = sphi 0, %s21
      %s41 = sphi 0, %s43
      %s44 = sphi 0, %s41
      %s45 = sphi 0, %s44
      %s61 = sphi 0, %s45
      %s65 = sphi 0, %s65
      %s67 = sphi 0, %s65
      %s68 = sphi 0, %s67
      %s82 = sphi 0, %s68
      %s86 = sphi 0, %s86
      %s88 = sphi 0, %s86
      %s89 = sphi 0, %s88
      %s103 = sphi 0, %s89
      %s109 = sphi 0, %s111
      %s112 = sphi 0, %s109
      %s113 = sphi 0, %s112
      %s129 = sphi 0, %s113
    $region4: #{unet_forward.28} parent=1 // loop_header_branch
      %13 = sbr.rel (%p11) target = $region8
    $region5: #{unet_forward.28} parent=1 // loop_body
      %s15 = ssub.s32 %s10, 1
      %s16 = ssub.s32 %s10, 2
      %s17 = sadd.s32 %s10, 1
      %s19 = sadd.s32 %s18, 1
      %p22 = scmp.eq.s32.totalorder %s10, 3
      %p23 = scmp.ne.s32.totalorder %s18, %s20
      %p24 = scmp.eq.s32.totalorder %s10, 0
      %p25 = por %p23, %p24
      %p26 = scmp.ne.s32.totalorder %s18, %s20
      %p27 = scmp.eq.s32.totalorder %s15, 3
      %p28 = por %p26, %p27
      %p29 = scmp.ne.s32.totalorder %s20, %s21
      %p30 = scmp.eq.s32.totalorder %s15, 0
      %p31 = por %p29, %p30
      %p32 = scmp.ne.s32.totalorder %s20, %s21
      %p33 = scmp.eq.s32.totalorder %s16, 3
      %p34 = por %p32, %p33
      %p36 = scmp.ne.s32.totalorder %s21, %s35
      %p37 = scmp.eq.s32.totalorder %s16, 0
      %p38 = por %p36, %p37
      %s39 = ssub.s32 %s10, %s17
      %p40 = scmp.eq.s32.totalorder %s39, 0
      %s42 = sadd.s32 %s41, 1
      %s43 = scalar_select %p40, %s41, %s42
      %p46 = pneg %p40
      %p47 = scmp.eq.s32.totalorder %s10, 3
      %p48 = por %p46, %p47
      %p49 = scmp.ne.s32.totalorder %s41, %s44
      %p50 = scmp.eq.s32.totalorder %s10, 0
      %p51 = por %p49, %p50
      %p52 = scmp.ne.s32.totalorder %s41, %s44
      %p53 = scmp.eq.s32.totalorder %s15, 3
      %p54 = por %p52, %p53
      %p55 = scmp.ne.s32.totalorder %s44, %s45
      %p56 = scmp.eq.s32.totalorder %s15, 0
      %p57 = por %p55, %p56
      %p58 = scmp.ne.s32.totalorder %s44, %s45
      %p59 = scmp.eq.s32.totalorder %s16, 3
      %p60 = por %p58, %p59
      %p62 = scmp.ne.s32.totalorder %s45, %s61
      %p63 = scmp.eq.s32.totalorder %s16, 0
      %p64 = por %p62, %p63
      %s66 = sadd.s32 %s65, 1
      %p69 = scmp.eq.s32.totalorder %s10, 3
      %p70 = scmp.ne.s32.totalorder %s65, %s67
      %p71 = scmp.eq.s32.totalorder %s10, 0
      %p72 = por %p70, %p71
      %p73 = scmp.ne.s32.totalorder %s65, %s67
      %p74 = scmp.eq.s32.totalorder %s15, 3
      %p75 = por %p73, %p74
      %p76 = scmp.ne.s32.totalorder %s67, %s68
      %p77 = scmp.eq.s32.totalorder %s15, 0
      %p78 = por %p76, %p77
      %p79 = scmp.ne.s32.totalorder %s67, %s68
      %p80 = scmp.eq.s32.totalorder %s16, 3
      %p81 = por %p79, %p80
      %p83 = scmp.ne.s32.totalorder %s68, %s82
      %p84 = scmp.eq.s32.totalorder %s16, 0
      %p85 = por %p83, %p84
      %s87 = sadd.s32 %s86, 1
      %p90 = scmp.eq.s32.totalorder %s10, 3
      %p91 = scmp.ne.s32.totalorder %s86, %s88
      %p92 = scmp.eq.s32.totalorder %s10, 0
      %p93 = por %p91, %p92
      %p94 = scmp.ne.s32.totalorder %s86, %s88
      %p95 = scmp.eq.s32.totalorder %s15, 3
      %p96 = por %p94, %p95
      %p97 = scmp.ne.s32.totalorder %s88, %s89
      %p98 = scmp.eq.s32.totalorder %s15, 0
      %p99 = por %p97, %p98
      %p100 = scmp.ne.s32.totalorder %s88, %s89
      %p101 = scmp.eq.s32.totalorder %s16, 3
      %p102 = por %p100, %p101
      %p104 = scmp.ne.s32.totalorder %s89, %s103
      %p105 = scmp.eq.s32.totalorder %s16, 0
      %p106 = por %p104, %p105
      %s107 = ssub.s32 %s10, %s17
      %p108 = scmp.eq.s32.totalorder %s107, 0
      %s110 = sadd.s32 %s109, 1
      %s111 = scalar_select %p108, %s109, %s110
      %p114 = pneg %p108
      %p115 = scmp.eq.s32.totalorder %s10, 3
      %p116 = por %p114, %p115
      %p117 = scmp.ne.s32.totalorder %s109, %s112
      %p118 = scmp.eq.s32.totalorder %s10, 0
      %p119 = por %p117, %p118
      %p120 = scmp.ne.s32.totalorder %s109, %s112
      %p121 = scmp.eq.s32.totalorder %s15, 3
      %p122 = por %p120, %p121
      %p123 = scmp.ne.s32.totalorder %s112, %s113
      %p124 = scmp.eq.s32.totalorder %s15, 0
      %p125 = por %p123, %p124
      %p126 = scmp.ne.s32.totalorder %s112, %s113
      %p127 = scmp.eq.s32.totalorder %s16, 3
      %p128 = por %p126, %p127
      %p130 = scmp.ne.s32.totalorder %s113, %s129
      %p131 = scmp.eq.s32.totalorder %s16, 0
      %p132 = por %p130, %p131
      %p133 = scmp.le.s32.totalorder 1, %s10
      %p134 = scmp.lt.s32.totalorder %s10, 5
      %p135 = pnand %p133, %p134
      %p136 = pneg %p135
      // Predicated region
      $region9: #{unet_forward.28} parent=5 // pred_check
        _
      $region10: #{unet_forward.28} parent=5 // pred_check_branch
        %138 = sbr.rel (%p135) target = $region12
      $region11: #{unet_forward.28} parent=5 // pred_region
        %s139 = ssub.s32 %s10, 1
        // Predicated region
        $region13: #{unet_forward.28} parent=11 // pred_check
          %p140 = pneg %p31
        $region14: #{unet_forward.28} parent=11 // pred_check_branch
          %142 = sbr.rel (%p140) target = $region16
        $region15: #{unet_forward.28} parent=11 // pred_region
          _
        $region16: #{unet_forward.28} parent=11 // pred_fallthru
          _
        // Predicated region
        $region17: #{unet_forward.28} parent=11 // pred_check
          %p143 = pneg %p78
        $region18: #{unet_forward.28} parent=11 // pred_check_branch
          %145 = sbr.rel (%p143) target = $region20
        $region19: #{unet_forward.28} parent=11 // pred_region
          _
        $region20: #{unet_forward.28} parent=11 // pred_fallthru
          _
        // Predicated region
        $region21: #{unet_forward.28} parent=11 // pred_check
          %p146 = pneg %p99
        $region22: #{unet_forward.28} parent=11 // pred_check_branch
          %148 = sbr.rel (%p146) target = $region24
        $region23: #{unet_forward.28} parent=11 // pred_region
          _
        $region24: #{unet_forward.28} parent=11 // pred_fallthru
          _
      $region12: #{unet_forward.28} parent=5 // pred_fallthru
        _
      %p149 = scmp.lt.s32.totalorder %s10, 4
      // Predicated region
      $region25: #{unet_forward.28} parent=5 // pred_check
        %p150 = pneg %p149
      $region26: #{unet_forward.28} parent=5 // pred_check_branch
        %152 = sbr.rel (%p150) target = $region28
      $region27: #{unet_forward.28} parent=5 // pred_region
        // Predicated region
        $region29: #{unet_forward.28} parent=27 // pred_check
          %p153 = pneg %p51
        $region30: #{unet_forward.28} parent=27 // pred_check_branch
          %155 = sbr.rel (%p153) target = $region32
        $region31: #{unet_forward.28} parent=27 // pred_region
          %s156 = sand.u32 %s41, 1
          %s157 = sand.u32 %s41, 1
          %s158 = smul.addr %s157, 288
          %s159 = scalar_lea.vmem [#allocation2], %s158
          %s160 = smul.u32 4, %s10
          %s161 = smul.addr %s160, 4
          %s162 = scalar_lea.vmem %s1, %s161
          // Predicated region
          $region33: #{unet_forward.28} parent=31 // pred_check
            _
          $region34: #{unet_forward.28} parent=31 // pred_check_branch
            %164 = sbr.rel (0) target = $region36
          $region35: #{unet_forward.28} parent=31 // pred_region
            // Predicated region
            $region37: #{unet_forward.28} parent=35 // pred_check
              _
            $region38: #{unet_forward.28} parent=35 // pred_check_branch
              %166 = sbr.rel (0) target = $region40
            $region39: #{unet_forward.28} parent=35 // pred_region
              loop: start=0, step=1, limit=1
              $region41: #{unet_forward.28} parent=39 // loop_pre_header
                _
              $region42: #{unet_forward.28} parent=39 // loop_header
                %s168 = sphi 0, %s172
                %p169 = scmp.ge.s32.totalorder %s168, 1
                %s173 = sphi %s162, %s162
                %s174 = sphi %s159, %s159
              $region43: #{unet_forward.28} parent=39 // loop_header_branch
                %171 = sbr.rel (%p169) target = $region47
              $region44: #{unet_forward.28} parent=39 // loop_body
                %v175 = vld [vmem:[%s173] sm:$0xff]
                %176 = vst [vmem:[%s174] sm:$0xff] %v175
                %v177 = vld [vmem:[%s173 + $0x8] sm:$0xff]
                %178 = vst [vmem:[%s174 + $0x8] sm:$0xff] %v177
                %v179 = vld [vmem:[%s173 + $0x40] sm:$0xff]
                %180 = vst [vmem:[%s174 + $0x10] sm:$0xff] %v179
                %v181 = vld [vmem:[%s173 + $0x48] sm:$0xff]
                %182 = vst [vmem:[%s174 + $0x18] sm:$0xff] %v181
                %v183 = vld [vmem:[%s173 + $0x80] sm:$0xff]
                %184 = vst [vmem:[%s174 + $0x20] sm:$0xff] %v183
                %v185 = vld [vmem:[%s173 + $0x88] sm:$0xff]
                %186 = vst [vmem:[%s174 + $0x28] sm:$0xff] %v185
                %v187 = vld [vmem:[%s173 + $0xc0] sm:$0xff]
                %188 = vst [vmem:[%s174 + $0x30] sm:$0xff] %v187
                %v189 = vld [vmem:[%s173 + $0xc8] sm:$0xff]
                %190 = vst [vmem:[%s174 + $0x38] sm:$0xff] %v189
                %v191 = vld [vmem:[%s173 + $0x100] sm:$0xff]
                %192 = vst [vmem:[%s174 + $0x40] sm:$0xff] %v191
                %v193 = vld [vmem:[%s173 + $0x108] sm:$0xff]
                %194 = vst [vmem:[%s174 + $0x48] sm:$0xff] %v193
                %v195 = vld [vmem:[%s173 + $0x140] sm:$0xff]
                %196 = vst [vmem:[%s174 + $0x50] sm:$0xff] %v195
                %v197 = vld [vmem:[%s173 + $0x148] sm:$0xff]
                %198 = vst [vmem:[%s174 + $0x58] sm:$0xff] %v197
                %v199 = vld [vmem:[%s173 + $0x180] sm:$0xff]
                %200 = vst [vmem:[%s174 + $0x60] sm:$0xff] %v199
                %v201 = vld [vmem:[%s173 + $0x188] sm:$0xff]
                %202 = vst [vmem:[%s174 + $0x68] sm:$0xff] %v201
                %v203 = vld [vmem:[%s173 + $0x1c0] sm:$0xff]
                %204 = vst [vmem:[%s174 + $0x70] sm:$0xff] %v203
                %v205 = vld [vmem:[%s173 + $0x1c8] sm:$0xff]
                %206 = vst [vmem:[%s174 + $0x78] sm:$0xff] %v205
                %v207 = vld [vmem:[%s173 + $0x200] sm:$0xff]
                %208 = vst [vmem:[%s174 + $0x80] sm:$0xff] %v207
                %v209 = vld [vmem:[%s173 + $0x208] sm:$0xff]
                %210 = vst [vmem:[%s174 + $0x88] sm:$0xff] %v209
                %v211 = vld [vmem:[%s173 + $0x240] sm:$0xff]
                %212 = vst [vmem:[%s174 + $0x90] sm:$0xff] %v211
                %v213 = vld [vmem:[%s173 + $0x248] sm:$0xff]
                %214 = vst [vmem:[%s174 + $0x98] sm:$0xff] %v213
                %v215 = vld [vmem:[%s173 + $0x280] sm:$0xff]
                %216 = vst [vmem:[%s174 + $0xa0] sm:$0xff] %v215
                %v217 = vld [vmem:[%s173 + $0x288] sm:$0xff]
                %218 = vst [vmem:[%s174 + $0xa8] sm:$0xff] %v217
                %v219 = vld [vmem:[%s173 + $0x2c0] sm:$0xff]
                %220 = vst [vmem:[%s174 + $0xb0] sm:$0xff] %v219
                %v221 = vld [vmem:[%s173 + $0x2c8] sm:$0xff]
                %222 = vst [vmem:[%s174 + $0xb8] sm:$0xff] %v221
                %v223 = vld [vmem:[%s173 + $0x300] sm:$0xff]
                %224 = vst [vmem:[%s174 + $0xc0] sm:$0xff] %v223
                %v225 = vld [vmem:[%s173 + $0x308] sm:$0xff]
                %226 = vst [vmem:[%s174 + $0xc8] sm:$0xff] %v225
                %v227 = vld [vmem:[%s173 + $0x340] sm:$0xff]
                %228 = vst [vmem:[%s174 + $0xd0] sm:$0xff] %v227
                %v229 = vld [vmem:[%s173 + $0x348] sm:$0xff]
                %230 = vst [vmem:[%s174 + $0xd8] sm:$0xff] %v229
                %v231 = vld [vmem:[%s173 + $0x380] sm:$0xff]
                %232 = vst [vmem:[%s174 + $0xe0] sm:$0xff] %v231
                %v233 = vld [vmem:[%s173 + $0x388] sm:$0xff]
                %234 = vst [vmem:[%s174 + $0xe8] sm:$0xff] %v233
                %v235 = vld [vmem:[%s173 + $0x3c0] sm:$0xff]
                %236 = vst [vmem:[%s174 + $0xf0] sm:$0xff] %v235
                %v237 = vld [vmem:[%s173 + $0x3c8] sm:$0xff]
                %238 = vst [vmem:[%s174 + $0xf8] sm:$0xff] %v237
                %v239 = vld [vmem:[%s173 + $0x400] sm:$0xff]
                %240 = vst [vmem:[%s174 + $0x100] sm:$0xff] %v239
                %v241 = vld [vmem:[%s173 + $0x408] sm:$0xff]
                %242 = vst [vmem:[%s174 + $0x108] sm:$0xff] %v241
                %v243 = vld [vmem:[%s173 + $0x440] sm:$0xff]
                %244 = vst [vmem:[%s174 + $0x110] sm:$0xff] %v243
                %v245 = vld [vmem:[%s173 + $0x448] sm:$0xff]
                %246 = vst [vmem:[%s174 + $0x118] sm:$0xff] %v245
              $region45: #{unet_forward.28} parent=39 // loop_footer
                %s172 = sadd.s32 1, %s168
              $region46: #{unet_forward.28} parent=39 // loop_footer_branch
                %167 = sbr.rel target = $region42
              $region47: #{unet_forward.28} parent=39 // loop_exit
                _
            $region40: #{unet_forward.28} parent=35 // pred_fallthru
              _
            // Predicated region
            $region48: #{unet_forward.28} parent=35 // pred_check
              _
            $region49: #{unet_forward.28} parent=35 // pred_check_branch
              %248 = sbr.rel target = $region51
            $region50: #{unet_forward.28} parent=35 // pred_region
              _
            $region51: #{unet_forward.28} parent=35 // pred_fallthru
              _
          $region36: #{unet_forward.28} parent=31 // pred_fallthru
            _
          %249 = vnop
        $region32: #{unet_forward.28} parent=27 // pred_fallthru
          _
      $region28: #{unet_forward.28} parent=5 // pred_fallthru
        _
      %p250 = scmp.le.s32.totalorder 1, %s10
      %p251 = scmp.lt.s32.totalorder %s10, 5
      %p252 = pnand %p250, %p251
      %p253 = pneg %p252
      // Predicated region
      $region52: #{unet_forward.28} parent=5 // pred_check
        _
      $region53: #{unet_forward.28} parent=5 // pred_check_branch
        %255 = sbr.rel (%p252) target = $region55
      $region54: #{unet_forward.28} parent=5 // pred_region
        %s256 = ssub.s32 %s10, 1
        %s257 = sand.u32 %s44, 1
        %s258 = sand.u32 %s44, 1
        %s259 = smul.addr %s258, 288
        %s260 = scalar_lea.vmem [#allocation2], %s259
        // Predicated region
        $region56: #{unet_forward.28} parent=54 // pred_check
          %p261 = pneg %p57
        $region57: #{unet_forward.28} parent=54 // pred_check_branch
          %263 = sbr.rel (%p261) target = $region59
        $region58: #{unet_forward.28} parent=54 // pred_region
          _
        $region59: #{unet_forward.28} parent=54 // pred_fallthru
          _
        %p264 = pneg %p31
        %p265 = pneg %p28
        %s266 = sand.u32 %s44, 1
        %s267 = sand.u32 %s44, 1
        %s268 = smul.addr %s267, 288
        %s269 = scalar_lea.vmem [#allocation2], %s268
        %p270 = pneg %p57
        %p271 = pneg %p54
        %p272 = pneg %p78
        %p273 = pneg %p75
        %p274 = pneg %p99
        %p275 = pneg %p96
        %p276 = pneg %p125
        %p277 = pneg %p122
        %s278 = sand.u32 %s112, 1
        %s279 = sand.u32 %s112, 1
        %s280 = smul.addr %s279, 64
        %s281 = scalar_lea.vmem [#allocation3], %s280
        %s282 = smul.u32 4, %s15
        %s283 = smul.u32 4, %s15
        %v285 = vld [vmem:[%s0] sm:$0xff]
        %v286 = vld [vmem:[%s0 + $0x8] sm:$0xff]
        %v287 = vld [vmem:[%s0 + $0x10] sm:$0xff]
        %v288 = vld [vmem:[%s0 + $0x18] sm:$0xff]
        %v289 = vld [vmem:[%s260] sm:$0xff]
        %v290 = vld [vmem:[%s260 + $0x8] sm:$0xff]
        %v291 = vld [vmem:[%s260 + $0x10] sm:$0xff]
        %v292 = vld [vmem:[%s260 + $0x18] sm:$0xff]
        %v293 = vld [vmem:[%s260 + $0x20] sm:$0xff]
        %v294 = vld [vmem:[%s260 + $0x28] sm:$0xff]
        %v295 = vld [vmem:[%s260 + $0x30] sm:$0xff]
        %v296 = vld [vmem:[%s260 + $0x38] sm:$0xff]
        %v297 = vld [vmem:[%s260 + $0x40] sm:$0xff]
        %v298 = vld [vmem:[%s260 + $0x48] sm:$0xff]
        %v299 = vld [vmem:[%s260 + $0x50] sm:$0xff]
        %v300 = vld [vmem:[%s260 + $0x58] sm:$0xff]
        %v301 = vld [vmem:[%s260 + $0x60] sm:$0xff]
        %v302 = vld [vmem:[%s260 + $0x68] sm:$0xff]
        %v303 = vld [vmem:[%s260 + $0x70] sm:$0xff]
        %v304 = vld [vmem:[%s260 + $0x78] sm:$0xff]
        %v305 = vld [vmem:[%s260 + $0x80] sm:$0xff]
        %v306 = vld [vmem:[%s260 + $0x88] sm:$0xff]
        %v307 = vld [vmem:[%s260 + $0x90] sm:$0xff]
        %v308 = vld [vmem:[%s260 + $0x98] sm:$0xff]
        %v309 = vld [vmem:[%s260 + $0xa0] sm:$0xff]
        %v310 = vld [vmem:[%s260 + $0xa8] sm:$0xff]
        %v311 = vld [vmem:[%s260 + $0xb0] sm:$0xff]
        %v312 = vld [vmem:[%s260 + $0xb8] sm:$0xff]
        %v313 = vld [vmem:[%s260 + $0xc0] sm:$0xff]
        %v314 = vld [vmem:[%s260 + $0xc8] sm:$0xff]
        %v315 = vld [vmem:[%s260 + $0xd0] sm:$0xff]
        %v316 = vld [vmem:[%s260 + $0xd8] sm:$0xff]
        %v317 = vld [vmem:[%s260 + $0xe0] sm:$0xff]
        %v318 = vld [vmem:[%s260 + $0xe8] sm:$0xff]
        %v319 = vld [vmem:[%s260 + $0xf0] sm:$0xff]
        %v320 = vld [vmem:[%s260 + $0xf8] sm:$0xff]
        %v321 = vld [vmem:[%s260 + $0x100] sm:$0xff]
        %v322 = vld [vmem:[%s260 + $0x108] sm:$0xff]
        %v323 = vld [vmem:[%s260 + $0x110] sm:$0xff]
        %v324 = vld [vmem:[%s260 + $0x118] sm:$0xff]
        %v329 = vunpack.c.l.b16 %v285
        %v330 = vunpack.c.h.b16 %v285
        %v331 = vunpack.c.l.b16 %v286
        %v332 = vunpack.c.h.b16 %v286
        %v333 = vunpack.c.l.b16 %v287
        %v334 = vunpack.c.h.b16 %v287
        %v335 = vunpack.c.l.b16 %v288
        %v336 = vunpack.c.h.b16 %v288
        %v337 = vpack.c.b16 %v331, %v329
        %v338 = vpack.c.b16 %v332, %v330
        %v339 = vpack.c.b16 %v335, %v333
        %v340 = vpack.c.b16 %v336, %v334
        %v379 = vunpack.c.l.b16 %v289
        %v380 = vunpack.c.h.b16 %v289
        %v381 = vunpack.c.l.b16 %v290
        %v382 = vunpack.c.h.b16 %v290
        %v383 = vunpack.c.l.b16 %v291
        %v384 = vunpack.c.h.b16 %v291
        %v385 = vunpack.c.l.b16 %v292
        %v386 = vunpack.c.h.b16 %v292
        %v387 = vunpack.c.l.b16 %v293
        %v388 = vunpack.c.h.b16 %v293
        %v389 = vunpack.c.l.b16 %v294
        %v390 = vunpack.c.h.b16 %v294
        %v391 = vunpack.c.l.b16 %v295
        %v392 = vunpack.c.h.b16 %v295
        %v393 = vunpack.c.l.b16 %v296
        %v394 = vunpack.c.h.b16 %v296
        %v395 = vunpack.c.l.b16 %v297
        %v396 = vunpack.c.h.b16 %v297
        %v397 = vunpack.c.l.b16 %v298
        %v398 = vunpack.c.h.b16 %v298
        %v399 = vunpack.c.l.b16 %v299
        %v400 = vunpack.c.h.b16 %v299
        %v401 = vunpack.c.l.b16 %v300
        %v402 = vunpack.c.h.b16 %v300
        %v403 = vunpack.c.l.b16 %v301
        %v404 = vunpack.c.h.b16 %v301
        %v405 = vunpack.c.l.b16 %v302
        %v406 = vunpack.c.h.b16 %v302
        %v407 = vunpack.c.l.b16 %v303
        %v408 = vunpack.c.h.b16 %v303
        %v409 = vunpack.c.l.b16 %v304
        %v410 = vunpack.c.h.b16 %v304
        %v411 = vunpack.c.l.b16 %v305
        %v412 = vunpack.c.h.b16 %v305
        %v413 = vunpack.c.l.b16 %v306
        %v414 = vunpack.c.h.b16 %v306
        %v415 = vunpack.c.l.b16 %v307
        %v416 = vunpack.c.h.b16 %v307
        %v417 = vunpack.c.l.b16 %v308
        %v418 = vunpack.c.h.b16 %v308
        %v419 = vunpack.c.l.b16 %v309
        %v420 = vunpack.c.h.b16 %v309
        %v421 = vunpack.c.l.b16 %v310
        %v422 = vunpack.c.h.b16 %v310
        %v423 = vunpack.c.l.b16 %v311
        %v424 = vunpack.c.h.b16 %v311
        %v425 = vunpack.c.l.b16 %v312
        %v426 = vunpack.c.h.b16 %v312
        %v427 = vunpack.c.l.b16 %v313
        %v428 = vunpack.c.h.b16 %v313
        %v429 = vunpack.c.l.b16 %v314
        %v430 = vunpack.c.h.b16 %v314
        %v431 = vunpack.c.l.b16 %v315
        %v432 = vunpack.c.h.b16 %v315
        %v433 = vunpack.c.l.b16 %v316
        %v434 = vunpack.c.h.b16 %v316
        %v435 = vunpack.c.l.b16 %v317
        %v436 = vunpack.c.h.b16 %v317
        %v437 = vunpack.c.l.b16 %v318
        %v438 = vunpack.c.h.b16 %v318
        %v439 = vunpack.c.l.b16 %v319
        %v440 = vunpack.c.h.b16 %v319
        %v441 = vunpack.c.l.b16 %v320
        %v442 = vunpack.c.h.b16 %v320
        %v443 = vunpack.c.l.b16 %v321
        %v444 = vunpack.c.h.b16 %v321
        %v445 = vunpack.c.l.b16 %v322
        %v446 = vunpack.c.h.b16 %v322
        %v447 = vunpack.c.l.b16 %v323
        %v448 = vunpack.c.h.b16 %v323
        %v449 = vunpack.c.l.b16 %v324
        %v450 = vunpack.c.h.b16 %v324
        %v451 = vpack.c.b16 %v383, %v379
        %v452 = vpack.c.b16 %v384, %v380
        %v453 = vpack.c.b16 %v385, %v381
        %v454 = vpack.c.b16 %v386, %v382
        %v455 = vpack.c.b16 %v391, %v387
        %v456 = vpack.c.b16 %v392, %v388
        %v457 = vpack.c.b16 %v393, %v389
        %v458 = vpack.c.b16 %v394, %v390
        %v459 = vpack.c.b16 %v399, %v395
        %v460 = vpack.c.b16 %v400, %v396
        %v461 = vpack.c.b16 %v401, %v397
        %v462 = vpack.c.b16 %v402, %v398
        %v463 = vpack.c.b16 %v407, %v403
        %v464 = vpack.c.b16 %v408, %v404
        %v465 = vpack.c.b16 %v409, %v405
        %v466 = vpack.c.b16 %v410, %v406
        %v467 = vpack.c.b16 %v415, %v411
        %v468 = vpack.c.b16 %v416, %v412
        %v469 = vpack.c.b16 %v417, %v413
        %v470 = vpack.c.b16 %v418, %v414
        %v471 = vpack.c.b16 %v423, %v419
        %v472 = vpack.c.b16 %v424, %v420
        %v473 = vpack.c.b16 %v425, %v421
        %v474 = vpack.c.b16 %v426, %v422
        %v475 = vpack.c.b16 %v431, %v427
        %v476 = vpack.c.b16 %v432, %v428
        %v477 = vpack.c.b16 %v433, %v429
        %v478 = vpack.c.b16 %v434, %v430
        %v479 = vpack.c.b16 %v439, %v435
        %v480 = vpack.c.b16 %v440, %v436
        %v481 = vpack.c.b16 %v441, %v437
        %v482 = vpack.c.b16 %v442, %v438
        %v483 = vpack.c.b16 %v447, %v443
        %v484 = vpack.c.b16 %v448, %v444
        %v485 = vpack.c.b16 %v449, %v445
        %v486 = vpack.c.b16 %v450, %v446
        %vm523 = vcmask 130048
        %v525 = vsel %vm523, %v338, 0
        %v528 = vsel %vm523, %v340, 0
        %530 = vmatpush.bf16.msra.mxu0 %v479
        %531 = vmatpush.bf16.msra.mxu0 %v475
        %532 = vmatpush.bf16.msra.mxu0 %v471
        %533 = vmatpush.bf16.msra.mxu0 %v467
        %534 = vmatpush.bf16.msra.mxu0 %v463
        %535 = vmatpush.bf16.msra.mxu0 %v459
        %536 = vmatpush.bf16.msra.mxu0 %v455
        %537 = vmatpush.bf16.msra.mxu0 %v451
        %538 = vmatmul.bf16.gmra.mxu0 %v337
        %v539 = vpop.f32.mrf.mxu0
        %v540 = vadd.f32 0.0, %v539
        %v541 = vpop.f32.mrf.mxu0
        %v542 = vadd.f32 0.0, %v541
        %543 = vmatmul.bf16.gmra.mxu0 %v339
        %v544 = vpop.f32.mrf.mxu0
        %v545 = vadd.f32 0.0, %v544
        %v546 = vpop.f32.mrf.mxu0
        %v547 = vadd.f32 0.0, %v546
        %548 = vdwg.mxu0
        %549 = vmatpush.bf16.msra.mxu0 0
        %550 = vmatpush.bf16.msra.mxu0 0
        %551 = vmatpush.bf16.msra.mxu0 0
        %552 = vmatpush.bf16.msra.mxu0 0
        %553 = vmatpush.bf16.msra.mxu0 0
        %554 = vmatpush.bf16.msra.mxu0 0
        %555 = vmatpush.bf16.msra.mxu0 0
        %556 = vmatpush.bf16.msra.mxu0 %v483
        %557 = vmatmul.bf16.gmra.mxu0 %v525
        %v558 = vpop.f32.mrf.mxu0
        %v559 = vadd.f32 %v540, %v558
        %v560 = vpop.f32.mrf.mxu0
        %v561 = vadd.f32 %v542, %v560
        %562 = vmatmul.bf16.gmra.mxu0 %v528
        %v563 = vpop.f32.mrf.mxu0
        %v564 = vadd.f32 %v545, %v563
        %v565 = vpop.f32.mrf.mxu0
        %v566 = vadd.f32 %v547, %v565
        %567 = vdwg.mxu0
        %568 = vmatpush.bf16.msra.mxu0 %v480
        %569 = vmatpush.bf16.msra.mxu0 %v476
        %570 = vmatpush.bf16.msra.mxu0 %v472
        %571 = vmatpush.bf16.msra.mxu0 %v468
        %572 = vmatpush.bf16.msra.mxu0 %v464
        %573 = vmatpush.bf16.msra.mxu0 %v460
        %574 = vmatpush.bf16.msra.mxu0 %v456
        %575 = vmatpush.bf16.msra.mxu0 %v452
        %576 = vmatmul.bf16.gmra.mxu0 %v337
        %v577 = vpop.f32.mrf.mxu0
        %v578 = vadd.f32 0.0, %v577
        %v579 = vpop.f32.mrf.mxu0
        %v580 = vadd.f32 0.0, %v579
        %581 = vmatmul.bf16.gmra.mxu0 %v339
        %v582 = vpop.f32.mrf.mxu0
        %v583 = vadd.f32 0.0, %v582
        %v584 = vpop.f32.mrf.mxu0
        %v585 = vadd.f32 0.0, %v584
        %586 = vdwg.mxu0
        %587 = vmatpush.bf16.msra.mxu0 0
        %588 = vmatpush.bf16.msra.mxu0 0
        %589 = vmatpush.bf16.msra.mxu0 0
        %590 = vmatpush.bf16.msra.mxu0 0
        %591 = vmatpush.bf16.msra.mxu0 0
        %592 = vmatpush.bf16.msra.mxu0 0
        %593 = vmatpush.bf16.msra.mxu0 0
        %594 = vmatpush.bf16.msra.mxu0 %v484
        %595 = vmatmul.bf16.gmra.mxu0 %v525
        %v596 = vpop.f32.mrf.mxu0
        %v597 = vadd.f32 %v578, %v596
        %v598 = vpop.f32.mrf.mxu0
        %v599 = vadd.f32 %v580, %v598
        %600 = vmatmul.bf16.gmra.mxu0 %v528
        %v601 = vpop.f32.mrf.mxu0
        %v602 = vadd.f32 %v583, %v601
        %v603 = vpop.f32.mrf.mxu0
        %v604 = vadd.f32 %v585, %v603
        %605 = vdwg.mxu0
        %606 = vmatpush.bf16.msra.mxu0 %v481
        %607 = vmatpush.bf16.msra.mxu0 %v477
        %608 = vmatpush.bf16.msra.mxu0 %v473
        %609 = vmatpush.bf16.msra.mxu0 %v469
        %610 = vmatpush.bf16.msra.mxu0 %v465
        %611 = vmatpush.bf16.msra.mxu0 %v461
        %612 = vmatpush.bf16.msra.mxu0 %v457
        %613 = vmatpush.bf16.msra.mxu0 %v453
        %614 = vmatmul.bf16.gmra.mxu0 %v337
        %v615 = vpop.f32.mrf.mxu0
        %v616 = vadd.f32 0.0, %v615
        %v617 = vpop.f32.mrf.mxu0
        %v618 = vadd.f32 0.0, %v617
        %619 = vmatmul.bf16.gmra.mxu0 %v339
        %v620 = vpop.f32.mrf.mxu0
        %v621 = vadd.f32 0.0, %v620
        %v622 = vpop.f32.mrf.mxu0
        %v623 = vadd.f32 0.0, %v622
        %624 = vdwg.mxu0
        %625 = vmatpush.bf16.msra.mxu0 0
        %626 = vmatpush.bf16.msra.mxu0 0
        %627 = vmatpush.bf16.msra.mxu0 0
        %628 = vmatpush.bf16.msra.mxu0 0
        %629 = vmatpush.bf16.msra.mxu0 0
        %630 = vmatpush.bf16.msra.mxu0 0
        %631 = vmatpush.bf16.msra.mxu0 0
        %632 = vmatpush.bf16.msra.mxu0 %v485
        %633 = vmatmul.bf16.gmra.mxu0 %v525
        %v634 = vpop.f32.mrf.mxu0
        %v635 = vadd.f32 %v616, %v634
        %v636 = vpop.f32.mrf.mxu0
        %v637 = vadd.f32 %v618, %v636
        %638 = vmatmul.bf16.gmra.mxu0 %v528
        %v639 = vpop.f32.mrf.mxu0
        %v640 = vadd.f32 %v621, %v639
        %v641 = vpop.f32.mrf.mxu0
        %v642 = vadd.f32 %v623, %v641
        %643 = vdwg.mxu0
        %644 = vmatpush.bf16.msra.mxu0 %v482
        %645 = vmatpush.bf16.msra.mxu0 %v478
        %646 = vmatpush.bf16.msra.mxu0 %v474
        %647 = vmatpush.bf16.msra.mxu0 %v470
        %648 = vmatpush.bf16.msra.mxu0 %v466
        %649 = vmatpush.bf16.msra.mxu0 %v462
        %650 = vmatpush.bf16.msra.mxu0 %v458
        %651 = vmatpush.bf16.msra.mxu0 %v454
        %652 = vmatmul.bf16.gmra.mxu0 %v337
        %v653 = vpop.f32.mrf.mxu0
        %v654 = vadd.f32 0.0, %v653
        %v655 = vpop.f32.mrf.mxu0
        %v656 = vadd.f32 0.0, %v655
        %657 = vmatmul.bf16.gmra.mxu0 %v339
        %v658 = vpop.f32.mrf.mxu0
        %v659 = vadd.f32 0.0, %v658
        %v660 = vpop.f32.mrf.mxu0
        %v661 = vadd.f32 0.0, %v660
        %662 = vdwg.mxu0
        %663 = vmatpush.bf16.msra.mxu0 0
        %664 = vmatpush.bf16.msra.mxu0 0
        %665 = vmatpush.bf16.msra.mxu0 0
        %666 = vmatpush.bf16.msra.mxu0 0
        %667 = vmatpush.bf16.msra.mxu0 0
        %668 = vmatpush.bf16.msra.mxu0 0
        %669 = vmatpush.bf16.msra.mxu0 0
        %670 = vmatpush.bf16.msra.mxu0 %v486
        %671 = vmatmul.bf16.gmra.mxu0 %v525
        %v672 = vpop.f32.mrf.mxu0
        %v673 = vadd.f32 %v654, %v672
        %v674 = vpop.f32.mrf.mxu0
        %v675 = vadd.f32 %v656, %v674
        %676 = vmatmul.bf16.gmra.mxu0 %v528
        %v677 = vpop.f32.mrf.mxu0
        %v678 = vadd.f32 %v659, %v677
        %v679 = vpop.f32.mrf.mxu0
        %v680 = vadd.f32 %v661, %v679
        %681 = vdwg.mxu0
        %v682 = vld [vmem:[%s2] sm:$0xff]
        %v683 = vld [vmem:[%s2 + $0x8] sm:$0xff]
        %v684 = vld [vmem:[%s2 + $0x10] sm:$0xff]
        %v685 = vld [vmem:[%s2 + $0x18] sm:$0xff]
        %687 = vset.pattern.permute.xlu0 0
        %688 = vperm.xlu0 %687, %v682
        %v689 = vpop.permute.xlu0 %688
        %692 = vset.pattern.permute.xlu0 0
        %693 = vperm.xlu0 %692, %v683
        %v694 = vpop.permute.xlu0 %693
        %697 = vset.pattern.permute.xlu0 0
        %698 = vperm.xlu0 %697, %v684
        %v699 = vpop.permute.xlu0 %698
        %702 = vset.pattern.permute.xlu0 0
        %703 = vperm.xlu0 %702, %v685
        %v704 = vpop.permute.xlu0 %703
        %v706 = vmul.f32 %v559, %v689
        %v707 = vmul.f32 %v597, %v689
        %v708 = vmul.f32 %v635, %v689
        %v709 = vmul.f32 %v673, %v689
        %v710 = vmul.f32 %v561, %v694
        %v711 = vmul.f32 %v599, %v694
        %v712 = vmul.f32 %v637, %v694
        %v713 = vmul.f32 %v675, %v694
        %v714 = vmul.f32 %v564, %v699
        %v715 = vmul.f32 %v602, %v699
        %v716 = vmul.f32 %v640, %v699
        %v717 = vmul.f32 %v678, %v699
        %v718 = vmul.f32 %v566, %v704
        %v719 = vmul.f32 %v604, %v704
        %v720 = vmul.f32 %v642, %v704
        %v721 = vmul.f32 %v680, %v704
        %v722 = vld [vmem:[%s3] sm:$0xff]
        %v723 = vld [vmem:[%s3 + $0x8] sm:$0xff]
        %v724 = vld [vmem:[%s3 + $0x10] sm:$0xff]
        %v725 = vld [vmem:[%s3 + $0x18] sm:$0xff]
        %727 = vset.pattern.permute.xlu0 0
        %728 = vperm.xlu0 %727, %v722
        %v729 = vpop.permute.xlu0 %728
        %732 = vset.pattern.permute.xlu0 0
        %733 = vperm.xlu0 %732, %v723
        %v734 = vpop.permute.xlu0 %733
        %737 = vset.pattern.permute.xlu0 0
        %738 = vperm.xlu0 %737, %v724
        %v739 = vpop.permute.xlu0 %738
        %742 = vset.pattern.permute.xlu0 0
        %743 = vperm.xlu0 %742, %v725
        %v744 = vpop.permute.xlu0 %743
        %v746 = vadd.f32 %v706, %v729
        %v747 = vadd.f32 %v707, %v729
        %v748 = vadd.f32 %v708, %v729
        %v749 = vadd.f32 %v709, %v729
        %v750 = vadd.f32 %v710, %v734
        %v751 = vadd.f32 %v711, %v734
        %v752 = vadd.f32 %v712, %v734
        %v753 = vadd.f32 %v713, %v734
        %v754 = vadd.f32 %v714, %v739
        %v755 = vadd.f32 %v715, %v739
        %v756 = vadd.f32 %v716, %v739
        %v757 = vadd.f32 %v717, %v739
        %v758 = vadd.f32 %v718, %v744
        %v759 = vadd.f32 %v719, %v744
        %v760 = vadd.f32 %v720, %v744
        %v761 = vadd.f32 %v721, %v744
        %v762 = vmax.f32 %v746, 0.0
        %v763 = vmax.f32 %v747, 0.0
        %v764 = vmax.f32 %v748, 0.0
        %v765 = vmax.f32 %v749, 0.0
        %v766 = vmax.f32 %v750, 0.0
        %v767 = vmax.f32 %v751, 0.0
        %v768 = vmax.f32 %v752, 0.0
        %v769 = vmax.f32 %v753, 0.0
        %v770 = vmax.f32 %v754, 0.0
        %v771 = vmax.f32 %v755, 0.0
        %v772 = vmax.f32 %v756, 0.0
        %v773 = vmax.f32 %v757, 0.0
        %v774 = vmax.f32 %v758, 0.0
        %v775 = vmax.f32 %v759, 0.0
        %v776 = vmax.f32 %v760, 0.0
        %v777 = vmax.f32 %v761, 0.0
        %v778 = vpack.c.bf16 %v763, %v762
        %v779 = vpack.c.bf16 %v765, %v764
        %v780 = vpack.c.bf16 %v767, %v766
        %v781 = vpack.c.bf16 %v769, %v768
        %v782 = vpack.c.bf16 %v771, %v770
        %v783 = vpack.c.bf16 %v773, %v772
        %v784 = vpack.c.bf16 %v775, %v774
        %v785 = vpack.c.bf16 %v777, %v776
        %786 = vst [vmem:[%s281] sm:$0xff] %v778
        %787 = vst [vmem:[%s281 + $0x8] sm:$0xff] %v779
        %788 = vst [vmem:[%s281 + $0x10] sm:$0xff] %v780
        %789 = vst [vmem:[%s281 + $0x18] sm:$0xff] %v781
        %790 = vst [vmem:[%s281 + $0x20] sm:$0xff] %v782
        %791 = vst [vmem:[%s281 + $0x28] sm:$0xff] %v783
        %792 = vst [vmem:[%s281 + $0x30] sm:$0xff] %v784
        %793 = vst [vmem:[%s281 + $0x38] sm:$0xff] %v785
        %s794 = sand.u32 %s112, 1
        %s795 = sand.u32 %s112, 1
        %s796 = smul.addr %s795, 64
        %s797 = scalar_lea.vmem [#allocation3], %s796
        // Predicated region
        $region60: #{unet_forward.28} parent=54 // pred_check
          %p798 = pneg %p122
        $region61: #{unet_forward.28} parent=54 // pred_check_branch
          %800 = sbr.rel (%p798) target = $region63
        $region62: #{unet_forward.28} parent=54 // pred_region
          %s801 = smul.u32 4, %s15
          %s802 = smul.addr %s801, 4
          %s803 = scalar_lea.vmem %s4, %s802
          // Predicated region
          $region64: #{unet_forward.28} parent=62 // pred_check
            _
          $region65: #{unet_forward.28} parent=62 // pred_check_branch
            %805 = sbr.rel (0) target = $region67
          $region66: #{unet_forward.28} parent=62 // pred_region
            // Predicated region
            $region68: #{unet_forward.28} parent=66 // pred_check
              _
            $region69: #{unet_forward.28} parent=66 // pred_check_branch
              %807 = sbr.rel (0) target = $region71
            $region70: #{unet_forward.28} parent=66 // pred_region
              loop: start=0, step=1, limit=1
              $region72: #{unet_forward.28} parent=70 // loop_pre_header
                _
              $region73: #{unet_forward.28} parent=70 // loop_header
                %s809 = sphi 0, %s813
                %p810 = scmp.ge.s32.totalorder %s809, 1
                %s814 = sphi %s797, %s797
                %s815 = sphi %s803, %s803
              $region74: #{unet_forward.28} parent=70 // loop_header_branch
                %812 = sbr.rel (%p810) target = $region78
              $region75: #{unet_forward.28} parent=70 // loop_body
                %v816 = vld [vmem:[%s814] sm:$0xff]
                %817 = vst [vmem:[%s815] sm:$0xff] %v816
                %v818 = vld [vmem:[%s814 + $0x8] sm:$0xff]
                %819 = vst [vmem:[%s815 + $0x8] sm:$0xff] %v818
                %v820 = vld [vmem:[%s814 + $0x10] sm:$0xff]
                %821 = vst [vmem:[%s815 + $0x40] sm:$0xff] %v820
                %v822 = vld [vmem:[%s814 + $0x18] sm:$0xff]
                %823 = vst [vmem:[%s815 + $0x48] sm:$0xff] %v822
                %v824 = vld [vmem:[%s814 + $0x20] sm:$0xff]
                %825 = vst [vmem:[%s815 + $0x80] sm:$0xff] %v824
                %v826 = vld [vmem:[%s814 + $0x28] sm:$0xff]
                %827 = vst [vmem:[%s815 + $0x88] sm:$0xff] %v826
                %v828 = vld [vmem:[%s814 + $0x30] sm:$0xff]
                %829 = vst [vmem:[%s815 + $0xc0] sm:$0xff] %v828
                %v830 = vld [vmem:[%s814 + $0x38] sm:$0xff]
                %831 = vst [vmem:[%s815 + $0xc8] sm:$0xff] %v830
              $region76: #{unet_forward.28} parent=70 // loop_footer
                %s813 = sadd.s32 1, %s809
              $region77: #{unet_forward.28} parent=70 // loop_footer_branch
                %808 = sbr.rel target = $region73
              $region78: #{unet_forward.28} parent=70 // loop_exit
                _
            $region71: #{unet_forward.28} parent=66 // pred_fallthru
              _
            // Predicated region
            $region79: #{unet_forward.28} parent=66 // pred_check
              _
            $region80: #{unet_forward.28} parent=66 // pred_check_branch
              %833 = sbr.rel target = $region82
            $region81: #{unet_forward.28} parent=66 // pred_region
              _
            $region82: #{unet_forward.28} parent=66 // pred_fallthru
              _
          $region67: #{unet_forward.28} parent=62 // pred_fallthru
            _
          %834 = vnop
        $region63: #{unet_forward.28} parent=54 // pred_fallthru
          _
      $region55: #{unet_forward.28} parent=5 // pred_fallthru
        _
      %p835 = scmp.le.s32.totalorder 2, %s10
      // Predicated region
      $region83: #{unet_forward.28} parent=5 // pred_check
        %p836 = pneg %p835
      $region84: #{unet_forward.28} parent=5 // pred_check_branch
        %838 = sbr.rel (%p836) target = $region86
      $region85: #{unet_forward.28} parent=5 // pred_region
        %s839 = ssub.s32 %s10, 2
        // Predicated region
        $region87: #{unet_forward.28} parent=85 // pred_check
          %p840 = pneg %p128
        $region88: #{unet_forward.28} parent=85 // pred_check_branch
          %842 = sbr.rel (%p840) target = $region90
        $region89: #{unet_forward.28} parent=85 // pred_region
          %s843 = sand.u32 %s113, 1
          %s844 = sand.u32 %s113, 1
          %s845 = smul.addr %s844, 64
          %s846 = scalar_lea.vmem [#allocation3], %s845
        $region90: #{unet_forward.28} parent=85 // pred_fallthru
          _
      $region86: #{unet_forward.28} parent=5 // pred_fallthru
        _
    $region6: #{unet_forward.28} parent=1 // loop_footer
      %s14 = sadd.s32 1, %s10
    $region7: #{unet_forward.28} parent=1 // loop_footer_branch
      %9 = sbr.rel target = $region3
    $region8: #{unet_forward.28} parent=1 // loop_exit
      _

// kernel: unet_forward.29
$region0: #{unet_forward.29}
  #allocation0 [shape = 'u32[]', space=smem, size = 0x4, offset = 0x4, fixed_abs, tag = 'smem constant byte address 0x4 - core index']
  #allocation1 [shape = 'u32[72,128]{1,0:T(1,128)}', space=vmem, size = 0x9000, scoped, tag = 'internal scratch']
  %s0 = inlined_call_operand.vmem [shape: bf16[8,72], index: 0, kind: input, shape index: {}]
  %s1 = inlined_call_operand.vmem [shape: bf16[72,8192], index: 1, kind: input, shape index: {}]
  %s2 = inlined_call_operand.vmem [shape: f32[8,1], index: 2, kind: input, shape index: {}]
  %s3 = inlined_call_operand.vmem [shape: f32[8,1], index: 3, kind: input, shape index: {}]
  %s4 = inlined_call_operand.vmem [shape: f32[8,8192], index: 4, kind: output, shape index: {}]
  %s5 = sld [smem:[#allocation0]]
  $region72: #{unet_forward.29} parent=0
    _
  %s7 = ssub.s32 1, %s5
  %s8 = scalar_select 0, %s7, %s5
  $region1: #{unet_forward.29} parent=0
    #allocation2 [shape = 'u8[294912]{0}', space=vmem, size = 0x48000, scoped, tag = 'input window, operand 1']
    loop: start=0, step=1, limit=10
    $region2: #{unet_forward.29} parent=1 // loop_pre_header
      _
    $region3: #{unet_forward.29} parent=1 // loop_header
      %s10 = sphi 0, %s14
      %p11 = scmp.ge.s32.totalorder %s10, 10
      %s18 = sphi 0, %s18
      %s20 = sphi 0, %s18
      %s21 = sphi 0, %s20
      %s35 = sphi 0, %s21
      %s41 = sphi 0, %s43
      %s44 = sphi 0, %s41
      %s45 = sphi 0, %s44
      %s61 = sphi 0, %s45
      %s65 = sphi 0, %s65
      %s67 = sphi 0, %s65
      %s68 = sphi 0, %s67
      %s82 = sphi 0, %s68
      %s86 = sphi 0, %s86
      %s88 = sphi 0, %s86
      %s89 = sphi 0, %s88
      %s103 = sphi 0, %s89
      %s109 = sphi 0, %s111
      %s112 = sphi 0, %s109
      %s113 = sphi 0, %s112
      %s129 = sphi 0, %s113
    $region4: #{unet_forward.29} parent=1 // loop_header_branch
      %13 = sbr.rel (%p11) target = $region8
    $region5: #{unet_forward.29} parent=1 // loop_body
      %s15 = ssub.s32 %s10, 1
      %s16 = ssub.s32 %s10, 2
      %s17 = sadd.s32 %s10, 1
      %s19 = sadd.s32 %s18, 1
      %p22 = scmp.eq.s32.totalorder %s10, 7
      %p23 = scmp.ne.s32.totalorder %s18, %s20
      %p24 = scmp.eq.s32.totalorder %s10, 0
      %p25 = por %p23, %p24
      %p26 = scmp.ne.s32.totalorder %s18, %s20
      %p27 = scmp.eq.s32.totalorder %s15, 7
      %p28 = por %p26, %p27
      %p29 = scmp.ne.s32.totalorder %s20, %s21
      %p30 = scmp.eq.s32.totalorder %s15, 0
      %p31 = por %p29, %p30
      %p32 = scmp.ne.s32.totalorder %s20, %s21
      %p33 = scmp.eq.s32.totalorder %s16, 7
      %p34 = por %p32, %p33
      %p36 = scmp.ne.s32.totalorder %s21, %s35
      %p37 = scmp.eq.s32.totalorder %s16, 0
      %p38 = por %p36, %p37
      %s39 = ssub.s32 %s10, %s17
      %p40 = scmp.eq.s32.totalorder %s39, 0
      %s42 = sadd.s32 %s41, 1
      %s43 = scalar_select %p40, %s41, %s42
      %p46 = pneg %p40
      %p47 = scmp.eq.s32.totalorder %s10, 7
      %p48 = por %p46, %p47
      %p49 = scmp.ne.s32.totalorder %s41, %s44
      %p50 = scmp.eq.s32.totalorder %s10, 0
      %p51 = por %p49, %p50
      %p52 = scmp.ne.s32.totalorder %s41, %s44
      %p53 = scmp.eq.s32.totalorder %s15, 7
      %p54 = por %p52, %p53
      %p55 = scmp.ne.s32.totalorder %s44, %s45
      %p56 = scmp.eq.s32.totalorder %s15, 0
      %p57 = por %p55, %p56
      %p58 = scmp.ne.s32.totalorder %s44, %s45
      %p59 = scmp.eq.s32.totalorder %s16, 7
      %p60 = por %p58, %p59
      %p62 = scmp.ne.s32.totalorder %s45, %s61
      %p63 = scmp.eq.s32.totalorder %s16, 0
      %p64 = por %p62, %p63
      %s66 = sadd.s32 %s65, 1
      %p69 = scmp.eq.s32.totalorder %s10, 7
      %p70 = scmp.ne.s32.totalorder %s65, %s67
      %p71 = scmp.eq.s32.totalorder %s10, 0
      %p72 = por %p70, %p71
      %p73 = scmp.ne.s32.totalorder %s65, %s67
      %p74 = scmp.eq.s32.totalorder %s15, 7
      %p75 = por %p73, %p74
      %p76 = scmp.ne.s32.totalorder %s67, %s68
      %p77 = scmp.eq.s32.totalorder %s15, 0
      %p78 = por %p76, %p77
      %p79 = scmp.ne.s32.totalorder %s67, %s68
      %p80 = scmp.eq.s32.totalorder %s16, 7
      %p81 = por %p79, %p80
      %p83 = scmp.ne.s32.totalorder %s68, %s82
      %p84 = scmp.eq.s32.totalorder %s16, 0
      %p85 = por %p83, %p84
      %s87 = sadd.s32 %s86, 1
      %p90 = scmp.eq.s32.totalorder %s10, 7
      %p91 = scmp.ne.s32.totalorder %s86, %s88
      %p92 = scmp.eq.s32.totalorder %s10, 0
      %p93 = por %p91, %p92
      %p94 = scmp.ne.s32.totalorder %s86, %s88
      %p95 = scmp.eq.s32.totalorder %s15, 7
      %p96 = por %p94, %p95
      %p97 = scmp.ne.s32.totalorder %s88, %s89
      %p98 = scmp.eq.s32.totalorder %s15, 0
      %p99 = por %p97, %p98
      %p100 = scmp.ne.s32.totalorder %s88, %s89
      %p101 = scmp.eq.s32.totalorder %s16, 7
      %p102 = por %p100, %p101
      %p104 = scmp.ne.s32.totalorder %s89, %s103
      %p105 = scmp.eq.s32.totalorder %s16, 0
      %p106 = por %p104, %p105
      %s107 = ssub.s32 %s10, %s17
      %p108 = scmp.eq.s32.totalorder %s107, 0
      %s110 = sadd.s32 %s109, 1
      %s111 = scalar_select %p108, %s109, %s110
      %p114 = pneg %p108
      %p115 = scmp.eq.s32.totalorder %s10, 7
      %p116 = por %p114, %p115
      %p117 = scmp.ne.s32.totalorder %s109, %s112
      %p118 = scmp.eq.s32.totalorder %s10, 0
      %p119 = por %p117, %p118
      %p120 = scmp.ne.s32.totalorder %s109, %s112
      %p121 = scmp.eq.s32.totalorder %s15, 7
      %p122 = por %p120, %p121
      %p123 = scmp.ne.s32.totalorder %s112, %s113
      %p124 = scmp.eq.s32.totalorder %s15, 0
      %p125 = por %p123, %p124
      %p126 = scmp.ne.s32.totalorder %s112, %s113
      %p127 = scmp.eq.s32.totalorder %s16, 7
      %p128 = por %p126, %p127
      %p130 = scmp.ne.s32.totalorder %s113, %s129
      %p131 = scmp.eq.s32.totalorder %s16, 0
      %p132 = por %p130, %p131
      %p133 = scmp.le.s32.totalorder 1, %s10
      %p134 = scmp.lt.s32.totalorder %s10, 9
      %p135 = pnand %p133, %p134
      %p136 = pneg %p135
      // Predicated region
      $region9: #{unet_forward.29} parent=5 // pred_check
        _
      $region10: #{unet_forward.29} parent=5 // pred_check_branch
        %138 = sbr.rel (%p135) target = $region12
      $region11: #{unet_forward.29} parent=5 // pred_region
        %s139 = ssub.s32 %s10, 1
        // Predicated region
        $region13: #{unet_forward.29} parent=11 // pred_check
          %p140 = pneg %p31
        $region14: #{unet_forward.29} parent=11 // pred_check_branch
          %142 = sbr.rel (%p140) target = $region16
        $region15: #{unet_forward.29} parent=11 // pred_region
          _
        $region16: #{unet_forward.29} parent=11 // pred_fallthru
          _
        // Predicated region
        $region17: #{unet_forward.29} parent=11 // pred_check
          %p143 = pneg %p78
        $region18: #{unet_forward.29} parent=11 // pred_check_branch
          %145 = sbr.rel (%p143) target = $region20
        $region19: #{unet_forward.29} parent=11 // pred_region
          _
        $region20: #{unet_forward.29} parent=11 // pred_fallthru
          _
        // Predicated region
        $region21: #{unet_forward.29} parent=11 // pred_check
          %p146 = pneg %p99
        $region22: #{unet_forward.29} parent=11 // pred_check_branch
          %148 = sbr.rel (%p146) target = $region24
        $region23: #{unet_forward.29} parent=11 // pred_region
          _
        $region24: #{unet_forward.29} parent=11 // pred_fallthru
          _
      $region12: #{unet_forward.29} parent=5 // pred_fallthru
        _
      %p149 = scmp.lt.s32.totalorder %s10, 8
      // Predicated region
      $region25: #{unet_forward.29} parent=5 // pred_check
        %p150 = pneg %p149
      $region26: #{unet_forward.29} parent=5 // pred_check_branch
        %152 = sbr.rel (%p150) target = $region28
      $region27: #{unet_forward.29} parent=5 // pred_region
        // Predicated region
        $region29: #{unet_forward.29} parent=27 // pred_check
          %p153 = pneg %p51
        $region30: #{unet_forward.29} parent=27 // pred_check_branch
          %155 = sbr.rel (%p153) target = $region32
        $region31: #{unet_forward.29} parent=27 // pred_region
          %s156 = sand.u32 %s41, 1
          %s157 = sand.u32 %s41, 1
          %s158 = smul.addr %s157, 288
          %s159 = scalar_lea.vmem [#allocation2], %s158
          %s160 = smul.u32 8, %s10
          %s161 = smul.addr %s160, 4
          %s162 = scalar_lea.vmem %s1, %s161
          // Predicated region
          $region33: #{unet_forward.29} parent=31 // pred_check
            _
          $region34: #{unet_forward.29} parent=31 // pred_check_branch
            %164 = sbr.rel (0) target = $region36
          $region35: #{unet_forward.29} parent=31 // pred_region
            // Predicated region
            $region37: #{unet_forward.29} parent=35 // pred_check
              _
            $region38: #{unet_forward.29} parent=35 // pred_check_branch
              %166 = sbr.rel (0) target = $region40
            $region39: #{unet_forward.29} parent=35 // pred_region
              loop: start=0, step=1, limit=1
              $region41: #{unet_forward.29} parent=39 // loop_pre_header
                _
              $region42: #{unet_forward.29} parent=39 // loop_header
                %s168 = sphi 0, %s172
                %p169 = scmp.ge.s32.totalorder %s168, 1
                %s173 = sphi %s162, %s162
                %s174 = sphi %s159, %s159
              $region43: #{unet_forward.29} parent=39 // loop_header_branch
                %171 = sbr.rel (%p169) target = $region47
              $region44: #{unet_forward.29} parent=39 // loop_body
                %v175 = vld [vmem:[%s173] sm:$0xff]
                %176 = vst [vmem:[%s174] sm:$0xff] %v175
                %v177 = vld [vmem:[%s173 + $0x8] sm:$0xff]
                %178 = vst [vmem:[%s174 + $0x8] sm:$0xff] %v177
                %v179 = vld [vmem:[%s173 + $0x10] sm:$0xff]
                %180 = vst [vmem:[%s174 + $0x10] sm:$0xff] %v179
                %v181 = vld [vmem:[%s173 + $0x18] sm:$0xff]
                %182 = vst [vmem:[%s174 + $0x18] sm:$0xff] %v181
                %v183 = vld [vmem:[%s173 + $0x100] sm:$0xff]
                %184 = vst [vmem:[%s174 + $0x20] sm:$0xff] %v183
                %v185 = vld [vmem:[%s173 + $0x108] sm:$0xff]
                %186 = vst [vmem:[%s174 + $0x28] sm:$0xff] %v185
                %v187 = vld [vmem:[%s173 + $0x110] sm:$0xff]
                %188 = vst [vmem:[%s174 + $0x30] sm:$0xff] %v187
                %v189 = vld [vmem:[%s173 + $0x118] sm:$0xff]
                %190 = vst [vmem:[%s174 + $0x38] sm:$0xff] %v189
                %v191 = vld [vmem:[%s173 + $0x200] sm:$0xff]
                %192 = vst [vmem:[%s174 + $0x40] sm:$0xff] %v191
                %v193 = vld [vmem:[%s173 + $0x208] sm:$0xff]
                %194 = vst [vmem:[%s174 + $0x48] sm:$0xff] %v193
                %v195 = vld [vmem:[%s173 + $0x210] sm:$0xff]
                %196 = vst [vmem:[%s174 + $0x50] sm:$0xff] %v195
                %v197 = vld [vmem:[%s173 + $0x218] sm:$0xff]
                %198 = vst [vmem:[%s174 + $0x58] sm:$0xff] %v197
                %v199 = vld [vmem:[%s173 + $0x300] sm:$0xff]
                %200 = vst [vmem:[%s174 + $0x60] sm:$0xff] %v199
                %v201 = vld [vmem:[%s173 + $0x308] sm:$0xff]
                %202 = vst [vmem:[%s174 + $0x68] sm:$0xff] %v201
                %v203 = vld [vmem:[%s173 + $0x310] sm:$0xff]
                %204 = vst [vmem:[%s174 + $0x70] sm:$0xff] %v203
                %v205 = vld [vmem:[%s173 + $0x318] sm:$0xff]
                %206 = vst [vmem:[%s174 + $0x78] sm:$0xff] %v205
                %v207 = vld [vmem:[%s173 + $0x400] sm:$0xff]
                %208 = vst [vmem:[%s174 + $0x80] sm:$0xff] %v207
                %v209 = vld [vmem:[%s173 + $0x408] sm:$0xff]
                %210 = vst [vmem:[%s174 + $0x88] sm:$0xff] %v209
                %v211 = vld [vmem:[%s173 + $0x410] sm:$0xff]
                %212 = vst [vmem:[%s174 + $0x90] sm:$0xff] %v211
                %v213 = vld [vmem:[%s173 + $0x418] sm:$0xff]
                %214 = vst [vmem:[%s174 + $0x98] sm:$0xff] %v213
                %v215 = vld [vmem:[%s173 + $0x500] sm:$0xff]
                %216 = vst [vmem:[%s174 + $0xa0] sm:$0xff] %v215
                %v217 = vld [vmem:[%s173 + $0x508] sm:$0xff]
                %218 = vst [vmem:[%s174 + $0xa8] sm:$0xff] %v217
                %v219 = vld [vmem:[%s173 + $0x510] sm:$0xff]
                %220 = vst [vmem:[%s174 + $0xb0] sm:$0xff] %v219
                %v221 = vld [vmem:[%s173 + $0x518] sm:$0xff]
                %222 = vst [vmem:[%s174 + $0xb8] sm:$0xff] %v221
                %v223 = vld [vmem:[%s173 + $0x600] sm:$0xff]
                %224 = vst [vmem:[%s174 + $0xc0] sm:$0xff] %v223
                %v225 = vld [vmem:[%s173 + $0x608] sm:$0xff]
                %226 = vst [vmem:[%s174 + $0xc8] sm:$0xff] %v225
                %v227 = vld [vmem:[%s173 + $0x610] sm:$0xff]
                %228 = vst [vmem:[%s174 + $0xd0] sm:$0xff] %v227
                %v229 = vld [vmem:[%s173 + $0x618] sm:$0xff]
                %230 = vst [vmem:[%s174 + $0xd8] sm:$0xff] %v229
                %v231 = vld [vmem:[%s173 + $0x700] sm:$0xff]
                %232 = vst [vmem:[%s174 + $0xe0] sm:$0xff] %v231
                %v233 = vld [vmem:[%s173 + $0x708] sm:$0xff]
                %234 = vst [vmem:[%s174 + $0xe8] sm:$0xff] %v233
                %v235 = vld [vmem:[%s173 + $0x710] sm:$0xff]
                %236 = vst [vmem:[%s174 + $0xf0] sm:$0xff] %v235
                %v237 = vld [vmem:[%s173 + $0x718] sm:$0xff]
                %238 = vst [vmem:[%s174 + $0xf8] sm:$0xff] %v237
                %v239 = vld [vmem:[%s173 + $0x800] sm:$0xff]
                %240 = vst [vmem:[%s174 + $0x100] sm:$0xff] %v239
                %v241 = vld [vmem:[%s173 + $0x808] sm:$0xff]
                %242 = vst [vmem:[%s174 + $0x108] sm:$0xff] %v241
                %v243 = vld [vmem:[%s173 + $0x810] sm:$0xff]
                %244 = vst [vmem:[%s174 + $0x110] sm:$0xff] %v243
                %v245 = vld [vmem:[%s173 + $0x818] sm:$0xff]
                %246 = vst [vmem:[%s174 + $0x118] sm:$0xff] %v245
              $region45: #{unet_forward.29} parent=39 // loop_footer
                %s172 = sadd.s32 1, %s168
              $region46: #{unet_forward.29} parent=39 // loop_footer_branch
                %167 = sbr.rel target = $region42
              $region47: #{unet_forward.29} parent=39 // loop_exit
                _
            $region40: #{unet_forward.29} parent=35 // pred_fallthru
              _
            // Predicated region
            $region48: #{unet_forward.29} parent=35 // pred_check
              _
            $region49: #{unet_forward.29} parent=35 // pred_check_branch
              %248 = sbr.rel target = $region51
            $region50: #{unet_forward.29} parent=35 // pred_region
              _
            $region51: #{unet_forward.29} parent=35 // pred_fallthru
              _
          $region36: #{unet_forward.29} parent=31 // pred_fallthru
            _
          %249 = vnop
        $region32: #{unet_forward.29} parent=27 // pred_fallthru
          _
      $region28: #{unet_forward.29} parent=5 // pred_fallthru
        _
      %p250 = scmp.le.s32.totalorder 1, %s10
      %p251 = scmp.lt.s32.totalorder %s10, 9
      %p252 = pnand %p250, %p251
      %p253 = pneg %p252
      // Predicated region
      $region52: #{unet_forward.29} parent=5 // pred_check
        _
      $region53: #{unet_forward.29} parent=5 // pred_check_branch
        %255 = sbr.rel (%p252) target = $region55
      $region54: #{unet_forward.29} parent=5 // pred_region
        %s256 = ssub.s32 %s10, 1
        %s257 = sand.u32 %s44, 1
        %s258 = sand.u32 %s44, 1
        %s259 = smul.addr %s258, 288
        %s260 = scalar_lea.vmem [#allocation2], %s259
        // Predicated region
        $region56: #{unet_forward.29} parent=54 // pred_check
          %p261 = pneg %p57
        $region57: #{unet_forward.29} parent=54 // pred_check_branch
          %263 = sbr.rel (%p261) target = $region59
        $region58: #{unet_forward.29} parent=54 // pred_region
          _
        $region59: #{unet_forward.29} parent=54 // pred_fallthru
          _
        %p264 = pneg %p31
        %p265 = pneg %p28
        %s266 = sand.u32 %s44, 1
        %s267 = sand.u32 %s44, 1
        %s268 = smul.addr %s267, 288
        %s269 = scalar_lea.vmem [#allocation2], %s268
        %p270 = pneg %p57
        %p271 = pneg %p54
        %p272 = pneg %p78
        %p273 = pneg %p75
        %p274 = pneg %p99
        %p275 = pneg %p96
        %p276 = pneg %p125
        %p277 = pneg %p122
        %s278 = smul.u32 8, %s15
        %p279 = scmp.lt.s32.totalorder %s278, 63
        %s280 = scalar_select %p279, %s278, 63
        %s281 = smul.addr %s280, 8
        %s282 = scalar_lea.vmem %s4, %s281
        %s283 = smul.u32 8, %s15
        %s284 = smul.u32 8, %s15
        %p285 = scmp.lt.s32.totalorder %s284, 63
        %s286 = scalar_select %p285, %s284, 63
        %s287 = smul.addr %s286, 8
        %s288 = scalar_lea.vmem %s4, %s287
        %s289 = smul.u32 8, %s15
        %v291 = vld [vmem:[%s0] sm:$0xf]
        %v292 = vld [vmem:[%s260] sm:$0xff]
        %v293 = vld [vmem:[%s260 + $0x8] sm:$0xff]
        %v294 = vld [vmem:[%s260 + $0x10] sm:$0xff]
        %v295 = vld [vmem:[%s260 + $0x18] sm:$0xff]
        %v296 = vld [vmem:[%s260 + $0x20] sm:$0xff]
        %v297 = vld [vmem:[%s260 + $0x28] sm:$0xff]
        %v298 = vld [vmem:[%s260 + $0x30] sm:$0xff]
        %v299 = vld [vmem:[%s260 + $0x38] sm:$0xff]
        %v300 = vld [vmem:[%s260 + $0x40] sm:$0xff]
        %v301 = vld [vmem:[%s260 + $0x48] sm:$0xff]
        %v302 = vld [vmem:[%s260 + $0x50] sm:$0xff]
        %v303 = vld [vmem:[%s260 + $0x58] sm:$0xff]
        %v304 = vld [vmem:[%s260 + $0x60] sm:$0xff]
        %v305 = vld [vmem:[%s260 + $0x68] sm:$0xff]
        %v306 = vld [vmem:[%s260 + $0x70] sm:$0xff]
        %v307 = vld [vmem:[%s260 + $0x78] sm:$0xff]
        %v308 = vld [vmem:[%s260 + $0x80] sm:$0xff]
        %v309 = vld [vmem:[%s260 + $0x88] sm:$0xff]
        %v310 = vld [vmem:[%s260 + $0x90] sm:$0xff]
        %v311 = vld [vmem:[%s260 + $0x98] sm:$0xff]
        %v312 = vld [vmem:[%s260 + $0xa0] sm:$0xff]
        %v313 = vld [vmem:[%s260 + $0xa8] sm:$0xff]
        %v314 = vld [vmem:[%s260 + $0xb0] sm:$0xff]
        %v315 = vld [vmem:[%s260 + $0xb8] sm:$0xff]
        %v316 = vld [vmem:[%s260 + $0xc0] sm:$0xff]
        %v317 = vld [vmem:[%s260 + $0xc8] sm:$0xff]
        %v318 = vld [vmem:[%s260 + $0xd0] sm:$0xff]
        %v319 = vld [vmem:[%s260 + $0xd8] sm:$0xff]
        %v320 = vld [vmem:[%s260 + $0xe0] sm:$0xff]
        %v321 = vld [vmem:[%s260 + $0xe8] sm:$0xff]
        %v322 = vld [vmem:[%s260 + $0xf0] sm:$0xff]
        %v323 = vld [vmem:[%s260 + $0xf8] sm:$0xff]
        %v324 = vld [vmem:[%s260 + $0x100] sm:$0xff]
        %v325 = vld [vmem:[%s260 + $0x108] sm:$0xff]
        %v326 = vld [vmem:[%s260 + $0x110] sm:$0xff]
        %v327 = vld [vmem:[%s260 + $0x118] sm:$0xff]
        %v364 = vunpack.c.l.b16 %v292
        %v365 = vunpack.c.h.b16 %v292
        %v366 = vunpack.c.l.b16 %v293
        %v367 = vunpack.c.h.b16 %v293
        %v368 = vunpack.c.l.b16 %v294
        %v369 = vunpack.c.h.b16 %v294
        %v370 = vunpack.c.l.b16 %v295
        %v371 = vunpack.c.h.b16 %v295
        %v372 = vunpack.c.l.b16 %v296
        %v373 = vunpack.c.h.b16 %v296
        %v374 = vunpack.c.l.b16 %v297
        %v375 = vunpack.c.h.b16 %v297
        %v376 = vunpack.c.l.b16 %v298
        %v377 = vunpack.c.h.b16 %v298
        %v378 = vunpack.c.l.b16 %v299
        %v379 = vunpack.c.h.b16 %v299
        %v380 = vunpack.c.l.b16 %v300
        %v381 = vunpack.c.h.b16 %v300
        %v382 = vunpack.c.l.b16 %v301
        %v383 = vunpack.c.h.b16 %v301
        %v384 = vunpack.c.l.b16 %v302
        %v385 = vunpack.c.h.b16 %v302
        %v386 = vunpack.c.l.b16 %v303
        %v387 = vunpack.c.h.b16 %v303
        %v388 = vunpack.c.l.b16 %v304
        %v389 = vunpack.c.h.b16 %v304
        %v390 = vunpack.c.l.b16 %v305
        %v391 = vunpack.c.h.b16 %v305
        %v392 = vunpack.c.l.b16 %v306
        %v393 = vunpack.c.h.b16 %v306
        %v394 = vunpack.c.l.b16 %v307
        %v395 = vunpack.c.h.b16 %v307
        %v396 = vunpack.c.l.b16 %v308
        %v397 = vunpack.c.h.b16 %v308
        %v398 = vunpack.c.l.b16 %v309
        %v399 = vunpack.c.h.b16 %v309
        %v400 = vunpack.c.l.b16 %v310
        %v401 = vunpack.c.h.b16 %v310
        %v402 = vunpack.c.l.b16 %v311
        %v403 = vunpack.c.h.b16 %v311
        %v404 = vunpack.c.l.b16 %v312
        %v405 = vunpack.c.h.b16 %v312
        %v406 = vunpack.c.l.b16 %v313
        %v407 = vunpack.c.h.b16 %v313
        %v408 = vunpack.c.l.b16 %v314
        %v409 = vunpack.c.h.b16 %v314
        %v410 = vunpack.c.l.b16 %v315
        %v411 = vunpack.c.h.b16 %v315
        %v412 = vunpack.c.l.b16 %v316
        %v413 = vunpack.c.h.b16 %v316
        %v414 = vunpack.c.l.b16 %v317
        %v415 = vunpack.c.h.b16 %v317
        %v416 = vunpack.c.l.b16 %v318
        %v417 = vunpack.c.h.b16 %v318
        %v418 = vunpack.c.l.b16 %v319
        %v419 = vunpack.c.h.b16 %v319
        %v420 = vunpack.c.l.b16 %v320
        %v421 = vunpack.c.h.b16 %v320
        %v422 = vunpack.c.l.b16 %v321
        %v423 = vunpack.c.h.b16 %v321
        %v424 = vunpack.c.l.b16 %v322
        %v425 = vunpack.c.h.b16 %v322
        %v426 = vunpack.c.l.b16 %v323
        %v427 = vunpack.c.h.b16 %v323
        %v428 = vunpack.c.l.b16 %v324
        %v429 = vunpack.c.h.b16 %v324
        %v430 = vunpack.c.l.b16 %v325
        %v431 = vunpack.c.h.b16 %v325
        %v432 = vunpack.c.l.b16 %v326
        %v433 = vunpack.c.h.b16 %v326
        %v434 = vunpack.c.l.b16 %v327
        %v435 = vunpack.c.h.b16 %v327
        %v436 = vpack.c.b16 %v372, %v364
        %v437 = vpack.c.b16 %v373, %v365
        %v438 = vpack.c.b16 %v374, %v366
        %v439 = vpack.c.b16 %v375, %v367
        %v440 = vpack.c.b16 %v376, %v368
        %v441 = vpack.c.b16 %v377, %v369
        %v442 = vpack.c.b16 %v378, %v370
        %v443 = vpack.c.b16 %v379, %v371
        %v444 = vpack.c.b16 %v388, %v380
        %v445 = vpack.c.b16 %v389, %v381
        %v446 = vpack.c.b16 %v390, %v382
        %v447 = vpack.c.b16 %v391, %v383
        %v448 = vpack.c.b16 %v392, %v384
        %v449 = vpack.c.b16 %v393, %v385
        %v450 = vpack.c.b16 %v394, %v386
        %v451 = vpack.c.b16 %v395, %v387
        %v452 = vpack.c.b16 %v404, %v396
        %v453 = vpack.c.b16 %v405, %v397
        %v454 = vpack.c.b16 %v406, %v398
        %v455 = vpack.c.b16 %v407, %v399
        %v456 = vpack.c.b16 %v408, %v400
        %v457 = vpack.c.b16 %v409, %v401
        %v458 = vpack.c.b16 %v410, %v402
        %v459 = vpack.c.b16 %v411, %v403
        %v460 = vpack.c.b16 %v420, %v412
        %v461 = vpack.c.b16 %v421, %v413
        %v462 = vpack.c.b16 %v422, %v414
        %v463 = vpack.c.b16 %v423, %v415
        %v464 = vpack.c.b16 %v424, %v416
        %v465 = vpack.c.b16 %v425, %v417
        %v466 = vpack.c.b16 %v426, %v418
        %v467 = vpack.c.b16 %v427, %v419
        %v468 = vpack.c.b16 %v428, %v428
        %v469 = vpack.c.b16 %v429, %v429
        %v470 = vpack.c.b16 %v430, %v430
        %v471 = vpack.c.b16 %v431, %v431
        %v472 = vpack.c.b16 %v432, %v432
        %v473 = vpack.c.b16 %v433, %v433
        %v474 = vpack.c.b16 %v434, %v434
        %v475 = vpack.c.b16 %v435, %v435
        %vm508 = vcmask 588800
        %v510 = vsel %vm508, %v291, 0
        %vm512 = vcmask 1043456
        %v514 = vsel %vm512, %v468, 0
        %v517 = vsel %vm512, %v469, 0
        %v520 = vsel %vm512, %v470, 0
        %v523 = vsel %vm512, %v471, 0
        %v526 = vsel %vm512, %v472, 0
        %v529 = vsel %vm512, %v473, 0
        %v532 = vsel %vm512, %v474, 0
        %v535 = vsel %vm512, %v475, 0
        %537 = vmatpush.bf16.msra.mxu0 0
        %538 = vmatpush.bf16.msra.mxu0 0
        %539 = vmatpush.bf16.msra.mxu0 0
        %540 = vmatpush.bf16.msra.mxu0 %v514
        %541 = vmatpush.bf16.msra.mxu0 %v460
        %542 = vmatpush.bf16.msra.mxu0 %v452
        %543 = vmatpush.bf16.msra.mxu0 %v444
        %544 = vmatpush.bf16.msra.mxu0 %v436
        %545 = vmatmul.bf16.gmra.mxu0 %v510
        %v546 = vpop.f32.mrf.mxu0
        %v547 = vadd.f32 0.0, %v546
        %v548 = vpop.f32.mrf.mxu0
        %549 = vdwg.mxu0
        %550 = vmatpush.bf16.msra.mxu0 0
        %551 = vmatpush.bf16.msra.mxu0 0
        %552 = vmatpush.bf16.msra.mxu0 0
        %553 = vmatpush.bf16.msra.mxu0 %v517
        %554 = vmatpush.bf16.msra.mxu0 %v461
        %555 = vmatpush.bf16.msra.mxu0 %v453
        %556 = vmatpush.bf16.msra.mxu0 %v445
        %557 = vmatpush.bf16.msra.mxu0 %v437
        %558 = vmatmul.bf16.gmra.mxu0 %v510
        %v559 = vpop.f32.mrf.mxu0
        %v560 = vadd.f32 0.0, %v559
        %v561 = vpop.f32.mrf.mxu0
        %562 = vdwg.mxu0
        %563 = vmatpush.bf16.msra.mxu0 0
        %564 = vmatpush.bf16.msra.mxu0 0
        %565 = vmatpush.bf16.msra.mxu0 0
        %566 = vmatpush.bf16.msra.mxu0 %v520
        %567 = vmatpush.bf16.msra.mxu0 %v462
        %568 = vmatpush.bf16.msra.mxu0 %v454
        %569 = vmatpush.bf16.msra.mxu0 %v446
        %570 = vmatpush.bf16.msra.mxu0 %v438
        %571 = vmatmul.bf16.gmra.mxu0 %v510
        %v572 = vpop.f32.mrf.mxu0
        %v573 = vadd.f32 0.0, %v572
        %v574 = vpop.f32.mrf.mxu0
        %575 = vdwg.mxu0
        %576 = vmatpush.bf16.msra.mxu0 0
        %577 = vmatpush.bf16.msra.mxu0 0
        %578 = vmatpush.bf16.msra.mxu0 0
        %579 = vmatpush.bf16.msra.mxu0 %v523
        %580 = vmatpush.bf16.msra.mxu0 %v463
        %581 = vmatpush.bf16.msra.mxu0 %v455
        %582 = vmatpush.bf16.msra.mxu0 %v447
        %583 = vmatpush.bf16.msra.mxu0 %v439
        %584 = vmatmul.bf16.gmra.mxu0 %v510
        %v585 = vpop.f32.mrf.mxu0
        %v586 = vadd.f32 0.0, %v585
        %v587 = vpop.f32.mrf.mxu0
        %588 = vdwg.mxu0
        %589 = vmatpush.bf16.msra.mxu0 0
        %590 = vmatpush.bf16.msra.mxu0 0
        %591 = vmatpush.bf16.msra.mxu0 0
        %592 = vmatpush.bf16.msra.mxu0 %v526
        %593 = vmatpush.bf16.msra.mxu0 %v464
        %594 = vmatpush.bf16.msra.mxu0 %v456
        %595 = vmatpush.bf16.msra.mxu0 %v448
        %596 = vmatpush.bf16.msra.mxu0 %v440
        %597 = vmatmul.bf16.gmra.mxu0 %v510
        %v598 = vpop.f32.mrf.mxu0
        %v599 = vadd.f32 0.0, %v598
        %v600 = vpop.f32.mrf.mxu0
        %601 = vdwg.mxu0
        %602 = vmatpush.bf16.msra.mxu0 0
        %603 = vmatpush.bf16.msra.mxu0 0
        %604 = vmatpush.bf16.msra.mxu0 0
        %605 = vmatpush.bf16.msra.mxu0 %v529
        %606 = vmatpush.bf16.msra.mxu0 %v465
        %607 = vmatpush.bf16.msra.mxu0 %v457
        %608 = vmatpush.bf16.msra.mxu0 %v449
        %609 = vmatpush.bf16.msra.mxu0 %v441
        %610 = vmatmul.bf16.gmra.mxu0 %v510
        %v611 = vpop.f32.mrf.mxu0
        %v612 = vadd.f32 0.0, %v611
        %v613 = vpop.f32.mrf.mxu0
        %614 = vdwg.mxu0
        %615 = vmatpush.bf16.msra.mxu0 0
        %616 = vmatpush.bf16.msra.mxu0 0
        %617 = vmatpush.bf16.msra.mxu0 0
        %618 = vmatpush.bf16.msra.mxu0 %v532
        %619 = vmatpush.bf16.msra.mxu0 %v466
        %620 = vmatpush.bf16.msra.mxu0 %v458
        %621 = vmatpush.bf16.msra.mxu0 %v450
        %622 = vmatpush.bf16.msra.mxu0 %v442
        %623 = vmatmul.bf16.gmra.mxu0 %v510
        %v624 = vpop.f32.mrf.mxu0
        %v625 = vadd.f32 0.0, %v624
        %v626 = vpop.f32.mrf.mxu0
        %627 = vdwg.mxu0
        %628 = vmatpush.bf16.msra.mxu0 0
        %629 = vmatpush.bf16.msra.mxu0 0
        %630 = vmatpush.bf16.msra.mxu0 0
        %631 = vmatpush.bf16.msra.mxu0 %v535
        %632 = vmatpush.bf16.msra.mxu0 %v467
        %633 = vmatpush.bf16.msra.mxu0 %v459
        %634 = vmatpush.bf16.msra.mxu0 %v451
        %635 = vmatpush.bf16.msra.mxu0 %v443
        %636 = vmatmul.bf16.gmra.mxu0 %v510
        %v637 = vpop.f32.mrf.mxu0
        %v638 = vadd.f32 0.0, %v637
        %v639 = vpop.f32.mrf.mxu0
        %640 = vdwg.mxu0
        %v641 = vld [vmem:[%s2] sm:$0xff]
        %643 = vset.pattern.permute.xlu0 0
        %644 = vperm.xlu0 %643, %v641
        %v645 = vpop.permute.xlu0 %644
        %v647 = vmul.f32 %v547, %v645
        %v648 = vmul.f32 %v560, %v645
        %v649 = vmul.f32 %v573, %v645
        %v650 = vmul.f32 %v586, %v645
        %v651 = vmul.f32 %v599, %v645
        %v652 = vmul.f32 %v612, %v645
        %v653 = vmul.f32 %v625, %v645
        %v654 = vmul.f32 %v638, %v645
        %v655 = vld [vmem:[%s3] sm:$0xff]
        %657 = vset.pattern.permute.xlu0 0
        %658 = vperm.xlu0 %657, %v655
        %v659 = vpop.permute.xlu0 %658
        %v661 = vadd.f32 %v647, %v659
        %v662 = vadd.f32 %v648, %v659
        %v663 = vadd.f32 %v649, %v659
        %v664 = vadd.f32 %v650, %v659
        %v665 = vadd.f32 %v651, %v659
        %v666 = vadd.f32 %v652, %v659
        %v667 = vadd.f32 %v653, %v659
        %v668 = vadd.f32 %v654, %v659
        %v669 = vmax.f32 %v661, 0.0
        %v670 = vmax.f32 %v662, 0.0
        %v671 = vmax.f32 %v663, 0.0
        %v672 = vmax.f32 %v664, 0.0
        %v673 = vmax.f32 %v665, 0.0
        %v674 = vmax.f32 %v666, 0.0
        %v675 = vmax.f32 %v667, 0.0
        %v676 = vmax.f32 %v668, 0.0
        %677 = vst [vmem:[%s288] sm:$0xff] %v669
        %678 = vst [vmem:[%s288 + $0x8] sm:$0xff] %v670
        %679 = vst [vmem:[%s288 + $0x10] sm:$0xff] %v671
        %680 = vst [vmem:[%s288 + $0x18] sm:$0xff] %v672
        %681 = vst [vmem:[%s288 + $0x20] sm:$0xff] %v673
        %682 = vst [vmem:[%s288 + $0x28] sm:$0xff] %v674
        %683 = vst [vmem:[%s288 + $0x30] sm:$0xff] %v675
        %684 = vst [vmem:[%s288 + $0x38] sm:$0xff] %v676
        %s685 = smul.u32 8, %s15
        %p686 = scmp.lt.s32.totalorder %s685, 63
        %s687 = scalar_select %p686, %s685, 63
        %s688 = smul.addr %s687, 8
        %s689 = scalar_lea.vmem %s4, %s688
        // Predicated region
        $region60: #{unet_forward.29} parent=54 // pred_check
          %p690 = pneg %p122
        $region61: #{unet_forward.29} parent=54 // pred_check_branch
          %692 = sbr.rel (%p690) target = $region63
        $region62: #{unet_forward.29} parent=54 // pred_region
          %s693 = smul.u32 8, %s15
        $region63: #{unet_forward.29} parent=54 // pred_fallthru
          _
      $region55: #{unet_forward.29} parent=5 // pred_fallthru
        _
      %p694 = scmp.le.s32.totalorder 2, %s10
      // Predicated region
      $region64: #{unet_forward.29} parent=5 // pred_check
        %p695 = pneg %p694
      $region65: #{unet_forward.29} parent=5 // pred_check_branch
        %697 = sbr.rel (%p695) target = $region67
      $region66: #{unet_forward.29} parent=5 // pred_region
        %s698 = ssub.s32 %s10, 2
        // Predicated region
        $region68: #{unet_forward.29} parent=66 // pred_check
          %p699 = pneg %p128
        $region69: #{unet_forward.29} parent=66 // pred_check_branch
          %701 = sbr.rel (%p699) target = $region71
        $region70: #{unet_forward.29} parent=66 // pred_region
          %s702 = smul.u32 8, %s16
          %p703 = scmp.lt.s32.totalorder %s702, 63
          %s704 = scalar_select %p703, %s702, 63
          %s705 = smul.addr %s704, 8
          %s706 = scalar_lea.vmem %s4, %s705
        $region71: #{unet_forward.29} parent=66 // pred_fallthru
          _
      $region67: #{unet_forward.29} parent=5 // pred_fallthru
        _
    $region6: #{unet_forward.29} parent=1 // loop_footer
      %s14 = sadd.s32 1, %s10
    $region7: #{unet_forward.29} parent=1 // loop_footer_branch
      %9 = sbr.rel target = $region3
    $region8: #{unet_forward.29} parent=1 // loop_exit
      _

</llo_original>
